<compile_context>
chip_gen: v5e
topology: v5e:2x2
jax: 0.10.0
libtpu: 0.0.40
codegen_flags: <defaults>
</compile_context>

<pallas_src>
import functools

import numpy as np
import jax
import jax.numpy as jnp
from jax.experimental import pallas as pl
from jax.experimental.pallas import tpu as pltpu


# ---------------------------------------------------------------------------
# Fused, window-batched shifted-window-attention kernel
# ---------------------------------------------------------------------------
def _swa_kernel(x_ref, wqkv_ref, bqkv_ref, bm_ref, wout_ref, bout_ref,
                o_ref, ctx_ref, *, bw, n, c, heads, head_dim):
    # ---- QKV projection over the whole window batch: M = bw*n rows --------
    x2d = x_ref[...].reshape(bw * n, c)                            # bf16
    qkv = jnp.dot(x2d, wqkv_ref[...],
                  preferred_element_type=jnp.float32) + bqkv_ref[...]
    qkv = qkv.astype(jnp.bfloat16).reshape(bw, n, 3 * c)           # one cast

    # ---- per-head attention, batched over the bw windows of this step -----
    for h in range(heads):                                         # static
        lo = h * head_dim
        qh = qkv[:, :, lo:lo + head_dim]                           # (bw,n,hd)
        kh = qkv[:, :, c + lo:c + lo + head_dim]
        vh = qkv[:, :, 2 * c + lo:2 * c + lo + head_dim]
        # scale already folded into q columns of Wqkv / bqkv at trace time.
        logits = jax.lax.dot_general(
            qh, kh, (((2,), (2,)), ((0,), (0,))),
            preferred_element_type=jnp.float32)                    # (bw,n,n)
        logits = logits + bm_ref[:, h]                             # bias+mask
        m = jnp.max(logits, axis=-1, keepdims=True)
        e = jnp.exp(logits - m)
        inv = pl.reciprocal(jnp.sum(e, axis=-1, keepdims=True), approx=True)
        probs = (e * inv).astype(jnp.bfloat16)
        ctx_h = jax.lax.dot_general(
            probs, vh, (((2,), (1,)), ((0,), (0,))),
            preferred_element_type=jnp.float32)                    # (bw,n,hd)
        # write head result straight into the VMEM slab at its column offset
        ctx_ref[:, lo:lo + head_dim] = (
            ctx_h.reshape(bw * n, head_dim).astype(jnp.bfloat16))

    # ---- output projection fused in the same kernel ------------------------
    y = jnp.dot(ctx_ref[...], wout_ref[...],
                preferred_element_type=jnp.float32) + bout_ref[...]
    o_ref[...] = y.reshape(bw, n, c).astype(o_ref.dtype)


# ---------------------------------------------------------------------------
# Layout helpers (pure XLA, no compute)
# ---------------------------------------------------------------------------
def _window_partition(x, Wh, Ww):
    # 'b c (r1 h1) (r2 w1) -> (b r1 r2) (h1 w1) c'
    B, C, H, W = x.shape
    r1, r2 = H // Wh, W // Ww
    x = x.reshape(B, C, r1, Wh, r2, Ww)
    x = jnp.transpose(x, (0, 2, 4, 3, 5, 1))        # B, r1, r2, Wh, Ww, C
    return x.reshape(B * r1 * r2, Wh * Ww, C)


def _window_merge(xw, B, C, H, W, Wh, Ww):
    # '(b r1 r2) (h1 w1) c -> b c (r1 h1) (r2 w1)'
    r1, r2 = H // Wh, W // Ww
    x = xw.reshape(B, r1, r2, Wh, Ww, C)
    x = jnp.transpose(x, (0, 5, 1, 3, 2, 4))        # B, C, r1, Wh, r2, Ww
    return x.reshape(B, C, H, W)


def _relative_position_index(Wh, Ww):
    coords = np.stack(np.meshgrid(np.arange(Wh), np.arange(Ww), indexing="ij"))
    coords = coords.reshape(2, -1)                               # (2, N)
    rel = coords[:, :, None] - coords[:, None, :]                # (2, N, N)
    rel = rel.transpose(1, 2, 0).astype(np.int64)                # (N, N, 2)
    rel[..., 0] += Wh - 1
    rel[..., 1] += Ww - 1
    rel[..., 0] *= 2 * Ww - 1
    return rel.sum(-1)                                           # (N, N)


def _relative_position_bias(table, Wh, Ww, heads):
    idx = _relative_position_index(Wh, Ww).reshape(-1)
    bias = jnp.take(table, jnp.asarray(idx, jnp.int32), axis=0)
    return bias.reshape(Wh * Ww, Wh * Ww, heads).transpose(2, 0, 1)  # (h,N,N)


def _shift_attn_mask(H, W, Wh, Ww, shift):
    img_mask = np.zeros((H, W), np.float32)
    h_slices = (slice(0, -Wh), slice(-Wh, -shift), slice(-shift, None))
    w_slices = (slice(0, -Ww), slice(-Ww, -shift), slice(-shift, None))
    cnt = 0
    for hs in h_slices:
        for ws in w_slices:
            img_mask[hs, ws] = cnt
            cnt += 1
    r1, r2 = H // Wh, W // Ww
    mw = img_mask.reshape(r1, Wh, r2, Ww).transpose(0, 2, 1, 3)
    mw = mw.reshape(r1 * r2, Wh * Ww)                            # (nW, N)
    am = mw[:, None, :] - mw[:, :, None]                         # (nW, N, N)
    am = np.where(am != 0, np.float32(-100.0), np.float32(0.0))
    return jnp.asarray(am, jnp.float32)


# ---------------------------------------------------------------------------
# Window-batch / VMEM sizing heuristics
# ---------------------------------------------------------------------------
def _step_bytes(bw, N, C, heads, nblk):
    io = 4 * bw * N * C * 2                                     # dbl-buf in+out (bf16)
    weights = 2 * (C * 3 * C * 2 + 3 * C * 4 + C * C * 2 + C * 4)
    bm = (1 if nblk == 1 else 2) * bw * heads * N * N * 4
    scratch = bw * N * C * 2
    work = 4 * bw * heads * N * N * 4 + bw * N * 3 * C * 6      # logits/exp + qkv slabs
    return io + weights + bm + scratch + work


def _choose_window_batch(nW, N, C, heads):
    # Largest divisor of nW with M = bw*N capped at 512 rows and a per-step
    # footprint that fits comfortably in v7x's 64 MiB VMEM (half of v5e/v6e).
    best = 1
    for bw in range(1, nW + 1):
        if nW % bw == 0 and bw * N <= 512 and \
           _step_bytes(bw, N, C, heads, nW // bw) <= 24 * 2**20:
            best = bw
    return best


def _vmem_limit_bytes(bw, N, C, heads, nblk):
    return int(min(60 * 2**20,
                   max(16 * 2**20, 2 * _step_bytes(bw, N, C, heads, nblk))))


# ---------------------------------------------------------------------------
# Parameters (synthetic, deterministic, f32 masters)
# ---------------------------------------------------------------------------
def init_params(key, dim, heads, window_size):
    Wh, Ww = window_size
    num_rel = (2 * Wh - 1) * (2 * Ww - 1)
    ks = jax.random.split(key, 5)
    s = 0.05
    return {
        # stored (in, out) f32 masters; cast to bf16 for the MXU at trace time
        "wqkv": s * jax.random.normal(ks[0], (dim, 3 * dim), jnp.float32),
        "bqkv": s * jax.random.normal(ks[1], (3 * dim,), jnp.float32),
        "wout": s * jax.random.normal(ks[2], (dim, dim), jnp.float32),
        "bout": s * jax.random.normal(ks[3], (dim,), jnp.float32),
        "rel_bias_table": 0.01 * jax.random.normal(ks[4], (num_rel, heads),
                                                   jnp.float32),
    }


# ---------------------------------------------------------------------------
# Forward pass
# ---------------------------------------------------------------------------
def shift_window_attention(x, params, *, heads, window_size, shift_size,
                           single_buffer_constants=True):
    Wh, Ww = window_size
    B, C, H, W = x.shape
    assert H % Wh == 0 and W % Ww == 0 and C % heads == 0
    assert 0 < shift_size < min(Wh, Ww)
    nW = (H // Wh) * (W // Ww)
    N = Wh * Ww
    head_dim = C // heads
    scale = head_dim ** (-0.5)

    # Fold the softmax scale into the q columns of the QKV projection.
    q_scale = jnp.concatenate([jnp.full((C,), scale, jnp.float32),
                               jnp.ones((2 * C,), jnp.float32)])
    wqkv = (params["wqkv"] * q_scale[None, :]).astype(jnp.bfloat16)
    bqkv = (params["bqkv"] * q_scale).reshape(1, 3 * C)
    wout = params["wout"].astype(jnp.bfloat16)
    bout = params["bout"].reshape(1, C)

    # Relative-position bias + shift mask fused once: (nW, heads, N, N) f32.
    rel_bias = _relative_position_bias(params["rel_bias_table"], Wh, Ww, heads)
    attn_mask = _shift_attn_mask(H, W, Wh, Ww, shift_size)
    bias_mask = attn_mask[:, None, :, :] + rel_bias[None, :, :, :]

    # Cyclic shift + window partition (layout only, left to XLA).
    x_sh = jnp.roll(x, (-shift_size, -shift_size), axis=(2, 3))
    xw = _window_partition(x_sh, Wh, Ww).astype(jnp.bfloat16)     # (G, N, C)
    G = xw.shape[0]

    BW = _choose_window_batch(nW, N, C, heads)                    # BW | nW
    nblk = nW // BW
    grid = (G // BW,)                                             # G = B * nW

    def _resident(shape):
        zeros = lambda g: (0,) * len(shape)
        if single_buffer_constants:
            return pl.BlockSpec(shape, zeros,
                                pipeline_mode=pl.Buffered(buffer_count=1))
        return pl.BlockSpec(shape, zeros)

    # Windows g*BW .. g*BW+BW-1 all belong to one image (BW | nW), and their
    # in-image mask ids are the contiguous range starting at BW*(g % nblk).
    if nblk == 1:
        bm_spec = _resident((BW, heads, N, N))
    else:
        bm_spec = pl.BlockSpec((BW, heads, N, N),
                               lambda g: (g % nblk, 0, 0, 0))

    flops = G * (2 * N * C * 3 * C                      # qkv projection
                 + heads * 2 * (2 * N * N * head_dim)   # qk^T and p@v
                 + 2 * N * C * C)                       # output projection
    bytes_accessed = (xw.size * 2 + G * N * C * 2 + bias_mask.size * 4
                      + wqkv.size * 2 + wout.size * 2
                      + bqkv.size * 4 + bout.size * 4)
    cost = pl.CostEstimate(flops=flops,
                           transcendentals=G * heads * N * N,
                           bytes_accessed=int(bytes_accessed))

    kernel = functools.partial(_swa_kernel, bw=BW, n=N, c=C, heads=heads,
                               head_dim=head_dim)
    out = pl.pallas_call(
        kernel,
        out_shape=jax.ShapeDtypeStruct((G, N, C), jnp.bfloat16),
        grid=grid,
        in_specs=[
            pl.BlockSpec((BW, N, C), lambda g: (g, 0, 0)),   # x windows
            _resident((C, 3 * C)),                           # Wqkv (resident)
            _resident((1, 3 * C)),                           # bqkv
            bm_spec,                                         # bias + shift mask
            _resident((C, C)),                               # Wout (resident)
            _resident((1, C)),                               # bout
        ],
        out_specs=pl.BlockSpec((BW, N, C), lambda g: (g, 0, 0)),
        scratch_shapes=[pltpu.VMEM((BW * N, C), jnp.bfloat16)],   # ctx slab
        compiler_params=pltpu.CompilerParams(
            dimension_semantics=("parallel",),
            vmem_limit_bytes=_vmem_limit_bytes(BW, N, C, heads, nblk)),
        cost_estimate=cost,
    )(xw, wqkv, bqkv, bias_mask, wout, bout)

    # Merge windows and undo the cyclic shift in bf16, cast f32 at the end.
    out = _window_merge(out, B, C, H, W, Wh, Ww)
    out = jnp.roll(out, (shift_size, shift_size), axis=(2, 3))
    return out.astype(jnp.float32)


# ---------------------------------------------------------------------------
# Pure-JAX reference (f32) for a numeric sanity check
# ---------------------------------------------------------------------------
def reference(x, params, *, heads, window_size, shift_size):
    Wh, Ww = window_size
    B, C, H, W = x.shape
    r1, r2 = H // Wh, W // Ww
    nW = r1 * r2
    N = Wh * Ww
    hd = C // heads
    scale = hd ** (-0.5)
    rel_bias = _relative_position_bias(params["rel_bias_table"], Wh, Ww, heads)
    attn_mask = _shift_attn_mask(H, W, Wh, Ww, shift_size)

    x_sh = jnp.roll(x, (-shift_size, -shift_size), axis=(2, 3))
    xw = _window_partition(x_sh, Wh, Ww)                          # (G, N, C)
    G = xw.shape[0]
    qkv = xw @ params["wqkv"] + params["bqkv"]
    q, k, v = jnp.split(qkv, 3, axis=-1)
    split = lambda t: t.reshape(G, N, heads, hd).transpose(0, 2, 1, 3)
    q, k, v = split(q) * scale, split(k), split(v)
    attn = jnp.einsum("ghmc,ghnc->ghmn", q, k) + rel_bias[None]
    attn = attn.reshape(B, nW, heads, N, N) + attn_mask[None, :, None]
    attn = jax.nn.softmax(attn.reshape(G, heads, N, N), axis=-1)
    out = jnp.einsum("ghmn,ghnc->ghmc", attn, v)
    out = out.transpose(0, 2, 1, 3).reshape(G, N, C)
    out = out @ params["wout"] + params["bout"]
    out = _window_merge(out, B, C, H, W, Wh, Ww)
    return jnp.roll(out, (shift_size, shift_size), axis=(2, 3))


# ---------------------------------------------------------------------------
# Main
# ---------------------------------------------------------------------------
if __name__ == "__main__":
    B, C, H, W = 2, 64, 16, 16
    heads = 2
    window_size = (8, 8)
    shift_size = 4

    key = jax.random.PRNGKey(0)
    kp, kx = jax.random.split(key)
    params = init_params(kp, C, heads, window_size)
    x = jax.random.normal(kx, (B, C, H, W), jnp.float32)

    def build(single_buffer):
        return jax.jit(lambda t: shift_window_attention(
            t, params, heads=heads, window_size=window_size,
            shift_size=shift_size, single_buffer_constants=single_buffer))

    try:
        out = build(True)(x)
        jax.block_until_ready(out)
    except Exception:
        # Fallback: this JAX/Mosaic build rejected pl.Buffered(1) on the
        # constant-index operands; rerun with default double-buffering
        # (identical math, slightly larger VMEM footprint).
        out = build(False)(x)
        jax.block_until_ready(out)

    assert out.shape == (B, C, H, W)

    ref = reference(x, params, heads=heads, window_size=window_size,
                    shift_size=shift_size)
    err = float(jnp.max(jnp.abs(out - ref)))
    # bf16 MXU inputs / bf16 writeback vs f32 reference: allow 2e-2 abs.
    assert err < 2e-2, f"max abs error too large: {err}"
    print("KERNEL_OK")
</pallas_src>

<mosaic_0001>
module attributes {stable_mosaic.version = 11 : i64} {
  func.func @_swa_kernel(%arg0: i32, %arg1: memref<4x64x64xbf16, #tpu.memory_space<vmem>>, %arg2: memref<64x192xbf16, #tpu.memory_space<vmem>>, %arg3: memref<1x192xf32, #tpu.memory_space<vmem>>, %arg4: memref<4x2x64x64xf32, #tpu.memory_space<vmem>>, %arg5: memref<64x64xbf16, #tpu.memory_space<vmem>>, %arg6: memref<1x64xf32, #tpu.memory_space<vmem>>, %arg7: memref<4x64x64xbf16, #tpu.memory_space<vmem>>, %arg8: memref<256x64xbf16, #tpu.memory_space<vmem>>) attributes {dimension_semantics = [#tpu.dimension_semantics<parallel>], iteration_bounds = array<i64: 2>, scalar_prefetch = 0 : i64, scratch_operands = 1 : i64, tpu.core_type = #tpu.core_type<tc>, window_params = [{transform_indices = @transform_0, window_bounds = array<i64: 4, 64, 64>}, {pipeline_mode = #tpu.pipeline_mode<synchronous>, transform_indices = @transform_1, window_bounds = array<i64: 64, 192>}, {pipeline_mode = #tpu.pipeline_mode<synchronous>, transform_indices = @transform_2, window_bounds = array<i64: 1, 192>}, {pipeline_mode = #tpu.pipeline_mode<synchronous>, transform_indices = @transform_3, window_bounds = array<i64: 4, 2, 64, 64>}, {pipeline_mode = #tpu.pipeline_mode<synchronous>, transform_indices = @transform_4, window_bounds = array<i64: 64, 64>}, {pipeline_mode = #tpu.pipeline_mode<synchronous>, transform_indices = @transform_5, window_bounds = array<i64: 1, 64>}, {transform_indices = @transform_6, window_bounds = array<i64: 4, 64, 64>}]} {
    %c0 = arith.constant 0 : index
    %c0_0 = arith.constant 0 : index
    %c0_1 = arith.constant 0 : index
    %0 = vector.load %arg1[%c0, %c0_0, %c0_1] : memref<4x64x64xbf16, #tpu.memory_space<vmem>>, vector<4x64x64xbf16>
    %1 = vector.shape_cast %0 : vector<4x64x64xbf16> to vector<256x64xbf16>
    %c0_2 = arith.constant 0 : index
    %c0_3 = arith.constant 0 : index
    %2 = vector.load %arg2[%c0_2, %c0_3] : memref<64x192xbf16, #tpu.memory_space<vmem>>, vector<64x192xbf16>
    %cst = arith.constant dense<0.000000e+00> : vector<256x192xf32>
    %3 = tpu.matmul %1, %2, %cst {dimension_numbers = #tpu.dot_dimension_numbers<[1], [0], [0], [1], [0, 0, 1, 1], [], []>} : vector<256x64xbf16>, vector<64x192xbf16>, vector<256x192xf32> -> vector<256x192xf32>
    %c0_4 = arith.constant 0 : index
    %c0_5 = arith.constant 0 : index
    %4 = vector.load %arg3[%c0_4, %c0_5] : memref<1x192xf32, #tpu.memory_space<vmem>>, vector<1x192xf32>
    %5 = vector.broadcast %4 : vector<1x192xf32> to vector<256x192xf32>
    %6 = arith.addf %3, %5 : vector<256x192xf32>
    %7 = arith.truncf %6 : vector<256x192xf32> to vector<256x192xbf16>
    %8 = vector.shape_cast %7 : vector<256x192xbf16> to vector<4x64x192xbf16>
    %9 = vector.extract_strided_slice %8 {offsets = [0, 0, 0], sizes = [4, 64, 32], strides = [1, 1, 1]} : vector<4x64x192xbf16> to vector<4x64x32xbf16>
    %10 = vector.extract_strided_slice %8 {offsets = [0, 0, 64], sizes = [4, 64, 32], strides = [1, 1, 1]} : vector<4x64x192xbf16> to vector<4x64x32xbf16>
    %11 = vector.extract_strided_slice %8 {offsets = [0, 0, 128], sizes = [4, 64, 32], strides = [1, 1, 1]} : vector<4x64x192xbf16> to vector<4x64x32xbf16>
    %cst_6 = arith.constant dense<0.000000e+00> : vector<4x64x64xf32>
    %12 = tpu.matmul %9, %10, %cst_6 {dimension_numbers = #tpu.dot_dimension_numbers<[2], [2], [1], [1], [0, 0, 0, 1, 1, 1], [0], [0]>} : vector<4x64x32xbf16>, vector<4x64x32xbf16>, vector<4x64x64xf32> -> vector<4x64x64xf32>
    %c0_7 = arith.constant 0 : index
    %c0_8 = arith.constant 0 : index
    %c0_9 = arith.constant 0 : index
    %c0_10 = arith.constant 0 : index
    %13 = vector.load %arg4[%c0_7, %c0_8, %c0_9, %c0_10] : memref<4x2x64x64xf32, #tpu.memory_space<vmem>>, vector<4x1x64x64xf32>
    %14 = vector.shape_cast %13 : vector<4x1x64x64xf32> to vector<4x64x64xf32>
    %15 = arith.addf %12, %14 : vector<4x64x64xf32>
    %cst_11 = arith.constant dense<0xFF800000> : vector<4x64xf32>
    %16 = vector.multi_reduction <maximumf>, %15, %cst_11 [2] : vector<4x64x64xf32> to vector<4x64xf32>
    %17 = vector.shape_cast %16 : vector<4x64xf32> to vector<4x64x1xf32>
    %18 = vector.broadcast %17 : vector<4x64x1xf32> to vector<4x64x64xf32>
    %19 = arith.subf %15, %18 : vector<4x64x64xf32>
    %20 = math.exp %19 : vector<4x64x64xf32>
    %cst_12 = arith.constant dense<0.000000e+00> : vector<4x64xf32>
    %21 = vector.multi_reduction <add>, %20, %cst_12 [2] : vector<4x64x64xf32> to vector<4x64xf32>
    %22 = vector.shape_cast %21 : vector<4x64xf32> to vector<4x64x1xf32>
    %23 = tpu.reciprocal %22 {approx = true} : vector<4x64x1xf32> -> vector<4x64x1xf32>
    %24 = vector.broadcast %23 : vector<4x64x1xf32> to vector<4x64x64xf32>
    %25 = arith.mulf %20, %24 : vector<4x64x64xf32>
    %26 = arith.truncf %25 : vector<4x64x64xf32> to vector<4x64x64xbf16>
    %cst_13 = arith.constant dense<0.000000e+00> : vector<4x64x32xf32>
    %27 = tpu.matmul %26, %11, %cst_13 {dimension_numbers = #tpu.dot_dimension_numbers<[2], [1], [1], [2], [0, 0, 0, 1, 1, 2], [0], [0]>} : vector<4x64x64xbf16>, vector<4x64x32xbf16>, vector<4x64x32xf32> -> vector<4x64x32xf32>
    %28 = vector.shape_cast %27 : vector<4x64x32xf32> to vector<256x32xf32>
    %29 = arith.truncf %28 : vector<256x32xf32> to vector<256x32xbf16>
    %c0_14 = arith.constant 0 : index
    %c0_15 = arith.constant 0 : index
    %30 = vector.load %arg8[%c0_14, %c0_15] : memref<256x64xbf16, #tpu.memory_space<vmem>>, vector<256x32xbf16>
    tpu.vector_store %arg8[%c0_14, %c0_15], %29 {strides = array<i32>} : memref<256x64xbf16, #tpu.memory_space<vmem>>, vector<256x32xbf16>,
    %31 = vector.extract_strided_slice %8 {offsets = [0, 0, 32], sizes = [4, 64, 32], strides = [1, 1, 1]} : vector<4x64x192xbf16> to vector<4x64x32xbf16>
    %32 = vector.extract_strided_slice %8 {offsets = [0, 0, 96], sizes = [4, 64, 32], strides = [1, 1, 1]} : vector<4x64x192xbf16> to vector<4x64x32xbf16>
    %33 = vector.extract_strided_slice %8 {offsets = [0, 0, 160], sizes = [4, 64, 32], strides = [1, 1, 1]} : vector<4x64x192xbf16> to vector<4x64x32xbf16>
    %cst_16 = arith.constant dense<0.000000e+00> : vector<4x64x64xf32>
    %34 = tpu.matmul %31, %32, %cst_16 {dimension_numbers = #tpu.dot_dimension_numbers<[2], [2], [1], [1], [0, 0, 0, 1, 1, 1], [0], [0]>} : vector<4x64x32xbf16>, vector<4x64x32xbf16>, vector<4x64x64xf32> -> vector<4x64x64xf32>
    %c0_17 = arith.constant 0 : index
    %c1 = arith.constant 1 : index
    %c0_18 = arith.constant 0 : index
    %c0_19 = arith.constant 0 : index
    %35 = vector.load %arg4[%c0_17, %c1, %c0_18, %c0_19] : memref<4x2x64x64xf32, #tpu.memory_space<vmem>>, vector<4x1x64x64xf32>
    %36 = vector.shape_cast %35 : vector<4x1x64x64xf32> to vector<4x64x64xf32>
    %37 = arith.addf %34, %36 : vector<4x64x64xf32>
    %cst_20 = arith.constant dense<0xFF800000> : vector<4x64xf32>
    %38 = vector.multi_reduction <maximumf>, %37, %cst_20 [2] : vector<4x64x64xf32> to vector<4x64xf32>
    %39 = vector.shape_cast %38 : vector<4x64xf32> to vector<4x64x1xf32>
    %40 = vector.broadcast %39 : vector<4x64x1xf32> to vector<4x64x64xf32>
    %41 = arith.subf %37, %40 : vector<4x64x64xf32>
    %42 = math.exp %41 : vector<4x64x64xf32>
    %cst_21 = arith.constant dense<0.000000e+00> : vector<4x64xf32>
    %43 = vector.multi_reduction <add>, %42, %cst_21 [2] : vector<4x64x64xf32> to vector<4x64xf32>
    %44 = vector.shape_cast %43 : vector<4x64xf32> to vector<4x64x1xf32>
    %45 = tpu.reciprocal %44 {approx = true} : vector<4x64x1xf32> -> vector<4x64x1xf32>
    %46 = vector.broadcast %45 : vector<4x64x1xf32> to vector<4x64x64xf32>
    %47 = arith.mulf %42, %46 : vector<4x64x64xf32>
    %48 = arith.truncf %47 : vector<4x64x64xf32> to vector<4x64x64xbf16>
    %cst_22 = arith.constant dense<0.000000e+00> : vector<4x64x32xf32>
    %49 = tpu.matmul %48, %33, %cst_22 {dimension_numbers = #tpu.dot_dimension_numbers<[2], [1], [1], [2], [0, 0, 0, 1, 1, 2], [0], [0]>} : vector<4x64x64xbf16>, vector<4x64x32xbf16>, vector<4x64x32xf32> -> vector<4x64x32xf32>
    %50 = vector.shape_cast %49 : vector<4x64x32xf32> to vector<256x32xf32>
    %51 = arith.truncf %50 : vector<256x32xf32> to vector<256x32xbf16>
    %c0_23 = arith.constant 0 : index
    %c32 = arith.constant 32 : index
    %52 = vector.load %arg8[%c0_23, %c32] : memref<256x64xbf16, #tpu.memory_space<vmem>>, vector<256x32xbf16>
    tpu.vector_store %arg8[%c0_23, %c32], %51 {strides = array<i32>} : memref<256x64xbf16, #tpu.memory_space<vmem>>, vector<256x32xbf16>,
    %c0_24 = arith.constant 0 : index
    %c0_25 = arith.constant 0 : index
    %53 = vector.load %arg8[%c0_24, %c0_25] : memref<256x64xbf16, #tpu.memory_space<vmem>>, vector<256x64xbf16>
    %c0_26 = arith.constant 0 : index
    %c0_27 = arith.constant 0 : index
    %54 = vector.load %arg5[%c0_26, %c0_27] : memref<64x64xbf16, #tpu.memory_space<vmem>>, vector<64x64xbf16>
    %cst_28 = arith.constant dense<0.000000e+00> : vector<256x64xf32>
    %55 = tpu.matmul %53, %54, %cst_28 {dimension_numbers = #tpu.dot_dimension_numbers<[1], [0], [0], [1], [0, 0, 1, 1], [], []>} : vector<256x64xbf16>, vector<64x64xbf16>, vector<256x64xf32> -> vector<256x64xf32>
    %c0_29 = arith.constant 0 : index
    %c0_30 = arith.constant 0 : index
    %56 = vector.load %arg6[%c0_29, %c0_30] : memref<1x64xf32, #tpu.memory_space<vmem>>, vector<1x64xf32>
    %57 = vector.broadcast %56 : vector<1x64xf32> to vector<256x64xf32>
    %58 = arith.addf %55, %57 : vector<256x64xf32>
    %59 = vector.shape_cast %58 : vector<256x64xf32> to vector<4x64x64xf32>
    %60 = arith.truncf %59 : vector<4x64x64xf32> to vector<4x64x64xbf16>
    %c0_31 = arith.constant 0 : index
    %c0_32 = arith.constant 0 : index
    %c0_33 = arith.constant 0 : index
    %61 = vector.load %arg7[%c0_31, %c0_32, %c0_33] : memref<4x64x64xbf16, #tpu.memory_space<vmem>>, vector<4x64x64xbf16>
    tpu.vector_store %arg7[%c0_31, %c0_32, %c0_33], %60 {strides = array<i32>} : memref<4x64x64xbf16, #tpu.memory_space<vmem>>, vector<4x64x64xbf16>,
    return
  }
  func.func @transform_0(%arg0: i32) -> (i32, i32, i32) {
    %c0_i32 = arith.constant 0 : i32
    %c0_i32_0 = arith.constant 0 : i32
    %c0_i32_1 = arith.constant 0 : i32
    return %arg0, %c0_i32, %c0_i32_0 : i32, i32, i32
  }
  func.func @transform_1(%arg0: i32) -> (i32, i32) {
    %c0_i32 = arith.constant 0 : i32
    %c0_i32_0 = arith.constant 0 : i32
    %c0_i32_1 = arith.constant 0 : i32
    return %c0_i32, %c0_i32_0 : i32, i32
  }
  func.func @transform_2(%arg0: i32) -> (i32, i32) {
    %c0_i32 = arith.constant 0 : i32
    %c0_i32_0 = arith.constant 0 : i32
    %c0_i32_1 = arith.constant 0 : i32
    return %c0_i32, %c0_i32_0 : i32, i32
  }
  func.func @transform_3(%arg0: i32) -> (i32, i32, i32, i32) {
    %c0_i32 = arith.constant 0 : i32
    %c0_i32_0 = arith.constant 0 : i32
    %c0_i32_1 = arith.constant 0 : i32
    %c0_i32_2 = arith.constant 0 : i32
    %c0_i32_3 = arith.constant 0 : i32
    return %c0_i32, %c0_i32_0, %c0_i32_1, %c0_i32_2 : i32, i32, i32, i32
  }
  func.func @transform_4(%arg0: i32) -> (i32, i32) {
    %c0_i32 = arith.constant 0 : i32
    %c0_i32_0 = arith.constant 0 : i32
    %c0_i32_1 = arith.constant 0 : i32
    return %c0_i32, %c0_i32_0 : i32, i32
  }
  func.func @transform_5(%arg0: i32) -> (i32, i32) {
    %c0_i32 = arith.constant 0 : i32
    %c0_i32_0 = arith.constant 0 : i32
    %c0_i32_1 = arith.constant 0 : i32
    return %c0_i32, %c0_i32_0 : i32, i32
  }
  func.func @transform_6(%arg0: i32) -> (i32, i32, i32) {
    %c0_i32 = arith.constant 0 : i32
    %c0_i32_0 = arith.constant 0 : i32
    %c0_i32_1 = arith.constant 0 : i32
    return %arg0, %c0_i32, %c0_i32_0 : i32, i32, i32
  }
}

module attributes {stable_mosaic.version = 11 : i64} {
  func.func @_swa_kernel(%arg0: i32, %arg1: memref<4x64x64xbf16, #tpu.memory_space<vmem>>, %arg2: memref<64x192xbf16, #tpu.memory_space<vmem>>, %arg3: memref<1x192xf32, #tpu.memory_space<vmem>>, %arg4: memref<4x2x64x64xf32, #tpu.memory_space<vmem>>, %arg5: memref<64x64xbf16, #tpu.memory_space<vmem>>, %arg6: memref<1x64xf32, #tpu.memory_space<vmem>>, %arg7: memref<4x64x64xbf16, #tpu.memory_space<vmem>>, %arg8: memref<256x64xbf16, #tpu.memory_space<vmem>>) attributes {dimension_semantics = [#tpu.dimension_semantics<parallel>], iteration_bounds = array<i64: 2>, scalar_prefetch = 0 : i64, scratch_operands = 1 : i64, tpu.core_type = #tpu.core_type<tc>, window_params = [{transform_indices = @transform_0, window_bounds = array<i64: 4, 64, 64>}, {pipeline_mode = #tpu.pipeline_mode<synchronous>, transform_indices = @transform_1, window_bounds = array<i64: 64, 192>}, {pipeline_mode = #tpu.pipeline_mode<synchronous>, transform_indices = @transform_2, window_bounds = array<i64: 1, 192>}, {pipeline_mode = #tpu.pipeline_mode<synchronous>, transform_indices = @transform_3, window_bounds = array<i64: 4, 2, 64, 64>}, {pipeline_mode = #tpu.pipeline_mode<synchronous>, transform_indices = @transform_4, window_bounds = array<i64: 64, 64>}, {pipeline_mode = #tpu.pipeline_mode<synchronous>, transform_indices = @transform_5, window_bounds = array<i64: 1, 64>}, {transform_indices = @transform_6, window_bounds = array<i64: 4, 64, 64>}]} {
    %c0 = arith.constant 0 : index
    %c0_0 = arith.constant 0 : index
    %c0_1 = arith.constant 0 : index
    %0 = vector.load %arg1[%c0, %c0_0, %c0_1] : memref<4x64x64xbf16, #tpu.memory_space<vmem>>, vector<4x64x64xbf16>
    %1 = vector.shape_cast %0 : vector<4x64x64xbf16> to vector<256x64xbf16>
    %c0_2 = arith.constant 0 : index
    %c0_3 = arith.constant 0 : index
    %2 = vector.load %arg2[%c0_2, %c0_3] : memref<64x192xbf16, #tpu.memory_space<vmem>>, vector<64x192xbf16>
    %cst = arith.constant dense<0.000000e+00> : vector<256x192xf32>
    %3 = tpu.matmul %1, %2, %cst {dimension_numbers = #tpu.dot_dimension_numbers<[1], [0], [0], [1], [0, 0, 1, 1], [], []>} : vector<256x64xbf16>, vector<64x192xbf16>, vector<256x192xf32> -> vector<256x192xf32>
    %c0_4 = arith.constant 0 : index
    %c0_5 = arith.constant 0 : index
    %4 = vector.load %arg3[%c0_4, %c0_5] : memref<1x192xf32, #tpu.memory_space<vmem>>, vector<1x192xf32>
    %5 = vector.broadcast %4 : vector<1x192xf32> to vector<256x192xf32>
    %6 = arith.addf %3, %5 : vector<256x192xf32>
    %7 = arith.truncf %6 : vector<256x192xf32> to vector<256x192xbf16>
    %8 = vector.shape_cast %7 : vector<256x192xbf16> to vector<4x64x192xbf16>
    %9 = vector.extract_strided_slice %8 {offsets = [0, 0, 0], sizes = [4, 64, 32], strides = [1, 1, 1]} : vector<4x64x192xbf16> to vector<4x64x32xbf16>
    %10 = vector.extract_strided_slice %8 {offsets = [0, 0, 64], sizes = [4, 64, 32], strides = [1, 1, 1]} : vector<4x64x192xbf16> to vector<4x64x32xbf16>
    %11 = vector.extract_strided_slice %8 {offsets = [0, 0, 128], sizes = [4, 64, 32], strides = [1, 1, 1]} : vector<4x64x192xbf16> to vector<4x64x32xbf16>
    %cst_6 = arith.constant dense<0.000000e+00> : vector<4x64x64xf32>
    %12 = tpu.matmul %9, %10, %cst_6 {dimension_numbers = #tpu.dot_dimension_numbers<[2], [2], [1], [1], [0, 0, 0, 1, 1, 1], [0], [0]>} : vector<4x64x32xbf16>, vector<4x64x32xbf16>, vector<4x64x64xf32> -> vector<4x64x64xf32>
    %c0_7 = arith.constant 0 : index
    %c0_8 = arith.constant 0 : index
    %c0_9 = arith.constant 0 : index
    %c0_10 = arith.constant 0 : index
    %13 = vector.load %arg4[%c0_7, %c0_8, %c0_9, %c0_10] : memref<4x2x64x64xf32, #tpu.memory_space<vmem>>, vector<4x1x64x64xf32>
    %14 = vector.shape_cast %13 : vector<4x1x64x64xf32> to vector<4x64x64xf32>
    %15 = arith.addf %12, %14 : vector<4x64x64xf32>
    %cst_11 = arith.constant dense<0xFF800000> : vector<4x64xf32>
    %16 = vector.multi_reduction <maximumf>, %15, %cst_11 [2] : vector<4x64x64xf32> to vector<4x64xf32>
    %17 = vector.shape_cast %16 : vector<4x64xf32> to vector<4x64x1xf32>
    %18 = vector.broadcast %17 : vector<4x64x1xf32> to vector<4x64x64xf32>
    %19 = arith.subf %15, %18 : vector<4x64x64xf32>
    %20 = math.exp %19 : vector<4x64x64xf32>
    %cst_12 = arith.constant dense<0.000000e+00> : vector<4x64xf32>
    %21 = vector.multi_reduction <add>, %20, %cst_12 [2] : vector<4x64x64xf32> to vector<4x64xf32>
    %22 = vector.shape_cast %21 : vector<4x64xf32> to vector<4x64x1xf32>
    %23 = tpu.reciprocal %22 {approx = true} : vector<4x64x1xf32> -> vector<4x64x1xf32>
    %24 = vector.broadcast %23 : vector<4x64x1xf32> to vector<4x64x64xf32>
    %25 = arith.mulf %20, %24 : vector<4x64x64xf32>
    %26 = arith.truncf %25 : vector<4x64x64xf32> to vector<4x64x64xbf16>
    %cst_13 = arith.constant dense<0.000000e+00> : vector<4x64x32xf32>
    %27 = tpu.matmul %26, %11, %cst_13 {dimension_numbers = #tpu.dot_dimension_numbers<[2], [1], [1], [2], [0, 0, 0, 1, 1, 2], [0], [0]>} : vector<4x64x64xbf16>, vector<4x64x32xbf16>, vector<4x64x32xf32> -> vector<4x64x32xf32>
    %28 = vector.shape_cast %27 : vector<4x64x32xf32> to vector<256x32xf32>
    %29 = arith.truncf %28 : vector<256x32xf32> to vector<256x32xbf16>
    %c0_14 = arith.constant 0 : index
    %c0_15 = arith.constant 0 : index
    %30 = vector.load %arg8[%c0_14, %c0_15] : memref<256x64xbf16, #tpu.memory_space<vmem>>, vector<256x32xbf16>
    tpu.vector_store %arg8[%c0_14, %c0_15], %29 {strides = array<i32>} : memref<256x64xbf16, #tpu.memory_space<vmem>>, vector<256x32xbf16>,
    %31 = vector.extract_strided_slice %8 {offsets = [0, 0, 32], sizes = [4, 64, 32], strides = [1, 1, 1]} : vector<4x64x192xbf16> to vector<4x64x32xbf16>
    %32 = vector.extract_strided_slice %8 {offsets = [0, 0, 96], sizes = [4, 64, 32], strides = [1, 1, 1]} : vector<4x64x192xbf16> to vector<4x64x32xbf16>
    %33 = vector.extract_strided_slice %8 {offsets = [0, 0, 160], sizes = [4, 64, 32], strides = [1, 1, 1]} : vector<4x64x192xbf16> to vector<4x64x32xbf16>
    %cst_16 = arith.constant dense<0.000000e+00> : vector<4x64x64xf32>
    %34 = tpu.matmul %31, %32, %cst_16 {dimension_numbers = #tpu.dot_dimension_numbers<[2], [2], [1], [1], [0, 0, 0, 1, 1, 1], [0], [0]>} : vector<4x64x32xbf16>, vector<4x64x32xbf16>, vector<4x64x64xf32> -> vector<4x64x64xf32>
    %c0_17 = arith.constant 0 : index
    %c1 = arith.constant 1 : index
    %c0_18 = arith.constant 0 : index
    %c0_19 = arith.constant 0 : index
    %35 = vector.load %arg4[%c0_17, %c1, %c0_18, %c0_19] : memref<4x2x64x64xf32, #tpu.memory_space<vmem>>, vector<4x1x64x64xf32>
    %36 = vector.shape_cast %35 : vector<4x1x64x64xf32> to vector<4x64x64xf32>
    %37 = arith.addf %34, %36 : vector<4x64x64xf32>
    %cst_20 = arith.constant dense<0xFF800000> : vector<4x64xf32>
    %38 = vector.multi_reduction <maximumf>, %37, %cst_20 [2] : vector<4x64x64xf32> to vector<4x64xf32>
    %39 = vector.shape_cast %38 : vector<4x64xf32> to vector<4x64x1xf32>
    %40 = vector.broadcast %39 : vector<4x64x1xf32> to vector<4x64x64xf32>
    %41 = arith.subf %37, %40 : vector<4x64x64xf32>
    %42 = math.exp %41 : vector<4x64x64xf32>
    %cst_21 = arith.constant dense<0.000000e+00> : vector<4x64xf32>
    %43 = vector.multi_reduction <add>, %42, %cst_21 [2] : vector<4x64x64xf32> to vector<4x64xf32>
    %44 = vector.shape_cast %43 : vector<4x64xf32> to vector<4x64x1xf32>
    %45 = tpu.reciprocal %44 {approx = true} : vector<4x64x1xf32> -> vector<4x64x1xf32>
    %46 = vector.broadcast %45 : vector<4x64x1xf32> to vector<4x64x64xf32>
    %47 = arith.mulf %42, %46 : vector<4x64x64xf32>
    %48 = arith.truncf %47 : vector<4x64x64xf32> to vector<4x64x64xbf16>
    %cst_22 = arith.constant dense<0.000000e+00> : vector<4x64x32xf32>
    %49 = tpu.matmul %48, %33, %cst_22 {dimension_numbers = #tpu.dot_dimension_numbers<[2], [1], [1], [2], [0, 0, 0, 1, 1, 2], [0], [0]>} : vector<4x64x64xbf16>, vector<4x64x32xbf16>, vector<4x64x32xf32> -> vector<4x64x32xf32>
    %50 = vector.shape_cast %49 : vector<4x64x32xf32> to vector<256x32xf32>
    %51 = arith.truncf %50 : vector<256x32xf32> to vector<256x32xbf16>
    %c0_23 = arith.constant 0 : index
    %c32 = arith.constant 32 : index
    %52 = vector.load %arg8[%c0_23, %c32] : memref<256x64xbf16, #tpu.memory_space<vmem>>, vector<256x32xbf16>
    tpu.vector_store %arg8[%c0_23, %c32], %51 {strides = array<i32>} : memref<256x64xbf16, #tpu.memory_space<vmem>>, vector<256x32xbf16>,
    %c0_24 = arith.constant 0 : index
    %c0_25 = arith.constant 0 : index
    %53 = vector.load %arg8[%c0_24, %c0_25] : memref<256x64xbf16, #tpu.memory_space<vmem>>, vector<256x64xbf16>
    %c0_26 = arith.constant 0 : index
    %c0_27 = arith.constant 0 : index
    %54 = vector.load %arg5[%c0_26, %c0_27] : memref<64x64xbf16, #tpu.memory_space<vmem>>, vector<64x64xbf16>
    %cst_28 = arith.constant dense<0.000000e+00> : vector<256x64xf32>
    %55 = tpu.matmul %53, %54, %cst_28 {dimension_numbers = #tpu.dot_dimension_numbers<[1], [0], [0], [1], [0, 0, 1, 1], [], []>} : vector<256x64xbf16>, vector<64x64xbf16>, vector<256x64xf32> -> vector<256x64xf32>
    %c0_29 = arith.constant 0 : index
    %c0_30 = arith.constant 0 : index
    %56 = vector.load %arg6[%c0_29, %c0_30] : memref<1x64xf32, #tpu.memory_space<vmem>>, vector<1x64xf32>
    %57 = vector.broadcast %56 : vector<1x64xf32> to vector<256x64xf32>
    %58 = arith.addf %55, %57 : vector<256x64xf32>
    %59 = vector.shape_cast %58 : vector<256x64xf32> to vector<4x64x64xf32>
    %60 = arith.truncf %59 : vector<4x64x64xf32> to vector<4x64x64xbf16>
    %c0_31 = arith.constant 0 : index
    %c0_32 = arith.constant 0 : index
    %c0_33 = arith.constant 0 : index
    %61 = vector.load %arg7[%c0_31, %c0_32, %c0_33] : memref<4x64x64xbf16, #tpu.memory_space<vmem>>, vector<4x64x64xbf16>
    tpu.vector_store %arg7[%c0_31, %c0_32, %c0_33], %60 {strides = array<i32>} : memref<4x64x64xbf16, #tpu.memory_space<vmem>>, vector<4x64x64xbf16>,
    return
  }
  func.func @transform_0(%arg0: i32) -> (i32, i32, i32) {
    %c0_i32 = arith.constant 0 : i32
    %c0_i32_0 = arith.constant 0 : i32
    %c0_i32_1 = arith.constant 0 : i32
    return %arg0, %c0_i32, %c0_i32_0 : i32, i32, i32
  }
  func.func @transform_1(%arg0: i32) -> (i32, i32) {
    %c0_i32 = arith.constant 0 : i32
    %c0_i32_0 = arith.constant 0 : i32
    %c0_i32_1 = arith.constant 0 : i32
    return %c0_i32, %c0_i32_0 : i32, i32
  }
  func.func @transform_2(%arg0: i32) -> (i32, i32) {
    %c0_i32 = arith.constant 0 : i32
    %c0_i32_0 = arith.constant 0 : i32
    %c0_i32_1 = arith.constant 0 : i32
    return %c0_i32, %c0_i32_0 : i32, i32
  }
  func.func @transform_3(%arg0: i32) -> (i32, i32, i32, i32) {
    %c0_i32 = arith.constant 0 : i32
    %c0_i32_0 = arith.constant 0 : i32
    %c0_i32_1 = arith.constant 0 : i32
    %c0_i32_2 = arith.constant 0 : i32
    %c0_i32_3 = arith.constant 0 : i32
    return %c0_i32, %c0_i32_0, %c0_i32_1, %c0_i32_2 : i32, i32, i32, i32
  }
  func.func @transform_4(%arg0: i32) -> (i32, i32) {
    %c0_i32 = arith.constant 0 : i32
    %c0_i32_0 = arith.constant 0 : i32
    %c0_i32_1 = arith.constant 0 : i32
    return %c0_i32, %c0_i32_0 : i32, i32
  }
  func.func @transform_5(%arg0: i32) -> (i32, i32) {
    %c0_i32 = arith.constant 0 : i32
    %c0_i32_0 = arith.constant 0 : i32
    %c0_i32_1 = arith.constant 0 : i32
    return %c0_i32, %c0_i32_0 : i32, i32
  }
  func.func @transform_6(%arg0: i32) -> (i32, i32, i32) {
    %c0_i32 = arith.constant 0 : i32
    %c0_i32_0 = arith.constant 0 : i32
    %c0_i32_1 = arith.constant 0 : i32
    return %arg0, %c0_i32, %c0_i32_0 : i32, i32, i32
  }
}

</mosaic_0001>

<llo_original>
// kernel: _lambda_.1
$region0: #{_lambda_.1}
  #allocation0 [shape = 'u32[]', space=smem, size = 0x4, offset = 0x4, fixed_abs, tag = 'smem constant byte address 0x4 - core index']
  #allocation1 [shape = 'u32[72,128]{1,0:T(1,128)}', space=vmem, size = 0x9000, scoped, tag = 'internal scratch']
  #allocation2 [shape = 'bf16[256,64]{1,0:T(8,128)(2,1)}', space=vmem, size = 0x10000, scoped, tag = 'scratch operand']
  %s0 = inlined_call_operand.vmem [shape: bf16[8,64,64], index: 0, kind: input, shape index: {}]
  %s1 = inlined_call_operand.vmem [shape: bf16[64,192], index: 1, kind: input, shape index: {}]
  %s2 = inlined_call_operand.vmem [shape: f32[1,192], index: 2, kind: input, shape index: {}]
  %s3 = inlined_call_operand.vmem [shape: f32[4,2,64,64], index: 3, kind: input, shape index: {}]
  %s4 = inlined_call_operand.vmem [shape: bf16[64,64], index: 4, kind: input, shape index: {}]
  %s5 = inlined_call_operand.vmem [shape: f32[1,64], index: 5, kind: input, shape index: {}]
  %s6 = inlined_call_operand.vmem [shape: bf16[8,64,64], index: 6, kind: output, shape index: {}]
  %s7 = sld [smem:[#allocation0]]
  $region57: #{_lambda_.1} parent=0
    _
  %s9 = ssub.s32 1, %s7
  %s10 = scalar_select 0, %s9, %s7
  loop: start=0, step=1, limit=4
  $region2: #{_lambda_.1} parent=0 // loop_pre_header
    _
  $region3: #{_lambda_.1} parent=0 // loop_header
    %s12 = sphi 0, %s16
    %p13 = scmp.ge.s32.totalorder %s12, 4
    %s22 = sphi 0, %s24
    %s25 = sphi 0, %s22
    %s26 = sphi 0, %s25
    %s42 = sphi 0, %s26
    %s46 = sphi 0, %s46
    %s48 = sphi 0, %s46
    %s49 = sphi 0, %s48
    %s63 = sphi 0, %s49
    %s67 = sphi 0, %s67
    %s69 = sphi 0, %s67
    %s70 = sphi 0, %s69
    %s84 = sphi 0, %s70
    %s88 = sphi 0, %s88
    %s90 = sphi 0, %s88
    %s91 = sphi 0, %s90
    %s105 = sphi 0, %s91
    %s109 = sphi 0, %s109
    %s111 = sphi 0, %s109
    %s112 = sphi 0, %s111
    %s126 = sphi 0, %s112
    %s130 = sphi 0, %s130
    %s132 = sphi 0, %s130
    %s133 = sphi 0, %s132
    %s147 = sphi 0, %s133
    %s153 = sphi 0, %s155
    %s156 = sphi 0, %s153
    %s157 = sphi 0, %s156
    %s173 = sphi 0, %s157
  $region4: #{_lambda_.1} parent=0 // loop_header_branch
    %15 = sbr.rel (%p13) target = $region8
  $region5: #{_lambda_.1} parent=0 // loop_body
    %s17 = ssub.s32 %s12, 1
    %s18 = ssub.s32 %s12, 2
    %s19 = sadd.s32 %s12, 1
    %s20 = ssub.s32 %s12, %s19
    %p21 = scmp.eq.s32.totalorder %s20, 0
    %s23 = sadd.s32 %s22, 1
    %s24 = scalar_select %p21, %s22, %s23
    %p27 = pneg %p21
    %p28 = scmp.eq.s32.totalorder %s12, 1
    %p29 = por %p27, %p28
    %p30 = scmp.ne.s32.totalorder %s22, %s25
    %p31 = scmp.eq.s32.totalorder %s12, 0
    %p32 = por %p30, %p31
    %p33 = scmp.ne.s32.totalorder %s22, %s25
    %p34 = scmp.eq.s32.totalorder %s17, 1
    %p35 = por %p33, %p34
    %p36 = scmp.ne.s32.totalorder %s25, %s26
    %p37 = scmp.eq.s32.totalorder %s17, 0
    %p38 = por %p36, %p37
    %p39 = scmp.ne.s32.totalorder %s25, %s26
    %p40 = scmp.eq.s32.totalorder %s18, 1
    %p41 = por %p39, %p40
    %p43 = scmp.ne.s32.totalorder %s26, %s42
    %p44 = scmp.eq.s32.totalorder %s18, 0
    %p45 = por %p43, %p44
    %s47 = sadd.s32 %s46, 1
    %p50 = scmp.eq.s32.totalorder %s12, 1
    %p51 = scmp.ne.s32.totalorder %s46, %s48
    %p52 = scmp.eq.s32.totalorder %s12, 0
    %p53 = por %p51, %p52
    %p54 = scmp.ne.s32.totalorder %s46, %s48
    %p55 = scmp.eq.s32.totalorder %s17, 1
    %p56 = por %p54, %p55
    %p57 = scmp.ne.s32.totalorder %s48, %s49
    %p58 = scmp.eq.s32.totalorder %s17, 0
    %p59 = por %p57, %p58
    %p60 = scmp.ne.s32.totalorder %s48, %s49
    %p61 = scmp.eq.s32.totalorder %s18, 1
    %p62 = por %p60, %p61
    %p64 = scmp.ne.s32.totalorder %s49, %s63
    %p65 = scmp.eq.s32.totalorder %s18, 0
    %p66 = por %p64, %p65
    %s68 = sadd.s32 %s67, 1
    %p71 = scmp.eq.s32.totalorder %s12, 1
    %p72 = scmp.ne.s32.totalorder %s67, %s69
    %p73 = scmp.eq.s32.totalorder %s12, 0
    %p74 = por %p72, %p73
    %p75 = scmp.ne.s32.totalorder %s67, %s69
    %p76 = scmp.eq.s32.totalorder %s17, 1
    %p77 = por %p75, %p76
    %p78 = scmp.ne.s32.totalorder %s69, %s70
    %p79 = scmp.eq.s32.totalorder %s17, 0
    %p80 = por %p78, %p79
    %p81 = scmp.ne.s32.totalorder %s69, %s70
    %p82 = scmp.eq.s32.totalorder %s18, 1
    %p83 = por %p81, %p82
    %p85 = scmp.ne.s32.totalorder %s70, %s84
    %p86 = scmp.eq.s32.totalorder %s18, 0
    %p87 = por %p85, %p86
    %s89 = sadd.s32 %s88, 1
    %p92 = scmp.eq.s32.totalorder %s12, 1
    %p93 = scmp.ne.s32.totalorder %s88, %s90
    %p94 = scmp.eq.s32.totalorder %s12, 0
    %p95 = por %p93, %p94
    %p96 = scmp.ne.s32.totalorder %s88, %s90
    %p97 = scmp.eq.s32.totalorder %s17, 1
    %p98 = por %p96, %p97
    %p99 = scmp.ne.s32.totalorder %s90, %s91
    %p100 = scmp.eq.s32.totalorder %s17, 0
    %p101 = por %p99, %p100
    %p102 = scmp.ne.s32.totalorder %s90, %s91
    %p103 = scmp.eq.s32.totalorder %s18, 1
    %p104 = por %p102, %p103
    %p106 = scmp.ne.s32.totalorder %s91, %s105
    %p107 = scmp.eq.s32.totalorder %s18, 0
    %p108 = por %p106, %p107
    %s110 = sadd.s32 %s109, 1
    %p113 = scmp.eq.s32.totalorder %s12, 1
    %p114 = scmp.ne.s32.totalorder %s109, %s111
    %p115 = scmp.eq.s32.totalorder %s12, 0
    %p116 = por %p114, %p115
    %p117 = scmp.ne.s32.totalorder %s109, %s111
    %p118 = scmp.eq.s32.totalorder %s17, 1
    %p119 = por %p117, %p118
    %p120 = scmp.ne.s32.totalorder %s111, %s112
    %p121 = scmp.eq.s32.totalorder %s17, 0
    %p122 = por %p120, %p121
    %p123 = scmp.ne.s32.totalorder %s111, %s112
    %p124 = scmp.eq.s32.totalorder %s18, 1
    %p125 = por %p123, %p124
    %p127 = scmp.ne.s32.totalorder %s112, %s126
    %p128 = scmp.eq.s32.totalorder %s18, 0
    %p129 = por %p127, %p128
    %s131 = sadd.s32 %s130, 1
    %p134 = scmp.eq.s32.totalorder %s12, 1
    %p135 = scmp.ne.s32.totalorder %s130, %s132
    %p136 = scmp.eq.s32.totalorder %s12, 0
    %p137 = por %p135, %p136
    %p138 = scmp.ne.s32.totalorder %s130, %s132
    %p139 = scmp.eq.s32.totalorder %s17, 1
    %p140 = por %p138, %p139
    %p141 = scmp.ne.s32.totalorder %s132, %s133
    %p142 = scmp.eq.s32.totalorder %s17, 0
    %p143 = por %p141, %p142
    %p144 = scmp.ne.s32.totalorder %s132, %s133
    %p145 = scmp.eq.s32.totalorder %s18, 1
    %p146 = por %p144, %p145
    %p148 = scmp.ne.s32.totalorder %s133, %s147
    %p149 = scmp.eq.s32.totalorder %s18, 0
    %p150 = por %p148, %p149
    %s151 = ssub.s32 %s12, %s19
    %p152 = scmp.eq.s32.totalorder %s151, 0
    %s154 = sadd.s32 %s153, 1
    %s155 = scalar_select %p152, %s153, %s154
    %p158 = pneg %p152
    %p159 = scmp.eq.s32.totalorder %s12, 1
    %p160 = por %p158, %p159
    %p161 = scmp.ne.s32.totalorder %s153, %s156
    %p162 = scmp.eq.s32.totalorder %s12, 0
    %p163 = por %p161, %p162
    %p164 = scmp.ne.s32.totalorder %s153, %s156
    %p165 = scmp.eq.s32.totalorder %s17, 1
    %p166 = por %p164, %p165
    %p167 = scmp.ne.s32.totalorder %s156, %s157
    %p168 = scmp.eq.s32.totalorder %s17, 0
    %p169 = por %p167, %p168
    %p170 = scmp.ne.s32.totalorder %s156, %s157
    %p171 = scmp.eq.s32.totalorder %s18, 1
    %p172 = por %p170, %p171
    %p174 = scmp.ne.s32.totalorder %s157, %s173
    %p175 = scmp.eq.s32.totalorder %s18, 0
    %p176 = por %p174, %p175
    %p177 = scmp.le.s32.totalorder 1, %s12
    %p178 = scmp.lt.s32.totalorder %s12, 3
    %p179 = pnand %p177, %p178
    %p180 = pneg %p179
    // Predicated region
    $region9: #{_lambda_.1} parent=5 // pred_check
      _
    $region10: #{_lambda_.1} parent=5 // pred_check_branch
      %182 = sbr.rel (%p179) target = $region12
    $region11: #{_lambda_.1} parent=5 // pred_region
      %s183 = ssub.s32 %s12, 1
      // Predicated region
      $region13: #{_lambda_.1} parent=11 // pred_check
        %p184 = pneg %p59
      $region14: #{_lambda_.1} parent=11 // pred_check_branch
        %186 = sbr.rel (%p184) target = $region16
      $region15: #{_lambda_.1} parent=11 // pred_region
        _
      $region16: #{_lambda_.1} parent=11 // pred_fallthru
        _
      // Predicated region
      $region17: #{_lambda_.1} parent=11 // pred_check
        %p187 = pneg %p80
      $region18: #{_lambda_.1} parent=11 // pred_check_branch
        %189 = sbr.rel (%p187) target = $region20
      $region19: #{_lambda_.1} parent=11 // pred_region
        _
      $region20: #{_lambda_.1} parent=11 // pred_fallthru
        _
      // Predicated region
      $region21: #{_lambda_.1} parent=11 // pred_check
        %p190 = pneg %p101
      $region22: #{_lambda_.1} parent=11 // pred_check_branch
        %192 = sbr.rel (%p190) target = $region24
      $region23: #{_lambda_.1} parent=11 // pred_region
        _
      $region24: #{_lambda_.1} parent=11 // pred_fallthru
        _
      // Predicated region
      $region25: #{_lambda_.1} parent=11 // pred_check
        %p193 = pneg %p122
      $region26: #{_lambda_.1} parent=11 // pred_check_branch
        %195 = sbr.rel (%p193) target = $region28
      $region27: #{_lambda_.1} parent=11 // pred_region
        _
      $region28: #{_lambda_.1} parent=11 // pred_fallthru
        _
      // Predicated region
      $region29: #{_lambda_.1} parent=11 // pred_check
        %p196 = pneg %p143
      $region30: #{_lambda_.1} parent=11 // pred_check_branch
        %198 = sbr.rel (%p196) target = $region32
      $region31: #{_lambda_.1} parent=11 // pred_region
        _
      $region32: #{_lambda_.1} parent=11 // pred_fallthru
        _
    $region12: #{_lambda_.1} parent=5 // pred_fallthru
      _
    %p199 = scmp.lt.s32.totalorder %s12, 2
    // Predicated region
    $region33: #{_lambda_.1} parent=5 // pred_check
      %p200 = pneg %p199
    $region34: #{_lambda_.1} parent=5 // pred_check_branch
      %202 = sbr.rel (%p200) target = $region36
    $region35: #{_lambda_.1} parent=5 // pred_region
      // Predicated region
      $region37: #{_lambda_.1} parent=35 // pred_check
        %p203 = pneg %p32
      $region38: #{_lambda_.1} parent=35 // pred_check_branch
        %205 = sbr.rel (%p203) target = $region40
      $region39: #{_lambda_.1} parent=35 // pred_region
        %s206 = smul.u32 4, %s12
        %p207 = scmp.lt.s32.totalorder %s206, 7
        %s208 = scalar_select %p207, %s206, 7
        %s209 = smul.addr %s208, 8
        %s210 = smul.addr %s209, 4
        %s211 = scalar_lea.vmem %s0, %s210
        %s212 = smul.u32 4, %s12
      $region40: #{_lambda_.1} parent=35 // pred_fallthru
        _
    $region36: #{_lambda_.1} parent=5 // pred_fallthru
      _
    %p213 = scmp.le.s32.totalorder 1, %s12
    %p214 = scmp.lt.s32.totalorder %s12, 3
    %p215 = pnand %p213, %p214
    %p216 = pneg %p215
    // Predicated region
    $region41: #{_lambda_.1} parent=5 // pred_check
      _
    $region42: #{_lambda_.1} parent=5 // pred_check_branch
      %218 = sbr.rel (%p215) target = $region44
    $region43: #{_lambda_.1} parent=5 // pred_region
      %s219 = ssub.s32 %s12, 1
      %s220 = smul.u32 4, %s17
      %p221 = scmp.lt.s32.totalorder %s220, 7
      %s222 = scalar_select %p221, %s220, 7
      %s223 = smul.addr %s222, 8
      %s224 = smul.addr %s223, 4
      %s225 = scalar_lea.vmem %s0, %s224
      %p226 = pneg %p38
      %p227 = pneg %p35
      %p228 = pneg %p59
      %p229 = pneg %p56
      %p230 = pneg %p80
      %p231 = pneg %p77
      %p232 = pneg %p101
      %p233 = pneg %p98
      %p234 = pneg %p122
      %p235 = pneg %p119
      %p236 = pneg %p143
      %p237 = pneg %p140
      %p238 = pneg %p169
      %p239 = pneg %p166
      %s240 = smul.u32 4, %s17
      %p241 = scmp.lt.s32.totalorder %s240, 7
      %s242 = scalar_select %p241, %s240, 7
      %s243 = smul.addr %s242, 8
      %s244 = smul.addr %s243, 4
      %s245 = scalar_lea.vmem %s6, %s244
      %s246 = smul.u32 4, %s17
      %p247 = scmp.lt.s32.totalorder %s246, 7
      %s248 = scalar_select %p247, %s246, 7
      %s249 = smul.addr %s248, 8
      %s250 = smul.addr %s249, 4
      %s251 = scalar_lea.vmem %s0, %s250
      %s252 = smul.u32 4, %s17
      %s253 = smul.u32 4, %s17
      %p254 = scmp.lt.s32.totalorder %s253, 7
      %s255 = scalar_select %p254, %s253, 7
      %s256 = smul.addr %s255, 8
      %s257 = smul.addr %s256, 4
      %s258 = scalar_lea.vmem %s6, %s257
      %s259 = smul.u32 4, %s17
      %v261 = vld [vmem:[%s251] sm:$0xf]
      %v262 = vld [vmem:[%s251 + $0x4] sm:$0xf]
      %v263 = vld [vmem:[%s251 + $0x8] sm:$0xf]
      %v264 = vld [vmem:[%s251 + $0xc] sm:$0xf]
      %v265 = vld [vmem:[%s251 + $0x10] sm:$0xf]
      %v266 = vld [vmem:[%s251 + $0x14] sm:$0xf]
      %v267 = vld [vmem:[%s251 + $0x18] sm:$0xf]
      %v268 = vld [vmem:[%s251 + $0x1c] sm:$0xf]
      %v269 = vld [vmem:[%s251 + $0x20] sm:$0xf]
      %v270 = vld [vmem:[%s251 + $0x24] sm:$0xf]
      %v271 = vld [vmem:[%s251 + $0x28] sm:$0xf]
      %v272 = vld [vmem:[%s251 + $0x2c] sm:$0xf]
      %v273 = vld [vmem:[%s251 + $0x30] sm:$0xf]
      %v274 = vld [vmem:[%s251 + $0x34] sm:$0xf]
      %v275 = vld [vmem:[%s251 + $0x38] sm:$0xf]
      %v276 = vld [vmem:[%s251 + $0x3c] sm:$0xf]
      %v277 = vld [vmem:[%s251 + $0x40] sm:$0xf]
      %v278 = vld [vmem:[%s251 + $0x44] sm:$0xf]
      %v279 = vld [vmem:[%s251 + $0x48] sm:$0xf]
      %v280 = vld [vmem:[%s251 + $0x4c] sm:$0xf]
      %v281 = vld [vmem:[%s251 + $0x50] sm:$0xf]
      %v282 = vld [vmem:[%s251 + $0x54] sm:$0xf]
      %v283 = vld [vmem:[%s251 + $0x58] sm:$0xf]
      %v284 = vld [vmem:[%s251 + $0x5c] sm:$0xf]
      %v285 = vld [vmem:[%s251 + $0x60] sm:$0xf]
      %v286 = vld [vmem:[%s251 + $0x64] sm:$0xf]
      %v287 = vld [vmem:[%s251 + $0x68] sm:$0xf]
      %v288 = vld [vmem:[%s251 + $0x6c] sm:$0xf]
      %v289 = vld [vmem:[%s251 + $0x70] sm:$0xf]
      %v290 = vld [vmem:[%s251 + $0x74] sm:$0xf]
      %v291 = vld [vmem:[%s251 + $0x78] sm:$0xf]
      %v292 = vld [vmem:[%s251 + $0x7c] sm:$0xf]
      %v293 = vld [vmem:[%s1] sm:$0xff]
      %v294 = vld [vmem:[%s1 + $0x8] sm:$0xff]
      %v295 = vld [vmem:[%s1 + $0x10] sm:$0xff]
      %v296 = vld [vmem:[%s1 + $0x18] sm:$0xff]
      %v297 = vld [vmem:[%s1 + $0x20] sm:$0xff]
      %v298 = vld [vmem:[%s1 + $0x28] sm:$0xff]
      %v299 = vld [vmem:[%s1 + $0x30] sm:$0xff]
      %v300 = vld [vmem:[%s1 + $0x38] sm:$0xff]
      %v301 = vld [vmem:[%s2] sm:$0x3]
      %v303 = vperm.slane %v301, 0
      %v304 = vperm.slane %v301, 1
      %v339 = vunpack.c.l.b16 %v261
      %v340 = vunpack.c.l.b16 %v262
      %v341 = vunpack.c.l.b16 %v263
      %v342 = vunpack.c.l.b16 %v264
      %v343 = vunpack.c.l.b16 %v265
      %v344 = vunpack.c.l.b16 %v266
      %v345 = vunpack.c.l.b16 %v267
      %v346 = vunpack.c.l.b16 %v268
      %v347 = vunpack.c.l.b16 %v269
      %v348 = vunpack.c.l.b16 %v270
      %v349 = vunpack.c.l.b16 %v271
      %v350 = vunpack.c.l.b16 %v272
      %v351 = vunpack.c.l.b16 %v273
      %v352 = vunpack.c.l.b16 %v274
      %v353 = vunpack.c.l.b16 %v275
      %v354 = vunpack.c.l.b16 %v276
      %v355 = vunpack.c.l.b16 %v277
      %v356 = vunpack.c.l.b16 %v278
      %v357 = vunpack.c.l.b16 %v279
      %v358 = vunpack.c.l.b16 %v280
      %v359 = vunpack.c.l.b16 %v281
      %v360 = vunpack.c.l.b16 %v282
      %v361 = vunpack.c.l.b16 %v283
      %v362 = vunpack.c.l.b16 %v284
      %v363 = vunpack.c.l.b16 %v285
      %v364 = vunpack.c.l.b16 %v286
      %v365 = vunpack.c.l.b16 %v287
      %v366 = vunpack.c.l.b16 %v288
      %v367 = vunpack.c.l.b16 %v289
      %v368 = vunpack.c.l.b16 %v290
      %v369 = vunpack.c.l.b16 %v291
      %v370 = vunpack.c.l.b16 %v292
      %v371 = vpack.c.b16 %v340, %v339
      %v372 = vpack.c.b16 %v342, %v341
      %v373 = vpack.c.b16 %v344, %v343
      %v374 = vpack.c.b16 %v346, %v345
      %v375 = vpack.c.b16 %v348, %v347
      %v376 = vpack.c.b16 %v350, %v349
      %v377 = vpack.c.b16 %v352, %v351
      %v378 = vpack.c.b16 %v354, %v353
      %v379 = vpack.c.b16 %v356, %v355
      %v380 = vpack.c.b16 %v358, %v357
      %v381 = vpack.c.b16 %v360, %v359
      %v382 = vpack.c.b16 %v362, %v361
      %v383 = vpack.c.b16 %v364, %v363
      %v384 = vpack.c.b16 %v366, %v365
      %v385 = vpack.c.b16 %v368, %v367
      %v386 = vpack.c.b16 %v370, %v369
      %v395 = vunpack.c.l.b16 %v293
      %v396 = vunpack.c.h.b16 %v293
      %v397 = vunpack.c.l.b16 %v294
      %v398 = vunpack.c.h.b16 %v294
      %v399 = vunpack.c.l.b16 %v295
      %v400 = vunpack.c.h.b16 %v295
      %v401 = vunpack.c.l.b16 %v296
      %v402 = vunpack.c.h.b16 %v296
      %v403 = vunpack.c.l.b16 %v297
      %v404 = vunpack.c.h.b16 %v297
      %v405 = vunpack.c.l.b16 %v298
      %v406 = vunpack.c.h.b16 %v298
      %v407 = vunpack.c.l.b16 %v299
      %v408 = vunpack.c.h.b16 %v299
      %v409 = vunpack.c.l.b16 %v300
      %v410 = vunpack.c.h.b16 %v300
      %v411 = vpack.c.b16 %v397, %v395
      %v412 = vpack.c.b16 %v398, %v396
      %v413 = vpack.c.b16 %v401, %v399
      %v414 = vpack.c.b16 %v402, %v400
      %v415 = vpack.c.b16 %v405, %v403
      %v416 = vpack.c.b16 %v406, %v404
      %v417 = vpack.c.b16 %v409, %v407
      %v418 = vpack.c.b16 %v410, %v408
      %vm427 = vcmask 523264
      %v429 = vsel %vm427, %v371, 0
      %v432 = vsel %vm427, %v372, 0
      %v435 = vsel %vm427, %v373, 0
      %v438 = vsel %vm427, %v374, 0
      %v441 = vsel %vm427, %v375, 0
      %v444 = vsel %vm427, %v376, 0
      %v447 = vsel %vm427, %v377, 0
      %v450 = vsel %vm427, %v378, 0
      %v453 = vsel %vm427, %v379, 0
      %v456 = vsel %vm427, %v380, 0
      %v459 = vsel %vm427, %v381, 0
      %v462 = vsel %vm427, %v382, 0
      %v465 = vsel %vm427, %v383, 0
      %v468 = vsel %vm427, %v384, 0
      %v471 = vsel %vm427, %v385, 0
      %v474 = vsel %vm427, %v386, 0
      %476 = vmatpush.bf16.msra.mxu0 0
      %477 = vmatpush.bf16.msra.mxu0 0
      %478 = vmatpush.bf16.msra.mxu0 0
      %479 = vmatpush.bf16.msra.mxu0 0
      %480 = vmatpush.bf16.msra.mxu0 %v417
      %481 = vmatpush.bf16.msra.mxu0 %v415
      %482 = vmatpush.bf16.msra.mxu0 %v413
      %483 = vmatpush.bf16.msra.mxu0 %v411
      %484 = vmatmul.bf16.gmra.mxu0 %v429
      %v485 = vpop.f32.mrf.mxu0
      %v486 = vadd.f32 %v303, %v485
      %v487 = vpop.f32.mrf.mxu0
      %v488 = vadd.f32 %v303, %v487
      %489 = vmatmul.bf16.gmra.mxu0 %v432
      %v490 = vpop.f32.mrf.mxu0
      %v491 = vadd.f32 %v303, %v490
      %v492 = vpop.f32.mrf.mxu0
      %v493 = vadd.f32 %v303, %v492
      %494 = vmatmul.bf16.gmra.mxu0 %v435
      %v495 = vpop.f32.mrf.mxu0
      %v496 = vadd.f32 %v303, %v495
      %v497 = vpop.f32.mrf.mxu0
      %v498 = vadd.f32 %v303, %v497
      %499 = vmatmul.bf16.gmra.mxu0 %v438
      %v500 = vpop.f32.mrf.mxu0
      %v501 = vadd.f32 %v303, %v500
      %v502 = vpop.f32.mrf.mxu0
      %v503 = vadd.f32 %v303, %v502
      %504 = vmatmul.bf16.gmra.mxu0 %v441
      %v505 = vpop.f32.mrf.mxu0
      %v506 = vadd.f32 %v303, %v505
      %v507 = vpop.f32.mrf.mxu0
      %v508 = vadd.f32 %v303, %v507
      %509 = vmatmul.bf16.gmra.mxu0 %v444
      %v510 = vpop.f32.mrf.mxu0
      %v511 = vadd.f32 %v303, %v510
      %v512 = vpop.f32.mrf.mxu0
      %v513 = vadd.f32 %v303, %v512
      %514 = vmatmul.bf16.gmra.mxu0 %v447
      %v515 = vpop.f32.mrf.mxu0
      %v516 = vadd.f32 %v303, %v515
      %v517 = vpop.f32.mrf.mxu0
      %v518 = vadd.f32 %v303, %v517
      %519 = vmatmul.bf16.gmra.mxu0 %v450
      %v520 = vpop.f32.mrf.mxu0
      %v521 = vadd.f32 %v303, %v520
      %v522 = vpop.f32.mrf.mxu0
      %v523 = vadd.f32 %v303, %v522
      %524 = vmatmul.bf16.gmra.mxu0 %v453
      %v525 = vpop.f32.mrf.mxu0
      %v526 = vadd.f32 %v303, %v525
      %v527 = vpop.f32.mrf.mxu0
      %v528 = vadd.f32 %v303, %v527
      %529 = vmatmul.bf16.gmra.mxu0 %v456
      %v530 = vpop.f32.mrf.mxu0
      %v531 = vadd.f32 %v303, %v530
      %v532 = vpop.f32.mrf.mxu0
      %v533 = vadd.f32 %v303, %v532
      %534 = vmatmul.bf16.gmra.mxu0 %v459
      %v535 = vpop.f32.mrf.mxu0
      %v536 = vadd.f32 %v303, %v535
      %v537 = vpop.f32.mrf.mxu0
      %v538 = vadd.f32 %v303, %v537
      %539 = vmatmul.bf16.gmra.mxu0 %v462
      %v540 = vpop.f32.mrf.mxu0
      %v541 = vadd.f32 %v303, %v540
      %v542 = vpop.f32.mrf.mxu0
      %v543 = vadd.f32 %v303, %v542
      %544 = vmatmul.bf16.gmra.mxu0 %v465
      %v545 = vpop.f32.mrf.mxu0
      %v546 = vadd.f32 %v303, %v545
      %v547 = vpop.f32.mrf.mxu0
      %v548 = vadd.f32 %v303, %v547
      %549 = vmatmul.bf16.gmra.mxu0 %v468
      %v550 = vpop.f32.mrf.mxu0
      %v551 = vadd.f32 %v303, %v550
      %v552 = vpop.f32.mrf.mxu0
      %v553 = vadd.f32 %v303, %v552
      %554 = vmatmul.bf16.gmra.mxu0 %v471
      %v555 = vpop.f32.mrf.mxu0
      %v556 = vadd.f32 %v303, %v555
      %v557 = vpop.f32.mrf.mxu0
      %v558 = vadd.f32 %v303, %v557
      %559 = vmatmul.bf16.gmra.mxu0 %v474
      %v560 = vpop.f32.mrf.mxu0
      %v561 = vadd.f32 %v303, %v560
      %v562 = vpop.f32.mrf.mxu0
      %v563 = vadd.f32 %v303, %v562
      %564 = vdwg.mxu0
      %565 = vmatpush.bf16.msra.mxu0 0
      %566 = vmatpush.bf16.msra.mxu0 0
      %567 = vmatpush.bf16.msra.mxu0 0
      %568 = vmatpush.bf16.msra.mxu0 0
      %569 = vmatpush.bf16.msra.mxu0 %v418
      %570 = vmatpush.bf16.msra.mxu0 %v416
      %571 = vmatpush.bf16.msra.mxu0 %v414
      %572 = vmatpush.bf16.msra.mxu0 %v412
      %573 = vmatmul.bf16.gmra.mxu0 %v429
      %v574 = vpop.f32.mrf.mxu0
      %v575 = vadd.f32 %v304, %v574
      %v576 = vpop.f32.mrf.mxu0
      %v577 = vadd.f32 %v304, %v576
      %578 = vmatmul.bf16.gmra.mxu0 %v432
      %v579 = vpop.f32.mrf.mxu0
      %v580 = vadd.f32 %v304, %v579
      %v581 = vpop.f32.mrf.mxu0
      %v582 = vadd.f32 %v304, %v581
      %583 = vmatmul.bf16.gmra.mxu0 %v435
      %v584 = vpop.f32.mrf.mxu0
      %v585 = vadd.f32 %v304, %v584
      %v586 = vpop.f32.mrf.mxu0
      %v587 = vadd.f32 %v304, %v586
      %588 = vmatmul.bf16.gmra.mxu0 %v438
      %v589 = vpop.f32.mrf.mxu0
      %v590 = vadd.f32 %v304, %v589
      %v591 = vpop.f32.mrf.mxu0
      %v592 = vadd.f32 %v304, %v591
      %593 = vmatmul.bf16.gmra.mxu0 %v441
      %v594 = vpop.f32.mrf.mxu0
      %v595 = vadd.f32 %v304, %v594
      %v596 = vpop.f32.mrf.mxu0
      %v597 = vadd.f32 %v304, %v596
      %598 = vmatmul.bf16.gmra.mxu0 %v444
      %v599 = vpop.f32.mrf.mxu0
      %v600 = vadd.f32 %v304, %v599
      %v601 = vpop.f32.mrf.mxu0
      %v602 = vadd.f32 %v304, %v601
      %603 = vmatmul.bf16.gmra.mxu0 %v447
      %v604 = vpop.f32.mrf.mxu0
      %v605 = vadd.f32 %v304, %v604
      %v606 = vpop.f32.mrf.mxu0
      %v607 = vadd.f32 %v304, %v606
      %608 = vmatmul.bf16.gmra.mxu0 %v450
      %v609 = vpop.f32.mrf.mxu0
      %v610 = vadd.f32 %v304, %v609
      %v611 = vpop.f32.mrf.mxu0
      %v612 = vadd.f32 %v304, %v611
      %613 = vmatmul.bf16.gmra.mxu0 %v453
      %v614 = vpop.f32.mrf.mxu0
      %v615 = vadd.f32 %v304, %v614
      %v616 = vpop.f32.mrf.mxu0
      %v617 = vadd.f32 %v304, %v616
      %618 = vmatmul.bf16.gmra.mxu0 %v456
      %v619 = vpop.f32.mrf.mxu0
      %v620 = vadd.f32 %v304, %v619
      %v621 = vpop.f32.mrf.mxu0
      %v622 = vadd.f32 %v304, %v621
      %623 = vmatmul.bf16.gmra.mxu0 %v459
      %v624 = vpop.f32.mrf.mxu0
      %v625 = vadd.f32 %v304, %v624
      %v626 = vpop.f32.mrf.mxu0
      %v627 = vadd.f32 %v304, %v626
      %628 = vmatmul.bf16.gmra.mxu0 %v462
      %v629 = vpop.f32.mrf.mxu0
      %v630 = vadd.f32 %v304, %v629
      %v631 = vpop.f32.mrf.mxu0
      %v632 = vadd.f32 %v304, %v631
      %633 = vmatmul.bf16.gmra.mxu0 %v465
      %v634 = vpop.f32.mrf.mxu0
      %v635 = vadd.f32 %v304, %v634
      %v636 = vpop.f32.mrf.mxu0
      %v637 = vadd.f32 %v304, %v636
      %638 = vmatmul.bf16.gmra.mxu0 %v468
      %v639 = vpop.f32.mrf.mxu0
      %v640 = vadd.f32 %v304, %v639
      %v641 = vpop.f32.mrf.mxu0
      %v642 = vadd.f32 %v304, %v641
      %643 = vmatmul.bf16.gmra.mxu0 %v471
      %v644 = vpop.f32.mrf.mxu0
      %v645 = vadd.f32 %v304, %v644
      %v646 = vpop.f32.mrf.mxu0
      %v647 = vadd.f32 %v304, %v646
      %648 = vmatmul.bf16.gmra.mxu0 %v474
      %v649 = vpop.f32.mrf.mxu0
      %v650 = vadd.f32 %v304, %v649
      %v651 = vpop.f32.mrf.mxu0
      %v652 = vadd.f32 %v304, %v651
      %653 = vdwg.mxu0
      %v654 = vpack.c.bf16 %v575, %v486
      %v655 = vpack.c.bf16 %v577, %v488
      %v656 = vpack.c.bf16 %v580, %v491
      %v657 = vpack.c.bf16 %v582, %v493
      %v658 = vpack.c.bf16 %v585, %v496
      %v659 = vpack.c.bf16 %v587, %v498
      %v660 = vpack.c.bf16 %v590, %v501
      %v661 = vpack.c.bf16 %v592, %v503
      %v662 = vpack.c.bf16 %v595, %v506
      %v663 = vpack.c.bf16 %v597, %v508
      %v664 = vpack.c.bf16 %v600, %v511
      %v665 = vpack.c.bf16 %v602, %v513
      %v666 = vpack.c.bf16 %v605, %v516
      %v667 = vpack.c.bf16 %v607, %v518
      %v668 = vpack.c.bf16 %v610, %v521
      %v669 = vpack.c.bf16 %v612, %v523
      %v670 = vpack.c.bf16 %v615, %v526
      %v671 = vpack.c.bf16 %v617, %v528
      %v672 = vpack.c.bf16 %v620, %v531
      %v673 = vpack.c.bf16 %v622, %v533
      %v674 = vpack.c.bf16 %v625, %v536
      %v675 = vpack.c.bf16 %v627, %v538
      %v676 = vpack.c.bf16 %v630, %v541
      %v677 = vpack.c.bf16 %v632, %v543
      %v678 = vpack.c.bf16 %v635, %v546
      %v679 = vpack.c.bf16 %v637, %v548
      %v680 = vpack.c.bf16 %v640, %v551
      %v681 = vpack.c.bf16 %v642, %v553
      %v682 = vpack.c.bf16 %v645, %v556
      %v683 = vpack.c.bf16 %v647, %v558
      %v684 = vpack.c.bf16 %v650, %v561
      %v685 = vpack.c.bf16 %v652, %v563
      %v686 = vld [vmem:[%s3] sm:$0xff]
      %v687 = vld [vmem:[%s3 + $0x8] sm:$0xff]
      %v688 = vld [vmem:[%s3 + $0x10] sm:$0xff]
      %v689 = vld [vmem:[%s3 + $0x18] sm:$0xff]
      %v690 = vld [vmem:[%s3 + $0x20] sm:$0xff]
      %v691 = vld [vmem:[%s3 + $0x28] sm:$0xff]
      %v692 = vld [vmem:[%s3 + $0x30] sm:$0xff]
      %v693 = vld [vmem:[%s3 + $0x38] sm:$0xff]
      %v694 = vld [vmem:[%s3 + $0x80] sm:$0xff]
      %v695 = vld [vmem:[%s3 + $0x88] sm:$0xff]
      %v696 = vld [vmem:[%s3 + $0x90] sm:$0xff]
      %v697 = vld [vmem:[%s3 + $0x98] sm:$0xff]
      %v698 = vld [vmem:[%s3 + $0xa0] sm:$0xff]
      %v699 = vld [vmem:[%s3 + $0xa8] sm:$0xff]
      %v700 = vld [vmem:[%s3 + $0xb0] sm:$0xff]
      %v701 = vld [vmem:[%s3 + $0xb8] sm:$0xff]
      %v702 = vld [vmem:[%s3 + $0x100] sm:$0xff]
      %v703 = vld [vmem:[%s3 + $0x108] sm:$0xff]
      %v704 = vld [vmem:[%s3 + $0x110] sm:$0xff]
      %v705 = vld [vmem:[%s3 + $0x118] sm:$0xff]
      %v706 = vld [vmem:[%s3 + $0x120] sm:$0xff]
      %v707 = vld [vmem:[%s3 + $0x128] sm:$0xff]
      %v708 = vld [vmem:[%s3 + $0x130] sm:$0xff]
      %v709 = vld [vmem:[%s3 + $0x138] sm:$0xff]
      %v710 = vld [vmem:[%s3 + $0x180] sm:$0xff]
      %v711 = vld [vmem:[%s3 + $0x188] sm:$0xff]
      %v712 = vld [vmem:[%s3 + $0x190] sm:$0xff]
      %v713 = vld [vmem:[%s3 + $0x198] sm:$0xff]
      %v714 = vld [vmem:[%s3 + $0x1a0] sm:$0xff]
      %v715 = vld [vmem:[%s3 + $0x1a8] sm:$0xff]
      %v716 = vld [vmem:[%s3 + $0x1b0] sm:$0xff]
      %v717 = vld [vmem:[%s3 + $0x1b8] sm:$0xff]
      %v726 = vunpack.c.l.b16 %v654
      %v727 = vunpack.c.l.b16 %v655
      %v728 = vunpack.c.l.b16 %v656
      %v729 = vunpack.c.l.b16 %v657
      %v730 = vunpack.c.l.b16 %v658
      %v731 = vunpack.c.l.b16 %v659
      %v732 = vunpack.c.l.b16 %v660
      %v733 = vunpack.c.l.b16 %v661
      %v734 = vpack.c.b16 %v727, %v726
      %v735 = vpack.c.b16 %v729, %v728
      %v736 = vpack.c.b16 %v731, %v730
      %v737 = vpack.c.b16 %v733, %v732
      %738 = vrot.lane.b32.xlu0 %v734, 64
      %v739 = vpop.permute.xlu0 %738
      %740 = vrot.lane.b32.xlu0 %v735, 64
      %v741 = vpop.permute.xlu0 %740
      %742 = vrot.lane.b32.xlu0 %v736, 64
      %v743 = vpop.permute.xlu0 %742
      %744 = vrot.lane.b32.xlu0 %v737, 64
      %v745 = vpop.permute.xlu0 %744
      %vm746 = vcmask 261120
      %v748 = vsel %vm746, %v734, 0
      %v751 = vsel %vm746, %v735, 0
      %v754 = vsel %vm746, %v736, 0
      %v757 = vsel %vm746, %v737, 0
      %v760 = vsel %vm746, %v739, 0
      %v763 = vsel %vm746, %v741, 0
      %v766 = vsel %vm746, %v743, 0
      %v769 = vsel %vm746, %v745, 0
      %771 = vmatpush.bf16.xpose.msra.mxu0 0
      %772 = vmatpush.bf16.xpose.msra.mxu0 0
      %773 = vmatpush.bf16.xpose.msra.mxu0 0
      %774 = vmatpush.bf16.xpose.msra.mxu0 0
      %775 = vmatpush.bf16.xpose.msra.mxu0 %v769
      %776 = vmatpush.bf16.xpose.msra.mxu0 %v766
      %777 = vmatpush.bf16.xpose.msra.mxu0 %v763
      %778 = vmatpush.bf16.xpose.msra.mxu0 %v760
      %779 = vmatmul.bf16.gmra.mxu0 %v748
      %v780 = vpop.f32.mrf.mxu0
      %v781 = vadd.f32 %v686, %v780
      %v782 = vpop.f32.mrf.mxu0
      %v783 = vadd.f32 %v687, %v782
      %784 = vmatmul.bf16.gmra.mxu0 %v751
      %v785 = vpop.f32.mrf.mxu0
      %v786 = vadd.f32 %v688, %v785
      %v787 = vpop.f32.mrf.mxu0
      %v788 = vadd.f32 %v689, %v787
      %789 = vmatmul.bf16.gmra.mxu0 %v754
      %v790 = vpop.f32.mrf.mxu0
      %v791 = vadd.f32 %v690, %v790
      %v792 = vpop.f32.mrf.mxu0
      %v793 = vadd.f32 %v691, %v792
      %794 = vmatmul.bf16.gmra.mxu0 %v757
      %v795 = vpop.f32.mrf.mxu0
      %v796 = vadd.f32 %v692, %v795
      %v797 = vpop.f32.mrf.mxu0
      %v798 = vadd.f32 %v693, %v797
      %799 = vdwg.mxu0
      %v808 = vunpack.c.l.b16 %v662
      %v809 = vunpack.c.l.b16 %v663
      %v810 = vunpack.c.l.b16 %v664
      %v811 = vunpack.c.l.b16 %v665
      %v812 = vunpack.c.l.b16 %v666
      %v813 = vunpack.c.l.b16 %v667
      %v814 = vunpack.c.l.b16 %v668
      %v815 = vunpack.c.l.b16 %v669
      %v816 = vpack.c.b16 %v809, %v808
      %v817 = vpack.c.b16 %v811, %v810
      %v818 = vpack.c.b16 %v813, %v812
      %v819 = vpack.c.b16 %v815, %v814
      %820 = vrot.lane.b32.xlu0 %v816, 64
      %v821 = vpop.permute.xlu0 %820
      %822 = vrot.lane.b32.xlu0 %v817, 64
      %v823 = vpop.permute.xlu0 %822
      %824 = vrot.lane.b32.xlu0 %v818, 64
      %v825 = vpop.permute.xlu0 %824
      %826 = vrot.lane.b32.xlu0 %v819, 64
      %v827 = vpop.permute.xlu0 %826
      %v829 = vsel %vm746, %v816, 0
      %v832 = vsel %vm746, %v817, 0
      %v835 = vsel %vm746, %v818, 0
      %v838 = vsel %vm746, %v819, 0
      %v841 = vsel %vm746, %v821, 0
      %v844 = vsel %vm746, %v823, 0
      %v847 = vsel %vm746, %v825, 0
      %v850 = vsel %vm746, %v827, 0
      %852 = vmatpush.bf16.xpose.msra.mxu0 0
      %853 = vmatpush.bf16.xpose.msra.mxu0 0
      %854 = vmatpush.bf16.xpose.msra.mxu0 0
      %855 = vmatpush.bf16.xpose.msra.mxu0 0
      %856 = vmatpush.bf16.xpose.msra.mxu0 %v850
      %857 = vmatpush.bf16.xpose.msra.mxu0 %v847
      %858 = vmatpush.bf16.xpose.msra.mxu0 %v844
      %859 = vmatpush.bf16.xpose.msra.mxu0 %v841
      %860 = vmatmul.bf16.gmra.mxu0 %v829
      %v861 = vpop.f32.mrf.mxu0
      %v862 = vadd.f32 %v694, %v861
      %v863 = vpop.f32.mrf.mxu0
      %v864 = vadd.f32 %v695, %v863
      %865 = vmatmul.bf16.gmra.mxu0 %v832
      %v866 = vpop.f32.mrf.mxu0
      %v867 = vadd.f32 %v696, %v866
      %v868 = vpop.f32.mrf.mxu0
      %v869 = vadd.f32 %v697, %v868
      %870 = vmatmul.bf16.gmra.mxu0 %v835
      %v871 = vpop.f32.mrf.mxu0
      %v872 = vadd.f32 %v698, %v871
      %v873 = vpop.f32.mrf.mxu0
      %v874 = vadd.f32 %v699, %v873
      %875 = vmatmul.bf16.gmra.mxu0 %v838
      %v876 = vpop.f32.mrf.mxu0
      %v877 = vadd.f32 %v700, %v876
      %v878 = vpop.f32.mrf.mxu0
      %v879 = vadd.f32 %v701, %v878
      %880 = vdwg.mxu0
      %v889 = vunpack.c.l.b16 %v670
      %v890 = vunpack.c.l.b16 %v671
      %v891 = vunpack.c.l.b16 %v672
      %v892 = vunpack.c.l.b16 %v673
      %v893 = vunpack.c.l.b16 %v674
      %v894 = vunpack.c.l.b16 %v675
      %v895 = vunpack.c.l.b16 %v676
      %v896 = vunpack.c.l.b16 %v677
      %v897 = vpack.c.b16 %v890, %v889
      %v898 = vpack.c.b16 %v892, %v891
      %v899 = vpack.c.b16 %v894, %v893
      %v900 = vpack.c.b16 %v896, %v895
      %901 = vrot.lane.b32.xlu0 %v897, 64
      %v902 = vpop.permute.xlu0 %901
      %903 = vrot.lane.b32.xlu0 %v898, 64
      %v904 = vpop.permute.xlu0 %903
      %905 = vrot.lane.b32.xlu0 %v899, 64
      %v906 = vpop.permute.xlu0 %905
      %907 = vrot.lane.b32.xlu0 %v900, 64
      %v908 = vpop.permute.xlu0 %907
      %v910 = vsel %vm746, %v897, 0
      %v913 = vsel %vm746, %v898, 0
      %v916 = vsel %vm746, %v899, 0
      %v919 = vsel %vm746, %v900, 0
      %v922 = vsel %vm746, %v902, 0
      %v925 = vsel %vm746, %v904, 0
      %v928 = vsel %vm746, %v906, 0
      %v931 = vsel %vm746, %v908, 0
      %933 = vmatpush.bf16.xpose.msra.mxu0 0
      %934 = vmatpush.bf16.xpose.msra.mxu0 0
      %935 = vmatpush.bf16.xpose.msra.mxu0 0
      %936 = vmatpush.bf16.xpose.msra.mxu0 0
      %937 = vmatpush.bf16.xpose.msra.mxu0 %v931
      %938 = vmatpush.bf16.xpose.msra.mxu0 %v928
      %939 = vmatpush.bf16.xpose.msra.mxu0 %v925
      %940 = vmatpush.bf16.xpose.msra.mxu0 %v922
      %941 = vmatmul.bf16.gmra.mxu0 %v910
      %v942 = vpop.f32.mrf.mxu0
      %v943 = vadd.f32 %v702, %v942
      %v944 = vpop.f32.mrf.mxu0
      %v945 = vadd.f32 %v703, %v944
      %946 = vmatmul.bf16.gmra.mxu0 %v913
      %v947 = vpop.f32.mrf.mxu0
      %v948 = vadd.f32 %v704, %v947
      %v949 = vpop.f32.mrf.mxu0
      %v950 = vadd.f32 %v705, %v949
      %951 = vmatmul.bf16.gmra.mxu0 %v916
      %v952 = vpop.f32.mrf.mxu0
      %v953 = vadd.f32 %v706, %v952
      %v954 = vpop.f32.mrf.mxu0
      %v955 = vadd.f32 %v707, %v954
      %956 = vmatmul.bf16.gmra.mxu0 %v919
      %v957 = vpop.f32.mrf.mxu0
      %v958 = vadd.f32 %v708, %v957
      %v959 = vpop.f32.mrf.mxu0
      %v960 = vadd.f32 %v709, %v959
      %961 = vdwg.mxu0
      %v970 = vunpack.c.l.b16 %v678
      %v971 = vunpack.c.l.b16 %v679
      %v972 = vunpack.c.l.b16 %v680
      %v973 = vunpack.c.l.b16 %v681
      %v974 = vunpack.c.l.b16 %v682
      %v975 = vunpack.c.l.b16 %v683
      %v976 = vunpack.c.l.b16 %v684
      %v977 = vunpack.c.l.b16 %v685
      %v978 = vpack.c.b16 %v971, %v970
      %v979 = vpack.c.b16 %v973, %v972
      %v980 = vpack.c.b16 %v975, %v974
      %v981 = vpack.c.b16 %v977, %v976
      %982 = vrot.lane.b32.xlu0 %v978, 64
      %v983 = vpop.permute.xlu0 %982
      %984 = vrot.lane.b32.xlu0 %v979, 64
      %v985 = vpop.permute.xlu0 %984
      %986 = vrot.lane.b32.xlu0 %v980, 64
      %v987 = vpop.permute.xlu0 %986
      %988 = vrot.lane.b32.xlu0 %v981, 64
      %v989 = vpop.permute.xlu0 %988
      %v991 = vsel %vm746, %v978, 0
      %v994 = vsel %vm746, %v979, 0
      %v997 = vsel %vm746, %v980, 0
      %v1000 = vsel %vm746, %v981, 0
      %v1003 = vsel %vm746, %v983, 0
      %v1006 = vsel %vm746, %v985, 0
      %v1009 = vsel %vm746, %v987, 0
      %v1012 = vsel %vm746, %v989, 0
      %1014 = vmatpush.bf16.xpose.msra.mxu0 0
      %1015 = vmatpush.bf16.xpose.msra.mxu0 0
      %1016 = vmatpush.bf16.xpose.msra.mxu0 0
      %1017 = vmatpush.bf16.xpose.msra.mxu0 0
      %1018 = vmatpush.bf16.xpose.msra.mxu0 %v1012
      %1019 = vmatpush.bf16.xpose.msra.mxu0 %v1009
      %1020 = vmatpush.bf16.xpose.msra.mxu0 %v1006
      %1021 = vmatpush.bf16.xpose.msra.mxu0 %v1003
      %1022 = vmatmul.bf16.gmra.mxu0 %v991
      %v1023 = vpop.f32.mrf.mxu0
      %v1024 = vadd.f32 %v710, %v1023
      %v1025 = vpop.f32.mrf.mxu0
      %v1026 = vadd.f32 %v711, %v1025
      %1027 = vmatmul.bf16.gmra.mxu0 %v994
      %v1028 = vpop.f32.mrf.mxu0
      %v1029 = vadd.f32 %v712, %v1028
      %v1030 = vpop.f32.mrf.mxu0
      %v1031 = vadd.f32 %v713, %v1030
      %1032 = vmatmul.bf16.gmra.mxu0 %v997
      %v1033 = vpop.f32.mrf.mxu0
      %v1034 = vadd.f32 %v714, %v1033
      %v1035 = vpop.f32.mrf.mxu0
      %v1036 = vadd.f32 %v715, %v1035
      %1037 = vmatmul.bf16.gmra.mxu0 %v1000
      %v1038 = vpop.f32.mrf.mxu0
      %v1039 = vadd.f32 %v716, %v1038
      %v1040 = vpop.f32.mrf.mxu0
      %v1041 = vadd.f32 %v717, %v1040
      %1042 = vdwg.mxu0
      %v1043 = vsel %vm427, %v781, -inf
      %1044 = vmax.xlane.f32.xlu0 %v1043
      %v1045 = vpop.xlane.xlu0 %1044
      %v1046 = vsel %vm427, %v783, -inf
      %1047 = vmax.xlane.f32.xlu0 %v1046
      %v1048 = vpop.xlane.xlu0 %1047
      %v1049 = vsel %vm427, %v786, -inf
      %1050 = vmax.xlane.f32.xlu0 %v1049
      %v1051 = vpop.xlane.xlu0 %1050
      %v1052 = vsel %vm427, %v788, -inf
      %1053 = vmax.xlane.f32.xlu0 %v1052
      %v1054 = vpop.xlane.xlu0 %1053
      %v1055 = vsel %vm427, %v791, -inf
      %1056 = vmax.xlane.f32.xlu0 %v1055
      %v1057 = vpop.xlane.xlu0 %1056
      %v1058 = vsel %vm427, %v793, -inf
      %1059 = vmax.xlane.f32.xlu0 %v1058
      %v1060 = vpop.xlane.xlu0 %1059
      %v1061 = vsel %vm427, %v796, -inf
      %1062 = vmax.xlane.f32.xlu0 %v1061
      %v1063 = vpop.xlane.xlu0 %1062
      %v1064 = vsel %vm427, %v798, -inf
      %1065 = vmax.xlane.f32.xlu0 %v1064
      %v1066 = vpop.xlane.xlu0 %1065
      %v1067 = vsel %vm427, %v862, -inf
      %1068 = vmax.xlane.f32.xlu0 %v1067
      %v1069 = vpop.xlane.xlu0 %1068
      %v1070 = vsel %vm427, %v864, -inf
      %1071 = vmax.xlane.f32.xlu0 %v1070
      %v1072 = vpop.xlane.xlu0 %1071
      %v1073 = vsel %vm427, %v867, -inf
      %1074 = vmax.xlane.f32.xlu0 %v1073
      %v1075 = vpop.xlane.xlu0 %1074
      %v1076 = vsel %vm427, %v869, -inf
      %1077 = vmax.xlane.f32.xlu0 %v1076
      %v1078 = vpop.xlane.xlu0 %1077
      %v1079 = vsel %vm427, %v872, -inf
      %1080 = vmax.xlane.f32.xlu0 %v1079
      %v1081 = vpop.xlane.xlu0 %1080
      %v1082 = vsel %vm427, %v874, -inf
      %1083 = vmax.xlane.f32.xlu0 %v1082
      %v1084 = vpop.xlane.xlu0 %1083
      %v1085 = vsel %vm427, %v877, -inf
      %1086 = vmax.xlane.f32.xlu0 %v1085
      %v1087 = vpop.xlane.xlu0 %1086
      %v1088 = vsel %vm427, %v879, -inf
      %1089 = vmax.xlane.f32.xlu0 %v1088
      %v1090 = vpop.xlane.xlu0 %1089
      %v1091 = vsel %vm427, %v943, -inf
      %1092 = vmax.xlane.f32.xlu0 %v1091
      %v1093 = vpop.xlane.xlu0 %1092
      %v1094 = vsel %vm427, %v945, -inf
      %1095 = vmax.xlane.f32.xlu0 %v1094
      %v1096 = vpop.xlane.xlu0 %1095
      %v1097 = vsel %vm427, %v948, -inf
      %1098 = vmax.xlane.f32.xlu0 %v1097
      %v1099 = vpop.xlane.xlu0 %1098
      %v1100 = vsel %vm427, %v950, -inf
      %1101 = vmax.xlane.f32.xlu0 %v1100
      %v1102 = vpop.xlane.xlu0 %1101
      %v1103 = vsel %vm427, %v953, -inf
      %1104 = vmax.xlane.f32.xlu0 %v1103
      %v1105 = vpop.xlane.xlu0 %1104
      %v1106 = vsel %vm427, %v955, -inf
      %1107 = vmax.xlane.f32.xlu0 %v1106
      %v1108 = vpop.xlane.xlu0 %1107
      %v1109 = vsel %vm427, %v958, -inf
      %1110 = vmax.xlane.f32.xlu0 %v1109
      %v1111 = vpop.xlane.xlu0 %1110
      %v1112 = vsel %vm427, %v960, -inf
      %1113 = vmax.xlane.f32.xlu0 %v1112
      %v1114 = vpop.xlane.xlu0 %1113
      %v1115 = vsel %vm427, %v1024, -inf
      %1116 = vmax.xlane.f32.xlu0 %v1115
      %v1117 = vpop.xlane.xlu0 %1116
      %v1118 = vsel %vm427, %v1026, -inf
      %1119 = vmax.xlane.f32.xlu0 %v1118
      %v1120 = vpop.xlane.xlu0 %1119
      %v1121 = vsel %vm427, %v1029, -inf
      %1122 = vmax.xlane.f32.xlu0 %v1121
      %v1123 = vpop.xlane.xlu0 %1122
      %v1124 = vsel %vm427, %v1031, -inf
      %1125 = vmax.xlane.f32.xlu0 %v1124
      %v1126 = vpop.xlane.xlu0 %1125
      %v1127 = vsel %vm427, %v1034, -inf
      %1128 = vmax.xlane.f32.xlu0 %v1127
      %v1129 = vpop.xlane.xlu0 %1128
      %v1130 = vsel %vm427, %v1036, -inf
      %1131 = vmax.xlane.f32.xlu0 %v1130
      %v1132 = vpop.xlane.xlu0 %1131
      %v1133 = vsel %vm427, %v1039, -inf
      %1134 = vmax.xlane.f32.xlu0 %v1133
      %v1135 = vpop.xlane.xlu0 %1134
      %v1136 = vsel %vm427, %v1041, -inf
      %1137 = vmax.xlane.f32.xlu0 %v1136
      %v1138 = vpop.xlane.xlu0 %1137
      %v1139 = vsub.f32 %v781, %v1045
      %v1140 = vsub.f32 %v783, %v1048
      %v1141 = vsub.f32 %v786, %v1051
      %v1142 = vsub.f32 %v788, %v1054
      %v1143 = vsub.f32 %v791, %v1057
      %v1144 = vsub.f32 %v793, %v1060
      %v1145 = vsub.f32 %v796, %v1063
      %v1146 = vsub.f32 %v798, %v1066
      %v1147 = vsub.f32 %v862, %v1069
      %v1148 = vsub.f32 %v864, %v1072
      %v1149 = vsub.f32 %v867, %v1075
      %v1150 = vsub.f32 %v869, %v1078
      %v1151 = vsub.f32 %v872, %v1081
      %v1152 = vsub.f32 %v874, %v1084
      %v1153 = vsub.f32 %v877, %v1087
      %v1154 = vsub.f32 %v879, %v1090
      %v1155 = vsub.f32 %v943, %v1093
      %v1156 = vsub.f32 %v945, %v1096
      %v1157 = vsub.f32 %v948, %v1099
      %v1158 = vsub.f32 %v950, %v1102
      %v1159 = vsub.f32 %v953, %v1105
      %v1160 = vsub.f32 %v955, %v1108
      %v1161 = vsub.f32 %v958, %v1111
      %v1162 = vsub.f32 %v960, %v1114
      %v1163 = vsub.f32 %v1024, %v1117
      %v1164 = vsub.f32 %v1026, %v1120
      %v1165 = vsub.f32 %v1029, %v1123
      %v1166 = vsub.f32 %v1031, %v1126
      %v1167 = vsub.f32 %v1034, %v1129
      %v1168 = vsub.f32 %v1036, %v1132
      %v1169 = vsub.f32 %v1039, %v1135
      %v1170 = vsub.f32 %v1041, %v1138
      %v1171 = vmul.f32 %v1139, 1.442695
      %v1172 = vpow.pop %v1171
      %v1173 = vmul.f32 %v1140, 1.442695
      %v1174 = vpow.pop %v1173
      %v1175 = vmul.f32 %v1141, 1.442695
      %v1176 = vpow.pop %v1175
      %v1177 = vmul.f32 %v1142, 1.442695
      %v1178 = vpow.pop %v1177
      %v1179 = vmul.f32 %v1143, 1.442695
      %v1180 = vpow.pop %v1179
      %v1181 = vmul.f32 %v1144, 1.442695
      %v1182 = vpow.pop %v1181
      %v1183 = vmul.f32 %v1145, 1.442695
      %v1184 = vpow.pop %v1183
      %v1185 = vmul.f32 %v1146, 1.442695
      %v1186 = vpow.pop %v1185
      %v1187 = vmul.f32 %v1147, 1.442695
      %v1188 = vpow.pop %v1187
      %v1189 = vmul.f32 %v1148, 1.442695
      %v1190 = vpow.pop %v1189
      %v1191 = vmul.f32 %v1149, 1.442695
      %v1192 = vpow.pop %v1191
      %v1193 = vmul.f32 %v1150, 1.442695
      %v1194 = vpow.pop %v1193
      %v1195 = vmul.f32 %v1151, 1.442695
      %v1196 = vpow.pop %v1195
      %v1197 = vmul.f32 %v1152, 1.442695
      %v1198 = vpow.pop %v1197
      %v1199 = vmul.f32 %v1153, 1.442695
      %v1200 = vpow.pop %v1199
      %v1201 = vmul.f32 %v1154, 1.442695
      %v1202 = vpow.pop %v1201
      %v1203 = vmul.f32 %v1155, 1.442695
      %v1204 = vpow.pop %v1203
      %v1205 = vmul.f32 %v1156, 1.442695
      %v1206 = vpow.pop %v1205
      %v1207 = vmul.f32 %v1157, 1.442695
      %v1208 = vpow.pop %v1207
      %v1209 = vmul.f32 %v1158, 1.442695
      %v1210 = vpow.pop %v1209
      %v1211 = vmul.f32 %v1159, 1.442695
      %v1212 = vpow.pop %v1211
      %v1213 = vmul.f32 %v1160, 1.442695
      %v1214 = vpow.pop %v1213
      %v1215 = vmul.f32 %v1161, 1.442695
      %v1216 = vpow.pop %v1215
      %v1217 = vmul.f32 %v1162, 1.442695
      %v1218 = vpow.pop %v1217
      %v1219 = vmul.f32 %v1163, 1.442695
      %v1220 = vpow.pop %v1219
      %v1221 = vmul.f32 %v1164, 1.442695
      %v1222 = vpow.pop %v1221
      %v1223 = vmul.f32 %v1165, 1.442695
      %v1224 = vpow.pop %v1223
      %v1225 = vmul.f32 %v1166, 1.442695
      %v1226 = vpow.pop %v1225
      %v1227 = vmul.f32 %v1167, 1.442695
      %v1228 = vpow.pop %v1227
      %v1229 = vmul.f32 %v1168, 1.442695
      %v1230 = vpow.pop %v1229
      %v1231 = vmul.f32 %v1169, 1.442695
      %v1232 = vpow.pop %v1231
      %v1233 = vmul.f32 %v1170, 1.442695
      %v1234 = vpow.pop %v1233
      %v1235 = vsel %vm427, %v1172, 0.0
      %1236 = vadd.xlane.f32.xlu0 %v1235
      %v1237 = vpop.xlane.xlu0 %1236
      %v1238 = vsel %vm427, %v1174, 0.0
      %1239 = vadd.xlane.f32.xlu0 %v1238
      %v1240 = vpop.xlane.xlu0 %1239
      %v1241 = vsel %vm427, %v1176, 0.0
      %1242 = vadd.xlane.f32.xlu0 %v1241
      %v1243 = vpop.xlane.xlu0 %1242
      %v1244 = vsel %vm427, %v1178, 0.0
      %1245 = vadd.xlane.f32.xlu0 %v1244
      %v1246 = vpop.xlane.xlu0 %1245
      %v1247 = vsel %vm427, %v1180, 0.0
      %1248 = vadd.xlane.f32.xlu0 %v1247
      %v1249 = vpop.xlane.xlu0 %1248
      %v1250 = vsel %vm427, %v1182, 0.0
      %1251 = vadd.xlane.f32.xlu0 %v1250
      %v1252 = vpop.xlane.xlu0 %1251
      %v1253 = vsel %vm427, %v1184, 0.0
      %1254 = vadd.xlane.f32.xlu0 %v1253
      %v1255 = vpop.xlane.xlu0 %1254
      %v1256 = vsel %vm427, %v1186, 0.0
      %1257 = vadd.xlane.f32.xlu0 %v1256
      %v1258 = vpop.xlane.xlu0 %1257
      %v1259 = vsel %vm427, %v1188, 0.0
      %1260 = vadd.xlane.f32.xlu0 %v1259
      %v1261 = vpop.xlane.xlu0 %1260
      %v1262 = vsel %vm427, %v1190, 0.0
      %1263 = vadd.xlane.f32.xlu0 %v1262
      %v1264 = vpop.xlane.xlu0 %1263
      %v1265 = vsel %vm427, %v1192, 0.0
      %1266 = vadd.xlane.f32.xlu0 %v1265
      %v1267 = vpop.xlane.xlu0 %1266
      %v1268 = vsel %vm427, %v1194, 0.0
      %1269 = vadd.xlane.f32.xlu0 %v1268
      %v1270 = vpop.xlane.xlu0 %1269
      %v1271 = vsel %vm427, %v1196, 0.0
      %1272 = vadd.xlane.f32.xlu0 %v1271
      %v1273 = vpop.xlane.xlu0 %1272
      %v1274 = vsel %vm427, %v1198, 0.0
      %1275 = vadd.xlane.f32.xlu0 %v1274
      %v1276 = vpop.xlane.xlu0 %1275
      %v1277 = vsel %vm427, %v1200, 0.0
      %1278 = vadd.xlane.f32.xlu0 %v1277
      %v1279 = vpop.xlane.xlu0 %1278
      %v1280 = vsel %vm427, %v1202, 0.0
      %1281 = vadd.xlane.f32.xlu0 %v1280
      %v1282 = vpop.xlane.xlu0 %1281
      %v1283 = vsel %vm427, %v1204, 0.0
      %1284 = vadd.xlane.f32.xlu0 %v1283
      %v1285 = vpop.xlane.xlu0 %1284
      %v1286 = vsel %vm427, %v1206, 0.0
      %1287 = vadd.xlane.f32.xlu0 %v1286
      %v1288 = vpop.xlane.xlu0 %1287
      %v1289 = vsel %vm427, %v1208, 0.0
      %1290 = vadd.xlane.f32.xlu0 %v1289
      %v1291 = vpop.xlane.xlu0 %1290
      %v1292 = vsel %vm427, %v1210, 0.0
      %1293 = vadd.xlane.f32.xlu0 %v1292
      %v1294 = vpop.xlane.xlu0 %1293
      %v1295 = vsel %vm427, %v1212, 0.0
      %1296 = vadd.xlane.f32.xlu0 %v1295
      %v1297 = vpop.xlane.xlu0 %1296
      %v1298 = vsel %vm427, %v1214, 0.0
      %1299 = vadd.xlane.f32.xlu0 %v1298
      %v1300 = vpop.xlane.xlu0 %1299
      %v1301 = vsel %vm427, %v1216, 0.0
      %1302 = vadd.xlane.f32.xlu0 %v1301
      %v1303 = vpop.xlane.xlu0 %1302
      %v1304 = vsel %vm427, %v1218, 0.0
      %1305 = vadd.xlane.f32.xlu0 %v1304
      %v1306 = vpop.xlane.xlu0 %1305
      %v1307 = vsel %vm427, %v1220, 0.0
      %1308 = vadd.xlane.f32.xlu0 %v1307
      %v1309 = vpop.xlane.xlu0 %1308
      %v1310 = vsel %vm427, %v1222, 0.0
      %1311 = vadd.xlane.f32.xlu0 %v1310
      %v1312 = vpop.xlane.xlu0 %1311
      %v1313 = vsel %vm427, %v1224, 0.0
      %1314 = vadd.xlane.f32.xlu0 %v1313
      %v1315 = vpop.xlane.xlu0 %1314
      %v1316 = vsel %vm427, %v1226, 0.0
      %1317 = vadd.xlane.f32.xlu0 %v1316
      %v1318 = vpop.xlane.xlu0 %1317
      %v1319 = vsel %vm427, %v1228, 0.0
      %1320 = vadd.xlane.f32.xlu0 %v1319
      %v1321 = vpop.xlane.xlu0 %1320
      %v1322 = vsel %vm427, %v1230, 0.0
      %1323 = vadd.xlane.f32.xlu0 %v1322
      %v1324 = vpop.xlane.xlu0 %1323
      %v1325 = vsel %vm427, %v1232, 0.0
      %1326 = vadd.xlane.f32.xlu0 %v1325
      %v1327 = vpop.xlane.xlu0 %1326
      %v1328 = vsel %vm427, %v1234, 0.0
      %1329 = vadd.xlane.f32.xlu0 %v1328
      %v1330 = vpop.xlane.xlu0 %1329
      %v1331 = vrcp.pop %v1237
      %v1332 = vrcp.pop %v1240
      %v1333 = vrcp.pop %v1243
      %v1334 = vrcp.pop %v1246
      %v1335 = vrcp.pop %v1249
      %v1336 = vrcp.pop %v1252
      %v1337 = vrcp.pop %v1255
      %v1338 = vrcp.pop %v1258
      %v1339 = vrcp.pop %v1261
      %v1340 = vrcp.pop %v1264
      %v1341 = vrcp.pop %v1267
      %v1342 = vrcp.pop %v1270
      %v1343 = vrcp.pop %v1273
      %v1344 = vrcp.pop %v1276
      %v1345 = vrcp.pop %v1279
      %v1346 = vrcp.pop %v1282
      %v1347 = vrcp.pop %v1285
      %v1348 = vrcp.pop %v1288
      %v1349 = vrcp.pop %v1291
      %v1350 = vrcp.pop %v1294
      %v1351 = vrcp.pop %v1297
      %v1352 = vrcp.pop %v1300
      %v1353 = vrcp.pop %v1303
      %v1354 = vrcp.pop %v1306
      %v1355 = vrcp.pop %v1309
      %v1356 = vrcp.pop %v1312
      %v1357 = vrcp.pop %v1315
      %v1358 = vrcp.pop %v1318
      %v1359 = vrcp.pop %v1321
      %v1360 = vrcp.pop %v1324
      %v1361 = vrcp.pop %v1327
      %v1362 = vrcp.pop %v1330
      %v1363 = vmul.f32 %v1172, %v1331
      %v1364 = vmul.f32 %v1174, %v1332
      %v1365 = vmul.f32 %v1176, %v1333
      %v1366 = vmul.f32 %v1178, %v1334
      %v1367 = vmul.f32 %v1180, %v1335
      %v1368 = vmul.f32 %v1182, %v1336
      %v1369 = vmul.f32 %v1184, %v1337
      %v1370 = vmul.f32 %v1186, %v1338
      %v1371 = vmul.f32 %v1188, %v1339
      %v1372 = vmul.f32 %v1190, %v1340
      %v1373 = vmul.f32 %v1192, %v1341
      %v1374 = vmul.f32 %v1194, %v1342
      %v1375 = vmul.f32 %v1196, %v1343
      %v1376 = vmul.f32 %v1198, %v1344
      %v1377 = vmul.f32 %v1200, %v1345
      %v1378 = vmul.f32 %v1202, %v1346
      %v1379 = vmul.f32 %v1204, %v1347
      %v1380 = vmul.f32 %v1206, %v1348
      %v1381 = vmul.f32 %v1208, %v1349
      %v1382 = vmul.f32 %v1210, %v1350
      %v1383 = vmul.f32 %v1212, %v1351
      %v1384 = vmul.f32 %v1214, %v1352
      %v1385 = vmul.f32 %v1216, %v1353
      %v1386 = vmul.f32 %v1218, %v1354
      %v1387 = vmul.f32 %v1220, %v1355
      %v1388 = vmul.f32 %v1222, %v1356
      %v1389 = vmul.f32 %v1224, %v1357
      %v1390 = vmul.f32 %v1226, %v1358
      %v1391 = vmul.f32 %v1228, %v1359
      %v1392 = vmul.f32 %v1230, %v1360
      %v1393 = vmul.f32 %v1232, %v1361
      %v1394 = vmul.f32 %v1234, %v1362
      %v1395 = vpack.c.bf16 %v1363, %v1363
      %v1396 = vpack.c.bf16 %v1364, %v1364
      %v1397 = vpack.c.bf16 %v1365, %v1365
      %v1398 = vpack.c.bf16 %v1366, %v1366
      %v1399 = vpack.c.bf16 %v1367, %v1367
      %v1400 = vpack.c.bf16 %v1368, %v1368
      %v1401 = vpack.c.bf16 %v1369, %v1369
      %v1402 = vpack.c.bf16 %v1370, %v1370
      %v1403 = vpack.c.bf16 %v1371, %v1371
      %v1404 = vpack.c.bf16 %v1372, %v1372
      %v1405 = vpack.c.bf16 %v1373, %v1373
      %v1406 = vpack.c.bf16 %v1374, %v1374
      %v1407 = vpack.c.bf16 %v1375, %v1375
      %v1408 = vpack.c.bf16 %v1376, %v1376
      %v1409 = vpack.c.bf16 %v1377, %v1377
      %v1410 = vpack.c.bf16 %v1378, %v1378
      %v1411 = vpack.c.bf16 %v1379, %v1379
      %v1412 = vpack.c.bf16 %v1380, %v1380
      %v1413 = vpack.c.bf16 %v1381, %v1381
      %v1414 = vpack.c.bf16 %v1382, %v1382
      %v1415 = vpack.c.bf16 %v1383, %v1383
      %v1416 = vpack.c.bf16 %v1384, %v1384
      %v1417 = vpack.c.bf16 %v1385, %v1385
      %v1418 = vpack.c.bf16 %v1386, %v1386
      %v1419 = vpack.c.bf16 %v1387, %v1387
      %v1420 = vpack.c.bf16 %v1388, %v1388
      %v1421 = vpack.c.bf16 %v1389, %v1389
      %v1422 = vpack.c.bf16 %v1390, %v1390
      %v1423 = vpack.c.bf16 %v1391, %v1391
      %v1424 = vpack.c.bf16 %v1392, %v1392
      %v1425 = vpack.c.bf16 %v1393, %v1393
      %v1426 = vpack.c.bf16 %v1394, %v1394
      %v1427 = vrot.slane %v654, 4
      %v1428 = vrot.slane %v655, 4
      %v1429 = vrot.slane %v656, 4
      %v1430 = vrot.slane %v657, 4
      %v1431 = vrot.slane %v658, 4
      %v1432 = vrot.slane %v659, 4
      %v1433 = vrot.slane %v660, 4
      %v1434 = vrot.slane %v661, 4
      %v1443 = vunpack.c.l.b16 %v1395
      %v1444 = vunpack.c.l.b16 %v1396
      %v1445 = vunpack.c.l.b16 %v1397
      %v1446 = vunpack.c.l.b16 %v1398
      %v1447 = vunpack.c.l.b16 %v1399
      %v1448 = vunpack.c.l.b16 %v1400
      %v1449 = vunpack.c.l.b16 %v1401
      %v1450 = vunpack.c.l.b16 %v1402
      %v1451 = vpack.c.b16 %v1444, %v1443
      %v1452 = vpack.c.b16 %v1446, %v1445
      %v1453 = vpack.c.b16 %v1448, %v1447
      %v1454 = vpack.c.b16 %v1450, %v1449
      %v1455 = vunpack.c.l.b16 %v1427
      %v1456 = vunpack.c.l.b16 %v1428
      %v1457 = vunpack.c.l.b16 %v1429
      %v1458 = vunpack.c.l.b16 %v1430
      %v1459 = vunpack.c.l.b16 %v1431
      %v1460 = vunpack.c.l.b16 %v1432
      %v1461 = vunpack.c.l.b16 %v1433
      %v1462 = vunpack.c.l.b16 %v1434
      %v1463 = vpack.c.b16 %v1456, %v1455
      %v1464 = vpack.c.b16 %v1458, %v1457
      %v1465 = vpack.c.b16 %v1460, %v1459
      %v1466 = vpack.c.b16 %v1462, %v1461
      %v1472 = vsel %vm427, %v1451, 0
      %v1475 = vsel %vm427, %v1452, 0
      %v1478 = vsel %vm427, %v1453, 0
      %v1481 = vsel %vm427, %v1454, 0
      %1483 = vmatpush.bf16.msra.mxu0 0
      %1484 = vmatpush.bf16.msra.mxu0 0
      %1485 = vmatpush.bf16.msra.mxu0 0
      %1486 = vmatpush.bf16.msra.mxu0 0
      %1487 = vmatpush.bf16.msra.mxu0 %v1466
      %1488 = vmatpush.bf16.msra.mxu0 %v1465
      %1489 = vmatpush.bf16.msra.mxu0 %v1464
      %1490 = vmatpush.bf16.msra.mxu0 %v1463
      %1491 = vmatmul.bf16.gmra.mxu0 %v1472
      %v1492 = vpop.f32.mrf.mxu0
      %v1493 = vadd.f32 0.0, %v1492
      %v1494 = vpop.f32.mrf.mxu0
      %v1495 = vadd.f32 0.0, %v1494
      %1496 = vmatmul.bf16.gmra.mxu0 %v1475
      %v1497 = vpop.f32.mrf.mxu0
      %v1498 = vadd.f32 0.0, %v1497
      %v1499 = vpop.f32.mrf.mxu0
      %v1500 = vadd.f32 0.0, %v1499
      %1501 = vmatmul.bf16.gmra.mxu0 %v1478
      %v1502 = vpop.f32.mrf.mxu0
      %v1503 = vadd.f32 0.0, %v1502
      %v1504 = vpop.f32.mrf.mxu0
      %v1505 = vadd.f32 0.0, %v1504
      %1506 = vmatmul.bf16.gmra.mxu0 %v1481
      %v1507 = vpop.f32.mrf.mxu0
      %v1508 = vadd.f32 0.0, %v1507
      %v1509 = vpop.f32.mrf.mxu0
      %v1510 = vadd.f32 0.0, %v1509
      %1511 = vdwg.mxu0
      %v1512 = vrot.slane %v662, 4
      %v1513 = vrot.slane %v663, 4
      %v1514 = vrot.slane %v664, 4
      %v1515 = vrot.slane %v665, 4
      %v1516 = vrot.slane %v666, 4
      %v1517 = vrot.slane %v667, 4
      %v1518 = vrot.slane %v668, 4
      %v1519 = vrot.slane %v669, 4
      %v1528 = vunpack.c.l.b16 %v1403
      %v1529 = vunpack.c.l.b16 %v1404
      %v1530 = vunpack.c.l.b16 %v1405
      %v1531 = vunpack.c.l.b16 %v1406
      %v1532 = vunpack.c.l.b16 %v1407
      %v1533 = vunpack.c.l.b16 %v1408
      %v1534 = vunpack.c.l.b16 %v1409
      %v1535 = vunpack.c.l.b16 %v1410
      %v1536 = vpack.c.b16 %v1529, %v1528
      %v1537 = vpack.c.b16 %v1531, %v1530
      %v1538 = vpack.c.b16 %v1533, %v1532
      %v1539 = vpack.c.b16 %v1535, %v1534
      %v1540 = vunpack.c.l.b16 %v1512
      %v1541 = vunpack.c.l.b16 %v1513
      %v1542 = vunpack.c.l.b16 %v1514
      %v1543 = vunpack.c.l.b16 %v1515
      %v1544 = vunpack.c.l.b16 %v1516
      %v1545 = vunpack.c.l.b16 %v1517
      %v1546 = vunpack.c.l.b16 %v1518
      %v1547 = vunpack.c.l.b16 %v1519
      %v1548 = vpack.c.b16 %v1541, %v1540
      %v1549 = vpack.c.b16 %v1543, %v1542
      %v1550 = vpack.c.b16 %v1545, %v1544
      %v1551 = vpack.c.b16 %v1547, %v1546
      %v1557 = vsel %vm427, %v1536, 0
      %v1560 = vsel %vm427, %v1537, 0
      %v1563 = vsel %vm427, %v1538, 0
      %v1566 = vsel %vm427, %v1539, 0
      %1568 = vmatpush.bf16.msra.mxu0 0
      %1569 = vmatpush.bf16.msra.mxu0 0
      %1570 = vmatpush.bf16.msra.mxu0 0
      %1571 = vmatpush.bf16.msra.mxu0 0
      %1572 = vmatpush.bf16.msra.mxu0 %v1551
      %1573 = vmatpush.bf16.msra.mxu0 %v1550
      %1574 = vmatpush.bf16.msra.mxu0 %v1549
      %1575 = vmatpush.bf16.msra.mxu0 %v1548
      %1576 = vmatmul.bf16.gmra.mxu0 %v1557
      %v1577 = vpop.f32.mrf.mxu0
      %v1578 = vadd.f32 0.0, %v1577
      %v1579 = vpop.f32.mrf.mxu0
      %v1580 = vadd.f32 0.0, %v1579
      %1581 = vmatmul.bf16.gmra.mxu0 %v1560
      %v1582 = vpop.f32.mrf.mxu0
      %v1583 = vadd.f32 0.0, %v1582
      %v1584 = vpop.f32.mrf.mxu0
      %v1585 = vadd.f32 0.0, %v1584
      %1586 = vmatmul.bf16.gmra.mxu0 %v1563
      %v1587 = vpop.f32.mrf.mxu0
      %v1588 = vadd.f32 0.0, %v1587
      %v1589 = vpop.f32.mrf.mxu0
      %v1590 = vadd.f32 0.0, %v1589
      %1591 = vmatmul.bf16.gmra.mxu0 %v1566
      %v1592 = vpop.f32.mrf.mxu0
      %v1593 = vadd.f32 0.0, %v1592
      %v1594 = vpop.f32.mrf.mxu0
      %v1595 = vadd.f32 0.0, %v1594
      %1596 = vdwg.mxu0
      %v1597 = vrot.slane %v670, 4
      %v1598 = vrot.slane %v671, 4
      %v1599 = vrot.slane %v672, 4
      %v1600 = vrot.slane %v673, 4
      %v1601 = vrot.slane %v674, 4
      %v1602 = vrot.slane %v675, 4
      %v1603 = vrot.slane %v676, 4
      %v1604 = vrot.slane %v677, 4
      %v1613 = vunpack.c.l.b16 %v1411
      %v1614 = vunpack.c.l.b16 %v1412
      %v1615 = vunpack.c.l.b16 %v1413
      %v1616 = vunpack.c.l.b16 %v1414
      %v1617 = vunpack.c.l.b16 %v1415
      %v1618 = vunpack.c.l.b16 %v1416
      %v1619 = vunpack.c.l.b16 %v1417
      %v1620 = vunpack.c.l.b16 %v1418
      %v1621 = vpack.c.b16 %v1614, %v1613
      %v1622 = vpack.c.b16 %v1616, %v1615
      %v1623 = vpack.c.b16 %v1618, %v1617
      %v1624 = vpack.c.b16 %v1620, %v1619
      %v1625 = vunpack.c.l.b16 %v1597
      %v1626 = vunpack.c.l.b16 %v1598
      %v1627 = vunpack.c.l.b16 %v1599
      %v1628 = vunpack.c.l.b16 %v1600
      %v1629 = vunpack.c.l.b16 %v1601
      %v1630 = vunpack.c.l.b16 %v1602
      %v1631 = vunpack.c.l.b16 %v1603
      %v1632 = vunpack.c.l.b16 %v1604
      %v1633 = vpack.c.b16 %v1626, %v1625
      %v1634 = vpack.c.b16 %v1628, %v1627
      %v1635 = vpack.c.b16 %v1630, %v1629
      %v1636 = vpack.c.b16 %v1632, %v1631
      %v1642 = vsel %vm427, %v1621, 0
      %v1645 = vsel %vm427, %v1622, 0
      %v1648 = vsel %vm427, %v1623, 0
      %v1651 = vsel %vm427, %v1624, 0
      %1653 = vmatpush.bf16.msra.mxu0 0
      %1654 = vmatpush.bf16.msra.mxu0 0
      %1655 = vmatpush.bf16.msra.mxu0 0
      %1656 = vmatpush.bf16.msra.mxu0 0
      %1657 = vmatpush.bf16.msra.mxu0 %v1636
      %1658 = vmatpush.bf16.msra.mxu0 %v1635
      %1659 = vmatpush.bf16.msra.mxu0 %v1634
      %1660 = vmatpush.bf16.msra.mxu0 %v1633
      %1661 = vmatmul.bf16.gmra.mxu0 %v1642
      %v1662 = vpop.f32.mrf.mxu0
      %v1663 = vadd.f32 0.0, %v1662
      %v1664 = vpop.f32.mrf.mxu0
      %v1665 = vadd.f32 0.0, %v1664
      %1666 = vmatmul.bf16.gmra.mxu0 %v1645
      %v1667 = vpop.f32.mrf.mxu0
      %v1668 = vadd.f32 0.0, %v1667
      %v1669 = vpop.f32.mrf.mxu0
      %v1670 = vadd.f32 0.0, %v1669
      %1671 = vmatmul.bf16.gmra.mxu0 %v1648
      %v1672 = vpop.f32.mrf.mxu0
      %v1673 = vadd.f32 0.0, %v1672
      %v1674 = vpop.f32.mrf.mxu0
      %v1675 = vadd.f32 0.0, %v1674
      %1676 = vmatmul.bf16.gmra.mxu0 %v1651
      %v1677 = vpop.f32.mrf.mxu0
      %v1678 = vadd.f32 0.0, %v1677
      %v1679 = vpop.f32.mrf.mxu0
      %v1680 = vadd.f32 0.0, %v1679
      %1681 = vdwg.mxu0
      %v1682 = vrot.slane %v678, 4
      %v1683 = vrot.slane %v679, 4
      %v1684 = vrot.slane %v680, 4
      %v1685 = vrot.slane %v681, 4
      %v1686 = vrot.slane %v682, 4
      %v1687 = vrot.slane %v683, 4
      %v1688 = vrot.slane %v684, 4
      %v1689 = vrot.slane %v685, 4
      %v1698 = vunpack.c.l.b16 %v1419
      %v1699 = vunpack.c.l.b16 %v1420
      %v1700 = vunpack.c.l.b16 %v1421
      %v1701 = vunpack.c.l.b16 %v1422
      %v1702 = vunpack.c.l.b16 %v1423
      %v1703 = vunpack.c.l.b16 %v1424
      %v1704 = vunpack.c.l.b16 %v1425
      %v1705 = vunpack.c.l.b16 %v1426
      %v1706 = vpack.c.b16 %v1699, %v1698
      %v1707 = vpack.c.b16 %v1701, %v1700
      %v1708 = vpack.c.b16 %v1703, %v1702
      %v1709 = vpack.c.b16 %v1705, %v1704
      %v1710 = vunpack.c.l.b16 %v1682
      %v1711 = vunpack.c.l.b16 %v1683
      %v1712 = vunpack.c.l.b16 %v1684
      %v1713 = vunpack.c.l.b16 %v1685
      %v1714 = vunpack.c.l.b16 %v1686
      %v1715 = vunpack.c.l.b16 %v1687
      %v1716 = vunpack.c.l.b16 %v1688
      %v1717 = vunpack.c.l.b16 %v1689
      %v1718 = vpack.c.b16 %v1711, %v1710
      %v1719 = vpack.c.b16 %v1713, %v1712
      %v1720 = vpack.c.b16 %v1715, %v1714
      %v1721 = vpack.c.b16 %v1717, %v1716
      %v1727 = vsel %vm427, %v1706, 0
      %v1730 = vsel %vm427, %v1707, 0
      %v1733 = vsel %vm427, %v1708, 0
      %v1736 = vsel %vm427, %v1709, 0
      %1738 = vmatpush.bf16.msra.mxu0 0
      %1739 = vmatpush.bf16.msra.mxu0 0
      %1740 = vmatpush.bf16.msra.mxu0 0
      %1741 = vmatpush.bf16.msra.mxu0 0
      %1742 = vmatpush.bf16.msra.mxu0 %v1721
      %1743 = vmatpush.bf16.msra.mxu0 %v1720
      %1744 = vmatpush.bf16.msra.mxu0 %v1719
      %1745 = vmatpush.bf16.msra.mxu0 %v1718
      %1746 = vmatmul.bf16.gmra.mxu0 %v1727
      %v1747 = vpop.f32.mrf.mxu0
      %v1748 = vadd.f32 0.0, %v1747
      %v1749 = vpop.f32.mrf.mxu0
      %v1750 = vadd.f32 0.0, %v1749
      %1751 = vmatmul.bf16.gmra.mxu0 %v1730
      %v1752 = vpop.f32.mrf.mxu0
      %v1753 = vadd.f32 0.0, %v1752
      %v1754 = vpop.f32.mrf.mxu0
      %v1755 = vadd.f32 0.0, %v1754
      %1756 = vmatmul.bf16.gmra.mxu0 %v1733
      %v1757 = vpop.f32.mrf.mxu0
      %v1758 = vadd.f32 0.0, %v1757
      %v1759 = vpop.f32.mrf.mxu0
      %v1760 = vadd.f32 0.0, %v1759
      %1761 = vmatmul.bf16.gmra.mxu0 %v1736
      %v1762 = vpop.f32.mrf.mxu0
      %v1763 = vadd.f32 0.0, %v1762
      %v1764 = vpop.f32.mrf.mxu0
      %v1765 = vadd.f32 0.0, %v1764
      %1766 = vdwg.mxu0
      %v1767 = vpack.c.bf16 %v1493, %v1493
      %v1768 = vpack.c.bf16 %v1495, %v1495
      %v1769 = vpack.c.bf16 %v1498, %v1498
      %v1770 = vpack.c.bf16 %v1500, %v1500
      %v1771 = vpack.c.bf16 %v1503, %v1503
      %v1772 = vpack.c.bf16 %v1505, %v1505
      %v1773 = vpack.c.bf16 %v1508, %v1508
      %v1774 = vpack.c.bf16 %v1510, %v1510
      %v1775 = vpack.c.bf16 %v1578, %v1578
      %v1776 = vpack.c.bf16 %v1580, %v1580
      %v1777 = vpack.c.bf16 %v1583, %v1583
      %v1778 = vpack.c.bf16 %v1585, %v1585
      %v1779 = vpack.c.bf16 %v1588, %v1588
      %v1780 = vpack.c.bf16 %v1590, %v1590
      %v1781 = vpack.c.bf16 %v1593, %v1593
      %v1782 = vpack.c.bf16 %v1595, %v1595
      %v1783 = vpack.c.bf16 %v1663, %v1663
      %v1784 = vpack.c.bf16 %v1665, %v1665
      %v1785 = vpack.c.bf16 %v1668, %v1668
      %v1786 = vpack.c.bf16 %v1670, %v1670
      %v1787 = vpack.c.bf16 %v1673, %v1673
      %v1788 = vpack.c.bf16 %v1675, %v1675
      %v1789 = vpack.c.bf16 %v1678, %v1678
      %v1790 = vpack.c.bf16 %v1680, %v1680
      %v1791 = vpack.c.bf16 %v1748, %v1748
      %v1792 = vpack.c.bf16 %v1750, %v1750
      %v1793 = vpack.c.bf16 %v1753, %v1753
      %v1794 = vpack.c.bf16 %v1755, %v1755
      %v1795 = vpack.c.bf16 %v1758, %v1758
      %v1796 = vpack.c.bf16 %v1760, %v1760
      %v1797 = vpack.c.bf16 %v1763, %v1763
      %v1798 = vpack.c.bf16 %v1765, %v1765
      %vm1799 = vcmask 257024
      %1800 = vst.msk [vmem:[#allocation2] sm:$0xf] %vm1799, %v1767
      %1801 = vst.msk [vmem:[#allocation2 + $0x4] sm:$0xf] %vm1799, %v1768
      %1802 = vst.msk [vmem:[#allocation2 + $0x8] sm:$0xf] %vm1799, %v1769
      %1803 = vst.msk [vmem:[#allocation2 + $0xc] sm:$0xf] %vm1799, %v1770
      %1804 = vst.msk [vmem:[#allocation2 + $0x10] sm:$0xf] %vm1799, %v1771
      %1805 = vst.msk [vmem:[#allocation2 + $0x14] sm:$0xf] %vm1799, %v1772
      %1806 = vst.msk [vmem:[#allocation2 + $0x18] sm:$0xf] %vm1799, %v1773
      %1807 = vst.msk [vmem:[#allocation2 + $0x1c] sm:$0xf] %vm1799, %v1774
      %1808 = vst.msk [vmem:[#allocation2 + $0x20] sm:$0xf] %vm1799, %v1775
      %1809 = vst.msk [vmem:[#allocation2 + $0x24] sm:$0xf] %vm1799, %v1776
      %1810 = vst.msk [vmem:[#allocation2 + $0x28] sm:$0xf] %vm1799, %v1777
      %1811 = vst.msk [vmem:[#allocation2 + $0x2c] sm:$0xf] %vm1799, %v1778
      %1812 = vst.msk [vmem:[#allocation2 + $0x30] sm:$0xf] %vm1799, %v1779
      %1813 = vst.msk [vmem:[#allocation2 + $0x34] sm:$0xf] %vm1799, %v1780
      %1814 = vst.msk [vmem:[#allocation2 + $0x38] sm:$0xf] %vm1799, %v1781
      %1815 = vst.msk [vmem:[#allocation2 + $0x3c] sm:$0xf] %vm1799, %v1782
      %1816 = vst.msk [vmem:[#allocation2 + $0x40] sm:$0xf] %vm1799, %v1783
      %1817 = vst.msk [vmem:[#allocation2 + $0x44] sm:$0xf] %vm1799, %v1784
      %1818 = vst.msk [vmem:[#allocation2 + $0x48] sm:$0xf] %vm1799, %v1785
      %1819 = vst.msk [vmem:[#allocation2 + $0x4c] sm:$0xf] %vm1799, %v1786
      %1820 = vst.msk [vmem:[#allocation2 + $0x50] sm:$0xf] %vm1799, %v1787
      %1821 = vst.msk [vmem:[#allocation2 + $0x54] sm:$0xf] %vm1799, %v1788
      %1822 = vst.msk [vmem:[#allocation2 + $0x58] sm:$0xf] %vm1799, %v1789
      %1823 = vst.msk [vmem:[#allocation2 + $0x5c] sm:$0xf] %vm1799, %v1790
      %1824 = vst.msk [vmem:[#allocation2 + $0x60] sm:$0xf] %vm1799, %v1791
      %1825 = vst.msk [vmem:[#allocation2 + $0x64] sm:$0xf] %vm1799, %v1792
      %1826 = vst.msk [vmem:[#allocation2 + $0x68] sm:$0xf] %vm1799, %v1793
      %1827 = vst.msk [vmem:[#allocation2 + $0x6c] sm:$0xf] %vm1799, %v1794
      %1828 = vst.msk [vmem:[#allocation2 + $0x70] sm:$0xf] %vm1799, %v1795
      %1829 = vst.msk [vmem:[#allocation2 + $0x74] sm:$0xf] %vm1799, %v1796
      %1830 = vst.msk [vmem:[#allocation2 + $0x78] sm:$0xf] %vm1799, %v1797
      %1831 = vst.msk [vmem:[#allocation2 + $0x7c] sm:$0xf] %vm1799, %v1798
      %s1832 = scalar_lea.vmem %s3, 64
      %v1833 = vld [vmem:[%s1832] sm:$0xff]
      %v1834 = vld [vmem:[%s1832 + $0x8] sm:$0xff]
      %v1835 = vld [vmem:[%s1832 + $0x10] sm:$0xff]
      %v1836 = vld [vmem:[%s1832 + $0x18] sm:$0xff]
      %v1837 = vld [vmem:[%s1832 + $0x20] sm:$0xff]
      %v1838 = vld [vmem:[%s1832 + $0x28] sm:$0xff]
      %v1839 = vld [vmem:[%s1832 + $0x30] sm:$0xff]
      %v1840 = vld [vmem:[%s1832 + $0x38] sm:$0xff]
      %v1841 = vld [vmem:[%s1832 + $0x80] sm:$0xff]
      %v1842 = vld [vmem:[%s1832 + $0x88] sm:$0xff]
      %v1843 = vld [vmem:[%s1832 + $0x90] sm:$0xff]
      %v1844 = vld [vmem:[%s1832 + $0x98] sm:$0xff]
      %v1845 = vld [vmem:[%s1832 + $0xa0] sm:$0xff]
      %v1846 = vld [vmem:[%s1832 + $0xa8] sm:$0xff]
      %v1847 = vld [vmem:[%s1832 + $0xb0] sm:$0xff]
      %v1848 = vld [vmem:[%s1832 + $0xb8] sm:$0xff]
      %v1849 = vld [vmem:[%s1832 + $0x100] sm:$0xff]
      %v1850 = vld [vmem:[%s1832 + $0x108] sm:$0xff]
      %v1851 = vld [vmem:[%s1832 + $0x110] sm:$0xff]
      %v1852 = vld [vmem:[%s1832 + $0x118] sm:$0xff]
      %v1853 = vld [vmem:[%s1832 + $0x120] sm:$0xff]
      %v1854 = vld [vmem:[%s1832 + $0x128] sm:$0xff]
      %v1855 = vld [vmem:[%s1832 + $0x130] sm:$0xff]
      %v1856 = vld [vmem:[%s1832 + $0x138] sm:$0xff]
      %v1857 = vld [vmem:[%s1832 + $0x180] sm:$0xff]
      %v1858 = vld [vmem:[%s1832 + $0x188] sm:$0xff]
      %v1859 = vld [vmem:[%s1832 + $0x190] sm:$0xff]
      %v1860 = vld [vmem:[%s1832 + $0x198] sm:$0xff]
      %v1861 = vld [vmem:[%s1832 + $0x1a0] sm:$0xff]
      %v1862 = vld [vmem:[%s1832 + $0x1a8] sm:$0xff]
      %v1863 = vld [vmem:[%s1832 + $0x1b0] sm:$0xff]
      %v1864 = vld [vmem:[%s1832 + $0x1b8] sm:$0xff]
      %1865 = vrot.lane.b32.xlu0 %v734, 96
      %v1866 = vpop.permute.xlu0 %1865
      %1867 = vrot.lane.b32.xlu0 %v735, 96
      %v1868 = vpop.permute.xlu0 %1867
      %1869 = vrot.lane.b32.xlu0 %v736, 96
      %v1870 = vpop.permute.xlu0 %1869
      %1871 = vrot.lane.b32.xlu0 %v737, 96
      %v1872 = vpop.permute.xlu0 %1871
      %1873 = vrot.lane.b32.xlu0 %v734, 32
      %v1874 = vpop.permute.xlu0 %1873
      %1875 = vrot.lane.b32.xlu0 %v735, 32
      %v1876 = vpop.permute.xlu0 %1875
      %1877 = vrot.lane.b32.xlu0 %v736, 32
      %v1878 = vpop.permute.xlu0 %1877
      %1879 = vrot.lane.b32.xlu0 %v737, 32
      %v1880 = vpop.permute.xlu0 %1879
      %v1882 = vsel %vm746, %v1866, 0
      %v1885 = vsel %vm746, %v1868, 0
      %v1888 = vsel %vm746, %v1870, 0
      %v1891 = vsel %vm746, %v1872, 0
      %v1894 = vsel %vm746, %v1874, 0
      %v1897 = vsel %vm746, %v1876, 0
      %v1900 = vsel %vm746, %v1878, 0
      %v1903 = vsel %vm746, %v1880, 0
      %1905 = vmatpush.bf16.xpose.msra.mxu0 0
      %1906 = vmatpush.bf16.xpose.msra.mxu0 0
      %1907 = vmatpush.bf16.xpose.msra.mxu0 0
      %1908 = vmatpush.bf16.xpose.msra.mxu0 0
      %1909 = vmatpush.bf16.xpose.msra.mxu0 %v1903
      %1910 = vmatpush.bf16.xpose.msra.mxu0 %v1900
      %1911 = vmatpush.bf16.xpose.msra.mxu0 %v1897
      %1912 = vmatpush.bf16.xpose.msra.mxu0 %v1894
      %1913 = vmatmul.bf16.gmra.mxu0 %v1882
      %v1914 = vpop.f32.mrf.mxu0
      %v1915 = vadd.f32 %v1833, %v1914
      %v1916 = vpop.f32.mrf.mxu0
      %v1917 = vadd.f32 %v1834, %v1916
      %1918 = vmatmul.bf16.gmra.mxu0 %v1885
      %v1919 = vpop.f32.mrf.mxu0
      %v1920 = vadd.f32 %v1835, %v1919
      %v1921 = vpop.f32.mrf.mxu0
      %v1922 = vadd.f32 %v1836, %v1921
      %1923 = vmatmul.bf16.gmra.mxu0 %v1888
      %v1924 = vpop.f32.mrf.mxu0
      %v1925 = vadd.f32 %v1837, %v1924
      %v1926 = vpop.f32.mrf.mxu0
      %v1927 = vadd.f32 %v1838, %v1926
      %1928 = vmatmul.bf16.gmra.mxu0 %v1891
      %v1929 = vpop.f32.mrf.mxu0
      %v1930 = vadd.f32 %v1839, %v1929
      %v1931 = vpop.f32.mrf.mxu0
      %v1932 = vadd.f32 %v1840, %v1931
      %1933 = vdwg.mxu0
      %1934 = vrot.lane.b32.xlu0 %v816, 96
      %v1935 = vpop.permute.xlu0 %1934
      %1936 = vrot.lane.b32.xlu0 %v817, 96
      %v1937 = vpop.permute.xlu0 %1936
      %1938 = vrot.lane.b32.xlu0 %v818, 96
      %v1939 = vpop.permute.xlu0 %1938
      %1940 = vrot.lane.b32.xlu0 %v819, 96
      %v1941 = vpop.permute.xlu0 %1940
      %1942 = vrot.lane.b32.xlu0 %v816, 32
      %v1943 = vpop.permute.xlu0 %1942
      %1944 = vrot.lane.b32.xlu0 %v817, 32
      %v1945 = vpop.permute.xlu0 %1944
      %1946 = vrot.lane.b32.xlu0 %v818, 32
      %v1947 = vpop.permute.xlu0 %1946
      %1948 = vrot.lane.b32.xlu0 %v819, 32
      %v1949 = vpop.permute.xlu0 %1948
      %v1951 = vsel %vm746, %v1935, 0
      %v1954 = vsel %vm746, %v1937, 0
      %v1957 = vsel %vm746, %v1939, 0
      %v1960 = vsel %vm746, %v1941, 0
      %v1963 = vsel %vm746, %v1943, 0
      %v1966 = vsel %vm746, %v1945, 0
      %v1969 = vsel %vm746, %v1947, 0
      %v1972 = vsel %vm746, %v1949, 0
      %1974 = vmatpush.bf16.xpose.msra.mxu0 0
      %1975 = vmatpush.bf16.xpose.msra.mxu0 0
      %1976 = vmatpush.bf16.xpose.msra.mxu0 0
      %1977 = vmatpush.bf16.xpose.msra.mxu0 0
      %1978 = vmatpush.bf16.xpose.msra.mxu0 %v1972
      %1979 = vmatpush.bf16.xpose.msra.mxu0 %v1969
      %1980 = vmatpush.bf16.xpose.msra.mxu0 %v1966
      %1981 = vmatpush.bf16.xpose.msra.mxu0 %v1963
      %1982 = vmatmul.bf16.gmra.mxu0 %v1951
      %v1983 = vpop.f32.mrf.mxu0
      %v1984 = vadd.f32 %v1841, %v1983
      %v1985 = vpop.f32.mrf.mxu0
      %v1986 = vadd.f32 %v1842, %v1985
      %1987 = vmatmul.bf16.gmra.mxu0 %v1954
      %v1988 = vpop.f32.mrf.mxu0
      %v1989 = vadd.f32 %v1843, %v1988
      %v1990 = vpop.f32.mrf.mxu0
      %v1991 = vadd.f32 %v1844, %v1990
      %1992 = vmatmul.bf16.gmra.mxu0 %v1957
      %v1993 = vpop.f32.mrf.mxu0
      %v1994 = vadd.f32 %v1845, %v1993
      %v1995 = vpop.f32.mrf.mxu0
      %v1996 = vadd.f32 %v1846, %v1995
      %1997 = vmatmul.bf16.gmra.mxu0 %v1960
      %v1998 = vpop.f32.mrf.mxu0
      %v1999 = vadd.f32 %v1847, %v1998
      %v2000 = vpop.f32.mrf.mxu0
      %v2001 = vadd.f32 %v1848, %v2000
      %2002 = vdwg.mxu0
      %2003 = vrot.lane.b32.xlu0 %v897, 96
      %v2004 = vpop.permute.xlu0 %2003
      %2005 = vrot.lane.b32.xlu0 %v898, 96
      %v2006 = vpop.permute.xlu0 %2005
      %2007 = vrot.lane.b32.xlu0 %v899, 96
      %v2008 = vpop.permute.xlu0 %2007
      %2009 = vrot.lane.b32.xlu0 %v900, 96
      %v2010 = vpop.permute.xlu0 %2009
      %2011 = vrot.lane.b32.xlu0 %v897, 32
      %v2012 = vpop.permute.xlu0 %2011
      %2013 = vrot.lane.b32.xlu0 %v898, 32
      %v2014 = vpop.permute.xlu0 %2013
      %2015 = vrot.lane.b32.xlu0 %v899, 32
      %v2016 = vpop.permute.xlu0 %2015
      %2017 = vrot.lane.b32.xlu0 %v900, 32
      %v2018 = vpop.permute.xlu0 %2017
      %v2020 = vsel %vm746, %v2004, 0
      %v2023 = vsel %vm746, %v2006, 0
      %v2026 = vsel %vm746, %v2008, 0
      %v2029 = vsel %vm746, %v2010, 0
      %v2032 = vsel %vm746, %v2012, 0
      %v2035 = vsel %vm746, %v2014, 0
      %v2038 = vsel %vm746, %v2016, 0
      %v2041 = vsel %vm746, %v2018, 0
      %2043 = vmatpush.bf16.xpose.msra.mxu0 0
      %2044 = vmatpush.bf16.xpose.msra.mxu0 0
      %2045 = vmatpush.bf16.xpose.msra.mxu0 0
      %2046 = vmatpush.bf16.xpose.msra.mxu0 0
      %2047 = vmatpush.bf16.xpose.msra.mxu0 %v2041
      %2048 = vmatpush.bf16.xpose.msra.mxu0 %v2038
      %2049 = vmatpush.bf16.xpose.msra.mxu0 %v2035
      %2050 = vmatpush.bf16.xpose.msra.mxu0 %v2032
      %2051 = vmatmul.bf16.gmra.mxu0 %v2020
      %v2052 = vpop.f32.mrf.mxu0
      %v2053 = vadd.f32 %v1849, %v2052
      %v2054 = vpop.f32.mrf.mxu0
      %v2055 = vadd.f32 %v1850, %v2054
      %2056 = vmatmul.bf16.gmra.mxu0 %v2023
      %v2057 = vpop.f32.mrf.mxu0
      %v2058 = vadd.f32 %v1851, %v2057
      %v2059 = vpop.f32.mrf.mxu0
      %v2060 = vadd.f32 %v1852, %v2059
      %2061 = vmatmul.bf16.gmra.mxu0 %v2026
      %v2062 = vpop.f32.mrf.mxu0
      %v2063 = vadd.f32 %v1853, %v2062
      %v2064 = vpop.f32.mrf.mxu0
      %v2065 = vadd.f32 %v1854, %v2064
      %2066 = vmatmul.bf16.gmra.mxu0 %v2029
      %v2067 = vpop.f32.mrf.mxu0
      %v2068 = vadd.f32 %v1855, %v2067
      %v2069 = vpop.f32.mrf.mxu0
      %v2070 = vadd.f32 %v1856, %v2069
      %2071 = vdwg.mxu0
      %2072 = vrot.lane.b32.xlu0 %v978, 96
      %v2073 = vpop.permute.xlu0 %2072
      %2074 = vrot.lane.b32.xlu0 %v979, 96
      %v2075 = vpop.permute.xlu0 %2074
      %2076 = vrot.lane.b32.xlu0 %v980, 96
      %v2077 = vpop.permute.xlu0 %2076
      %2078 = vrot.lane.b32.xlu0 %v981, 96
      %v2079 = vpop.permute.xlu0 %2078
      %2080 = vrot.lane.b32.xlu0 %v978, 32
      %v2081 = vpop.permute.xlu0 %2080
      %2082 = vrot.lane.b32.xlu0 %v979, 32
      %v2083 = vpop.permute.xlu0 %2082
      %2084 = vrot.lane.b32.xlu0 %v980, 32
      %v2085 = vpop.permute.xlu0 %2084
      %2086 = vrot.lane.b32.xlu0 %v981, 32
      %v2087 = vpop.permute.xlu0 %2086
      %v2089 = vsel %vm746, %v2073, 0
      %v2092 = vsel %vm746, %v2075, 0
      %v2095 = vsel %vm746, %v2077, 0
      %v2098 = vsel %vm746, %v2079, 0
      %v2101 = vsel %vm746, %v2081, 0
      %v2104 = vsel %vm746, %v2083, 0
      %v2107 = vsel %vm746, %v2085, 0
      %v2110 = vsel %vm746, %v2087, 0
      %2112 = vmatpush.bf16.xpose.msra.mxu0 0
      %2113 = vmatpush.bf16.xpose.msra.mxu0 0
      %2114 = vmatpush.bf16.xpose.msra.mxu0 0
      %2115 = vmatpush.bf16.xpose.msra.mxu0 0
      %2116 = vmatpush.bf16.xpose.msra.mxu0 %v2110
      %2117 = vmatpush.bf16.xpose.msra.mxu0 %v2107
      %2118 = vmatpush.bf16.xpose.msra.mxu0 %v2104
      %2119 = vmatpush.bf16.xpose.msra.mxu0 %v2101
      %2120 = vmatmul.bf16.gmra.mxu0 %v2089
      %v2121 = vpop.f32.mrf.mxu0
      %v2122 = vadd.f32 %v1857, %v2121
      %v2123 = vpop.f32.mrf.mxu0
      %v2124 = vadd.f32 %v1858, %v2123
      %2125 = vmatmul.bf16.gmra.mxu0 %v2092
      %v2126 = vpop.f32.mrf.mxu0
      %v2127 = vadd.f32 %v1859, %v2126
      %v2128 = vpop.f32.mrf.mxu0
      %v2129 = vadd.f32 %v1860, %v2128
      %2130 = vmatmul.bf16.gmra.mxu0 %v2095
      %v2131 = vpop.f32.mrf.mxu0
      %v2132 = vadd.f32 %v1861, %v2131
      %v2133 = vpop.f32.mrf.mxu0
      %v2134 = vadd.f32 %v1862, %v2133
      %2135 = vmatmul.bf16.gmra.mxu0 %v2098
      %v2136 = vpop.f32.mrf.mxu0
      %v2137 = vadd.f32 %v1863, %v2136
      %v2138 = vpop.f32.mrf.mxu0
      %v2139 = vadd.f32 %v1864, %v2138
      %2140 = vdwg.mxu0
      %v2141 = vsel %vm427, %v1915, -inf
      %2142 = vmax.xlane.f32.xlu0 %v2141
      %v2143 = vpop.xlane.xlu0 %2142
      %v2144 = vsel %vm427, %v1917, -inf
      %2145 = vmax.xlane.f32.xlu0 %v2144
      %v2146 = vpop.xlane.xlu0 %2145
      %v2147 = vsel %vm427, %v1920, -inf
      %2148 = vmax.xlane.f32.xlu0 %v2147
      %v2149 = vpop.xlane.xlu0 %2148
      %v2150 = vsel %vm427, %v1922, -inf
      %2151 = vmax.xlane.f32.xlu0 %v2150
      %v2152 = vpop.xlane.xlu0 %2151
      %v2153 = vsel %vm427, %v1925, -inf
      %2154 = vmax.xlane.f32.xlu0 %v2153
      %v2155 = vpop.xlane.xlu0 %2154
      %v2156 = vsel %vm427, %v1927, -inf
      %2157 = vmax.xlane.f32.xlu0 %v2156
      %v2158 = vpop.xlane.xlu0 %2157
      %v2159 = vsel %vm427, %v1930, -inf
      %2160 = vmax.xlane.f32.xlu0 %v2159
      %v2161 = vpop.xlane.xlu0 %2160
      %v2162 = vsel %vm427, %v1932, -inf
      %2163 = vmax.xlane.f32.xlu0 %v2162
      %v2164 = vpop.xlane.xlu0 %2163
      %v2165 = vsel %vm427, %v1984, -inf
      %2166 = vmax.xlane.f32.xlu0 %v2165
      %v2167 = vpop.xlane.xlu0 %2166
      %v2168 = vsel %vm427, %v1986, -inf
      %2169 = vmax.xlane.f32.xlu0 %v2168
      %v2170 = vpop.xlane.xlu0 %2169
      %v2171 = vsel %vm427, %v1989, -inf
      %2172 = vmax.xlane.f32.xlu0 %v2171
      %v2173 = vpop.xlane.xlu0 %2172
      %v2174 = vsel %vm427, %v1991, -inf
      %2175 = vmax.xlane.f32.xlu0 %v2174
      %v2176 = vpop.xlane.xlu0 %2175
      %v2177 = vsel %vm427, %v1994, -inf
      %2178 = vmax.xlane.f32.xlu0 %v2177
      %v2179 = vpop.xlane.xlu0 %2178
      %v2180 = vsel %vm427, %v1996, -inf
      %2181 = vmax.xlane.f32.xlu0 %v2180
      %v2182 = vpop.xlane.xlu0 %2181
      %v2183 = vsel %vm427, %v1999, -inf
      %2184 = vmax.xlane.f32.xlu0 %v2183
      %v2185 = vpop.xlane.xlu0 %2184
      %v2186 = vsel %vm427, %v2001, -inf
      %2187 = vmax.xlane.f32.xlu0 %v2186
      %v2188 = vpop.xlane.xlu0 %2187
      %v2189 = vsel %vm427, %v2053, -inf
      %2190 = vmax.xlane.f32.xlu0 %v2189
      %v2191 = vpop.xlane.xlu0 %2190
      %v2192 = vsel %vm427, %v2055, -inf
      %2193 = vmax.xlane.f32.xlu0 %v2192
      %v2194 = vpop.xlane.xlu0 %2193
      %v2195 = vsel %vm427, %v2058, -inf
      %2196 = vmax.xlane.f32.xlu0 %v2195
      %v2197 = vpop.xlane.xlu0 %2196
      %v2198 = vsel %vm427, %v2060, -inf
      %2199 = vmax.xlane.f32.xlu0 %v2198
      %v2200 = vpop.xlane.xlu0 %2199
      %v2201 = vsel %vm427, %v2063, -inf
      %2202 = vmax.xlane.f32.xlu0 %v2201
      %v2203 = vpop.xlane.xlu0 %2202
      %v2204 = vsel %vm427, %v2065, -inf
      %2205 = vmax.xlane.f32.xlu0 %v2204
      %v2206 = vpop.xlane.xlu0 %2205
      %v2207 = vsel %vm427, %v2068, -inf
      %2208 = vmax.xlane.f32.xlu0 %v2207
      %v2209 = vpop.xlane.xlu0 %2208
      %v2210 = vsel %vm427, %v2070, -inf
      %2211 = vmax.xlane.f32.xlu0 %v2210
      %v2212 = vpop.xlane.xlu0 %2211
      %v2213 = vsel %vm427, %v2122, -inf
      %2214 = vmax.xlane.f32.xlu0 %v2213
      %v2215 = vpop.xlane.xlu0 %2214
      %v2216 = vsel %vm427, %v2124, -inf
      %2217 = vmax.xlane.f32.xlu0 %v2216
      %v2218 = vpop.xlane.xlu0 %2217
      %v2219 = vsel %vm427, %v2127, -inf
      %2220 = vmax.xlane.f32.xlu0 %v2219
      %v2221 = vpop.xlane.xlu0 %2220
      %v2222 = vsel %vm427, %v2129, -inf
      %2223 = vmax.xlane.f32.xlu0 %v2222
      %v2224 = vpop.xlane.xlu0 %2223
      %v2225 = vsel %vm427, %v2132, -inf
      %2226 = vmax.xlane.f32.xlu0 %v2225
      %v2227 = vpop.xlane.xlu0 %2226
      %v2228 = vsel %vm427, %v2134, -inf
      %2229 = vmax.xlane.f32.xlu0 %v2228
      %v2230 = vpop.xlane.xlu0 %2229
      %v2231 = vsel %vm427, %v2137, -inf
      %2232 = vmax.xlane.f32.xlu0 %v2231
      %v2233 = vpop.xlane.xlu0 %2232
      %v2234 = vsel %vm427, %v2139, -inf
      %2235 = vmax.xlane.f32.xlu0 %v2234
      %v2236 = vpop.xlane.xlu0 %2235
      %v2237 = vsub.f32 %v1915, %v2143
      %v2238 = vsub.f32 %v1917, %v2146
      %v2239 = vsub.f32 %v1920, %v2149
      %v2240 = vsub.f32 %v1922, %v2152
      %v2241 = vsub.f32 %v1925, %v2155
      %v2242 = vsub.f32 %v1927, %v2158
      %v2243 = vsub.f32 %v1930, %v2161
      %v2244 = vsub.f32 %v1932, %v2164
      %v2245 = vsub.f32 %v1984, %v2167
      %v2246 = vsub.f32 %v1986, %v2170
      %v2247 = vsub.f32 %v1989, %v2173
      %v2248 = vsub.f32 %v1991, %v2176
      %v2249 = vsub.f32 %v1994, %v2179
      %v2250 = vsub.f32 %v1996, %v2182
      %v2251 = vsub.f32 %v1999, %v2185
      %v2252 = vsub.f32 %v2001, %v2188
      %v2253 = vsub.f32 %v2053, %v2191
      %v2254 = vsub.f32 %v2055, %v2194
      %v2255 = vsub.f32 %v2058, %v2197
      %v2256 = vsub.f32 %v2060, %v2200
      %v2257 = vsub.f32 %v2063, %v2203
      %v2258 = vsub.f32 %v2065, %v2206
      %v2259 = vsub.f32 %v2068, %v2209
      %v2260 = vsub.f32 %v2070, %v2212
      %v2261 = vsub.f32 %v2122, %v2215
      %v2262 = vsub.f32 %v2124, %v2218
      %v2263 = vsub.f32 %v2127, %v2221
      %v2264 = vsub.f32 %v2129, %v2224
      %v2265 = vsub.f32 %v2132, %v2227
      %v2266 = vsub.f32 %v2134, %v2230
      %v2267 = vsub.f32 %v2137, %v2233
      %v2268 = vsub.f32 %v2139, %v2236
      %v2269 = vmul.f32 %v2237, 1.442695
      %v2270 = vpow.pop %v2269
      %v2271 = vmul.f32 %v2238, 1.442695
      %v2272 = vpow.pop %v2271
      %v2273 = vmul.f32 %v2239, 1.442695
      %v2274 = vpow.pop %v2273
      %v2275 = vmul.f32 %v2240, 1.442695
      %v2276 = vpow.pop %v2275
      %v2277 = vmul.f32 %v2241, 1.442695
      %v2278 = vpow.pop %v2277
      %v2279 = vmul.f32 %v2242, 1.442695
      %v2280 = vpow.pop %v2279
      %v2281 = vmul.f32 %v2243, 1.442695
      %v2282 = vpow.pop %v2281
      %v2283 = vmul.f32 %v2244, 1.442695
      %v2284 = vpow.pop %v2283
      %v2285 = vmul.f32 %v2245, 1.442695
      %v2286 = vpow.pop %v2285
      %v2287 = vmul.f32 %v2246, 1.442695
      %v2288 = vpow.pop %v2287
      %v2289 = vmul.f32 %v2247, 1.442695
      %v2290 = vpow.pop %v2289
      %v2291 = vmul.f32 %v2248, 1.442695
      %v2292 = vpow.pop %v2291
      %v2293 = vmul.f32 %v2249, 1.442695
      %v2294 = vpow.pop %v2293
      %v2295 = vmul.f32 %v2250, 1.442695
      %v2296 = vpow.pop %v2295
      %v2297 = vmul.f32 %v2251, 1.442695
      %v2298 = vpow.pop %v2297
      %v2299 = vmul.f32 %v2252, 1.442695
      %v2300 = vpow.pop %v2299
      %v2301 = vmul.f32 %v2253, 1.442695
      %v2302 = vpow.pop %v2301
      %v2303 = vmul.f32 %v2254, 1.442695
      %v2304 = vpow.pop %v2303
      %v2305 = vmul.f32 %v2255, 1.442695
      %v2306 = vpow.pop %v2305
      %v2307 = vmul.f32 %v2256, 1.442695
      %v2308 = vpow.pop %v2307
      %v2309 = vmul.f32 %v2257, 1.442695
      %v2310 = vpow.pop %v2309
      %v2311 = vmul.f32 %v2258, 1.442695
      %v2312 = vpow.pop %v2311
      %v2313 = vmul.f32 %v2259, 1.442695
      %v2314 = vpow.pop %v2313
      %v2315 = vmul.f32 %v2260, 1.442695
      %v2316 = vpow.pop %v2315
      %v2317 = vmul.f32 %v2261, 1.442695
      %v2318 = vpow.pop %v2317
      %v2319 = vmul.f32 %v2262, 1.442695
      %v2320 = vpow.pop %v2319
      %v2321 = vmul.f32 %v2263, 1.442695
      %v2322 = vpow.pop %v2321
      %v2323 = vmul.f32 %v2264, 1.442695
      %v2324 = vpow.pop %v2323
      %v2325 = vmul.f32 %v2265, 1.442695
      %v2326 = vpow.pop %v2325
      %v2327 = vmul.f32 %v2266, 1.442695
      %v2328 = vpow.pop %v2327
      %v2329 = vmul.f32 %v2267, 1.442695
      %v2330 = vpow.pop %v2329
      %v2331 = vmul.f32 %v2268, 1.442695
      %v2332 = vpow.pop %v2331
      %v2333 = vsel %vm427, %v2270, 0.0
      %2334 = vadd.xlane.f32.xlu0 %v2333
      %v2335 = vpop.xlane.xlu0 %2334
      %v2336 = vsel %vm427, %v2272, 0.0
      %2337 = vadd.xlane.f32.xlu0 %v2336
      %v2338 = vpop.xlane.xlu0 %2337
      %v2339 = vsel %vm427, %v2274, 0.0
      %2340 = vadd.xlane.f32.xlu0 %v2339
      %v2341 = vpop.xlane.xlu0 %2340
      %v2342 = vsel %vm427, %v2276, 0.0
      %2343 = vadd.xlane.f32.xlu0 %v2342
      %v2344 = vpop.xlane.xlu0 %2343
      %v2345 = vsel %vm427, %v2278, 0.0
      %2346 = vadd.xlane.f32.xlu0 %v2345
      %v2347 = vpop.xlane.xlu0 %2346
      %v2348 = vsel %vm427, %v2280, 0.0
      %2349 = vadd.xlane.f32.xlu0 %v2348
      %v2350 = vpop.xlane.xlu0 %2349
      %v2351 = vsel %vm427, %v2282, 0.0
      %2352 = vadd.xlane.f32.xlu0 %v2351
      %v2353 = vpop.xlane.xlu0 %2352
      %v2354 = vsel %vm427, %v2284, 0.0
      %2355 = vadd.xlane.f32.xlu0 %v2354
      %v2356 = vpop.xlane.xlu0 %2355
      %v2357 = vsel %vm427, %v2286, 0.0
      %2358 = vadd.xlane.f32.xlu0 %v2357
      %v2359 = vpop.xlane.xlu0 %2358
      %v2360 = vsel %vm427, %v2288, 0.0
      %2361 = vadd.xlane.f32.xlu0 %v2360
      %v2362 = vpop.xlane.xlu0 %2361
      %v2363 = vsel %vm427, %v2290, 0.0
      %2364 = vadd.xlane.f32.xlu0 %v2363
      %v2365 = vpop.xlane.xlu0 %2364
      %v2366 = vsel %vm427, %v2292, 0.0
      %2367 = vadd.xlane.f32.xlu0 %v2366
      %v2368 = vpop.xlane.xlu0 %2367
      %v2369 = vsel %vm427, %v2294, 0.0
      %2370 = vadd.xlane.f32.xlu0 %v2369
      %v2371 = vpop.xlane.xlu0 %2370
      %v2372 = vsel %vm427, %v2296, 0.0
      %2373 = vadd.xlane.f32.xlu0 %v2372
      %v2374 = vpop.xlane.xlu0 %2373
      %v2375 = vsel %vm427, %v2298, 0.0
      %2376 = vadd.xlane.f32.xlu0 %v2375
      %v2377 = vpop.xlane.xlu0 %2376
      %v2378 = vsel %vm427, %v2300, 0.0
      %2379 = vadd.xlane.f32.xlu0 %v2378
      %v2380 = vpop.xlane.xlu0 %2379
      %v2381 = vsel %vm427, %v2302, 0.0
      %2382 = vadd.xlane.f32.xlu0 %v2381
      %v2383 = vpop.xlane.xlu0 %2382
      %v2384 = vsel %vm427, %v2304, 0.0
      %2385 = vadd.xlane.f32.xlu0 %v2384
      %v2386 = vpop.xlane.xlu0 %2385
      %v2387 = vsel %vm427, %v2306, 0.0
      %2388 = vadd.xlane.f32.xlu0 %v2387
      %v2389 = vpop.xlane.xlu0 %2388
      %v2390 = vsel %vm427, %v2308, 0.0
      %2391 = vadd.xlane.f32.xlu0 %v2390
      %v2392 = vpop.xlane.xlu0 %2391
      %v2393 = vsel %vm427, %v2310, 0.0
      %2394 = vadd.xlane.f32.xlu0 %v2393
      %v2395 = vpop.xlane.xlu0 %2394
      %v2396 = vsel %vm427, %v2312, 0.0
      %2397 = vadd.xlane.f32.xlu0 %v2396
      %v2398 = vpop.xlane.xlu0 %2397
      %v2399 = vsel %vm427, %v2314, 0.0
      %2400 = vadd.xlane.f32.xlu0 %v2399
      %v2401 = vpop.xlane.xlu0 %2400
      %v2402 = vsel %vm427, %v2316, 0.0
      %2403 = vadd.xlane.f32.xlu0 %v2402
      %v2404 = vpop.xlane.xlu0 %2403
      %v2405 = vsel %vm427, %v2318, 0.0
      %2406 = vadd.xlane.f32.xlu0 %v2405
      %v2407 = vpop.xlane.xlu0 %2406
      %v2408 = vsel %vm427, %v2320, 0.0
      %2409 = vadd.xlane.f32.xlu0 %v2408
      %v2410 = vpop.xlane.xlu0 %2409
      %v2411 = vsel %vm427, %v2322, 0.0
      %2412 = vadd.xlane.f32.xlu0 %v2411
      %v2413 = vpop.xlane.xlu0 %2412
      %v2414 = vsel %vm427, %v2324, 0.0
      %2415 = vadd.xlane.f32.xlu0 %v2414
      %v2416 = vpop.xlane.xlu0 %2415
      %v2417 = vsel %vm427, %v2326, 0.0
      %2418 = vadd.xlane.f32.xlu0 %v2417
      %v2419 = vpop.xlane.xlu0 %2418
      %v2420 = vsel %vm427, %v2328, 0.0
      %2421 = vadd.xlane.f32.xlu0 %v2420
      %v2422 = vpop.xlane.xlu0 %2421
      %v2423 = vsel %vm427, %v2330, 0.0
      %2424 = vadd.xlane.f32.xlu0 %v2423
      %v2425 = vpop.xlane.xlu0 %2424
      %v2426 = vsel %vm427, %v2332, 0.0
      %2427 = vadd.xlane.f32.xlu0 %v2426
      %v2428 = vpop.xlane.xlu0 %2427
      %v2429 = vrcp.pop %v2335
      %v2430 = vrcp.pop %v2338
      %v2431 = vrcp.pop %v2341
      %v2432 = vrcp.pop %v2344
      %v2433 = vrcp.pop %v2347
      %v2434 = vrcp.pop %v2350
      %v2435 = vrcp.pop %v2353
      %v2436 = vrcp.pop %v2356
      %v2437 = vrcp.pop %v2359
      %v2438 = vrcp.pop %v2362
      %v2439 = vrcp.pop %v2365
      %v2440 = vrcp.pop %v2368
      %v2441 = vrcp.pop %v2371
      %v2442 = vrcp.pop %v2374
      %v2443 = vrcp.pop %v2377
      %v2444 = vrcp.pop %v2380
      %v2445 = vrcp.pop %v2383
      %v2446 = vrcp.pop %v2386
      %v2447 = vrcp.pop %v2389
      %v2448 = vrcp.pop %v2392
      %v2449 = vrcp.pop %v2395
      %v2450 = vrcp.pop %v2398
      %v2451 = vrcp.pop %v2401
      %v2452 = vrcp.pop %v2404
      %v2453 = vrcp.pop %v2407
      %v2454 = vrcp.pop %v2410
      %v2455 = vrcp.pop %v2413
      %v2456 = vrcp.pop %v2416
      %v2457 = vrcp.pop %v2419
      %v2458 = vrcp.pop %v2422
      %v2459 = vrcp.pop %v2425
      %v2460 = vrcp.pop %v2428
      %v2461 = vmul.f32 %v2270, %v2429
      %v2462 = vmul.f32 %v2272, %v2430
      %v2463 = vmul.f32 %v2274, %v2431
      %v2464 = vmul.f32 %v2276, %v2432
      %v2465 = vmul.f32 %v2278, %v2433
      %v2466 = vmul.f32 %v2280, %v2434
      %v2467 = vmul.f32 %v2282, %v2435
      %v2468 = vmul.f32 %v2284, %v2436
      %v2469 = vmul.f32 %v2286, %v2437
      %v2470 = vmul.f32 %v2288, %v2438
      %v2471 = vmul.f32 %v2290, %v2439
      %v2472 = vmul.f32 %v2292, %v2440
      %v2473 = vmul.f32 %v2294, %v2441
      %v2474 = vmul.f32 %v2296, %v2442
      %v2475 = vmul.f32 %v2298, %v2443
      %v2476 = vmul.f32 %v2300, %v2444
      %v2477 = vmul.f32 %v2302, %v2445
      %v2478 = vmul.f32 %v2304, %v2446
      %v2479 = vmul.f32 %v2306, %v2447
      %v2480 = vmul.f32 %v2308, %v2448
      %v2481 = vmul.f32 %v2310, %v2449
      %v2482 = vmul.f32 %v2312, %v2450
      %v2483 = vmul.f32 %v2314, %v2451
      %v2484 = vmul.f32 %v2316, %v2452
      %v2485 = vmul.f32 %v2318, %v2453
      %v2486 = vmul.f32 %v2320, %v2454
      %v2487 = vmul.f32 %v2322, %v2455
      %v2488 = vmul.f32 %v2324, %v2456
      %v2489 = vmul.f32 %v2326, %v2457
      %v2490 = vmul.f32 %v2328, %v2458
      %v2491 = vmul.f32 %v2330, %v2459
      %v2492 = vmul.f32 %v2332, %v2460
      %v2493 = vpack.c.bf16 %v2461, %v2461
      %v2494 = vpack.c.bf16 %v2462, %v2462
      %v2495 = vpack.c.bf16 %v2463, %v2463
      %v2496 = vpack.c.bf16 %v2464, %v2464
      %v2497 = vpack.c.bf16 %v2465, %v2465
      %v2498 = vpack.c.bf16 %v2466, %v2466
      %v2499 = vpack.c.bf16 %v2467, %v2467
      %v2500 = vpack.c.bf16 %v2468, %v2468
      %v2501 = vpack.c.bf16 %v2469, %v2469
      %v2502 = vpack.c.bf16 %v2470, %v2470
      %v2503 = vpack.c.bf16 %v2471, %v2471
      %v2504 = vpack.c.bf16 %v2472, %v2472
      %v2505 = vpack.c.bf16 %v2473, %v2473
      %v2506 = vpack.c.bf16 %v2474, %v2474
      %v2507 = vpack.c.bf16 %v2475, %v2475
      %v2508 = vpack.c.bf16 %v2476, %v2476
      %v2509 = vpack.c.bf16 %v2477, %v2477
      %v2510 = vpack.c.bf16 %v2478, %v2478
      %v2511 = vpack.c.bf16 %v2479, %v2479
      %v2512 = vpack.c.bf16 %v2480, %v2480
      %v2513 = vpack.c.bf16 %v2481, %v2481
      %v2514 = vpack.c.bf16 %v2482, %v2482
      %v2515 = vpack.c.bf16 %v2483, %v2483
      %v2516 = vpack.c.bf16 %v2484, %v2484
      %v2517 = vpack.c.bf16 %v2485, %v2485
      %v2518 = vpack.c.bf16 %v2486, %v2486
      %v2519 = vpack.c.bf16 %v2487, %v2487
      %v2520 = vpack.c.bf16 %v2488, %v2488
      %v2521 = vpack.c.bf16 %v2489, %v2489
      %v2522 = vpack.c.bf16 %v2490, %v2490
      %v2523 = vpack.c.bf16 %v2491, %v2491
      %v2524 = vpack.c.bf16 %v2492, %v2492
      %2525 = vrot.lane.b32.xlu0 %v654, 96
      %v2526 = vpop.permute.xlu0 %2525
      %2527 = vrot.lane.b32.xlu0 %v655, 96
      %v2528 = vpop.permute.xlu0 %2527
      %2529 = vrot.lane.b32.xlu0 %v656, 96
      %v2530 = vpop.permute.xlu0 %2529
      %2531 = vrot.lane.b32.xlu0 %v657, 96
      %v2532 = vpop.permute.xlu0 %2531
      %2533 = vrot.lane.b32.xlu0 %v658, 96
      %v2534 = vpop.permute.xlu0 %2533
      %2535 = vrot.lane.b32.xlu0 %v659, 96
      %v2536 = vpop.permute.xlu0 %2535
      %2537 = vrot.lane.b32.xlu0 %v660, 96
      %v2538 = vpop.permute.xlu0 %2537
      %2539 = vrot.lane.b32.xlu0 %v661, 96
      %v2540 = vpop.permute.xlu0 %2539
      %v2541 = vrot.slane %v2526, 4
      %v2542 = vrot.slane %v2528, 4
      %v2543 = vrot.slane %v2530, 4
      %v2544 = vrot.slane %v2532, 4
      %v2545 = vrot.slane %v2534, 4
      %v2546 = vrot.slane %v2536, 4
      %v2547 = vrot.slane %v2538, 4
      %v2548 = vrot.slane %v2540, 4
      %v2557 = vunpack.c.l.b16 %v2493
      %v2558 = vunpack.c.l.b16 %v2494
      %v2559 = vunpack.c.l.b16 %v2495
      %v2560 = vunpack.c.l.b16 %v2496
      %v2561 = vunpack.c.l.b16 %v2497
      %v2562 = vunpack.c.l.b16 %v2498
      %v2563 = vunpack.c.l.b16 %v2499
      %v2564 = vunpack.c.l.b16 %v2500
      %v2565 = vpack.c.b16 %v2558, %v2557
      %v2566 = vpack.c.b16 %v2560, %v2559
      %v2567 = vpack.c.b16 %v2562, %v2561
      %v2568 = vpack.c.b16 %v2564, %v2563
      %v2569 = vunpack.c.l.b16 %v2541
      %v2570 = vunpack.c.l.b16 %v2542
      %v2571 = vunpack.c.l.b16 %v2543
      %v2572 = vunpack.c.l.b16 %v2544
      %v2573 = vunpack.c.l.b16 %v2545
      %v2574 = vunpack.c.l.b16 %v2546
      %v2575 = vunpack.c.l.b16 %v2547
      %v2576 = vunpack.c.l.b16 %v2548
      %v2577 = vpack.c.b16 %v2570, %v2569
      %v2578 = vpack.c.b16 %v2572, %v2571
      %v2579 = vpack.c.b16 %v2574, %v2573
      %v2580 = vpack.c.b16 %v2576, %v2575
      %v2586 = vsel %vm427, %v2565, 0
      %v2589 = vsel %vm427, %v2566, 0
      %v2592 = vsel %vm427, %v2567, 0
      %v2595 = vsel %vm427, %v2568, 0
      %2597 = vmatpush.bf16.msra.mxu0 0
      %2598 = vmatpush.bf16.msra.mxu0 0
      %2599 = vmatpush.bf16.msra.mxu0 0
      %2600 = vmatpush.bf16.msra.mxu0 0
      %2601 = vmatpush.bf16.msra.mxu0 %v2580
      %2602 = vmatpush.bf16.msra.mxu0 %v2579
      %2603 = vmatpush.bf16.msra.mxu0 %v2578
      %2604 = vmatpush.bf16.msra.mxu0 %v2577
      %2605 = vmatmul.bf16.gmra.mxu0 %v2586
      %v2606 = vpop.f32.mrf.mxu0
      %v2607 = vadd.f32 0.0, %v2606
      %v2608 = vpop.f32.mrf.mxu0
      %v2609 = vadd.f32 0.0, %v2608
      %2610 = vmatmul.bf16.gmra.mxu0 %v2589
      %v2611 = vpop.f32.mrf.mxu0
      %v2612 = vadd.f32 0.0, %v2611
      %v2613 = vpop.f32.mrf.mxu0
      %v2614 = vadd.f32 0.0, %v2613
      %2615 = vmatmul.bf16.gmra.mxu0 %v2592
      %v2616 = vpop.f32.mrf.mxu0
      %v2617 = vadd.f32 0.0, %v2616
      %v2618 = vpop.f32.mrf.mxu0
      %v2619 = vadd.f32 0.0, %v2618
      %2620 = vmatmul.bf16.gmra.mxu0 %v2595
      %v2621 = vpop.f32.mrf.mxu0
      %v2622 = vadd.f32 0.0, %v2621
      %v2623 = vpop.f32.mrf.mxu0
      %v2624 = vadd.f32 0.0, %v2623
      %2625 = vdwg.mxu0
      %2626 = vrot.lane.b32.xlu0 %v662, 96
      %v2627 = vpop.permute.xlu0 %2626
      %2628 = vrot.lane.b32.xlu0 %v663, 96
      %v2629 = vpop.permute.xlu0 %2628
      %2630 = vrot.lane.b32.xlu0 %v664, 96
      %v2631 = vpop.permute.xlu0 %2630
      %2632 = vrot.lane.b32.xlu0 %v665, 96
      %v2633 = vpop.permute.xlu0 %2632
      %2634 = vrot.lane.b32.xlu0 %v666, 96
      %v2635 = vpop.permute.xlu0 %2634
      %2636 = vrot.lane.b32.xlu0 %v667, 96
      %v2637 = vpop.permute.xlu0 %2636
      %2638 = vrot.lane.b32.xlu0 %v668, 96
      %v2639 = vpop.permute.xlu0 %2638
      %2640 = vrot.lane.b32.xlu0 %v669, 96
      %v2641 = vpop.permute.xlu0 %2640
      %v2642 = vrot.slane %v2627, 4
      %v2643 = vrot.slane %v2629, 4
      %v2644 = vrot.slane %v2631, 4
      %v2645 = vrot.slane %v2633, 4
      %v2646 = vrot.slane %v2635, 4
      %v2647 = vrot.slane %v2637, 4
      %v2648 = vrot.slane %v2639, 4
      %v2649 = vrot.slane %v2641, 4
      %v2658 = vunpack.c.l.b16 %v2501
      %v2659 = vunpack.c.l.b16 %v2502
      %v2660 = vunpack.c.l.b16 %v2503
      %v2661 = vunpack.c.l.b16 %v2504
      %v2662 = vunpack.c.l.b16 %v2505
      %v2663 = vunpack.c.l.b16 %v2506
      %v2664 = vunpack.c.l.b16 %v2507
      %v2665 = vunpack.c.l.b16 %v2508
      %v2666 = vpack.c.b16 %v2659, %v2658
      %v2667 = vpack.c.b16 %v2661, %v2660
      %v2668 = vpack.c.b16 %v2663, %v2662
      %v2669 = vpack.c.b16 %v2665, %v2664
      %v2670 = vunpack.c.l.b16 %v2642
      %v2671 = vunpack.c.l.b16 %v2643
      %v2672 = vunpack.c.l.b16 %v2644
      %v2673 = vunpack.c.l.b16 %v2645
      %v2674 = vunpack.c.l.b16 %v2646
      %v2675 = vunpack.c.l.b16 %v2647
      %v2676 = vunpack.c.l.b16 %v2648
      %v2677 = vunpack.c.l.b16 %v2649
      %v2678 = vpack.c.b16 %v2671, %v2670
      %v2679 = vpack.c.b16 %v2673, %v2672
      %v2680 = vpack.c.b16 %v2675, %v2674
      %v2681 = vpack.c.b16 %v2677, %v2676
      %v2687 = vsel %vm427, %v2666, 0
      %v2690 = vsel %vm427, %v2667, 0
      %v2693 = vsel %vm427, %v2668, 0
      %v2696 = vsel %vm427, %v2669, 0
      %2698 = vmatpush.bf16.msra.mxu0 0
      %2699 = vmatpush.bf16.msra.mxu0 0
      %2700 = vmatpush.bf16.msra.mxu0 0
      %2701 = vmatpush.bf16.msra.mxu0 0
      %2702 = vmatpush.bf16.msra.mxu0 %v2681
      %2703 = vmatpush.bf16.msra.mxu0 %v2680
      %2704 = vmatpush.bf16.msra.mxu0 %v2679
      %2705 = vmatpush.bf16.msra.mxu0 %v2678
      %2706 = vmatmul.bf16.gmra.mxu0 %v2687
      %v2707 = vpop.f32.mrf.mxu0
      %v2708 = vadd.f32 0.0, %v2707
      %v2709 = vpop.f32.mrf.mxu0
      %v2710 = vadd.f32 0.0, %v2709
      %2711 = vmatmul.bf16.gmra.mxu0 %v2690
      %v2712 = vpop.f32.mrf.mxu0
      %v2713 = vadd.f32 0.0, %v2712
      %v2714 = vpop.f32.mrf.mxu0
      %v2715 = vadd.f32 0.0, %v2714
      %2716 = vmatmul.bf16.gmra.mxu0 %v2693
      %v2717 = vpop.f32.mrf.mxu0
      %v2718 = vadd.f32 0.0, %v2717
      %v2719 = vpop.f32.mrf.mxu0
      %v2720 = vadd.f32 0.0, %v2719
      %2721 = vmatmul.bf16.gmra.mxu0 %v2696
      %v2722 = vpop.f32.mrf.mxu0
      %v2723 = vadd.f32 0.0, %v2722
      %v2724 = vpop.f32.mrf.mxu0
      %v2725 = vadd.f32 0.0, %v2724
      %2726 = vdwg.mxu0
      %2727 = vrot.lane.b32.xlu0 %v670, 96
      %v2728 = vpop.permute.xlu0 %2727
      %2729 = vrot.lane.b32.xlu0 %v671, 96
      %v2730 = vpop.permute.xlu0 %2729
      %2731 = vrot.lane.b32.xlu0 %v672, 96
      %v2732 = vpop.permute.xlu0 %2731
      %2733 = vrot.lane.b32.xlu0 %v673, 96
      %v2734 = vpop.permute.xlu0 %2733
      %2735 = vrot.lane.b32.xlu0 %v674, 96
      %v2736 = vpop.permute.xlu0 %2735
      %2737 = vrot.lane.b32.xlu0 %v675, 96
      %v2738 = vpop.permute.xlu0 %2737
      %2739 = vrot.lane.b32.xlu0 %v676, 96
      %v2740 = vpop.permute.xlu0 %2739
      %2741 = vrot.lane.b32.xlu0 %v677, 96
      %v2742 = vpop.permute.xlu0 %2741
      %v2743 = vrot.slane %v2728, 4
      %v2744 = vrot.slane %v2730, 4
      %v2745 = vrot.slane %v2732, 4
      %v2746 = vrot.slane %v2734, 4
      %v2747 = vrot.slane %v2736, 4
      %v2748 = vrot.slane %v2738, 4
      %v2749 = vrot.slane %v2740, 4
      %v2750 = vrot.slane %v2742, 4
      %v2759 = vunpack.c.l.b16 %v2509
      %v2760 = vunpack.c.l.b16 %v2510
      %v2761 = vunpack.c.l.b16 %v2511
      %v2762 = vunpack.c.l.b16 %v2512
      %v2763 = vunpack.c.l.b16 %v2513
      %v2764 = vunpack.c.l.b16 %v2514
      %v2765 = vunpack.c.l.b16 %v2515
      %v2766 = vunpack.c.l.b16 %v2516
      %v2767 = vpack.c.b16 %v2760, %v2759
      %v2768 = vpack.c.b16 %v2762, %v2761
      %v2769 = vpack.c.b16 %v2764, %v2763
      %v2770 = vpack.c.b16 %v2766, %v2765
      %v2771 = vunpack.c.l.b16 %v2743
      %v2772 = vunpack.c.l.b16 %v2744
      %v2773 = vunpack.c.l.b16 %v2745
      %v2774 = vunpack.c.l.b16 %v2746
      %v2775 = vunpack.c.l.b16 %v2747
      %v2776 = vunpack.c.l.b16 %v2748
      %v2777 = vunpack.c.l.b16 %v2749
      %v2778 = vunpack.c.l.b16 %v2750
      %v2779 = vpack.c.b16 %v2772, %v2771
      %v2780 = vpack.c.b16 %v2774, %v2773
      %v2781 = vpack.c.b16 %v2776, %v2775
      %v2782 = vpack.c.b16 %v2778, %v2777
      %v2788 = vsel %vm427, %v2767, 0
      %v2791 = vsel %vm427, %v2768, 0
      %v2794 = vsel %vm427, %v2769, 0
      %v2797 = vsel %vm427, %v2770, 0
      %2799 = vmatpush.bf16.msra.mxu0 0
      %2800 = vmatpush.bf16.msra.mxu0 0
      %2801 = vmatpush.bf16.msra.mxu0 0
      %2802 = vmatpush.bf16.msra.mxu0 0
      %2803 = vmatpush.bf16.msra.mxu0 %v2782
      %2804 = vmatpush.bf16.msra.mxu0 %v2781
      %2805 = vmatpush.bf16.msra.mxu0 %v2780
      %2806 = vmatpush.bf16.msra.mxu0 %v2779
      %2807 = vmatmul.bf16.gmra.mxu0 %v2788
      %v2808 = vpop.f32.mrf.mxu0
      %v2809 = vadd.f32 0.0, %v2808
      %v2810 = vpop.f32.mrf.mxu0
      %v2811 = vadd.f32 0.0, %v2810
      %2812 = vmatmul.bf16.gmra.mxu0 %v2791
      %v2813 = vpop.f32.mrf.mxu0
      %v2814 = vadd.f32 0.0, %v2813
      %v2815 = vpop.f32.mrf.mxu0
      %v2816 = vadd.f32 0.0, %v2815
      %2817 = vmatmul.bf16.gmra.mxu0 %v2794
      %v2818 = vpop.f32.mrf.mxu0
      %v2819 = vadd.f32 0.0, %v2818
      %v2820 = vpop.f32.mrf.mxu0
      %v2821 = vadd.f32 0.0, %v2820
      %2822 = vmatmul.bf16.gmra.mxu0 %v2797
      %v2823 = vpop.f32.mrf.mxu0
      %v2824 = vadd.f32 0.0, %v2823
      %v2825 = vpop.f32.mrf.mxu0
      %v2826 = vadd.f32 0.0, %v2825
      %2827 = vdwg.mxu0
      %2828 = vrot.lane.b32.xlu0 %v678, 96
      %v2829 = vpop.permute.xlu0 %2828
      %2830 = vrot.lane.b32.xlu0 %v679, 96
      %v2831 = vpop.permute.xlu0 %2830
      %2832 = vrot.lane.b32.xlu0 %v680, 96
      %v2833 = vpop.permute.xlu0 %2832
      %2834 = vrot.lane.b32.xlu0 %v681, 96
      %v2835 = vpop.permute.xlu0 %2834
      %2836 = vrot.lane.b32.xlu0 %v682, 96
      %v2837 = vpop.permute.xlu0 %2836
      %2838 = vrot.lane.b32.xlu0 %v683, 96
      %v2839 = vpop.permute.xlu0 %2838
      %2840 = vrot.lane.b32.xlu0 %v684, 96
      %v2841 = vpop.permute.xlu0 %2840
      %2842 = vrot.lane.b32.xlu0 %v685, 96
      %v2843 = vpop.permute.xlu0 %2842
      %v2844 = vrot.slane %v2829, 4
      %v2845 = vrot.slane %v2831, 4
      %v2846 = vrot.slane %v2833, 4
      %v2847 = vrot.slane %v2835, 4
      %v2848 = vrot.slane %v2837, 4
      %v2849 = vrot.slane %v2839, 4
      %v2850 = vrot.slane %v2841, 4
      %v2851 = vrot.slane %v2843, 4
      %v2860 = vunpack.c.l.b16 %v2517
      %v2861 = vunpack.c.l.b16 %v2518
      %v2862 = vunpack.c.l.b16 %v2519
      %v2863 = vunpack.c.l.b16 %v2520
      %v2864 = vunpack.c.l.b16 %v2521
      %v2865 = vunpack.c.l.b16 %v2522
      %v2866 = vunpack.c.l.b16 %v2523
      %v2867 = vunpack.c.l.b16 %v2524
      %v2868 = vpack.c.b16 %v2861, %v2860
      %v2869 = vpack.c.b16 %v2863, %v2862
      %v2870 = vpack.c.b16 %v2865, %v2864
      %v2871 = vpack.c.b16 %v2867, %v2866
      %v2872 = vunpack.c.l.b16 %v2844
      %v2873 = vunpack.c.l.b16 %v2845
      %v2874 = vunpack.c.l.b16 %v2846
      %v2875 = vunpack.c.l.b16 %v2847
      %v2876 = vunpack.c.l.b16 %v2848
      %v2877 = vunpack.c.l.b16 %v2849
      %v2878 = vunpack.c.l.b16 %v2850
      %v2879 = vunpack.c.l.b16 %v2851
      %v2880 = vpack.c.b16 %v2873, %v2872
      %v2881 = vpack.c.b16 %v2875, %v2874
      %v2882 = vpack.c.b16 %v2877, %v2876
      %v2883 = vpack.c.b16 %v2879, %v2878
      %v2889 = vsel %vm427, %v2868, 0
      %v2892 = vsel %vm427, %v2869, 0
      %v2895 = vsel %vm427, %v2870, 0
      %v2898 = vsel %vm427, %v2871, 0
      %2900 = vmatpush.bf16.msra.mxu0 0
      %2901 = vmatpush.bf16.msra.mxu0 0
      %2902 = vmatpush.bf16.msra.mxu0 0
      %2903 = vmatpush.bf16.msra.mxu0 0
      %2904 = vmatpush.bf16.msra.mxu0 %v2883
      %2905 = vmatpush.bf16.msra.mxu0 %v2882
      %2906 = vmatpush.bf16.msra.mxu0 %v2881
      %2907 = vmatpush.bf16.msra.mxu0 %v2880
      %2908 = vmatmul.bf16.gmra.mxu0 %v2889
      %v2909 = vpop.f32.mrf.mxu0
      %v2910 = vadd.f32 0.0, %v2909
      %v2911 = vpop.f32.mrf.mxu0
      %v2912 = vadd.f32 0.0, %v2911
      %2913 = vmatmul.bf16.gmra.mxu0 %v2892
      %v2914 = vpop.f32.mrf.mxu0
      %v2915 = vadd.f32 0.0, %v2914
      %v2916 = vpop.f32.mrf.mxu0
      %v2917 = vadd.f32 0.0, %v2916
      %2918 = vmatmul.bf16.gmra.mxu0 %v2895
      %v2919 = vpop.f32.mrf.mxu0
      %v2920 = vadd.f32 0.0, %v2919
      %v2921 = vpop.f32.mrf.mxu0
      %v2922 = vadd.f32 0.0, %v2921
      %2923 = vmatmul.bf16.gmra.mxu0 %v2898
      %v2924 = vpop.f32.mrf.mxu0
      %v2925 = vadd.f32 0.0, %v2924
      %v2926 = vpop.f32.mrf.mxu0
      %v2927 = vadd.f32 0.0, %v2926
      %2928 = vdwg.mxu0
      %v2929 = vpack.c.bf16 %v2607, %v2607
      %v2930 = vpack.c.bf16 %v2609, %v2609
      %v2931 = vpack.c.bf16 %v2612, %v2612
      %v2932 = vpack.c.bf16 %v2614, %v2614
      %v2933 = vpack.c.bf16 %v2617, %v2617
      %v2934 = vpack.c.bf16 %v2619, %v2619
      %v2935 = vpack.c.bf16 %v2622, %v2622
      %v2936 = vpack.c.bf16 %v2624, %v2624
      %v2937 = vpack.c.bf16 %v2708, %v2708
      %v2938 = vpack.c.bf16 %v2710, %v2710
      %v2939 = vpack.c.bf16 %v2713, %v2713
      %v2940 = vpack.c.bf16 %v2715, %v2715
      %v2941 = vpack.c.bf16 %v2718, %v2718
      %v2942 = vpack.c.bf16 %v2720, %v2720
      %v2943 = vpack.c.bf16 %v2723, %v2723
      %v2944 = vpack.c.bf16 %v2725, %v2725
      %v2945 = vpack.c.bf16 %v2809, %v2809
      %v2946 = vpack.c.bf16 %v2811, %v2811
      %v2947 = vpack.c.bf16 %v2814, %v2814
      %v2948 = vpack.c.bf16 %v2816, %v2816
      %v2949 = vpack.c.bf16 %v2819, %v2819
      %v2950 = vpack.c.bf16 %v2821, %v2821
      %v2951 = vpack.c.bf16 %v2824, %v2824
      %v2952 = vpack.c.bf16 %v2826, %v2826
      %v2953 = vpack.c.bf16 %v2910, %v2910
      %v2954 = vpack.c.bf16 %v2912, %v2912
      %v2955 = vpack.c.bf16 %v2915, %v2915
      %v2956 = vpack.c.bf16 %v2917, %v2917
      %v2957 = vpack.c.bf16 %v2920, %v2920
      %v2958 = vpack.c.bf16 %v2922, %v2922
      %v2959 = vpack.c.bf16 %v2925, %v2925
      %v2960 = vpack.c.bf16 %v2927, %v2927
      %2993 = vrot.lane.b32.xlu0 %v2929, 32
      %v2994 = vpop.permute.xlu0 %2993
      %2995 = vrot.lane.b32.xlu0 %v2930, 32
      %v2996 = vpop.permute.xlu0 %2995
      %2997 = vrot.lane.b32.xlu0 %v2931, 32
      %v2998 = vpop.permute.xlu0 %2997
      %2999 = vrot.lane.b32.xlu0 %v2932, 32
      %v3000 = vpop.permute.xlu0 %2999
      %3001 = vrot.lane.b32.xlu0 %v2933, 32
      %v3002 = vpop.permute.xlu0 %3001
      %3003 = vrot.lane.b32.xlu0 %v2934, 32
      %v3004 = vpop.permute.xlu0 %3003
      %3005 = vrot.lane.b32.xlu0 %v2935, 32
      %v3006 = vpop.permute.xlu0 %3005
      %3007 = vrot.lane.b32.xlu0 %v2936, 32
      %v3008 = vpop.permute.xlu0 %3007
      %3009 = vrot.lane.b32.xlu0 %v2937, 32
      %v3010 = vpop.permute.xlu0 %3009
      %3011 = vrot.lane.b32.xlu0 %v2938, 32
      %v3012 = vpop.permute.xlu0 %3011
      %3013 = vrot.lane.b32.xlu0 %v2939, 32
      %v3014 = vpop.permute.xlu0 %3013
      %3015 = vrot.lane.b32.xlu0 %v2940, 32
      %v3016 = vpop.permute.xlu0 %3015
      %3017 = vrot.lane.b32.xlu0 %v2941, 32
      %v3018 = vpop.permute.xlu0 %3017
      %3019 = vrot.lane.b32.xlu0 %v2942, 32
      %v3020 = vpop.permute.xlu0 %3019
      %3021 = vrot.lane.b32.xlu0 %v2943, 32
      %v3022 = vpop.permute.xlu0 %3021
      %3023 = vrot.lane.b32.xlu0 %v2944, 32
      %v3024 = vpop.permute.xlu0 %3023
      %3025 = vrot.lane.b32.xlu0 %v2945, 32
      %v3026 = vpop.permute.xlu0 %3025
      %3027 = vrot.lane.b32.xlu0 %v2946, 32
      %v3028 = vpop.permute.xlu0 %3027
      %3029 = vrot.lane.b32.xlu0 %v2947, 32
      %v3030 = vpop.permute.xlu0 %3029
      %3031 = vrot.lane.b32.xlu0 %v2948, 32
      %v3032 = vpop.permute.xlu0 %3031
      %3033 = vrot.lane.b32.xlu0 %v2949, 32
      %v3034 = vpop.permute.xlu0 %3033
      %3035 = vrot.lane.b32.xlu0 %v2950, 32
      %v3036 = vpop.permute.xlu0 %3035
      %3037 = vrot.lane.b32.xlu0 %v2951, 32
      %v3038 = vpop.permute.xlu0 %3037
      %3039 = vrot.lane.b32.xlu0 %v2952, 32
      %v3040 = vpop.permute.xlu0 %3039
      %3041 = vrot.lane.b32.xlu0 %v2953, 32
      %v3042 = vpop.permute.xlu0 %3041
      %3043 = vrot.lane.b32.xlu0 %v2954, 32
      %v3044 = vpop.permute.xlu0 %3043
      %3045 = vrot.lane.b32.xlu0 %v2955, 32
      %v3046 = vpop.permute.xlu0 %3045
      %3047 = vrot.lane.b32.xlu0 %v2956, 32
      %v3048 = vpop.permute.xlu0 %3047
      %3049 = vrot.lane.b32.xlu0 %v2957, 32
      %v3050 = vpop.permute.xlu0 %3049
      %3051 = vrot.lane.b32.xlu0 %v2958, 32
      %v3052 = vpop.permute.xlu0 %3051
      %3053 = vrot.lane.b32.xlu0 %v2959, 32
      %v3054 = vpop.permute.xlu0 %3053
      %3055 = vrot.lane.b32.xlu0 %v2960, 32
      %v3056 = vpop.permute.xlu0 %3055
      %vm3089 = vcmask 519424
      %3090 = vst.msk [vmem:[#allocation2] sm:$0xf] %vm3089, %v2994
      %3091 = vst.msk [vmem:[#allocation2 + $0x4] sm:$0xf] %vm3089, %v2996
      %3092 = vst.msk [vmem:[#allocation2 + $0x8] sm:$0xf] %vm3089, %v2998
      %3093 = vst.msk [vmem:[#allocation2 + $0xc] sm:$0xf] %vm3089, %v3000
      %3094 = vst.msk [vmem:[#allocation2 + $0x10] sm:$0xf] %vm3089, %v3002
      %3095 = vst.msk [vmem:[#allocation2 + $0x14] sm:$0xf] %vm3089, %v3004
      %3096 = vst.msk [vmem:[#allocation2 + $0x18] sm:$0xf] %vm3089, %v3006
      %3097 = vst.msk [vmem:[#allocation2 + $0x1c] sm:$0xf] %vm3089, %v3008
      %3098 = vst.msk [vmem:[#allocation2 + $0x20] sm:$0xf] %vm3089, %v3010
      %3099 = vst.msk [vmem:[#allocation2 + $0x24] sm:$0xf] %vm3089, %v3012
      %3100 = vst.msk [vmem:[#allocation2 + $0x28] sm:$0xf] %vm3089, %v3014
      %3101 = vst.msk [vmem:[#allocation2 + $0x2c] sm:$0xf] %vm3089, %v3016
      %3102 = vst.msk [vmem:[#allocation2 + $0x30] sm:$0xf] %vm3089, %v3018
      %3103 = vst.msk [vmem:[#allocation2 + $0x34] sm:$0xf] %vm3089, %v3020
      %3104 = vst.msk [vmem:[#allocation2 + $0x38] sm:$0xf] %vm3089, %v3022
      %3105 = vst.msk [vmem:[#allocation2 + $0x3c] sm:$0xf] %vm3089, %v3024
      %3106 = vst.msk [vmem:[#allocation2 + $0x40] sm:$0xf] %vm3089, %v3026
      %3107 = vst.msk [vmem:[#allocation2 + $0x44] sm:$0xf] %vm3089, %v3028
      %3108 = vst.msk [vmem:[#allocation2 + $0x48] sm:$0xf] %vm3089, %v3030
      %3109 = vst.msk [vmem:[#allocation2 + $0x4c] sm:$0xf] %vm3089, %v3032
      %3110 = vst.msk [vmem:[#allocation2 + $0x50] sm:$0xf] %vm3089, %v3034
      %3111 = vst.msk [vmem:[#allocation2 + $0x54] sm:$0xf] %vm3089, %v3036
      %3112 = vst.msk [vmem:[#allocation2 + $0x58] sm:$0xf] %vm3089, %v3038
      %3113 = vst.msk [vmem:[#allocation2 + $0x5c] sm:$0xf] %vm3089, %v3040
      %3114 = vst.msk [vmem:[#allocation2 + $0x60] sm:$0xf] %vm3089, %v3042
      %3115 = vst.msk [vmem:[#allocation2 + $0x64] sm:$0xf] %vm3089, %v3044
      %3116 = vst.msk [vmem:[#allocation2 + $0x68] sm:$0xf] %vm3089, %v3046
      %3117 = vst.msk [vmem:[#allocation2 + $0x6c] sm:$0xf] %vm3089, %v3048
      %3118 = vst.msk [vmem:[#allocation2 + $0x70] sm:$0xf] %vm3089, %v3050
      %3119 = vst.msk [vmem:[#allocation2 + $0x74] sm:$0xf] %vm3089, %v3052
      %3120 = vst.msk [vmem:[#allocation2 + $0x78] sm:$0xf] %vm3089, %v3054
      %3121 = vst.msk [vmem:[#allocation2 + $0x7c] sm:$0xf] %vm3089, %v3056
      %v3122 = vld [vmem:[#allocation2] sm:$0xf]
      %v3123 = vld [vmem:[#allocation2 + $0x4] sm:$0xf]
      %v3124 = vld [vmem:[#allocation2 + $0x8] sm:$0xf]
      %v3125 = vld [vmem:[#allocation2 + $0xc] sm:$0xf]
      %v3126 = vld [vmem:[#allocation2 + $0x10] sm:$0xf]
      %v3127 = vld [vmem:[#allocation2 + $0x14] sm:$0xf]
      %v3128 = vld [vmem:[#allocation2 + $0x18] sm:$0xf]
      %v3129 = vld [vmem:[#allocation2 + $0x1c] sm:$0xf]
      %v3130 = vld [vmem:[#allocation2 + $0x20] sm:$0xf]
      %v3131 = vld [vmem:[#allocation2 + $0x24] sm:$0xf]
      %v3132 = vld [vmem:[#allocation2 + $0x28] sm:$0xf]
      %v3133 = vld [vmem:[#allocation2 + $0x2c] sm:$0xf]
      %v3134 = vld [vmem:[#allocation2 + $0x30] sm:$0xf]
      %v3135 = vld [vmem:[#allocation2 + $0x34] sm:$0xf]
      %v3136 = vld [vmem:[#allocation2 + $0x38] sm:$0xf]
      %v3137 = vld [vmem:[#allocation2 + $0x3c] sm:$0xf]
      %v3138 = vld [vmem:[#allocation2 + $0x40] sm:$0xf]
      %v3139 = vld [vmem:[#allocation2 + $0x44] sm:$0xf]
      %v3140 = vld [vmem:[#allocation2 + $0x48] sm:$0xf]
      %v3141 = vld [vmem:[#allocation2 + $0x4c] sm:$0xf]
      %v3142 = vld [vmem:[#allocation2 + $0x50] sm:$0xf]
      %v3143 = vld [vmem:[#allocation2 + $0x54] sm:$0xf]
      %v3144 = vld [vmem:[#allocation2 + $0x58] sm:$0xf]
      %v3145 = vld [vmem:[#allocation2 + $0x5c] sm:$0xf]
      %v3146 = vld [vmem:[#allocation2 + $0x60] sm:$0xf]
      %v3147 = vld [vmem:[#allocation2 + $0x64] sm:$0xf]
      %v3148 = vld [vmem:[#allocation2 + $0x68] sm:$0xf]
      %v3149 = vld [vmem:[#allocation2 + $0x6c] sm:$0xf]
      %v3150 = vld [vmem:[#allocation2 + $0x70] sm:$0xf]
      %v3151 = vld [vmem:[#allocation2 + $0x74] sm:$0xf]
      %v3152 = vld [vmem:[#allocation2 + $0x78] sm:$0xf]
      %v3153 = vld [vmem:[#allocation2 + $0x7c] sm:$0xf]
      %v3154 = vld [vmem:[%s4] sm:$0xf]
      %v3155 = vld [vmem:[%s4 + $0x4] sm:$0xf]
      %v3156 = vld [vmem:[%s4 + $0x8] sm:$0xf]
      %v3157 = vld [vmem:[%s4 + $0xc] sm:$0xf]
      %v3158 = vld [vmem:[%s4 + $0x10] sm:$0xf]
      %v3159 = vld [vmem:[%s4 + $0x14] sm:$0xf]
      %v3160 = vld [vmem:[%s4 + $0x18] sm:$0xf]
      %v3161 = vld [vmem:[%s4 + $0x1c] sm:$0xf]
      %v3162 = vld [vmem:[%s5] sm:$0x1]
      %v3164 = vperm.slane %v3162, 0
      %v3198 = vunpack.c.l.b16 %v3122
      %v3199 = vunpack.c.l.b16 %v3123
      %v3200 = vunpack.c.l.b16 %v3124
      %v3201 = vunpack.c.l.b16 %v3125
      %v3202 = vunpack.c.l.b16 %v3126
      %v3203 = vunpack.c.l.b16 %v3127
      %v3204 = vunpack.c.l.b16 %v3128
      %v3205 = vunpack.c.l.b16 %v3129
      %v3206 = vunpack.c.l.b16 %v3130
      %v3207 = vunpack.c.l.b16 %v3131
      %v3208 = vunpack.c.l.b16 %v3132
      %v3209 = vunpack.c.l.b16 %v3133
      %v3210 = vunpack.c.l.b16 %v3134
      %v3211 = vunpack.c.l.b16 %v3135
      %v3212 = vunpack.c.l.b16 %v3136
      %v3213 = vunpack.c.l.b16 %v3137
      %v3214 = vunpack.c.l.b16 %v3138
      %v3215 = vunpack.c.l.b16 %v3139
      %v3216 = vunpack.c.l.b16 %v3140
      %v3217 = vunpack.c.l.b16 %v3141
      %v3218 = vunpack.c.l.b16 %v3142
      %v3219 = vunpack.c.l.b16 %v3143
      %v3220 = vunpack.c.l.b16 %v3144
      %v3221 = vunpack.c.l.b16 %v3145
      %v3222 = vunpack.c.l.b16 %v3146
      %v3223 = vunpack.c.l.b16 %v3147
      %v3224 = vunpack.c.l.b16 %v3148
      %v3225 = vunpack.c.l.b16 %v3149
      %v3226 = vunpack.c.l.b16 %v3150
      %v3227 = vunpack.c.l.b16 %v3151
      %v3228 = vunpack.c.l.b16 %v3152
      %v3229 = vunpack.c.l.b16 %v3153
      %v3230 = vpack.c.b16 %v3199, %v3198
      %v3231 = vpack.c.b16 %v3201, %v3200
      %v3232 = vpack.c.b16 %v3203, %v3202
      %v3233 = vpack.c.b16 %v3205, %v3204
      %v3234 = vpack.c.b16 %v3207, %v3206
      %v3235 = vpack.c.b16 %v3209, %v3208
      %v3236 = vpack.c.b16 %v3211, %v3210
      %v3237 = vpack.c.b16 %v3213, %v3212
      %v3238 = vpack.c.b16 %v3215, %v3214
      %v3239 = vpack.c.b16 %v3217, %v3216
      %v3240 = vpack.c.b16 %v3219, %v3218
      %v3241 = vpack.c.b16 %v3221, %v3220
      %v3242 = vpack.c.b16 %v3223, %v3222
      %v3243 = vpack.c.b16 %v3225, %v3224
      %v3244 = vpack.c.b16 %v3227, %v3226
      %v3245 = vpack.c.b16 %v3229, %v3228
      %v3254 = vunpack.c.l.b16 %v3154
      %v3255 = vunpack.c.l.b16 %v3155
      %v3256 = vunpack.c.l.b16 %v3156
      %v3257 = vunpack.c.l.b16 %v3157
      %v3258 = vunpack.c.l.b16 %v3158
      %v3259 = vunpack.c.l.b16 %v3159
      %v3260 = vunpack.c.l.b16 %v3160
      %v3261 = vunpack.c.l.b16 %v3161
      %v3262 = vpack.c.b16 %v3255, %v3254
      %v3263 = vpack.c.b16 %v3257, %v3256
      %v3264 = vpack.c.b16 %v3259, %v3258
      %v3265 = vpack.c.b16 %v3261, %v3260
      %v3271 = vsel %vm427, %v3230, 0
      %v3274 = vsel %vm427, %v3231, 0
      %v3277 = vsel %vm427, %v3232, 0
      %v3280 = vsel %vm427, %v3233, 0
      %v3283 = vsel %vm427, %v3234, 0
      %v3286 = vsel %vm427, %v3235, 0
      %v3289 = vsel %vm427, %v3236, 0
      %v3292 = vsel %vm427, %v3237, 0
      %v3295 = vsel %vm427, %v3238, 0
      %v3298 = vsel %vm427, %v3239, 0
      %v3301 = vsel %vm427, %v3240, 0
      %v3304 = vsel %vm427, %v3241, 0
      %v3307 = vsel %vm427, %v3242, 0
      %v3310 = vsel %vm427, %v3243, 0
      %v3313 = vsel %vm427, %v3244, 0
      %v3316 = vsel %vm427, %v3245, 0
      %3318 = vmatpush.bf16.msra.mxu0 0
      %3319 = vmatpush.bf16.msra.mxu0 0
      %3320 = vmatpush.bf16.msra.mxu0 0
      %3321 = vmatpush.bf16.msra.mxu0 0
      %3322 = vmatpush.bf16.msra.mxu0 %v3265
      %3323 = vmatpush.bf16.msra.mxu0 %v3264
      %3324 = vmatpush.bf16.msra.mxu0 %v3263
      %3325 = vmatpush.bf16.msra.mxu0 %v3262
      %3326 = vmatmul.bf16.gmra.mxu0 %v3271
      %v3327 = vpop.f32.mrf.mxu0
      %v3328 = vadd.f32 %v3164, %v3327
      %v3329 = vpop.f32.mrf.mxu0
      %v3330 = vadd.f32 %v3164, %v3329
      %3331 = vmatmul.bf16.gmra.mxu0 %v3274
      %v3332 = vpop.f32.mrf.mxu0
      %v3333 = vadd.f32 %v3164, %v3332
      %v3334 = vpop.f32.mrf.mxu0
      %v3335 = vadd.f32 %v3164, %v3334
      %3336 = vmatmul.bf16.gmra.mxu0 %v3277
      %v3337 = vpop.f32.mrf.mxu0
      %v3338 = vadd.f32 %v3164, %v3337
      %v3339 = vpop.f32.mrf.mxu0
      %v3340 = vadd.f32 %v3164, %v3339
      %3341 = vmatmul.bf16.gmra.mxu0 %v3280
      %v3342 = vpop.f32.mrf.mxu0
      %v3343 = vadd.f32 %v3164, %v3342
      %v3344 = vpop.f32.mrf.mxu0
      %v3345 = vadd.f32 %v3164, %v3344
      %3346 = vmatmul.bf16.gmra.mxu0 %v3283
      %v3347 = vpop.f32.mrf.mxu0
      %v3348 = vadd.f32 %v3164, %v3347
      %v3349 = vpop.f32.mrf.mxu0
      %v3350 = vadd.f32 %v3164, %v3349
      %3351 = vmatmul.bf16.gmra.mxu0 %v3286
      %v3352 = vpop.f32.mrf.mxu0
      %v3353 = vadd.f32 %v3164, %v3352
      %v3354 = vpop.f32.mrf.mxu0
      %v3355 = vadd.f32 %v3164, %v3354
      %3356 = vmatmul.bf16.gmra.mxu0 %v3289
      %v3357 = vpop.f32.mrf.mxu0
      %v3358 = vadd.f32 %v3164, %v3357
      %v3359 = vpop.f32.mrf.mxu0
      %v3360 = vadd.f32 %v3164, %v3359
      %3361 = vmatmul.bf16.gmra.mxu0 %v3292
      %v3362 = vpop.f32.mrf.mxu0
      %v3363 = vadd.f32 %v3164, %v3362
      %v3364 = vpop.f32.mrf.mxu0
      %v3365 = vadd.f32 %v3164, %v3364
      %3366 = vmatmul.bf16.gmra.mxu0 %v3295
      %v3367 = vpop.f32.mrf.mxu0
      %v3368 = vadd.f32 %v3164, %v3367
      %v3369 = vpop.f32.mrf.mxu0
      %v3370 = vadd.f32 %v3164, %v3369
      %3371 = vmatmul.bf16.gmra.mxu0 %v3298
      %v3372 = vpop.f32.mrf.mxu0
      %v3373 = vadd.f32 %v3164, %v3372
      %v3374 = vpop.f32.mrf.mxu0
      %v3375 = vadd.f32 %v3164, %v3374
      %3376 = vmatmul.bf16.gmra.mxu0 %v3301
      %v3377 = vpop.f32.mrf.mxu0
      %v3378 = vadd.f32 %v3164, %v3377
      %v3379 = vpop.f32.mrf.mxu0
      %v3380 = vadd.f32 %v3164, %v3379
      %3381 = vmatmul.bf16.gmra.mxu0 %v3304
      %v3382 = vpop.f32.mrf.mxu0
      %v3383 = vadd.f32 %v3164, %v3382
      %v3384 = vpop.f32.mrf.mxu0
      %v3385 = vadd.f32 %v3164, %v3384
      %3386 = vmatmul.bf16.gmra.mxu0 %v3307
      %v3387 = vpop.f32.mrf.mxu0
      %v3388 = vadd.f32 %v3164, %v3387
      %v3389 = vpop.f32.mrf.mxu0
      %v3390 = vadd.f32 %v3164, %v3389
      %3391 = vmatmul.bf16.gmra.mxu0 %v3310
      %v3392 = vpop.f32.mrf.mxu0
      %v3393 = vadd.f32 %v3164, %v3392
      %v3394 = vpop.f32.mrf.mxu0
      %v3395 = vadd.f32 %v3164, %v3394
      %3396 = vmatmul.bf16.gmra.mxu0 %v3313
      %v3397 = vpop.f32.mrf.mxu0
      %v3398 = vadd.f32 %v3164, %v3397
      %v3399 = vpop.f32.mrf.mxu0
      %v3400 = vadd.f32 %v3164, %v3399
      %3401 = vmatmul.bf16.gmra.mxu0 %v3316
      %v3402 = vpop.f32.mrf.mxu0
      %v3403 = vadd.f32 %v3164, %v3402
      %v3404 = vpop.f32.mrf.mxu0
      %v3405 = vadd.f32 %v3164, %v3404
      %3406 = vdwg.mxu0
      %v3407 = vpack.c.bf16 %v3328, %v3328
      %v3408 = vpack.c.bf16 %v3330, %v3330
      %v3409 = vpack.c.bf16 %v3333, %v3333
      %v3410 = vpack.c.bf16 %v3335, %v3335
      %v3411 = vpack.c.bf16 %v3338, %v3338
      %v3412 = vpack.c.bf16 %v3340, %v3340
      %v3413 = vpack.c.bf16 %v3343, %v3343
      %v3414 = vpack.c.bf16 %v3345, %v3345
      %v3415 = vpack.c.bf16 %v3348, %v3348
      %v3416 = vpack.c.bf16 %v3350, %v3350
      %v3417 = vpack.c.bf16 %v3353, %v3353
      %v3418 = vpack.c.bf16 %v3355, %v3355
      %v3419 = vpack.c.bf16 %v3358, %v3358
      %v3420 = vpack.c.bf16 %v3360, %v3360
      %v3421 = vpack.c.bf16 %v3363, %v3363
      %v3422 = vpack.c.bf16 %v3365, %v3365
      %v3423 = vpack.c.bf16 %v3368, %v3368
      %v3424 = vpack.c.bf16 %v3370, %v3370
      %v3425 = vpack.c.bf16 %v3373, %v3373
      %v3426 = vpack.c.bf16 %v3375, %v3375
      %v3427 = vpack.c.bf16 %v3378, %v3378
      %v3428 = vpack.c.bf16 %v3380, %v3380
      %v3429 = vpack.c.bf16 %v3383, %v3383
      %v3430 = vpack.c.bf16 %v3385, %v3385
      %v3431 = vpack.c.bf16 %v3388, %v3388
      %v3432 = vpack.c.bf16 %v3390, %v3390
      %v3433 = vpack.c.bf16 %v3393, %v3393
      %v3434 = vpack.c.bf16 %v3395, %v3395
      %v3435 = vpack.c.bf16 %v3398, %v3398
      %v3436 = vpack.c.bf16 %v3400, %v3400
      %v3437 = vpack.c.bf16 %v3403, %v3403
      %v3438 = vpack.c.bf16 %v3405, %v3405
      %vm3439 = vcmask 519168
      %3440 = vst.msk [vmem:[%s258] sm:$0xf] %vm3439, %v3407
      %3441 = vst.msk [vmem:[%s258 + $0x4] sm:$0xf] %vm3439, %v3408
      %3442 = vst.msk [vmem:[%s258 + $0x8] sm:$0xf] %vm3439, %v3409
      %3443 = vst.msk [vmem:[%s258 + $0xc] sm:$0xf] %vm3439, %v3410
      %3444 = vst.msk [vmem:[%s258 + $0x10] sm:$0xf] %vm3439, %v3411
      %3445 = vst.msk [vmem:[%s258 + $0x14] sm:$0xf] %vm3439, %v3412
      %3446 = vst.msk [vmem:[%s258 + $0x18] sm:$0xf] %vm3439, %v3413
      %3447 = vst.msk [vmem:[%s258 + $0x1c] sm:$0xf] %vm3439, %v3414
      %3448 = vst.msk [vmem:[%s258 + $0x20] sm:$0xf] %vm3439, %v3415
      %3449 = vst.msk [vmem:[%s258 + $0x24] sm:$0xf] %vm3439, %v3416
      %3450 = vst.msk [vmem:[%s258 + $0x28] sm:$0xf] %vm3439, %v3417
      %3451 = vst.msk [vmem:[%s258 + $0x2c] sm:$0xf] %vm3439, %v3418
      %3452 = vst.msk [vmem:[%s258 + $0x30] sm:$0xf] %vm3439, %v3419
      %3453 = vst.msk [vmem:[%s258 + $0x34] sm:$0xf] %vm3439, %v3420
      %3454 = vst.msk [vmem:[%s258 + $0x38] sm:$0xf] %vm3439, %v3421
      %3455 = vst.msk [vmem:[%s258 + $0x3c] sm:$0xf] %vm3439, %v3422
      %3456 = vst.msk [vmem:[%s258 + $0x40] sm:$0xf] %vm3439, %v3423
      %3457 = vst.msk [vmem:[%s258 + $0x44] sm:$0xf] %vm3439, %v3424
      %3458 = vst.msk [vmem:[%s258 + $0x48] sm:$0xf] %vm3439, %v3425
      %3459 = vst.msk [vmem:[%s258 + $0x4c] sm:$0xf] %vm3439, %v3426
      %3460 = vst.msk [vmem:[%s258 + $0x50] sm:$0xf] %vm3439, %v3427
      %3461 = vst.msk [vmem:[%s258 + $0x54] sm:$0xf] %vm3439, %v3428
      %3462 = vst.msk [vmem:[%s258 + $0x58] sm:$0xf] %vm3439, %v3429
      %3463 = vst.msk [vmem:[%s258 + $0x5c] sm:$0xf] %vm3439, %v3430
      %3464 = vst.msk [vmem:[%s258 + $0x60] sm:$0xf] %vm3439, %v3431
      %3465 = vst.msk [vmem:[%s258 + $0x64] sm:$0xf] %vm3439, %v3432
      %3466 = vst.msk [vmem:[%s258 + $0x68] sm:$0xf] %vm3439, %v3433
      %3467 = vst.msk [vmem:[%s258 + $0x6c] sm:$0xf] %vm3439, %v3434
      %3468 = vst.msk [vmem:[%s258 + $0x70] sm:$0xf] %vm3439, %v3435
      %3469 = vst.msk [vmem:[%s258 + $0x74] sm:$0xf] %vm3439, %v3436
      %3470 = vst.msk [vmem:[%s258 + $0x78] sm:$0xf] %vm3439, %v3437
      %3471 = vst.msk [vmem:[%s258 + $0x7c] sm:$0xf] %vm3439, %v3438
      %s3472 = smul.u32 4, %s17
      %p3473 = scmp.lt.s32.totalorder %s3472, 7
      %s3474 = scalar_select %p3473, %s3472, 7
      %s3475 = smul.addr %s3474, 8
      %s3476 = smul.addr %s3475, 4
      %s3477 = scalar_lea.vmem %s6, %s3476
      // Predicated region
      $region45: #{_lambda_.1} parent=43 // pred_check
        %p3478 = pneg %p166
      $region46: #{_lambda_.1} parent=43 // pred_check_branch
        %3480 = sbr.rel (%p3478) target = $region48
      $region47: #{_lambda_.1} parent=43 // pred_region
        %s3481 = smul.u32 4, %s17
      $region48: #{_lambda_.1} parent=43 // pred_fallthru
        _
    $region44: #{_lambda_.1} parent=5 // pred_fallthru
      _
    %p3482 = scmp.le.s32.totalorder 2, %s12
    // Predicated region
    $region49: #{_lambda_.1} parent=5 // pred_check
      %p3483 = pneg %p3482
    $region50: #{_lambda_.1} parent=5 // pred_check_branch
      %3485 = sbr.rel (%p3483) target = $region52
    $region51: #{_lambda_.1} parent=5 // pred_region
      %s3486 = ssub.s32 %s12, 2
      // Predicated region
      $region53: #{_lambda_.1} parent=51 // pred_check
        %p3487 = pneg %p172
      $region54: #{_lambda_.1} parent=51 // pred_check_branch
        %3489 = sbr.rel (%p3487) target = $region56
      $region55: #{_lambda_.1} parent=51 // pred_region
        %s3490 = smul.u32 4, %s18
        %p3491 = scmp.lt.s32.totalorder %s3490, 7
        %s3492 = scalar_select %p3491, %s3490, 7
        %s3493 = smul.addr %s3492, 8
        %s3494 = smul.addr %s3493, 4
        %s3495 = scalar_lea.vmem %s6, %s3494
      $region56: #{_lambda_.1} parent=51 // pred_fallthru
        _
    $region52: #{_lambda_.1} parent=5 // pred_fallthru
      _
  $region6: #{_lambda_.1} parent=0 // loop_footer
    %s16 = sadd.s32 1, %s12
  $region7: #{_lambda_.1} parent=0 // loop_footer_branch
    %11 = sbr.rel target = $region3
  $region8: #{_lambda_.1} parent=0 // loop_exit
    _

// kernel: _lambda_.1
$region0: #{_lambda_.1}
  #allocation0 [shape = 'u32[]', space=smem, size = 0x4, offset = 0x4, fixed_abs, tag = 'smem constant byte address 0x4 - core index']
  #allocation1 [shape = 'u32[72,128]{1,0:T(1,128)}', space=vmem, size = 0x9000, scoped, tag = 'internal scratch']
  #allocation2 [shape = 'bf16[256,64]{1,0:T(8,128)(2,1)}', space=vmem, size = 0x10000, scoped, tag = 'scratch operand']
  %s0 = inlined_call_operand.vmem [shape: bf16[8,64,64], index: 0, kind: input, shape index: {}]
  %s1 = inlined_call_operand.vmem [shape: bf16[64,192], index: 1, kind: input, shape index: {}]
  %s2 = inlined_call_operand.vmem [shape: f32[1,192], index: 2, kind: input, shape index: {}]
  %s3 = inlined_call_operand.vmem [shape: f32[4,2,64,64], index: 3, kind: input, shape index: {}]
  %s4 = inlined_call_operand.vmem [shape: bf16[64,64], index: 4, kind: input, shape index: {}]
  %s5 = inlined_call_operand.vmem [shape: f32[1,64], index: 5, kind: input, shape index: {}]
  %s6 = inlined_call_operand.vmem [shape: bf16[8,64,64], index: 6, kind: output, shape index: {}]
  %s7 = sld [smem:[#allocation0]]
  $region57: #{_lambda_.1} parent=0
    _
  %s9 = ssub.s32 1, %s7
  %s10 = scalar_select 0, %s9, %s7
  loop: start=0, step=1, limit=4
  $region2: #{_lambda_.1} parent=0 // loop_pre_header
    _
  $region3: #{_lambda_.1} parent=0 // loop_header
    %s12 = sphi 0, %s16
    %p13 = scmp.ge.s32.totalorder %s12, 4
    %s22 = sphi 0, %s24
    %s25 = sphi 0, %s22
    %s26 = sphi 0, %s25
    %s42 = sphi 0, %s26
    %s46 = sphi 0, %s46
    %s48 = sphi 0, %s46
    %s49 = sphi 0, %s48
    %s63 = sphi 0, %s49
    %s67 = sphi 0, %s67
    %s69 = sphi 0, %s67
    %s70 = sphi 0, %s69
    %s84 = sphi 0, %s70
    %s88 = sphi 0, %s88
    %s90 = sphi 0, %s88
    %s91 = sphi 0, %s90
    %s105 = sphi 0, %s91
    %s109 = sphi 0, %s109
    %s111 = sphi 0, %s109
    %s112 = sphi 0, %s111
    %s126 = sphi 0, %s112
    %s130 = sphi 0, %s130
    %s132 = sphi 0, %s130
    %s133 = sphi 0, %s132
    %s147 = sphi 0, %s133
    %s153 = sphi 0, %s155
    %s156 = sphi 0, %s153
    %s157 = sphi 0, %s156
    %s173 = sphi 0, %s157
  $region4: #{_lambda_.1} parent=0 // loop_header_branch
    %15 = sbr.rel (%p13) target = $region8
  $region5: #{_lambda_.1} parent=0 // loop_body
    %s17 = ssub.s32 %s12, 1
    %s18 = ssub.s32 %s12, 2
    %s19 = sadd.s32 %s12, 1
    %s20 = ssub.s32 %s12, %s19
    %p21 = scmp.eq.s32.totalorder %s20, 0
    %s23 = sadd.s32 %s22, 1
    %s24 = scalar_select %p21, %s22, %s23
    %p27 = pneg %p21
    %p28 = scmp.eq.s32.totalorder %s12, 1
    %p29 = por %p27, %p28
    %p30 = scmp.ne.s32.totalorder %s22, %s25
    %p31 = scmp.eq.s32.totalorder %s12, 0
    %p32 = por %p30, %p31
    %p33 = scmp.ne.s32.totalorder %s22, %s25
    %p34 = scmp.eq.s32.totalorder %s17, 1
    %p35 = por %p33, %p34
    %p36 = scmp.ne.s32.totalorder %s25, %s26
    %p37 = scmp.eq.s32.totalorder %s17, 0
    %p38 = por %p36, %p37
    %p39 = scmp.ne.s32.totalorder %s25, %s26
    %p40 = scmp.eq.s32.totalorder %s18, 1
    %p41 = por %p39, %p40
    %p43 = scmp.ne.s32.totalorder %s26, %s42
    %p44 = scmp.eq.s32.totalorder %s18, 0
    %p45 = por %p43, %p44
    %s47 = sadd.s32 %s46, 1
    %p50 = scmp.eq.s32.totalorder %s12, 1
    %p51 = scmp.ne.s32.totalorder %s46, %s48
    %p52 = scmp.eq.s32.totalorder %s12, 0
    %p53 = por %p51, %p52
    %p54 = scmp.ne.s32.totalorder %s46, %s48
    %p55 = scmp.eq.s32.totalorder %s17, 1
    %p56 = por %p54, %p55
    %p57 = scmp.ne.s32.totalorder %s48, %s49
    %p58 = scmp.eq.s32.totalorder %s17, 0
    %p59 = por %p57, %p58
    %p60 = scmp.ne.s32.totalorder %s48, %s49
    %p61 = scmp.eq.s32.totalorder %s18, 1
    %p62 = por %p60, %p61
    %p64 = scmp.ne.s32.totalorder %s49, %s63
    %p65 = scmp.eq.s32.totalorder %s18, 0
    %p66 = por %p64, %p65
    %s68 = sadd.s32 %s67, 1
    %p71 = scmp.eq.s32.totalorder %s12, 1
    %p72 = scmp.ne.s32.totalorder %s67, %s69
    %p73 = scmp.eq.s32.totalorder %s12, 0
    %p74 = por %p72, %p73
    %p75 = scmp.ne.s32.totalorder %s67, %s69
    %p76 = scmp.eq.s32.totalorder %s17, 1
    %p77 = por %p75, %p76
    %p78 = scmp.ne.s32.totalorder %s69, %s70
    %p79 = scmp.eq.s32.totalorder %s17, 0
    %p80 = por %p78, %p79
    %p81 = scmp.ne.s32.totalorder %s69, %s70
    %p82 = scmp.eq.s32.totalorder %s18, 1
    %p83 = por %p81, %p82
    %p85 = scmp.ne.s32.totalorder %s70, %s84
    %p86 = scmp.eq.s32.totalorder %s18, 0
    %p87 = por %p85, %p86
    %s89 = sadd.s32 %s88, 1
    %p92 = scmp.eq.s32.totalorder %s12, 1
    %p93 = scmp.ne.s32.totalorder %s88, %s90
    %p94 = scmp.eq.s32.totalorder %s12, 0
    %p95 = por %p93, %p94
    %p96 = scmp.ne.s32.totalorder %s88, %s90
    %p97 = scmp.eq.s32.totalorder %s17, 1
    %p98 = por %p96, %p97
    %p99 = scmp.ne.s32.totalorder %s90, %s91
    %p100 = scmp.eq.s32.totalorder %s17, 0
    %p101 = por %p99, %p100
    %p102 = scmp.ne.s32.totalorder %s90, %s91
    %p103 = scmp.eq.s32.totalorder %s18, 1
    %p104 = por %p102, %p103
    %p106 = scmp.ne.s32.totalorder %s91, %s105
    %p107 = scmp.eq.s32.totalorder %s18, 0
    %p108 = por %p106, %p107
    %s110 = sadd.s32 %s109, 1
    %p113 = scmp.eq.s32.totalorder %s12, 1
    %p114 = scmp.ne.s32.totalorder %s109, %s111
    %p115 = scmp.eq.s32.totalorder %s12, 0
    %p116 = por %p114, %p115
    %p117 = scmp.ne.s32.totalorder %s109, %s111
    %p118 = scmp.eq.s32.totalorder %s17, 1
    %p119 = por %p117, %p118
    %p120 = scmp.ne.s32.totalorder %s111, %s112
    %p121 = scmp.eq.s32.totalorder %s17, 0
    %p122 = por %p120, %p121
    %p123 = scmp.ne.s32.totalorder %s111, %s112
    %p124 = scmp.eq.s32.totalorder %s18, 1
    %p125 = por %p123, %p124
    %p127 = scmp.ne.s32.totalorder %s112, %s126
    %p128 = scmp.eq.s32.totalorder %s18, 0
    %p129 = por %p127, %p128
    %s131 = sadd.s32 %s130, 1
    %p134 = scmp.eq.s32.totalorder %s12, 1
    %p135 = scmp.ne.s32.totalorder %s130, %s132
    %p136 = scmp.eq.s32.totalorder %s12, 0
    %p137 = por %p135, %p136
    %p138 = scmp.ne.s32.totalorder %s130, %s132
    %p139 = scmp.eq.s32.totalorder %s17, 1
    %p140 = por %p138, %p139
    %p141 = scmp.ne.s32.totalorder %s132, %s133
    %p142 = scmp.eq.s32.totalorder %s17, 0
    %p143 = por %p141, %p142
    %p144 = scmp.ne.s32.totalorder %s132, %s133
    %p145 = scmp.eq.s32.totalorder %s18, 1
    %p146 = por %p144, %p145
    %p148 = scmp.ne.s32.totalorder %s133, %s147
    %p149 = scmp.eq.s32.totalorder %s18, 0
    %p150 = por %p148, %p149
    %s151 = ssub.s32 %s12, %s19
    %p152 = scmp.eq.s32.totalorder %s151, 0
    %s154 = sadd.s32 %s153, 1
    %s155 = scalar_select %p152, %s153, %s154
    %p158 = pneg %p152
    %p159 = scmp.eq.s32.totalorder %s12, 1
    %p160 = por %p158, %p159
    %p161 = scmp.ne.s32.totalorder %s153, %s156
    %p162 = scmp.eq.s32.totalorder %s12, 0
    %p163 = por %p161, %p162
    %p164 = scmp.ne.s32.totalorder %s153, %s156
    %p165 = scmp.eq.s32.totalorder %s17, 1
    %p166 = por %p164, %p165
    %p167 = scmp.ne.s32.totalorder %s156, %s157
    %p168 = scmp.eq.s32.totalorder %s17, 0
    %p169 = por %p167, %p168
    %p170 = scmp.ne.s32.totalorder %s156, %s157
    %p171 = scmp.eq.s32.totalorder %s18, 1
    %p172 = por %p170, %p171
    %p174 = scmp.ne.s32.totalorder %s157, %s173
    %p175 = scmp.eq.s32.totalorder %s18, 0
    %p176 = por %p174, %p175
    %p177 = scmp.le.s32.totalorder 1, %s12
    %p178 = scmp.lt.s32.totalorder %s12, 3
    %p179 = pnand %p177, %p178
    %p180 = pneg %p179
    // Predicated region
    $region9: #{_lambda_.1} parent=5 // pred_check
      _
    $region10: #{_lambda_.1} parent=5 // pred_check_branch
      %182 = sbr.rel (%p179) target = $region12
    $region11: #{_lambda_.1} parent=5 // pred_region
      %s183 = ssub.s32 %s12, 1
      // Predicated region
      $region13: #{_lambda_.1} parent=11 // pred_check
        %p184 = pneg %p59
      $region14: #{_lambda_.1} parent=11 // pred_check_branch
        %186 = sbr.rel (%p184) target = $region16
      $region15: #{_lambda_.1} parent=11 // pred_region
        _
      $region16: #{_lambda_.1} parent=11 // pred_fallthru
        _
      // Predicated region
      $region17: #{_lambda_.1} parent=11 // pred_check
        %p187 = pneg %p80
      $region18: #{_lambda_.1} parent=11 // pred_check_branch
        %189 = sbr.rel (%p187) target = $region20
      $region19: #{_lambda_.1} parent=11 // pred_region
        _
      $region20: #{_lambda_.1} parent=11 // pred_fallthru
        _
      // Predicated region
      $region21: #{_lambda_.1} parent=11 // pred_check
        %p190 = pneg %p101
      $region22: #{_lambda_.1} parent=11 // pred_check_branch
        %192 = sbr.rel (%p190) target = $region24
      $region23: #{_lambda_.1} parent=11 // pred_region
        _
      $region24: #{_lambda_.1} parent=11 // pred_fallthru
        _
      // Predicated region
      $region25: #{_lambda_.1} parent=11 // pred_check
        %p193 = pneg %p122
      $region26: #{_lambda_.1} parent=11 // pred_check_branch
        %195 = sbr.rel (%p193) target = $region28
      $region27: #{_lambda_.1} parent=11 // pred_region
        _
      $region28: #{_lambda_.1} parent=11 // pred_fallthru
        _
      // Predicated region
      $region29: #{_lambda_.1} parent=11 // pred_check
        %p196 = pneg %p143
      $region30: #{_lambda_.1} parent=11 // pred_check_branch
        %198 = sbr.rel (%p196) target = $region32
      $region31: #{_lambda_.1} parent=11 // pred_region
        _
      $region32: #{_lambda_.1} parent=11 // pred_fallthru
        _
    $region12: #{_lambda_.1} parent=5 // pred_fallthru
      _
    %p199 = scmp.lt.s32.totalorder %s12, 2
    // Predicated region
    $region33: #{_lambda_.1} parent=5 // pred_check
      %p200 = pneg %p199
    $region34: #{_lambda_.1} parent=5 // pred_check_branch
      %202 = sbr.rel (%p200) target = $region36
    $region35: #{_lambda_.1} parent=5 // pred_region
      // Predicated region
      $region37: #{_lambda_.1} parent=35 // pred_check
        %p203 = pneg %p32
      $region38: #{_lambda_.1} parent=35 // pred_check_branch
        %205 = sbr.rel (%p203) target = $region40
      $region39: #{_lambda_.1} parent=35 // pred_region
        %s206 = smul.u32 4, %s12
        %p207 = scmp.lt.s32.totalorder %s206, 7
        %s208 = scalar_select %p207, %s206, 7
        %s209 = smul.addr %s208, 8
        %s210 = smul.addr %s209, 4
        %s211 = scalar_lea.vmem %s0, %s210
        %s212 = smul.u32 4, %s12
      $region40: #{_lambda_.1} parent=35 // pred_fallthru
        _
    $region36: #{_lambda_.1} parent=5 // pred_fallthru
      _
    %p213 = scmp.le.s32.totalorder 1, %s12
    %p214 = scmp.lt.s32.totalorder %s12, 3
    %p215 = pnand %p213, %p214
    %p216 = pneg %p215
    // Predicated region
    $region41: #{_lambda_.1} parent=5 // pred_check
      _
    $region42: #{_lambda_.1} parent=5 // pred_check_branch
      %218 = sbr.rel (%p215) target = $region44
    $region43: #{_lambda_.1} parent=5 // pred_region
      %s219 = ssub.s32 %s12, 1
      %s220 = smul.u32 4, %s17
      %p221 = scmp.lt.s32.totalorder %s220, 7
      %s222 = scalar_select %p221, %s220, 7
      %s223 = smul.addr %s222, 8
      %s224 = smul.addr %s223, 4
      %s225 = scalar_lea.vmem %s0, %s224
      %p226 = pneg %p38
      %p227 = pneg %p35
      %p228 = pneg %p59
      %p229 = pneg %p56
      %p230 = pneg %p80
      %p231 = pneg %p77
      %p232 = pneg %p101
      %p233 = pneg %p98
      %p234 = pneg %p122
      %p235 = pneg %p119
      %p236 = pneg %p143
      %p237 = pneg %p140
      %p238 = pneg %p169
      %p239 = pneg %p166
      %s240 = smul.u32 4, %s17
      %p241 = scmp.lt.s32.totalorder %s240, 7
      %s242 = scalar_select %p241, %s240, 7
      %s243 = smul.addr %s242, 8
      %s244 = smul.addr %s243, 4
      %s245 = scalar_lea.vmem %s6, %s244
      %s246 = smul.u32 4, %s17
      %p247 = scmp.lt.s32.totalorder %s246, 7
      %s248 = scalar_select %p247, %s246, 7
      %s249 = smul.addr %s248, 8
      %s250 = smul.addr %s249, 4
      %s251 = scalar_lea.vmem %s0, %s250
      %s252 = smul.u32 4, %s17
      %s253 = smul.u32 4, %s17
      %p254 = scmp.lt.s32.totalorder %s253, 7
      %s255 = scalar_select %p254, %s253, 7
      %s256 = smul.addr %s255, 8
      %s257 = smul.addr %s256, 4
      %s258 = scalar_lea.vmem %s6, %s257
      %s259 = smul.u32 4, %s17
      %v261 = vld [vmem:[%s251] sm:$0xf]
      %v262 = vld [vmem:[%s251 + $0x4] sm:$0xf]
      %v263 = vld [vmem:[%s251 + $0x8] sm:$0xf]
      %v264 = vld [vmem:[%s251 + $0xc] sm:$0xf]
      %v265 = vld [vmem:[%s251 + $0x10] sm:$0xf]
      %v266 = vld [vmem:[%s251 + $0x14] sm:$0xf]
      %v267 = vld [vmem:[%s251 + $0x18] sm:$0xf]
      %v268 = vld [vmem:[%s251 + $0x1c] sm:$0xf]
      %v269 = vld [vmem:[%s251 + $0x20] sm:$0xf]
      %v270 = vld [vmem:[%s251 + $0x24] sm:$0xf]
      %v271 = vld [vmem:[%s251 + $0x28] sm:$0xf]
      %v272 = vld [vmem:[%s251 + $0x2c] sm:$0xf]
      %v273 = vld [vmem:[%s251 + $0x30] sm:$0xf]
      %v274 = vld [vmem:[%s251 + $0x34] sm:$0xf]
      %v275 = vld [vmem:[%s251 + $0x38] sm:$0xf]
      %v276 = vld [vmem:[%s251 + $0x3c] sm:$0xf]
      %v277 = vld [vmem:[%s251 + $0x40] sm:$0xf]
      %v278 = vld [vmem:[%s251 + $0x44] sm:$0xf]
      %v279 = vld [vmem:[%s251 + $0x48] sm:$0xf]
      %v280 = vld [vmem:[%s251 + $0x4c] sm:$0xf]
      %v281 = vld [vmem:[%s251 + $0x50] sm:$0xf]
      %v282 = vld [vmem:[%s251 + $0x54] sm:$0xf]
      %v283 = vld [vmem:[%s251 + $0x58] sm:$0xf]
      %v284 = vld [vmem:[%s251 + $0x5c] sm:$0xf]
      %v285 = vld [vmem:[%s251 + $0x60] sm:$0xf]
      %v286 = vld [vmem:[%s251 + $0x64] sm:$0xf]
      %v287 = vld [vmem:[%s251 + $0x68] sm:$0xf]
      %v288 = vld [vmem:[%s251 + $0x6c] sm:$0xf]
      %v289 = vld [vmem:[%s251 + $0x70] sm:$0xf]
      %v290 = vld [vmem:[%s251 + $0x74] sm:$0xf]
      %v291 = vld [vmem:[%s251 + $0x78] sm:$0xf]
      %v292 = vld [vmem:[%s251 + $0x7c] sm:$0xf]
      %v293 = vld [vmem:[%s1] sm:$0xff]
      %v294 = vld [vmem:[%s1 + $0x8] sm:$0xff]
      %v295 = vld [vmem:[%s1 + $0x10] sm:$0xff]
      %v296 = vld [vmem:[%s1 + $0x18] sm:$0xff]
      %v297 = vld [vmem:[%s1 + $0x20] sm:$0xff]
      %v298 = vld [vmem:[%s1 + $0x28] sm:$0xff]
      %v299 = vld [vmem:[%s1 + $0x30] sm:$0xff]
      %v300 = vld [vmem:[%s1 + $0x38] sm:$0xff]
      %v301 = vld [vmem:[%s2] sm:$0x3]
      %v303 = vperm.slane %v301, 0
      %v304 = vperm.slane %v301, 1
      %v339 = vunpack.c.l.b16 %v261
      %v340 = vunpack.c.l.b16 %v262
      %v341 = vunpack.c.l.b16 %v263
      %v342 = vunpack.c.l.b16 %v264
      %v343 = vunpack.c.l.b16 %v265
      %v344 = vunpack.c.l.b16 %v266
      %v345 = vunpack.c.l.b16 %v267
      %v346 = vunpack.c.l.b16 %v268
      %v347 = vunpack.c.l.b16 %v269
      %v348 = vunpack.c.l.b16 %v270
      %v349 = vunpack.c.l.b16 %v271
      %v350 = vunpack.c.l.b16 %v272
      %v351 = vunpack.c.l.b16 %v273
      %v352 = vunpack.c.l.b16 %v274
      %v353 = vunpack.c.l.b16 %v275
      %v354 = vunpack.c.l.b16 %v276
      %v355 = vunpack.c.l.b16 %v277
      %v356 = vunpack.c.l.b16 %v278
      %v357 = vunpack.c.l.b16 %v279
      %v358 = vunpack.c.l.b16 %v280
      %v359 = vunpack.c.l.b16 %v281
      %v360 = vunpack.c.l.b16 %v282
      %v361 = vunpack.c.l.b16 %v283
      %v362 = vunpack.c.l.b16 %v284
      %v363 = vunpack.c.l.b16 %v285
      %v364 = vunpack.c.l.b16 %v286
      %v365 = vunpack.c.l.b16 %v287
      %v366 = vunpack.c.l.b16 %v288
      %v367 = vunpack.c.l.b16 %v289
      %v368 = vunpack.c.l.b16 %v290
      %v369 = vunpack.c.l.b16 %v291
      %v370 = vunpack.c.l.b16 %v292
      %v371 = vpack.c.b16 %v340, %v339
      %v372 = vpack.c.b16 %v342, %v341
      %v373 = vpack.c.b16 %v344, %v343
      %v374 = vpack.c.b16 %v346, %v345
      %v375 = vpack.c.b16 %v348, %v347
      %v376 = vpack.c.b16 %v350, %v349
      %v377 = vpack.c.b16 %v352, %v351
      %v378 = vpack.c.b16 %v354, %v353
      %v379 = vpack.c.b16 %v356, %v355
      %v380 = vpack.c.b16 %v358, %v357
      %v381 = vpack.c.b16 %v360, %v359
      %v382 = vpack.c.b16 %v362, %v361
      %v383 = vpack.c.b16 %v364, %v363
      %v384 = vpack.c.b16 %v366, %v365
      %v385 = vpack.c.b16 %v368, %v367
      %v386 = vpack.c.b16 %v370, %v369
      %v395 = vunpack.c.l.b16 %v293
      %v396 = vunpack.c.h.b16 %v293
      %v397 = vunpack.c.l.b16 %v294
      %v398 = vunpack.c.h.b16 %v294
      %v399 = vunpack.c.l.b16 %v295
      %v400 = vunpack.c.h.b16 %v295
      %v401 = vunpack.c.l.b16 %v296
      %v402 = vunpack.c.h.b16 %v296
      %v403 = vunpack.c.l.b16 %v297
      %v404 = vunpack.c.h.b16 %v297
      %v405 = vunpack.c.l.b16 %v298
      %v406 = vunpack.c.h.b16 %v298
      %v407 = vunpack.c.l.b16 %v299
      %v408 = vunpack.c.h.b16 %v299
      %v409 = vunpack.c.l.b16 %v300
      %v410 = vunpack.c.h.b16 %v300
      %v411 = vpack.c.b16 %v397, %v395
      %v412 = vpack.c.b16 %v398, %v396
      %v413 = vpack.c.b16 %v401, %v399
      %v414 = vpack.c.b16 %v402, %v400
      %v415 = vpack.c.b16 %v405, %v403
      %v416 = vpack.c.b16 %v406, %v404
      %v417 = vpack.c.b16 %v409, %v407
      %v418 = vpack.c.b16 %v410, %v408
      %vm427 = vcmask 523264
      %v429 = vsel %vm427, %v371, 0
      %v432 = vsel %vm427, %v372, 0
      %v435 = vsel %vm427, %v373, 0
      %v438 = vsel %vm427, %v374, 0
      %v441 = vsel %vm427, %v375, 0
      %v444 = vsel %vm427, %v376, 0
      %v447 = vsel %vm427, %v377, 0
      %v450 = vsel %vm427, %v378, 0
      %v453 = vsel %vm427, %v379, 0
      %v456 = vsel %vm427, %v380, 0
      %v459 = vsel %vm427, %v381, 0
      %v462 = vsel %vm427, %v382, 0
      %v465 = vsel %vm427, %v383, 0
      %v468 = vsel %vm427, %v384, 0
      %v471 = vsel %vm427, %v385, 0
      %v474 = vsel %vm427, %v386, 0
      %476 = vmatpush.bf16.msra.mxu0 0
      %477 = vmatpush.bf16.msra.mxu0 0
      %478 = vmatpush.bf16.msra.mxu0 0
      %479 = vmatpush.bf16.msra.mxu0 0
      %480 = vmatpush.bf16.msra.mxu0 %v417
      %481 = vmatpush.bf16.msra.mxu0 %v415
      %482 = vmatpush.bf16.msra.mxu0 %v413
      %483 = vmatpush.bf16.msra.mxu0 %v411
      %484 = vmatmul.bf16.gmra.mxu0 %v429
      %v485 = vpop.f32.mrf.mxu0
      %v486 = vadd.f32 %v303, %v485
      %v487 = vpop.f32.mrf.mxu0
      %v488 = vadd.f32 %v303, %v487
      %489 = vmatmul.bf16.gmra.mxu0 %v432
      %v490 = vpop.f32.mrf.mxu0
      %v491 = vadd.f32 %v303, %v490
      %v492 = vpop.f32.mrf.mxu0
      %v493 = vadd.f32 %v303, %v492
      %494 = vmatmul.bf16.gmra.mxu0 %v435
      %v495 = vpop.f32.mrf.mxu0
      %v496 = vadd.f32 %v303, %v495
      %v497 = vpop.f32.mrf.mxu0
      %v498 = vadd.f32 %v303, %v497
      %499 = vmatmul.bf16.gmra.mxu0 %v438
      %v500 = vpop.f32.mrf.mxu0
      %v501 = vadd.f32 %v303, %v500
      %v502 = vpop.f32.mrf.mxu0
      %v503 = vadd.f32 %v303, %v502
      %504 = vmatmul.bf16.gmra.mxu0 %v441
      %v505 = vpop.f32.mrf.mxu0
      %v506 = vadd.f32 %v303, %v505
      %v507 = vpop.f32.mrf.mxu0
      %v508 = vadd.f32 %v303, %v507
      %509 = vmatmul.bf16.gmra.mxu0 %v444
      %v510 = vpop.f32.mrf.mxu0
      %v511 = vadd.f32 %v303, %v510
      %v512 = vpop.f32.mrf.mxu0
      %v513 = vadd.f32 %v303, %v512
      %514 = vmatmul.bf16.gmra.mxu0 %v447
      %v515 = vpop.f32.mrf.mxu0
      %v516 = vadd.f32 %v303, %v515
      %v517 = vpop.f32.mrf.mxu0
      %v518 = vadd.f32 %v303, %v517
      %519 = vmatmul.bf16.gmra.mxu0 %v450
      %v520 = vpop.f32.mrf.mxu0
      %v521 = vadd.f32 %v303, %v520
      %v522 = vpop.f32.mrf.mxu0
      %v523 = vadd.f32 %v303, %v522
      %524 = vmatmul.bf16.gmra.mxu0 %v453
      %v525 = vpop.f32.mrf.mxu0
      %v526 = vadd.f32 %v303, %v525
      %v527 = vpop.f32.mrf.mxu0
      %v528 = vadd.f32 %v303, %v527
      %529 = vmatmul.bf16.gmra.mxu0 %v456
      %v530 = vpop.f32.mrf.mxu0
      %v531 = vadd.f32 %v303, %v530
      %v532 = vpop.f32.mrf.mxu0
      %v533 = vadd.f32 %v303, %v532
      %534 = vmatmul.bf16.gmra.mxu0 %v459
      %v535 = vpop.f32.mrf.mxu0
      %v536 = vadd.f32 %v303, %v535
      %v537 = vpop.f32.mrf.mxu0
      %v538 = vadd.f32 %v303, %v537
      %539 = vmatmul.bf16.gmra.mxu0 %v462
      %v540 = vpop.f32.mrf.mxu0
      %v541 = vadd.f32 %v303, %v540
      %v542 = vpop.f32.mrf.mxu0
      %v543 = vadd.f32 %v303, %v542
      %544 = vmatmul.bf16.gmra.mxu0 %v465
      %v545 = vpop.f32.mrf.mxu0
      %v546 = vadd.f32 %v303, %v545
      %v547 = vpop.f32.mrf.mxu0
      %v548 = vadd.f32 %v303, %v547
      %549 = vmatmul.bf16.gmra.mxu0 %v468
      %v550 = vpop.f32.mrf.mxu0
      %v551 = vadd.f32 %v303, %v550
      %v552 = vpop.f32.mrf.mxu0
      %v553 = vadd.f32 %v303, %v552
      %554 = vmatmul.bf16.gmra.mxu0 %v471
      %v555 = vpop.f32.mrf.mxu0
      %v556 = vadd.f32 %v303, %v555
      %v557 = vpop.f32.mrf.mxu0
      %v558 = vadd.f32 %v303, %v557
      %559 = vmatmul.bf16.gmra.mxu0 %v474
      %v560 = vpop.f32.mrf.mxu0
      %v561 = vadd.f32 %v303, %v560
      %v562 = vpop.f32.mrf.mxu0
      %v563 = vadd.f32 %v303, %v562
      %564 = vdwg.mxu0
      %565 = vmatpush.bf16.msra.mxu0 0
      %566 = vmatpush.bf16.msra.mxu0 0
      %567 = vmatpush.bf16.msra.mxu0 0
      %568 = vmatpush.bf16.msra.mxu0 0
      %569 = vmatpush.bf16.msra.mxu0 %v418
      %570 = vmatpush.bf16.msra.mxu0 %v416
      %571 = vmatpush.bf16.msra.mxu0 %v414
      %572 = vmatpush.bf16.msra.mxu0 %v412
      %573 = vmatmul.bf16.gmra.mxu0 %v429
      %v574 = vpop.f32.mrf.mxu0
      %v575 = vadd.f32 %v304, %v574
      %v576 = vpop.f32.mrf.mxu0
      %v577 = vadd.f32 %v304, %v576
      %578 = vmatmul.bf16.gmra.mxu0 %v432
      %v579 = vpop.f32.mrf.mxu0
      %v580 = vadd.f32 %v304, %v579
      %v581 = vpop.f32.mrf.mxu0
      %v582 = vadd.f32 %v304, %v581
      %583 = vmatmul.bf16.gmra.mxu0 %v435
      %v584 = vpop.f32.mrf.mxu0
      %v585 = vadd.f32 %v304, %v584
      %v586 = vpop.f32.mrf.mxu0
      %v587 = vadd.f32 %v304, %v586
      %588 = vmatmul.bf16.gmra.mxu0 %v438
      %v589 = vpop.f32.mrf.mxu0
      %v590 = vadd.f32 %v304, %v589
      %v591 = vpop.f32.mrf.mxu0
      %v592 = vadd.f32 %v304, %v591
      %593 = vmatmul.bf16.gmra.mxu0 %v441
      %v594 = vpop.f32.mrf.mxu0
      %v595 = vadd.f32 %v304, %v594
      %v596 = vpop.f32.mrf.mxu0
      %v597 = vadd.f32 %v304, %v596
      %598 = vmatmul.bf16.gmra.mxu0 %v444
      %v599 = vpop.f32.mrf.mxu0
      %v600 = vadd.f32 %v304, %v599
      %v601 = vpop.f32.mrf.mxu0
      %v602 = vadd.f32 %v304, %v601
      %603 = vmatmul.bf16.gmra.mxu0 %v447
      %v604 = vpop.f32.mrf.mxu0
      %v605 = vadd.f32 %v304, %v604
      %v606 = vpop.f32.mrf.mxu0
      %v607 = vadd.f32 %v304, %v606
      %608 = vmatmul.bf16.gmra.mxu0 %v450
      %v609 = vpop.f32.mrf.mxu0
      %v610 = vadd.f32 %v304, %v609
      %v611 = vpop.f32.mrf.mxu0
      %v612 = vadd.f32 %v304, %v611
      %613 = vmatmul.bf16.gmra.mxu0 %v453
      %v614 = vpop.f32.mrf.mxu0
      %v615 = vadd.f32 %v304, %v614
      %v616 = vpop.f32.mrf.mxu0
      %v617 = vadd.f32 %v304, %v616
      %618 = vmatmul.bf16.gmra.mxu0 %v456
      %v619 = vpop.f32.mrf.mxu0
      %v620 = vadd.f32 %v304, %v619
      %v621 = vpop.f32.mrf.mxu0
      %v622 = vadd.f32 %v304, %v621
      %623 = vmatmul.bf16.gmra.mxu0 %v459
      %v624 = vpop.f32.mrf.mxu0
      %v625 = vadd.f32 %v304, %v624
      %v626 = vpop.f32.mrf.mxu0
      %v627 = vadd.f32 %v304, %v626
      %628 = vmatmul.bf16.gmra.mxu0 %v462
      %v629 = vpop.f32.mrf.mxu0
      %v630 = vadd.f32 %v304, %v629
      %v631 = vpop.f32.mrf.mxu0
      %v632 = vadd.f32 %v304, %v631
      %633 = vmatmul.bf16.gmra.mxu0 %v465
      %v634 = vpop.f32.mrf.mxu0
      %v635 = vadd.f32 %v304, %v634
      %v636 = vpop.f32.mrf.mxu0
      %v637 = vadd.f32 %v304, %v636
      %638 = vmatmul.bf16.gmra.mxu0 %v468
      %v639 = vpop.f32.mrf.mxu0
      %v640 = vadd.f32 %v304, %v639
      %v641 = vpop.f32.mrf.mxu0
      %v642 = vadd.f32 %v304, %v641
      %643 = vmatmul.bf16.gmra.mxu0 %v471
      %v644 = vpop.f32.mrf.mxu0
      %v645 = vadd.f32 %v304, %v644
      %v646 = vpop.f32.mrf.mxu0
      %v647 = vadd.f32 %v304, %v646
      %648 = vmatmul.bf16.gmra.mxu0 %v474
      %v649 = vpop.f32.mrf.mxu0
      %v650 = vadd.f32 %v304, %v649
      %v651 = vpop.f32.mrf.mxu0
      %v652 = vadd.f32 %v304, %v651
      %653 = vdwg.mxu0
      %v654 = vpack.c.bf16 %v575, %v486
      %v655 = vpack.c.bf16 %v577, %v488
      %v656 = vpack.c.bf16 %v580, %v491
      %v657 = vpack.c.bf16 %v582, %v493
      %v658 = vpack.c.bf16 %v585, %v496
      %v659 = vpack.c.bf16 %v587, %v498
      %v660 = vpack.c.bf16 %v590, %v501
      %v661 = vpack.c.bf16 %v592, %v503
      %v662 = vpack.c.bf16 %v595, %v506
      %v663 = vpack.c.bf16 %v597, %v508
      %v664 = vpack.c.bf16 %v600, %v511
      %v665 = vpack.c.bf16 %v602, %v513
      %v666 = vpack.c.bf16 %v605, %v516
      %v667 = vpack.c.bf16 %v607, %v518
      %v668 = vpack.c.bf16 %v610, %v521
      %v669 = vpack.c.bf16 %v612, %v523
      %v670 = vpack.c.bf16 %v615, %v526
      %v671 = vpack.c.bf16 %v617, %v528
      %v672 = vpack.c.bf16 %v620, %v531
      %v673 = vpack.c.bf16 %v622, %v533
      %v674 = vpack.c.bf16 %v625, %v536
      %v675 = vpack.c.bf16 %v627, %v538
      %v676 = vpack.c.bf16 %v630, %v541
      %v677 = vpack.c.bf16 %v632, %v543
      %v678 = vpack.c.bf16 %v635, %v546
      %v679 = vpack.c.bf16 %v637, %v548
      %v680 = vpack.c.bf16 %v640, %v551
      %v681 = vpack.c.bf16 %v642, %v553
      %v682 = vpack.c.bf16 %v645, %v556
      %v683 = vpack.c.bf16 %v647, %v558
      %v684 = vpack.c.bf16 %v650, %v561
      %v685 = vpack.c.bf16 %v652, %v563
      %v686 = vld [vmem:[%s3] sm:$0xff]
      %v687 = vld [vmem:[%s3 + $0x8] sm:$0xff]
      %v688 = vld [vmem:[%s3 + $0x10] sm:$0xff]
      %v689 = vld [vmem:[%s3 + $0x18] sm:$0xff]
      %v690 = vld [vmem:[%s3 + $0x20] sm:$0xff]
      %v691 = vld [vmem:[%s3 + $0x28] sm:$0xff]
      %v692 = vld [vmem:[%s3 + $0x30] sm:$0xff]
      %v693 = vld [vmem:[%s3 + $0x38] sm:$0xff]
      %v694 = vld [vmem:[%s3 + $0x80] sm:$0xff]
      %v695 = vld [vmem:[%s3 + $0x88] sm:$0xff]
      %v696 = vld [vmem:[%s3 + $0x90] sm:$0xff]
      %v697 = vld [vmem:[%s3 + $0x98] sm:$0xff]
      %v698 = vld [vmem:[%s3 + $0xa0] sm:$0xff]
      %v699 = vld [vmem:[%s3 + $0xa8] sm:$0xff]
      %v700 = vld [vmem:[%s3 + $0xb0] sm:$0xff]
      %v701 = vld [vmem:[%s3 + $0xb8] sm:$0xff]
      %v702 = vld [vmem:[%s3 + $0x100] sm:$0xff]
      %v703 = vld [vmem:[%s3 + $0x108] sm:$0xff]
      %v704 = vld [vmem:[%s3 + $0x110] sm:$0xff]
      %v705 = vld [vmem:[%s3 + $0x118] sm:$0xff]
      %v706 = vld [vmem:[%s3 + $0x120] sm:$0xff]
      %v707 = vld [vmem:[%s3 + $0x128] sm:$0xff]
      %v708 = vld [vmem:[%s3 + $0x130] sm:$0xff]
      %v709 = vld [vmem:[%s3 + $0x138] sm:$0xff]
      %v710 = vld [vmem:[%s3 + $0x180] sm:$0xff]
      %v711 = vld [vmem:[%s3 + $0x188] sm:$0xff]
      %v712 = vld [vmem:[%s3 + $0x190] sm:$0xff]
      %v713 = vld [vmem:[%s3 + $0x198] sm:$0xff]
      %v714 = vld [vmem:[%s3 + $0x1a0] sm:$0xff]
      %v715 = vld [vmem:[%s3 + $0x1a8] sm:$0xff]
      %v716 = vld [vmem:[%s3 + $0x1b0] sm:$0xff]
      %v717 = vld [vmem:[%s3 + $0x1b8] sm:$0xff]
      %v726 = vunpack.c.l.b16 %v654
      %v727 = vunpack.c.l.b16 %v655
      %v728 = vunpack.c.l.b16 %v656
      %v729 = vunpack.c.l.b16 %v657
      %v730 = vunpack.c.l.b16 %v658
      %v731 = vunpack.c.l.b16 %v659
      %v732 = vunpack.c.l.b16 %v660
      %v733 = vunpack.c.l.b16 %v661
      %v734 = vpack.c.b16 %v727, %v726
      %v735 = vpack.c.b16 %v729, %v728
      %v736 = vpack.c.b16 %v731, %v730
      %v737 = vpack.c.b16 %v733, %v732
      %738 = vrot.lane.b32.xlu0 %v734, 64
      %v739 = vpop.permute.xlu0 %738
      %740 = vrot.lane.b32.xlu0 %v735, 64
      %v741 = vpop.permute.xlu0 %740
      %742 = vrot.lane.b32.xlu0 %v736, 64
      %v743 = vpop.permute.xlu0 %742
      %744 = vrot.lane.b32.xlu0 %v737, 64
      %v745 = vpop.permute.xlu0 %744
      %vm746 = vcmask 261120
      %v748 = vsel %vm746, %v734, 0
      %v751 = vsel %vm746, %v735, 0
      %v754 = vsel %vm746, %v736, 0
      %v757 = vsel %vm746, %v737, 0
      %v760 = vsel %vm746, %v739, 0
      %v763 = vsel %vm746, %v741, 0
      %v766 = vsel %vm746, %v743, 0
      %v769 = vsel %vm746, %v745, 0
      %771 = vmatpush.bf16.xpose.msra.mxu0 0
      %772 = vmatpush.bf16.xpose.msra.mxu0 0
      %773 = vmatpush.bf16.xpose.msra.mxu0 0
      %774 = vmatpush.bf16.xpose.msra.mxu0 0
      %775 = vmatpush.bf16.xpose.msra.mxu0 %v769
      %776 = vmatpush.bf16.xpose.msra.mxu0 %v766
      %777 = vmatpush.bf16.xpose.msra.mxu0 %v763
      %778 = vmatpush.bf16.xpose.msra.mxu0 %v760
      %779 = vmatmul.bf16.gmra.mxu0 %v748
      %v780 = vpop.f32.mrf.mxu0
      %v781 = vadd.f32 %v686, %v780
      %v782 = vpop.f32.mrf.mxu0
      %v783 = vadd.f32 %v687, %v782
      %784 = vmatmul.bf16.gmra.mxu0 %v751
      %v785 = vpop.f32.mrf.mxu0
      %v786 = vadd.f32 %v688, %v785
      %v787 = vpop.f32.mrf.mxu0
      %v788 = vadd.f32 %v689, %v787
      %789 = vmatmul.bf16.gmra.mxu0 %v754
      %v790 = vpop.f32.mrf.mxu0
      %v791 = vadd.f32 %v690, %v790
      %v792 = vpop.f32.mrf.mxu0
      %v793 = vadd.f32 %v691, %v792
      %794 = vmatmul.bf16.gmra.mxu0 %v757
      %v795 = vpop.f32.mrf.mxu0
      %v796 = vadd.f32 %v692, %v795
      %v797 = vpop.f32.mrf.mxu0
      %v798 = vadd.f32 %v693, %v797
      %799 = vdwg.mxu0
      %v808 = vunpack.c.l.b16 %v662
      %v809 = vunpack.c.l.b16 %v663
      %v810 = vunpack.c.l.b16 %v664
      %v811 = vunpack.c.l.b16 %v665
      %v812 = vunpack.c.l.b16 %v666
      %v813 = vunpack.c.l.b16 %v667
      %v814 = vunpack.c.l.b16 %v668
      %v815 = vunpack.c.l.b16 %v669
      %v816 = vpack.c.b16 %v809, %v808
      %v817 = vpack.c.b16 %v811, %v810
      %v818 = vpack.c.b16 %v813, %v812
      %v819 = vpack.c.b16 %v815, %v814
      %820 = vrot.lane.b32.xlu0 %v816, 64
      %v821 = vpop.permute.xlu0 %820
      %822 = vrot.lane.b32.xlu0 %v817, 64
      %v823 = vpop.permute.xlu0 %822
      %824 = vrot.lane.b32.xlu0 %v818, 64
      %v825 = vpop.permute.xlu0 %824
      %826 = vrot.lane.b32.xlu0 %v819, 64
      %v827 = vpop.permute.xlu0 %826
      %v829 = vsel %vm746, %v816, 0
      %v832 = vsel %vm746, %v817, 0
      %v835 = vsel %vm746, %v818, 0
      %v838 = vsel %vm746, %v819, 0
      %v841 = vsel %vm746, %v821, 0
      %v844 = vsel %vm746, %v823, 0
      %v847 = vsel %vm746, %v825, 0
      %v850 = vsel %vm746, %v827, 0
      %852 = vmatpush.bf16.xpose.msra.mxu0 0
      %853 = vmatpush.bf16.xpose.msra.mxu0 0
      %854 = vmatpush.bf16.xpose.msra.mxu0 0
      %855 = vmatpush.bf16.xpose.msra.mxu0 0
      %856 = vmatpush.bf16.xpose.msra.mxu0 %v850
      %857 = vmatpush.bf16.xpose.msra.mxu0 %v847
      %858 = vmatpush.bf16.xpose.msra.mxu0 %v844
      %859 = vmatpush.bf16.xpose.msra.mxu0 %v841
      %860 = vmatmul.bf16.gmra.mxu0 %v829
      %v861 = vpop.f32.mrf.mxu0
      %v862 = vadd.f32 %v694, %v861
      %v863 = vpop.f32.mrf.mxu0
      %v864 = vadd.f32 %v695, %v863
      %865 = vmatmul.bf16.gmra.mxu0 %v832
      %v866 = vpop.f32.mrf.mxu0
      %v867 = vadd.f32 %v696, %v866
      %v868 = vpop.f32.mrf.mxu0
      %v869 = vadd.f32 %v697, %v868
      %870 = vmatmul.bf16.gmra.mxu0 %v835
      %v871 = vpop.f32.mrf.mxu0
      %v872 = vadd.f32 %v698, %v871
      %v873 = vpop.f32.mrf.mxu0
      %v874 = vadd.f32 %v699, %v873
      %875 = vmatmul.bf16.gmra.mxu0 %v838
      %v876 = vpop.f32.mrf.mxu0
      %v877 = vadd.f32 %v700, %v876
      %v878 = vpop.f32.mrf.mxu0
      %v879 = vadd.f32 %v701, %v878
      %880 = vdwg.mxu0
      %v889 = vunpack.c.l.b16 %v670
      %v890 = vunpack.c.l.b16 %v671
      %v891 = vunpack.c.l.b16 %v672
      %v892 = vunpack.c.l.b16 %v673
      %v893 = vunpack.c.l.b16 %v674
      %v894 = vunpack.c.l.b16 %v675
      %v895 = vunpack.c.l.b16 %v676
      %v896 = vunpack.c.l.b16 %v677
      %v897 = vpack.c.b16 %v890, %v889
      %v898 = vpack.c.b16 %v892, %v891
      %v899 = vpack.c.b16 %v894, %v893
      %v900 = vpack.c.b16 %v896, %v895
      %901 = vrot.lane.b32.xlu0 %v897, 64
      %v902 = vpop.permute.xlu0 %901
      %903 = vrot.lane.b32.xlu0 %v898, 64
      %v904 = vpop.permute.xlu0 %903
      %905 = vrot.lane.b32.xlu0 %v899, 64
      %v906 = vpop.permute.xlu0 %905
      %907 = vrot.lane.b32.xlu0 %v900, 64
      %v908 = vpop.permute.xlu0 %907
      %v910 = vsel %vm746, %v897, 0
      %v913 = vsel %vm746, %v898, 0
      %v916 = vsel %vm746, %v899, 0
      %v919 = vsel %vm746, %v900, 0
      %v922 = vsel %vm746, %v902, 0
      %v925 = vsel %vm746, %v904, 0
      %v928 = vsel %vm746, %v906, 0
      %v931 = vsel %vm746, %v908, 0
      %933 = vmatpush.bf16.xpose.msra.mxu0 0
      %934 = vmatpush.bf16.xpose.msra.mxu0 0
      %935 = vmatpush.bf16.xpose.msra.mxu0 0
      %936 = vmatpush.bf16.xpose.msra.mxu0 0
      %937 = vmatpush.bf16.xpose.msra.mxu0 %v931
      %938 = vmatpush.bf16.xpose.msra.mxu0 %v928
      %939 = vmatpush.bf16.xpose.msra.mxu0 %v925
      %940 = vmatpush.bf16.xpose.msra.mxu0 %v922
      %941 = vmatmul.bf16.gmra.mxu0 %v910
      %v942 = vpop.f32.mrf.mxu0
      %v943 = vadd.f32 %v702, %v942
      %v944 = vpop.f32.mrf.mxu0
      %v945 = vadd.f32 %v703, %v944
      %946 = vmatmul.bf16.gmra.mxu0 %v913
      %v947 = vpop.f32.mrf.mxu0
      %v948 = vadd.f32 %v704, %v947
      %v949 = vpop.f32.mrf.mxu0
      %v950 = vadd.f32 %v705, %v949
      %951 = vmatmul.bf16.gmra.mxu0 %v916
      %v952 = vpop.f32.mrf.mxu0
      %v953 = vadd.f32 %v706, %v952
      %v954 = vpop.f32.mrf.mxu0
      %v955 = vadd.f32 %v707, %v954
      %956 = vmatmul.bf16.gmra.mxu0 %v919
      %v957 = vpop.f32.mrf.mxu0
      %v958 = vadd.f32 %v708, %v957
      %v959 = vpop.f32.mrf.mxu0
      %v960 = vadd.f32 %v709, %v959
      %961 = vdwg.mxu0
      %v970 = vunpack.c.l.b16 %v678
      %v971 = vunpack.c.l.b16 %v679
      %v972 = vunpack.c.l.b16 %v680
      %v973 = vunpack.c.l.b16 %v681
      %v974 = vunpack.c.l.b16 %v682
      %v975 = vunpack.c.l.b16 %v683
      %v976 = vunpack.c.l.b16 %v684
      %v977 = vunpack.c.l.b16 %v685
      %v978 = vpack.c.b16 %v971, %v970
      %v979 = vpack.c.b16 %v973, %v972
      %v980 = vpack.c.b16 %v975, %v974
      %v981 = vpack.c.b16 %v977, %v976
      %982 = vrot.lane.b32.xlu0 %v978, 64
      %v983 = vpop.permute.xlu0 %982
      %984 = vrot.lane.b32.xlu0 %v979, 64
      %v985 = vpop.permute.xlu0 %984
      %986 = vrot.lane.b32.xlu0 %v980, 64
      %v987 = vpop.permute.xlu0 %986
      %988 = vrot.lane.b32.xlu0 %v981, 64
      %v989 = vpop.permute.xlu0 %988
      %v991 = vsel %vm746, %v978, 0
      %v994 = vsel %vm746, %v979, 0
      %v997 = vsel %vm746, %v980, 0
      %v1000 = vsel %vm746, %v981, 0
      %v1003 = vsel %vm746, %v983, 0
      %v1006 = vsel %vm746, %v985, 0
      %v1009 = vsel %vm746, %v987, 0
      %v1012 = vsel %vm746, %v989, 0
      %1014 = vmatpush.bf16.xpose.msra.mxu0 0
      %1015 = vmatpush.bf16.xpose.msra.mxu0 0
      %1016 = vmatpush.bf16.xpose.msra.mxu0 0
      %1017 = vmatpush.bf16.xpose.msra.mxu0 0
      %1018 = vmatpush.bf16.xpose.msra.mxu0 %v1012
      %1019 = vmatpush.bf16.xpose.msra.mxu0 %v1009
      %1020 = vmatpush.bf16.xpose.msra.mxu0 %v1006
      %1021 = vmatpush.bf16.xpose.msra.mxu0 %v1003
      %1022 = vmatmul.bf16.gmra.mxu0 %v991
      %v1023 = vpop.f32.mrf.mxu0
      %v1024 = vadd.f32 %v710, %v1023
      %v1025 = vpop.f32.mrf.mxu0
      %v1026 = vadd.f32 %v711, %v1025
      %1027 = vmatmul.bf16.gmra.mxu0 %v994
      %v1028 = vpop.f32.mrf.mxu0
      %v1029 = vadd.f32 %v712, %v1028
      %v1030 = vpop.f32.mrf.mxu0
      %v1031 = vadd.f32 %v713, %v1030
      %1032 = vmatmul.bf16.gmra.mxu0 %v997
      %v1033 = vpop.f32.mrf.mxu0
      %v1034 = vadd.f32 %v714, %v1033
      %v1035 = vpop.f32.mrf.mxu0
      %v1036 = vadd.f32 %v715, %v1035
      %1037 = vmatmul.bf16.gmra.mxu0 %v1000
      %v1038 = vpop.f32.mrf.mxu0
      %v1039 = vadd.f32 %v716, %v1038
      %v1040 = vpop.f32.mrf.mxu0
      %v1041 = vadd.f32 %v717, %v1040
      %1042 = vdwg.mxu0
      %v1043 = vsel %vm427, %v781, -inf
      %1044 = vmax.xlane.f32.xlu0 %v1043
      %v1045 = vpop.xlane.xlu0 %1044
      %v1046 = vsel %vm427, %v783, -inf
      %1047 = vmax.xlane.f32.xlu0 %v1046
      %v1048 = vpop.xlane.xlu0 %1047
      %v1049 = vsel %vm427, %v786, -inf
      %1050 = vmax.xlane.f32.xlu0 %v1049
      %v1051 = vpop.xlane.xlu0 %1050
      %v1052 = vsel %vm427, %v788, -inf
      %1053 = vmax.xlane.f32.xlu0 %v1052
      %v1054 = vpop.xlane.xlu0 %1053
      %v1055 = vsel %vm427, %v791, -inf
      %1056 = vmax.xlane.f32.xlu0 %v1055
      %v1057 = vpop.xlane.xlu0 %1056
      %v1058 = vsel %vm427, %v793, -inf
      %1059 = vmax.xlane.f32.xlu0 %v1058
      %v1060 = vpop.xlane.xlu0 %1059
      %v1061 = vsel %vm427, %v796, -inf
      %1062 = vmax.xlane.f32.xlu0 %v1061
      %v1063 = vpop.xlane.xlu0 %1062
      %v1064 = vsel %vm427, %v798, -inf
      %1065 = vmax.xlane.f32.xlu0 %v1064
      %v1066 = vpop.xlane.xlu0 %1065
      %v1067 = vsel %vm427, %v862, -inf
      %1068 = vmax.xlane.f32.xlu0 %v1067
      %v1069 = vpop.xlane.xlu0 %1068
      %v1070 = vsel %vm427, %v864, -inf
      %1071 = vmax.xlane.f32.xlu0 %v1070
      %v1072 = vpop.xlane.xlu0 %1071
      %v1073 = vsel %vm427, %v867, -inf
      %1074 = vmax.xlane.f32.xlu0 %v1073
      %v1075 = vpop.xlane.xlu0 %1074
      %v1076 = vsel %vm427, %v869, -inf
      %1077 = vmax.xlane.f32.xlu0 %v1076
      %v1078 = vpop.xlane.xlu0 %1077
      %v1079 = vsel %vm427, %v872, -inf
      %1080 = vmax.xlane.f32.xlu0 %v1079
      %v1081 = vpop.xlane.xlu0 %1080
      %v1082 = vsel %vm427, %v874, -inf
      %1083 = vmax.xlane.f32.xlu0 %v1082
      %v1084 = vpop.xlane.xlu0 %1083
      %v1085 = vsel %vm427, %v877, -inf
      %1086 = vmax.xlane.f32.xlu0 %v1085
      %v1087 = vpop.xlane.xlu0 %1086
      %v1088 = vsel %vm427, %v879, -inf
      %1089 = vmax.xlane.f32.xlu0 %v1088
      %v1090 = vpop.xlane.xlu0 %1089
      %v1091 = vsel %vm427, %v943, -inf
      %1092 = vmax.xlane.f32.xlu0 %v1091
      %v1093 = vpop.xlane.xlu0 %1092
      %v1094 = vsel %vm427, %v945, -inf
      %1095 = vmax.xlane.f32.xlu0 %v1094
      %v1096 = vpop.xlane.xlu0 %1095
      %v1097 = vsel %vm427, %v948, -inf
      %1098 = vmax.xlane.f32.xlu0 %v1097
      %v1099 = vpop.xlane.xlu0 %1098
      %v1100 = vsel %vm427, %v950, -inf
      %1101 = vmax.xlane.f32.xlu0 %v1100
      %v1102 = vpop.xlane.xlu0 %1101
      %v1103 = vsel %vm427, %v953, -inf
      %1104 = vmax.xlane.f32.xlu0 %v1103
      %v1105 = vpop.xlane.xlu0 %1104
      %v1106 = vsel %vm427, %v955, -inf
      %1107 = vmax.xlane.f32.xlu0 %v1106
      %v1108 = vpop.xlane.xlu0 %1107
      %v1109 = vsel %vm427, %v958, -inf
      %1110 = vmax.xlane.f32.xlu0 %v1109
      %v1111 = vpop.xlane.xlu0 %1110
      %v1112 = vsel %vm427, %v960, -inf
      %1113 = vmax.xlane.f32.xlu0 %v1112
      %v1114 = vpop.xlane.xlu0 %1113
      %v1115 = vsel %vm427, %v1024, -inf
      %1116 = vmax.xlane.f32.xlu0 %v1115
      %v1117 = vpop.xlane.xlu0 %1116
      %v1118 = vsel %vm427, %v1026, -inf
      %1119 = vmax.xlane.f32.xlu0 %v1118
      %v1120 = vpop.xlane.xlu0 %1119
      %v1121 = vsel %vm427, %v1029, -inf
      %1122 = vmax.xlane.f32.xlu0 %v1121
      %v1123 = vpop.xlane.xlu0 %1122
      %v1124 = vsel %vm427, %v1031, -inf
      %1125 = vmax.xlane.f32.xlu0 %v1124
      %v1126 = vpop.xlane.xlu0 %1125
      %v1127 = vsel %vm427, %v1034, -inf
      %1128 = vmax.xlane.f32.xlu0 %v1127
      %v1129 = vpop.xlane.xlu0 %1128
      %v1130 = vsel %vm427, %v1036, -inf
      %1131 = vmax.xlane.f32.xlu0 %v1130
      %v1132 = vpop.xlane.xlu0 %1131
      %v1133 = vsel %vm427, %v1039, -inf
      %1134 = vmax.xlane.f32.xlu0 %v1133
      %v1135 = vpop.xlane.xlu0 %1134
      %v1136 = vsel %vm427, %v1041, -inf
      %1137 = vmax.xlane.f32.xlu0 %v1136
      %v1138 = vpop.xlane.xlu0 %1137
      %v1139 = vsub.f32 %v781, %v1045
      %v1140 = vsub.f32 %v783, %v1048
      %v1141 = vsub.f32 %v786, %v1051
      %v1142 = vsub.f32 %v788, %v1054
      %v1143 = vsub.f32 %v791, %v1057
      %v1144 = vsub.f32 %v793, %v1060
      %v1145 = vsub.f32 %v796, %v1063
      %v1146 = vsub.f32 %v798, %v1066
      %v1147 = vsub.f32 %v862, %v1069
      %v1148 = vsub.f32 %v864, %v1072
      %v1149 = vsub.f32 %v867, %v1075
      %v1150 = vsub.f32 %v869, %v1078
      %v1151 = vsub.f32 %v872, %v1081
      %v1152 = vsub.f32 %v874, %v1084
      %v1153 = vsub.f32 %v877, %v1087
      %v1154 = vsub.f32 %v879, %v1090
      %v1155 = vsub.f32 %v943, %v1093
      %v1156 = vsub.f32 %v945, %v1096
      %v1157 = vsub.f32 %v948, %v1099
      %v1158 = vsub.f32 %v950, %v1102
      %v1159 = vsub.f32 %v953, %v1105
      %v1160 = vsub.f32 %v955, %v1108
      %v1161 = vsub.f32 %v958, %v1111
      %v1162 = vsub.f32 %v960, %v1114
      %v1163 = vsub.f32 %v1024, %v1117
      %v1164 = vsub.f32 %v1026, %v1120
      %v1165 = vsub.f32 %v1029, %v1123
      %v1166 = vsub.f32 %v1031, %v1126
      %v1167 = vsub.f32 %v1034, %v1129
      %v1168 = vsub.f32 %v1036, %v1132
      %v1169 = vsub.f32 %v1039, %v1135
      %v1170 = vsub.f32 %v1041, %v1138
      %v1171 = vmul.f32 %v1139, 1.442695
      %v1172 = vpow.pop %v1171
      %v1173 = vmul.f32 %v1140, 1.442695
      %v1174 = vpow.pop %v1173
      %v1175 = vmul.f32 %v1141, 1.442695
      %v1176 = vpow.pop %v1175
      %v1177 = vmul.f32 %v1142, 1.442695
      %v1178 = vpow.pop %v1177
      %v1179 = vmul.f32 %v1143, 1.442695
      %v1180 = vpow.pop %v1179
      %v1181 = vmul.f32 %v1144, 1.442695
      %v1182 = vpow.pop %v1181
      %v1183 = vmul.f32 %v1145, 1.442695
      %v1184 = vpow.pop %v1183
      %v1185 = vmul.f32 %v1146, 1.442695
      %v1186 = vpow.pop %v1185
      %v1187 = vmul.f32 %v1147, 1.442695
      %v1188 = vpow.pop %v1187
      %v1189 = vmul.f32 %v1148, 1.442695
      %v1190 = vpow.pop %v1189
      %v1191 = vmul.f32 %v1149, 1.442695
      %v1192 = vpow.pop %v1191
      %v1193 = vmul.f32 %v1150, 1.442695
      %v1194 = vpow.pop %v1193
      %v1195 = vmul.f32 %v1151, 1.442695
      %v1196 = vpow.pop %v1195
      %v1197 = vmul.f32 %v1152, 1.442695
      %v1198 = vpow.pop %v1197
      %v1199 = vmul.f32 %v1153, 1.442695
      %v1200 = vpow.pop %v1199
      %v1201 = vmul.f32 %v1154, 1.442695
      %v1202 = vpow.pop %v1201
      %v1203 = vmul.f32 %v1155, 1.442695
      %v1204 = vpow.pop %v1203
      %v1205 = vmul.f32 %v1156, 1.442695
      %v1206 = vpow.pop %v1205
      %v1207 = vmul.f32 %v1157, 1.442695
      %v1208 = vpow.pop %v1207
      %v1209 = vmul.f32 %v1158, 1.442695
      %v1210 = vpow.pop %v1209
      %v1211 = vmul.f32 %v1159, 1.442695
      %v1212 = vpow.pop %v1211
      %v1213 = vmul.f32 %v1160, 1.442695
      %v1214 = vpow.pop %v1213
      %v1215 = vmul.f32 %v1161, 1.442695
      %v1216 = vpow.pop %v1215
      %v1217 = vmul.f32 %v1162, 1.442695
      %v1218 = vpow.pop %v1217
      %v1219 = vmul.f32 %v1163, 1.442695
      %v1220 = vpow.pop %v1219
      %v1221 = vmul.f32 %v1164, 1.442695
      %v1222 = vpow.pop %v1221
      %v1223 = vmul.f32 %v1165, 1.442695
      %v1224 = vpow.pop %v1223
      %v1225 = vmul.f32 %v1166, 1.442695
      %v1226 = vpow.pop %v1225
      %v1227 = vmul.f32 %v1167, 1.442695
      %v1228 = vpow.pop %v1227
      %v1229 = vmul.f32 %v1168, 1.442695
      %v1230 = vpow.pop %v1229
      %v1231 = vmul.f32 %v1169, 1.442695
      %v1232 = vpow.pop %v1231
      %v1233 = vmul.f32 %v1170, 1.442695
      %v1234 = vpow.pop %v1233
      %v1235 = vsel %vm427, %v1172, 0.0
      %1236 = vadd.xlane.f32.xlu0 %v1235
      %v1237 = vpop.xlane.xlu0 %1236
      %v1238 = vsel %vm427, %v1174, 0.0
      %1239 = vadd.xlane.f32.xlu0 %v1238
      %v1240 = vpop.xlane.xlu0 %1239
      %v1241 = vsel %vm427, %v1176, 0.0
      %1242 = vadd.xlane.f32.xlu0 %v1241
      %v1243 = vpop.xlane.xlu0 %1242
      %v1244 = vsel %vm427, %v1178, 0.0
      %1245 = vadd.xlane.f32.xlu0 %v1244
      %v1246 = vpop.xlane.xlu0 %1245
      %v1247 = vsel %vm427, %v1180, 0.0
      %1248 = vadd.xlane.f32.xlu0 %v1247
      %v1249 = vpop.xlane.xlu0 %1248
      %v1250 = vsel %vm427, %v1182, 0.0
      %1251 = vadd.xlane.f32.xlu0 %v1250
      %v1252 = vpop.xlane.xlu0 %1251
      %v1253 = vsel %vm427, %v1184, 0.0
      %1254 = vadd.xlane.f32.xlu0 %v1253
      %v1255 = vpop.xlane.xlu0 %1254
      %v1256 = vsel %vm427, %v1186, 0.0
      %1257 = vadd.xlane.f32.xlu0 %v1256
      %v1258 = vpop.xlane.xlu0 %1257
      %v1259 = vsel %vm427, %v1188, 0.0
      %1260 = vadd.xlane.f32.xlu0 %v1259
      %v1261 = vpop.xlane.xlu0 %1260
      %v1262 = vsel %vm427, %v1190, 0.0
      %1263 = vadd.xlane.f32.xlu0 %v1262
      %v1264 = vpop.xlane.xlu0 %1263
      %v1265 = vsel %vm427, %v1192, 0.0
      %1266 = vadd.xlane.f32.xlu0 %v1265
      %v1267 = vpop.xlane.xlu0 %1266
      %v1268 = vsel %vm427, %v1194, 0.0
      %1269 = vadd.xlane.f32.xlu0 %v1268
      %v1270 = vpop.xlane.xlu0 %1269
      %v1271 = vsel %vm427, %v1196, 0.0
      %1272 = vadd.xlane.f32.xlu0 %v1271
      %v1273 = vpop.xlane.xlu0 %1272
      %v1274 = vsel %vm427, %v1198, 0.0
      %1275 = vadd.xlane.f32.xlu0 %v1274
      %v1276 = vpop.xlane.xlu0 %1275
      %v1277 = vsel %vm427, %v1200, 0.0
      %1278 = vadd.xlane.f32.xlu0 %v1277
      %v1279 = vpop.xlane.xlu0 %1278
      %v1280 = vsel %vm427, %v1202, 0.0
      %1281 = vadd.xlane.f32.xlu0 %v1280
      %v1282 = vpop.xlane.xlu0 %1281
      %v1283 = vsel %vm427, %v1204, 0.0
      %1284 = vadd.xlane.f32.xlu0 %v1283
      %v1285 = vpop.xlane.xlu0 %1284
      %v1286 = vsel %vm427, %v1206, 0.0
      %1287 = vadd.xlane.f32.xlu0 %v1286
      %v1288 = vpop.xlane.xlu0 %1287
      %v1289 = vsel %vm427, %v1208, 0.0
      %1290 = vadd.xlane.f32.xlu0 %v1289
      %v1291 = vpop.xlane.xlu0 %1290
      %v1292 = vsel %vm427, %v1210, 0.0
      %1293 = vadd.xlane.f32.xlu0 %v1292
      %v1294 = vpop.xlane.xlu0 %1293
      %v1295 = vsel %vm427, %v1212, 0.0
      %1296 = vadd.xlane.f32.xlu0 %v1295
      %v1297 = vpop.xlane.xlu0 %1296
      %v1298 = vsel %vm427, %v1214, 0.0
      %1299 = vadd.xlane.f32.xlu0 %v1298
      %v1300 = vpop.xlane.xlu0 %1299
      %v1301 = vsel %vm427, %v1216, 0.0
      %1302 = vadd.xlane.f32.xlu0 %v1301
      %v1303 = vpop.xlane.xlu0 %1302
      %v1304 = vsel %vm427, %v1218, 0.0
      %1305 = vadd.xlane.f32.xlu0 %v1304
      %v1306 = vpop.xlane.xlu0 %1305
      %v1307 = vsel %vm427, %v1220, 0.0
      %1308 = vadd.xlane.f32.xlu0 %v1307
      %v1309 = vpop.xlane.xlu0 %1308
      %v1310 = vsel %vm427, %v1222, 0.0
      %1311 = vadd.xlane.f32.xlu0 %v1310
      %v1312 = vpop.xlane.xlu0 %1311
      %v1313 = vsel %vm427, %v1224, 0.0
      %1314 = vadd.xlane.f32.xlu0 %v1313
      %v1315 = vpop.xlane.xlu0 %1314
      %v1316 = vsel %vm427, %v1226, 0.0
      %1317 = vadd.xlane.f32.xlu0 %v1316
      %v1318 = vpop.xlane.xlu0 %1317
      %v1319 = vsel %vm427, %v1228, 0.0
      %1320 = vadd.xlane.f32.xlu0 %v1319
      %v1321 = vpop.xlane.xlu0 %1320
      %v1322 = vsel %vm427, %v1230, 0.0
      %1323 = vadd.xlane.f32.xlu0 %v1322
      %v1324 = vpop.xlane.xlu0 %1323
      %v1325 = vsel %vm427, %v1232, 0.0
      %1326 = vadd.xlane.f32.xlu0 %v1325
      %v1327 = vpop.xlane.xlu0 %1326
      %v1328 = vsel %vm427, %v1234, 0.0
      %1329 = vadd.xlane.f32.xlu0 %v1328
      %v1330 = vpop.xlane.xlu0 %1329
      %v1331 = vrcp.pop %v1237
      %v1332 = vrcp.pop %v1240
      %v1333 = vrcp.pop %v1243
      %v1334 = vrcp.pop %v1246
      %v1335 = vrcp.pop %v1249
      %v1336 = vrcp.pop %v1252
      %v1337 = vrcp.pop %v1255
      %v1338 = vrcp.pop %v1258
      %v1339 = vrcp.pop %v1261
      %v1340 = vrcp.pop %v1264
      %v1341 = vrcp.pop %v1267
      %v1342 = vrcp.pop %v1270
      %v1343 = vrcp.pop %v1273
      %v1344 = vrcp.pop %v1276
      %v1345 = vrcp.pop %v1279
      %v1346 = vrcp.pop %v1282
      %v1347 = vrcp.pop %v1285
      %v1348 = vrcp.pop %v1288
      %v1349 = vrcp.pop %v1291
      %v1350 = vrcp.pop %v1294
      %v1351 = vrcp.pop %v1297
      %v1352 = vrcp.pop %v1300
      %v1353 = vrcp.pop %v1303
      %v1354 = vrcp.pop %v1306
      %v1355 = vrcp.pop %v1309
      %v1356 = vrcp.pop %v1312
      %v1357 = vrcp.pop %v1315
      %v1358 = vrcp.pop %v1318
      %v1359 = vrcp.pop %v1321
      %v1360 = vrcp.pop %v1324
      %v1361 = vrcp.pop %v1327
      %v1362 = vrcp.pop %v1330
      %v1363 = vmul.f32 %v1172, %v1331
      %v1364 = vmul.f32 %v1174, %v1332
      %v1365 = vmul.f32 %v1176, %v1333
      %v1366 = vmul.f32 %v1178, %v1334
      %v1367 = vmul.f32 %v1180, %v1335
      %v1368 = vmul.f32 %v1182, %v1336
      %v1369 = vmul.f32 %v1184, %v1337
      %v1370 = vmul.f32 %v1186, %v1338
      %v1371 = vmul.f32 %v1188, %v1339
      %v1372 = vmul.f32 %v1190, %v1340
      %v1373 = vmul.f32 %v1192, %v1341
      %v1374 = vmul.f32 %v1194, %v1342
      %v1375 = vmul.f32 %v1196, %v1343
      %v1376 = vmul.f32 %v1198, %v1344
      %v1377 = vmul.f32 %v1200, %v1345
      %v1378 = vmul.f32 %v1202, %v1346
      %v1379 = vmul.f32 %v1204, %v1347
      %v1380 = vmul.f32 %v1206, %v1348
      %v1381 = vmul.f32 %v1208, %v1349
      %v1382 = vmul.f32 %v1210, %v1350
      %v1383 = vmul.f32 %v1212, %v1351
      %v1384 = vmul.f32 %v1214, %v1352
      %v1385 = vmul.f32 %v1216, %v1353
      %v1386 = vmul.f32 %v1218, %v1354
      %v1387 = vmul.f32 %v1220, %v1355
      %v1388 = vmul.f32 %v1222, %v1356
      %v1389 = vmul.f32 %v1224, %v1357
      %v1390 = vmul.f32 %v1226, %v1358
      %v1391 = vmul.f32 %v1228, %v1359
      %v1392 = vmul.f32 %v1230, %v1360
      %v1393 = vmul.f32 %v1232, %v1361
      %v1394 = vmul.f32 %v1234, %v1362
      %v1395 = vpack.c.bf16 %v1363, %v1363
      %v1396 = vpack.c.bf16 %v1364, %v1364
      %v1397 = vpack.c.bf16 %v1365, %v1365
      %v1398 = vpack.c.bf16 %v1366, %v1366
      %v1399 = vpack.c.bf16 %v1367, %v1367
      %v1400 = vpack.c.bf16 %v1368, %v1368
      %v1401 = vpack.c.bf16 %v1369, %v1369
      %v1402 = vpack.c.bf16 %v1370, %v1370
      %v1403 = vpack.c.bf16 %v1371, %v1371
      %v1404 = vpack.c.bf16 %v1372, %v1372
      %v1405 = vpack.c.bf16 %v1373, %v1373
      %v1406 = vpack.c.bf16 %v1374, %v1374
      %v1407 = vpack.c.bf16 %v1375, %v1375
      %v1408 = vpack.c.bf16 %v1376, %v1376
      %v1409 = vpack.c.bf16 %v1377, %v1377
      %v1410 = vpack.c.bf16 %v1378, %v1378
      %v1411 = vpack.c.bf16 %v1379, %v1379
      %v1412 = vpack.c.bf16 %v1380, %v1380
      %v1413 = vpack.c.bf16 %v1381, %v1381
      %v1414 = vpack.c.bf16 %v1382, %v1382
      %v1415 = vpack.c.bf16 %v1383, %v1383
      %v1416 = vpack.c.bf16 %v1384, %v1384
      %v1417 = vpack.c.bf16 %v1385, %v1385
      %v1418 = vpack.c.bf16 %v1386, %v1386
      %v1419 = vpack.c.bf16 %v1387, %v1387
      %v1420 = vpack.c.bf16 %v1388, %v1388
      %v1421 = vpack.c.bf16 %v1389, %v1389
      %v1422 = vpack.c.bf16 %v1390, %v1390
      %v1423 = vpack.c.bf16 %v1391, %v1391
      %v1424 = vpack.c.bf16 %v1392, %v1392
      %v1425 = vpack.c.bf16 %v1393, %v1393
      %v1426 = vpack.c.bf16 %v1394, %v1394
      %v1427 = vrot.slane %v654, 4
      %v1428 = vrot.slane %v655, 4
      %v1429 = vrot.slane %v656, 4
      %v1430 = vrot.slane %v657, 4
      %v1431 = vrot.slane %v658, 4
      %v1432 = vrot.slane %v659, 4
      %v1433 = vrot.slane %v660, 4
      %v1434 = vrot.slane %v661, 4
      %v1443 = vunpack.c.l.b16 %v1395
      %v1444 = vunpack.c.l.b16 %v1396
      %v1445 = vunpack.c.l.b16 %v1397
      %v1446 = vunpack.c.l.b16 %v1398
      %v1447 = vunpack.c.l.b16 %v1399
      %v1448 = vunpack.c.l.b16 %v1400
      %v1449 = vunpack.c.l.b16 %v1401
      %v1450 = vunpack.c.l.b16 %v1402
      %v1451 = vpack.c.b16 %v1444, %v1443
      %v1452 = vpack.c.b16 %v1446, %v1445
      %v1453 = vpack.c.b16 %v1448, %v1447
      %v1454 = vpack.c.b16 %v1450, %v1449
      %v1455 = vunpack.c.l.b16 %v1427
      %v1456 = vunpack.c.l.b16 %v1428
      %v1457 = vunpack.c.l.b16 %v1429
      %v1458 = vunpack.c.l.b16 %v1430
      %v1459 = vunpack.c.l.b16 %v1431
      %v1460 = vunpack.c.l.b16 %v1432
      %v1461 = vunpack.c.l.b16 %v1433
      %v1462 = vunpack.c.l.b16 %v1434
      %v1463 = vpack.c.b16 %v1456, %v1455
      %v1464 = vpack.c.b16 %v1458, %v1457
      %v1465 = vpack.c.b16 %v1460, %v1459
      %v1466 = vpack.c.b16 %v1462, %v1461
      %v1472 = vsel %vm427, %v1451, 0
      %v1475 = vsel %vm427, %v1452, 0
      %v1478 = vsel %vm427, %v1453, 0
      %v1481 = vsel %vm427, %v1454, 0
      %1483 = vmatpush.bf16.msra.mxu0 0
      %1484 = vmatpush.bf16.msra.mxu0 0
      %1485 = vmatpush.bf16.msra.mxu0 0
      %1486 = vmatpush.bf16.msra.mxu0 0
      %1487 = vmatpush.bf16.msra.mxu0 %v1466
      %1488 = vmatpush.bf16.msra.mxu0 %v1465
      %1489 = vmatpush.bf16.msra.mxu0 %v1464
      %1490 = vmatpush.bf16.msra.mxu0 %v1463
      %1491 = vmatmul.bf16.gmra.mxu0 %v1472
      %v1492 = vpop.f32.mrf.mxu0
      %v1493 = vadd.f32 0.0, %v1492
      %v1494 = vpop.f32.mrf.mxu0
      %v1495 = vadd.f32 0.0, %v1494
      %1496 = vmatmul.bf16.gmra.mxu0 %v1475
      %v1497 = vpop.f32.mrf.mxu0
      %v1498 = vadd.f32 0.0, %v1497
      %v1499 = vpop.f32.mrf.mxu0
      %v1500 = vadd.f32 0.0, %v1499
      %1501 = vmatmul.bf16.gmra.mxu0 %v1478
      %v1502 = vpop.f32.mrf.mxu0
      %v1503 = vadd.f32 0.0, %v1502
      %v1504 = vpop.f32.mrf.mxu0
      %v1505 = vadd.f32 0.0, %v1504
      %1506 = vmatmul.bf16.gmra.mxu0 %v1481
      %v1507 = vpop.f32.mrf.mxu0
      %v1508 = vadd.f32 0.0, %v1507
      %v1509 = vpop.f32.mrf.mxu0
      %v1510 = vadd.f32 0.0, %v1509
      %1511 = vdwg.mxu0
      %v1512 = vrot.slane %v662, 4
      %v1513 = vrot.slane %v663, 4
      %v1514 = vrot.slane %v664, 4
      %v1515 = vrot.slane %v665, 4
      %v1516 = vrot.slane %v666, 4
      %v1517 = vrot.slane %v667, 4
      %v1518 = vrot.slane %v668, 4
      %v1519 = vrot.slane %v669, 4
      %v1528 = vunpack.c.l.b16 %v1403
      %v1529 = vunpack.c.l.b16 %v1404
      %v1530 = vunpack.c.l.b16 %v1405
      %v1531 = vunpack.c.l.b16 %v1406
      %v1532 = vunpack.c.l.b16 %v1407
      %v1533 = vunpack.c.l.b16 %v1408
      %v1534 = vunpack.c.l.b16 %v1409
      %v1535 = vunpack.c.l.b16 %v1410
      %v1536 = vpack.c.b16 %v1529, %v1528
      %v1537 = vpack.c.b16 %v1531, %v1530
      %v1538 = vpack.c.b16 %v1533, %v1532
      %v1539 = vpack.c.b16 %v1535, %v1534
      %v1540 = vunpack.c.l.b16 %v1512
      %v1541 = vunpack.c.l.b16 %v1513
      %v1542 = vunpack.c.l.b16 %v1514
      %v1543 = vunpack.c.l.b16 %v1515
      %v1544 = vunpack.c.l.b16 %v1516
      %v1545 = vunpack.c.l.b16 %v1517
      %v1546 = vunpack.c.l.b16 %v1518
      %v1547 = vunpack.c.l.b16 %v1519
      %v1548 = vpack.c.b16 %v1541, %v1540
      %v1549 = vpack.c.b16 %v1543, %v1542
      %v1550 = vpack.c.b16 %v1545, %v1544
      %v1551 = vpack.c.b16 %v1547, %v1546
      %v1557 = vsel %vm427, %v1536, 0
      %v1560 = vsel %vm427, %v1537, 0
      %v1563 = vsel %vm427, %v1538, 0
      %v1566 = vsel %vm427, %v1539, 0
      %1568 = vmatpush.bf16.msra.mxu0 0
      %1569 = vmatpush.bf16.msra.mxu0 0
      %1570 = vmatpush.bf16.msra.mxu0 0
      %1571 = vmatpush.bf16.msra.mxu0 0
      %1572 = vmatpush.bf16.msra.mxu0 %v1551
      %1573 = vmatpush.bf16.msra.mxu0 %v1550
      %1574 = vmatpush.bf16.msra.mxu0 %v1549
      %1575 = vmatpush.bf16.msra.mxu0 %v1548
      %1576 = vmatmul.bf16.gmra.mxu0 %v1557
      %v1577 = vpop.f32.mrf.mxu0
      %v1578 = vadd.f32 0.0, %v1577
      %v1579 = vpop.f32.mrf.mxu0
      %v1580 = vadd.f32 0.0, %v1579
      %1581 = vmatmul.bf16.gmra.mxu0 %v1560
      %v1582 = vpop.f32.mrf.mxu0
      %v1583 = vadd.f32 0.0, %v1582
      %v1584 = vpop.f32.mrf.mxu0
      %v1585 = vadd.f32 0.0, %v1584
      %1586 = vmatmul.bf16.gmra.mxu0 %v1563
      %v1587 = vpop.f32.mrf.mxu0
      %v1588 = vadd.f32 0.0, %v1587
      %v1589 = vpop.f32.mrf.mxu0
      %v1590 = vadd.f32 0.0, %v1589
      %1591 = vmatmul.bf16.gmra.mxu0 %v1566
      %v1592 = vpop.f32.mrf.mxu0
      %v1593 = vadd.f32 0.0, %v1592
      %v1594 = vpop.f32.mrf.mxu0
      %v1595 = vadd.f32 0.0, %v1594
      %1596 = vdwg.mxu0
      %v1597 = vrot.slane %v670, 4
      %v1598 = vrot.slane %v671, 4
      %v1599 = vrot.slane %v672, 4
      %v1600 = vrot.slane %v673, 4
      %v1601 = vrot.slane %v674, 4
      %v1602 = vrot.slane %v675, 4
      %v1603 = vrot.slane %v676, 4
      %v1604 = vrot.slane %v677, 4
      %v1613 = vunpack.c.l.b16 %v1411
      %v1614 = vunpack.c.l.b16 %v1412
      %v1615 = vunpack.c.l.b16 %v1413
      %v1616 = vunpack.c.l.b16 %v1414
      %v1617 = vunpack.c.l.b16 %v1415
      %v1618 = vunpack.c.l.b16 %v1416
      %v1619 = vunpack.c.l.b16 %v1417
      %v1620 = vunpack.c.l.b16 %v1418
      %v1621 = vpack.c.b16 %v1614, %v1613
      %v1622 = vpack.c.b16 %v1616, %v1615
      %v1623 = vpack.c.b16 %v1618, %v1617
      %v1624 = vpack.c.b16 %v1620, %v1619
      %v1625 = vunpack.c.l.b16 %v1597
      %v1626 = vunpack.c.l.b16 %v1598
      %v1627 = vunpack.c.l.b16 %v1599
      %v1628 = vunpack.c.l.b16 %v1600
      %v1629 = vunpack.c.l.b16 %v1601
      %v1630 = vunpack.c.l.b16 %v1602
      %v1631 = vunpack.c.l.b16 %v1603
      %v1632 = vunpack.c.l.b16 %v1604
      %v1633 = vpack.c.b16 %v1626, %v1625
      %v1634 = vpack.c.b16 %v1628, %v1627
      %v1635 = vpack.c.b16 %v1630, %v1629
      %v1636 = vpack.c.b16 %v1632, %v1631
      %v1642 = vsel %vm427, %v1621, 0
      %v1645 = vsel %vm427, %v1622, 0
      %v1648 = vsel %vm427, %v1623, 0
      %v1651 = vsel %vm427, %v1624, 0
      %1653 = vmatpush.bf16.msra.mxu0 0
      %1654 = vmatpush.bf16.msra.mxu0 0
      %1655 = vmatpush.bf16.msra.mxu0 0
      %1656 = vmatpush.bf16.msra.mxu0 0
      %1657 = vmatpush.bf16.msra.mxu0 %v1636
      %1658 = vmatpush.bf16.msra.mxu0 %v1635
      %1659 = vmatpush.bf16.msra.mxu0 %v1634
      %1660 = vmatpush.bf16.msra.mxu0 %v1633
      %1661 = vmatmul.bf16.gmra.mxu0 %v1642
      %v1662 = vpop.f32.mrf.mxu0
      %v1663 = vadd.f32 0.0, %v1662
      %v1664 = vpop.f32.mrf.mxu0
      %v1665 = vadd.f32 0.0, %v1664
      %1666 = vmatmul.bf16.gmra.mxu0 %v1645
      %v1667 = vpop.f32.mrf.mxu0
      %v1668 = vadd.f32 0.0, %v1667
      %v1669 = vpop.f32.mrf.mxu0
      %v1670 = vadd.f32 0.0, %v1669
      %1671 = vmatmul.bf16.gmra.mxu0 %v1648
      %v1672 = vpop.f32.mrf.mxu0
      %v1673 = vadd.f32 0.0, %v1672
      %v1674 = vpop.f32.mrf.mxu0
      %v1675 = vadd.f32 0.0, %v1674
      %1676 = vmatmul.bf16.gmra.mxu0 %v1651
      %v1677 = vpop.f32.mrf.mxu0
      %v1678 = vadd.f32 0.0, %v1677
      %v1679 = vpop.f32.mrf.mxu0
      %v1680 = vadd.f32 0.0, %v1679
      %1681 = vdwg.mxu0
      %v1682 = vrot.slane %v678, 4
      %v1683 = vrot.slane %v679, 4
      %v1684 = vrot.slane %v680, 4
      %v1685 = vrot.slane %v681, 4
      %v1686 = vrot.slane %v682, 4
      %v1687 = vrot.slane %v683, 4
      %v1688 = vrot.slane %v684, 4
      %v1689 = vrot.slane %v685, 4
      %v1698 = vunpack.c.l.b16 %v1419
      %v1699 = vunpack.c.l.b16 %v1420
      %v1700 = vunpack.c.l.b16 %v1421
      %v1701 = vunpack.c.l.b16 %v1422
      %v1702 = vunpack.c.l.b16 %v1423
      %v1703 = vunpack.c.l.b16 %v1424
      %v1704 = vunpack.c.l.b16 %v1425
      %v1705 = vunpack.c.l.b16 %v1426
      %v1706 = vpack.c.b16 %v1699, %v1698
      %v1707 = vpack.c.b16 %v1701, %v1700
      %v1708 = vpack.c.b16 %v1703, %v1702
      %v1709 = vpack.c.b16 %v1705, %v1704
      %v1710 = vunpack.c.l.b16 %v1682
      %v1711 = vunpack.c.l.b16 %v1683
      %v1712 = vunpack.c.l.b16 %v1684
      %v1713 = vunpack.c.l.b16 %v1685
      %v1714 = vunpack.c.l.b16 %v1686
      %v1715 = vunpack.c.l.b16 %v1687
      %v1716 = vunpack.c.l.b16 %v1688
      %v1717 = vunpack.c.l.b16 %v1689
      %v1718 = vpack.c.b16 %v1711, %v1710
      %v1719 = vpack.c.b16 %v1713, %v1712
      %v1720 = vpack.c.b16 %v1715, %v1714
      %v1721 = vpack.c.b16 %v1717, %v1716
      %v1727 = vsel %vm427, %v1706, 0
      %v1730 = vsel %vm427, %v1707, 0
      %v1733 = vsel %vm427, %v1708, 0
      %v1736 = vsel %vm427, %v1709, 0
      %1738 = vmatpush.bf16.msra.mxu0 0
      %1739 = vmatpush.bf16.msra.mxu0 0
      %1740 = vmatpush.bf16.msra.mxu0 0
      %1741 = vmatpush.bf16.msra.mxu0 0
      %1742 = vmatpush.bf16.msra.mxu0 %v1721
      %1743 = vmatpush.bf16.msra.mxu0 %v1720
      %1744 = vmatpush.bf16.msra.mxu0 %v1719
      %1745 = vmatpush.bf16.msra.mxu0 %v1718
      %1746 = vmatmul.bf16.gmra.mxu0 %v1727
      %v1747 = vpop.f32.mrf.mxu0
      %v1748 = vadd.f32 0.0, %v1747
      %v1749 = vpop.f32.mrf.mxu0
      %v1750 = vadd.f32 0.0, %v1749
      %1751 = vmatmul.bf16.gmra.mxu0 %v1730
      %v1752 = vpop.f32.mrf.mxu0
      %v1753 = vadd.f32 0.0, %v1752
      %v1754 = vpop.f32.mrf.mxu0
      %v1755 = vadd.f32 0.0, %v1754
      %1756 = vmatmul.bf16.gmra.mxu0 %v1733
      %v1757 = vpop.f32.mrf.mxu0
      %v1758 = vadd.f32 0.0, %v1757
      %v1759 = vpop.f32.mrf.mxu0
      %v1760 = vadd.f32 0.0, %v1759
      %1761 = vmatmul.bf16.gmra.mxu0 %v1736
      %v1762 = vpop.f32.mrf.mxu0
      %v1763 = vadd.f32 0.0, %v1762
      %v1764 = vpop.f32.mrf.mxu0
      %v1765 = vadd.f32 0.0, %v1764
      %1766 = vdwg.mxu0
      %v1767 = vpack.c.bf16 %v1493, %v1493
      %v1768 = vpack.c.bf16 %v1495, %v1495
      %v1769 = vpack.c.bf16 %v1498, %v1498
      %v1770 = vpack.c.bf16 %v1500, %v1500
      %v1771 = vpack.c.bf16 %v1503, %v1503
      %v1772 = vpack.c.bf16 %v1505, %v1505
      %v1773 = vpack.c.bf16 %v1508, %v1508
      %v1774 = vpack.c.bf16 %v1510, %v1510
      %v1775 = vpack.c.bf16 %v1578, %v1578
      %v1776 = vpack.c.bf16 %v1580, %v1580
      %v1777 = vpack.c.bf16 %v1583, %v1583
      %v1778 = vpack.c.bf16 %v1585, %v1585
      %v1779 = vpack.c.bf16 %v1588, %v1588
      %v1780 = vpack.c.bf16 %v1590, %v1590
      %v1781 = vpack.c.bf16 %v1593, %v1593
      %v1782 = vpack.c.bf16 %v1595, %v1595
      %v1783 = vpack.c.bf16 %v1663, %v1663
      %v1784 = vpack.c.bf16 %v1665, %v1665
      %v1785 = vpack.c.bf16 %v1668, %v1668
      %v1786 = vpack.c.bf16 %v1670, %v1670
      %v1787 = vpack.c.bf16 %v1673, %v1673
      %v1788 = vpack.c.bf16 %v1675, %v1675
      %v1789 = vpack.c.bf16 %v1678, %v1678
      %v1790 = vpack.c.bf16 %v1680, %v1680
      %v1791 = vpack.c.bf16 %v1748, %v1748
      %v1792 = vpack.c.bf16 %v1750, %v1750
      %v1793 = vpack.c.bf16 %v1753, %v1753
      %v1794 = vpack.c.bf16 %v1755, %v1755
      %v1795 = vpack.c.bf16 %v1758, %v1758
      %v1796 = vpack.c.bf16 %v1760, %v1760
      %v1797 = vpack.c.bf16 %v1763, %v1763
      %v1798 = vpack.c.bf16 %v1765, %v1765
      %vm1799 = vcmask 257024
      %1800 = vst.msk [vmem:[#allocation2] sm:$0xf] %vm1799, %v1767
      %1801 = vst.msk [vmem:[#allocation2 + $0x4] sm:$0xf] %vm1799, %v1768
      %1802 = vst.msk [vmem:[#allocation2 + $0x8] sm:$0xf] %vm1799, %v1769
      %1803 = vst.msk [vmem:[#allocation2 + $0xc] sm:$0xf] %vm1799, %v1770
      %1804 = vst.msk [vmem:[#allocation2 + $0x10] sm:$0xf] %vm1799, %v1771
      %1805 = vst.msk [vmem:[#allocation2 + $0x14] sm:$0xf] %vm1799, %v1772
      %1806 = vst.msk [vmem:[#allocation2 + $0x18] sm:$0xf] %vm1799, %v1773
      %1807 = vst.msk [vmem:[#allocation2 + $0x1c] sm:$0xf] %vm1799, %v1774
      %1808 = vst.msk [vmem:[#allocation2 + $0x20] sm:$0xf] %vm1799, %v1775
      %1809 = vst.msk [vmem:[#allocation2 + $0x24] sm:$0xf] %vm1799, %v1776
      %1810 = vst.msk [vmem:[#allocation2 + $0x28] sm:$0xf] %vm1799, %v1777
      %1811 = vst.msk [vmem:[#allocation2 + $0x2c] sm:$0xf] %vm1799, %v1778
      %1812 = vst.msk [vmem:[#allocation2 + $0x30] sm:$0xf] %vm1799, %v1779
      %1813 = vst.msk [vmem:[#allocation2 + $0x34] sm:$0xf] %vm1799, %v1780
      %1814 = vst.msk [vmem:[#allocation2 + $0x38] sm:$0xf] %vm1799, %v1781
      %1815 = vst.msk [vmem:[#allocation2 + $0x3c] sm:$0xf] %vm1799, %v1782
      %1816 = vst.msk [vmem:[#allocation2 + $0x40] sm:$0xf] %vm1799, %v1783
      %1817 = vst.msk [vmem:[#allocation2 + $0x44] sm:$0xf] %vm1799, %v1784
      %1818 = vst.msk [vmem:[#allocation2 + $0x48] sm:$0xf] %vm1799, %v1785
      %1819 = vst.msk [vmem:[#allocation2 + $0x4c] sm:$0xf] %vm1799, %v1786
      %1820 = vst.msk [vmem:[#allocation2 + $0x50] sm:$0xf] %vm1799, %v1787
      %1821 = vst.msk [vmem:[#allocation2 + $0x54] sm:$0xf] %vm1799, %v1788
      %1822 = vst.msk [vmem:[#allocation2 + $0x58] sm:$0xf] %vm1799, %v1789
      %1823 = vst.msk [vmem:[#allocation2 + $0x5c] sm:$0xf] %vm1799, %v1790
      %1824 = vst.msk [vmem:[#allocation2 + $0x60] sm:$0xf] %vm1799, %v1791
      %1825 = vst.msk [vmem:[#allocation2 + $0x64] sm:$0xf] %vm1799, %v1792
      %1826 = vst.msk [vmem:[#allocation2 + $0x68] sm:$0xf] %vm1799, %v1793
      %1827 = vst.msk [vmem:[#allocation2 + $0x6c] sm:$0xf] %vm1799, %v1794
      %1828 = vst.msk [vmem:[#allocation2 + $0x70] sm:$0xf] %vm1799, %v1795
      %1829 = vst.msk [vmem:[#allocation2 + $0x74] sm:$0xf] %vm1799, %v1796
      %1830 = vst.msk [vmem:[#allocation2 + $0x78] sm:$0xf] %vm1799, %v1797
      %1831 = vst.msk [vmem:[#allocation2 + $0x7c] sm:$0xf] %vm1799, %v1798
      %s1832 = scalar_lea.vmem %s3, 64
      %v1833 = vld [vmem:[%s1832] sm:$0xff]
      %v1834 = vld [vmem:[%s1832 + $0x8] sm:$0xff]
      %v1835 = vld [vmem:[%s1832 + $0x10] sm:$0xff]
      %v1836 = vld [vmem:[%s1832 + $0x18] sm:$0xff]
      %v1837 = vld [vmem:[%s1832 + $0x20] sm:$0xff]
      %v1838 = vld [vmem:[%s1832 + $0x28] sm:$0xff]
      %v1839 = vld [vmem:[%s1832 + $0x30] sm:$0xff]
      %v1840 = vld [vmem:[%s1832 + $0x38] sm:$0xff]
      %v1841 = vld [vmem:[%s1832 + $0x80] sm:$0xff]
      %v1842 = vld [vmem:[%s1832 + $0x88] sm:$0xff]
      %v1843 = vld [vmem:[%s1832 + $0x90] sm:$0xff]
      %v1844 = vld [vmem:[%s1832 + $0x98] sm:$0xff]
      %v1845 = vld [vmem:[%s1832 + $0xa0] sm:$0xff]
      %v1846 = vld [vmem:[%s1832 + $0xa8] sm:$0xff]
      %v1847 = vld [vmem:[%s1832 + $0xb0] sm:$0xff]
      %v1848 = vld [vmem:[%s1832 + $0xb8] sm:$0xff]
      %v1849 = vld [vmem:[%s1832 + $0x100] sm:$0xff]
      %v1850 = vld [vmem:[%s1832 + $0x108] sm:$0xff]
      %v1851 = vld [vmem:[%s1832 + $0x110] sm:$0xff]
      %v1852 = vld [vmem:[%s1832 + $0x118] sm:$0xff]
      %v1853 = vld [vmem:[%s1832 + $0x120] sm:$0xff]
      %v1854 = vld [vmem:[%s1832 + $0x128] sm:$0xff]
      %v1855 = vld [vmem:[%s1832 + $0x130] sm:$0xff]
      %v1856 = vld [vmem:[%s1832 + $0x138] sm:$0xff]
      %v1857 = vld [vmem:[%s1832 + $0x180] sm:$0xff]
      %v1858 = vld [vmem:[%s1832 + $0x188] sm:$0xff]
      %v1859 = vld [vmem:[%s1832 + $0x190] sm:$0xff]
      %v1860 = vld [vmem:[%s1832 + $0x198] sm:$0xff]
      %v1861 = vld [vmem:[%s1832 + $0x1a0] sm:$0xff]
      %v1862 = vld [vmem:[%s1832 + $0x1a8] sm:$0xff]
      %v1863 = vld [vmem:[%s1832 + $0x1b0] sm:$0xff]
      %v1864 = vld [vmem:[%s1832 + $0x1b8] sm:$0xff]
      %1865 = vrot.lane.b32.xlu0 %v734, 96
      %v1866 = vpop.permute.xlu0 %1865
      %1867 = vrot.lane.b32.xlu0 %v735, 96
      %v1868 = vpop.permute.xlu0 %1867
      %1869 = vrot.lane.b32.xlu0 %v736, 96
      %v1870 = vpop.permute.xlu0 %1869
      %1871 = vrot.lane.b32.xlu0 %v737, 96
      %v1872 = vpop.permute.xlu0 %1871
      %1873 = vrot.lane.b32.xlu0 %v734, 32
      %v1874 = vpop.permute.xlu0 %1873
      %1875 = vrot.lane.b32.xlu0 %v735, 32
      %v1876 = vpop.permute.xlu0 %1875
      %1877 = vrot.lane.b32.xlu0 %v736, 32
      %v1878 = vpop.permute.xlu0 %1877
      %1879 = vrot.lane.b32.xlu0 %v737, 32
      %v1880 = vpop.permute.xlu0 %1879
      %v1882 = vsel %vm746, %v1866, 0
      %v1885 = vsel %vm746, %v1868, 0
      %v1888 = vsel %vm746, %v1870, 0
      %v1891 = vsel %vm746, %v1872, 0
      %v1894 = vsel %vm746, %v1874, 0
      %v1897 = vsel %vm746, %v1876, 0
      %v1900 = vsel %vm746, %v1878, 0
      %v1903 = vsel %vm746, %v1880, 0
      %1905 = vmatpush.bf16.xpose.msra.mxu0 0
      %1906 = vmatpush.bf16.xpose.msra.mxu0 0
      %1907 = vmatpush.bf16.xpose.msra.mxu0 0
      %1908 = vmatpush.bf16.xpose.msra.mxu0 0
      %1909 = vmatpush.bf16.xpose.msra.mxu0 %v1903
      %1910 = vmatpush.bf16.xpose.msra.mxu0 %v1900
      %1911 = vmatpush.bf16.xpose.msra.mxu0 %v1897
      %1912 = vmatpush.bf16.xpose.msra.mxu0 %v1894
      %1913 = vmatmul.bf16.gmra.mxu0 %v1882
      %v1914 = vpop.f32.mrf.mxu0
      %v1915 = vadd.f32 %v1833, %v1914
      %v1916 = vpop.f32.mrf.mxu0
      %v1917 = vadd.f32 %v1834, %v1916
      %1918 = vmatmul.bf16.gmra.mxu0 %v1885
      %v1919 = vpop.f32.mrf.mxu0
      %v1920 = vadd.f32 %v1835, %v1919
      %v1921 = vpop.f32.mrf.mxu0
      %v1922 = vadd.f32 %v1836, %v1921
      %1923 = vmatmul.bf16.gmra.mxu0 %v1888
      %v1924 = vpop.f32.mrf.mxu0
      %v1925 = vadd.f32 %v1837, %v1924
      %v1926 = vpop.f32.mrf.mxu0
      %v1927 = vadd.f32 %v1838, %v1926
      %1928 = vmatmul.bf16.gmra.mxu0 %v1891
      %v1929 = vpop.f32.mrf.mxu0
      %v1930 = vadd.f32 %v1839, %v1929
      %v1931 = vpop.f32.mrf.mxu0
      %v1932 = vadd.f32 %v1840, %v1931
      %1933 = vdwg.mxu0
      %1934 = vrot.lane.b32.xlu0 %v816, 96
      %v1935 = vpop.permute.xlu0 %1934
      %1936 = vrot.lane.b32.xlu0 %v817, 96
      %v1937 = vpop.permute.xlu0 %1936
      %1938 = vrot.lane.b32.xlu0 %v818, 96
      %v1939 = vpop.permute.xlu0 %1938
      %1940 = vrot.lane.b32.xlu0 %v819, 96
      %v1941 = vpop.permute.xlu0 %1940
      %1942 = vrot.lane.b32.xlu0 %v816, 32
      %v1943 = vpop.permute.xlu0 %1942
      %1944 = vrot.lane.b32.xlu0 %v817, 32
      %v1945 = vpop.permute.xlu0 %1944
      %1946 = vrot.lane.b32.xlu0 %v818, 32
      %v1947 = vpop.permute.xlu0 %1946
      %1948 = vrot.lane.b32.xlu0 %v819, 32
      %v1949 = vpop.permute.xlu0 %1948
      %v1951 = vsel %vm746, %v1935, 0
      %v1954 = vsel %vm746, %v1937, 0
      %v1957 = vsel %vm746, %v1939, 0
      %v1960 = vsel %vm746, %v1941, 0
      %v1963 = vsel %vm746, %v1943, 0
      %v1966 = vsel %vm746, %v1945, 0
      %v1969 = vsel %vm746, %v1947, 0
      %v1972 = vsel %vm746, %v1949, 0
      %1974 = vmatpush.bf16.xpose.msra.mxu0 0
      %1975 = vmatpush.bf16.xpose.msra.mxu0 0
      %1976 = vmatpush.bf16.xpose.msra.mxu0 0
      %1977 = vmatpush.bf16.xpose.msra.mxu0 0
      %1978 = vmatpush.bf16.xpose.msra.mxu0 %v1972
      %1979 = vmatpush.bf16.xpose.msra.mxu0 %v1969
      %1980 = vmatpush.bf16.xpose.msra.mxu0 %v1966
      %1981 = vmatpush.bf16.xpose.msra.mxu0 %v1963
      %1982 = vmatmul.bf16.gmra.mxu0 %v1951
      %v1983 = vpop.f32.mrf.mxu0
      %v1984 = vadd.f32 %v1841, %v1983
      %v1985 = vpop.f32.mrf.mxu0
      %v1986 = vadd.f32 %v1842, %v1985
      %1987 = vmatmul.bf16.gmra.mxu0 %v1954
      %v1988 = vpop.f32.mrf.mxu0
      %v1989 = vadd.f32 %v1843, %v1988
      %v1990 = vpop.f32.mrf.mxu0
      %v1991 = vadd.f32 %v1844, %v1990
      %1992 = vmatmul.bf16.gmra.mxu0 %v1957
      %v1993 = vpop.f32.mrf.mxu0
      %v1994 = vadd.f32 %v1845, %v1993
      %v1995 = vpop.f32.mrf.mxu0
      %v1996 = vadd.f32 %v1846, %v1995
      %1997 = vmatmul.bf16.gmra.mxu0 %v1960
      %v1998 = vpop.f32.mrf.mxu0
      %v1999 = vadd.f32 %v1847, %v1998
      %v2000 = vpop.f32.mrf.mxu0
      %v2001 = vadd.f32 %v1848, %v2000
      %2002 = vdwg.mxu0
      %2003 = vrot.lane.b32.xlu0 %v897, 96
      %v2004 = vpop.permute.xlu0 %2003
      %2005 = vrot.lane.b32.xlu0 %v898, 96
      %v2006 = vpop.permute.xlu0 %2005
      %2007 = vrot.lane.b32.xlu0 %v899, 96
      %v2008 = vpop.permute.xlu0 %2007
      %2009 = vrot.lane.b32.xlu0 %v900, 96
      %v2010 = vpop.permute.xlu0 %2009
      %2011 = vrot.lane.b32.xlu0 %v897, 32
      %v2012 = vpop.permute.xlu0 %2011
      %2013 = vrot.lane.b32.xlu0 %v898, 32
      %v2014 = vpop.permute.xlu0 %2013
      %2015 = vrot.lane.b32.xlu0 %v899, 32
      %v2016 = vpop.permute.xlu0 %2015
      %2017 = vrot.lane.b32.xlu0 %v900, 32
      %v2018 = vpop.permute.xlu0 %2017
      %v2020 = vsel %vm746, %v2004, 0
      %v2023 = vsel %vm746, %v2006, 0
      %v2026 = vsel %vm746, %v2008, 0
      %v2029 = vsel %vm746, %v2010, 0
      %v2032 = vsel %vm746, %v2012, 0
      %v2035 = vsel %vm746, %v2014, 0
      %v2038 = vsel %vm746, %v2016, 0
      %v2041 = vsel %vm746, %v2018, 0
      %2043 = vmatpush.bf16.xpose.msra.mxu0 0
      %2044 = vmatpush.bf16.xpose.msra.mxu0 0
      %2045 = vmatpush.bf16.xpose.msra.mxu0 0
      %2046 = vmatpush.bf16.xpose.msra.mxu0 0
      %2047 = vmatpush.bf16.xpose.msra.mxu0 %v2041
      %2048 = vmatpush.bf16.xpose.msra.mxu0 %v2038
      %2049 = vmatpush.bf16.xpose.msra.mxu0 %v2035
      %2050 = vmatpush.bf16.xpose.msra.mxu0 %v2032
      %2051 = vmatmul.bf16.gmra.mxu0 %v2020
      %v2052 = vpop.f32.mrf.mxu0
      %v2053 = vadd.f32 %v1849, %v2052
      %v2054 = vpop.f32.mrf.mxu0
      %v2055 = vadd.f32 %v1850, %v2054
      %2056 = vmatmul.bf16.gmra.mxu0 %v2023
      %v2057 = vpop.f32.mrf.mxu0
      %v2058 = vadd.f32 %v1851, %v2057
      %v2059 = vpop.f32.mrf.mxu0
      %v2060 = vadd.f32 %v1852, %v2059
      %2061 = vmatmul.bf16.gmra.mxu0 %v2026
      %v2062 = vpop.f32.mrf.mxu0
      %v2063 = vadd.f32 %v1853, %v2062
      %v2064 = vpop.f32.mrf.mxu0
      %v2065 = vadd.f32 %v1854, %v2064
      %2066 = vmatmul.bf16.gmra.mxu0 %v2029
      %v2067 = vpop.f32.mrf.mxu0
      %v2068 = vadd.f32 %v1855, %v2067
      %v2069 = vpop.f32.mrf.mxu0
      %v2070 = vadd.f32 %v1856, %v2069
      %2071 = vdwg.mxu0
      %2072 = vrot.lane.b32.xlu0 %v978, 96
      %v2073 = vpop.permute.xlu0 %2072
      %2074 = vrot.lane.b32.xlu0 %v979, 96
      %v2075 = vpop.permute.xlu0 %2074
      %2076 = vrot.lane.b32.xlu0 %v980, 96
      %v2077 = vpop.permute.xlu0 %2076
      %2078 = vrot.lane.b32.xlu0 %v981, 96
      %v2079 = vpop.permute.xlu0 %2078
      %2080 = vrot.lane.b32.xlu0 %v978, 32
      %v2081 = vpop.permute.xlu0 %2080
      %2082 = vrot.lane.b32.xlu0 %v979, 32
      %v2083 = vpop.permute.xlu0 %2082
      %2084 = vrot.lane.b32.xlu0 %v980, 32
      %v2085 = vpop.permute.xlu0 %2084
      %2086 = vrot.lane.b32.xlu0 %v981, 32
      %v2087 = vpop.permute.xlu0 %2086
      %v2089 = vsel %vm746, %v2073, 0
      %v2092 = vsel %vm746, %v2075, 0
      %v2095 = vsel %vm746, %v2077, 0
      %v2098 = vsel %vm746, %v2079, 0
      %v2101 = vsel %vm746, %v2081, 0
      %v2104 = vsel %vm746, %v2083, 0
      %v2107 = vsel %vm746, %v2085, 0
      %v2110 = vsel %vm746, %v2087, 0
      %2112 = vmatpush.bf16.xpose.msra.mxu0 0
      %2113 = vmatpush.bf16.xpose.msra.mxu0 0
      %2114 = vmatpush.bf16.xpose.msra.mxu0 0
      %2115 = vmatpush.bf16.xpose.msra.mxu0 0
      %2116 = vmatpush.bf16.xpose.msra.mxu0 %v2110
      %2117 = vmatpush.bf16.xpose.msra.mxu0 %v2107
      %2118 = vmatpush.bf16.xpose.msra.mxu0 %v2104
      %2119 = vmatpush.bf16.xpose.msra.mxu0 %v2101
      %2120 = vmatmul.bf16.gmra.mxu0 %v2089
      %v2121 = vpop.f32.mrf.mxu0
      %v2122 = vadd.f32 %v1857, %v2121
      %v2123 = vpop.f32.mrf.mxu0
      %v2124 = vadd.f32 %v1858, %v2123
      %2125 = vmatmul.bf16.gmra.mxu0 %v2092
      %v2126 = vpop.f32.mrf.mxu0
      %v2127 = vadd.f32 %v1859, %v2126
      %v2128 = vpop.f32.mrf.mxu0
      %v2129 = vadd.f32 %v1860, %v2128
      %2130 = vmatmul.bf16.gmra.mxu0 %v2095
      %v2131 = vpop.f32.mrf.mxu0
      %v2132 = vadd.f32 %v1861, %v2131
      %v2133 = vpop.f32.mrf.mxu0
      %v2134 = vadd.f32 %v1862, %v2133
      %2135 = vmatmul.bf16.gmra.mxu0 %v2098
      %v2136 = vpop.f32.mrf.mxu0
      %v2137 = vadd.f32 %v1863, %v2136
      %v2138 = vpop.f32.mrf.mxu0
      %v2139 = vadd.f32 %v1864, %v2138
      %2140 = vdwg.mxu0
      %v2141 = vsel %vm427, %v1915, -inf
      %2142 = vmax.xlane.f32.xlu0 %v2141
      %v2143 = vpop.xlane.xlu0 %2142
      %v2144 = vsel %vm427, %v1917, -inf
      %2145 = vmax.xlane.f32.xlu0 %v2144
      %v2146 = vpop.xlane.xlu0 %2145
      %v2147 = vsel %vm427, %v1920, -inf
      %2148 = vmax.xlane.f32.xlu0 %v2147
      %v2149 = vpop.xlane.xlu0 %2148
      %v2150 = vsel %vm427, %v1922, -inf
      %2151 = vmax.xlane.f32.xlu0 %v2150
      %v2152 = vpop.xlane.xlu0 %2151
      %v2153 = vsel %vm427, %v1925, -inf
      %2154 = vmax.xlane.f32.xlu0 %v2153
      %v2155 = vpop.xlane.xlu0 %2154
      %v2156 = vsel %vm427, %v1927, -inf
      %2157 = vmax.xlane.f32.xlu0 %v2156
      %v2158 = vpop.xlane.xlu0 %2157
      %v2159 = vsel %vm427, %v1930, -inf
      %2160 = vmax.xlane.f32.xlu0 %v2159
      %v2161 = vpop.xlane.xlu0 %2160
      %v2162 = vsel %vm427, %v1932, -inf
      %2163 = vmax.xlane.f32.xlu0 %v2162
      %v2164 = vpop.xlane.xlu0 %2163
      %v2165 = vsel %vm427, %v1984, -inf
      %2166 = vmax.xlane.f32.xlu0 %v2165
      %v2167 = vpop.xlane.xlu0 %2166
      %v2168 = vsel %vm427, %v1986, -inf
      %2169 = vmax.xlane.f32.xlu0 %v2168
      %v2170 = vpop.xlane.xlu0 %2169
      %v2171 = vsel %vm427, %v1989, -inf
      %2172 = vmax.xlane.f32.xlu0 %v2171
      %v2173 = vpop.xlane.xlu0 %2172
      %v2174 = vsel %vm427, %v1991, -inf
      %2175 = vmax.xlane.f32.xlu0 %v2174
      %v2176 = vpop.xlane.xlu0 %2175
      %v2177 = vsel %vm427, %v1994, -inf
      %2178 = vmax.xlane.f32.xlu0 %v2177
      %v2179 = vpop.xlane.xlu0 %2178
      %v2180 = vsel %vm427, %v1996, -inf
      %2181 = vmax.xlane.f32.xlu0 %v2180
      %v2182 = vpop.xlane.xlu0 %2181
      %v2183 = vsel %vm427, %v1999, -inf
      %2184 = vmax.xlane.f32.xlu0 %v2183
      %v2185 = vpop.xlane.xlu0 %2184
      %v2186 = vsel %vm427, %v2001, -inf
      %2187 = vmax.xlane.f32.xlu0 %v2186
      %v2188 = vpop.xlane.xlu0 %2187
      %v2189 = vsel %vm427, %v2053, -inf
      %2190 = vmax.xlane.f32.xlu0 %v2189
      %v2191 = vpop.xlane.xlu0 %2190
      %v2192 = vsel %vm427, %v2055, -inf
      %2193 = vmax.xlane.f32.xlu0 %v2192
      %v2194 = vpop.xlane.xlu0 %2193
      %v2195 = vsel %vm427, %v2058, -inf
      %2196 = vmax.xlane.f32.xlu0 %v2195
      %v2197 = vpop.xlane.xlu0 %2196
      %v2198 = vsel %vm427, %v2060, -inf
      %2199 = vmax.xlane.f32.xlu0 %v2198
      %v2200 = vpop.xlane.xlu0 %2199
      %v2201 = vsel %vm427, %v2063, -inf
      %2202 = vmax.xlane.f32.xlu0 %v2201
      %v2203 = vpop.xlane.xlu0 %2202
      %v2204 = vsel %vm427, %v2065, -inf
      %2205 = vmax.xlane.f32.xlu0 %v2204
      %v2206 = vpop.xlane.xlu0 %2205
      %v2207 = vsel %vm427, %v2068, -inf
      %2208 = vmax.xlane.f32.xlu0 %v2207
      %v2209 = vpop.xlane.xlu0 %2208
      %v2210 = vsel %vm427, %v2070, -inf
      %2211 = vmax.xlane.f32.xlu0 %v2210
      %v2212 = vpop.xlane.xlu0 %2211
      %v2213 = vsel %vm427, %v2122, -inf
      %2214 = vmax.xlane.f32.xlu0 %v2213
      %v2215 = vpop.xlane.xlu0 %2214
      %v2216 = vsel %vm427, %v2124, -inf
      %2217 = vmax.xlane.f32.xlu0 %v2216
      %v2218 = vpop.xlane.xlu0 %2217
      %v2219 = vsel %vm427, %v2127, -inf
      %2220 = vmax.xlane.f32.xlu0 %v2219
      %v2221 = vpop.xlane.xlu0 %2220
      %v2222 = vsel %vm427, %v2129, -inf
      %2223 = vmax.xlane.f32.xlu0 %v2222
      %v2224 = vpop.xlane.xlu0 %2223
      %v2225 = vsel %vm427, %v2132, -inf
      %2226 = vmax.xlane.f32.xlu0 %v2225
      %v2227 = vpop.xlane.xlu0 %2226
      %v2228 = vsel %vm427, %v2134, -inf
      %2229 = vmax.xlane.f32.xlu0 %v2228
      %v2230 = vpop.xlane.xlu0 %2229
      %v2231 = vsel %vm427, %v2137, -inf
      %2232 = vmax.xlane.f32.xlu0 %v2231
      %v2233 = vpop.xlane.xlu0 %2232
      %v2234 = vsel %vm427, %v2139, -inf
      %2235 = vmax.xlane.f32.xlu0 %v2234
      %v2236 = vpop.xlane.xlu0 %2235
      %v2237 = vsub.f32 %v1915, %v2143
      %v2238 = vsub.f32 %v1917, %v2146
      %v2239 = vsub.f32 %v1920, %v2149
      %v2240 = vsub.f32 %v1922, %v2152
      %v2241 = vsub.f32 %v1925, %v2155
      %v2242 = vsub.f32 %v1927, %v2158
      %v2243 = vsub.f32 %v1930, %v2161
      %v2244 = vsub.f32 %v1932, %v2164
      %v2245 = vsub.f32 %v1984, %v2167
      %v2246 = vsub.f32 %v1986, %v2170
      %v2247 = vsub.f32 %v1989, %v2173
      %v2248 = vsub.f32 %v1991, %v2176
      %v2249 = vsub.f32 %v1994, %v2179
      %v2250 = vsub.f32 %v1996, %v2182
      %v2251 = vsub.f32 %v1999, %v2185
      %v2252 = vsub.f32 %v2001, %v2188
      %v2253 = vsub.f32 %v2053, %v2191
      %v2254 = vsub.f32 %v2055, %v2194
      %v2255 = vsub.f32 %v2058, %v2197
      %v2256 = vsub.f32 %v2060, %v2200
      %v2257 = vsub.f32 %v2063, %v2203
      %v2258 = vsub.f32 %v2065, %v2206
      %v2259 = vsub.f32 %v2068, %v2209
      %v2260 = vsub.f32 %v2070, %v2212
      %v2261 = vsub.f32 %v2122, %v2215
      %v2262 = vsub.f32 %v2124, %v2218
      %v2263 = vsub.f32 %v2127, %v2221
      %v2264 = vsub.f32 %v2129, %v2224
      %v2265 = vsub.f32 %v2132, %v2227
      %v2266 = vsub.f32 %v2134, %v2230
      %v2267 = vsub.f32 %v2137, %v2233
      %v2268 = vsub.f32 %v2139, %v2236
      %v2269 = vmul.f32 %v2237, 1.442695
      %v2270 = vpow.pop %v2269
      %v2271 = vmul.f32 %v2238, 1.442695
      %v2272 = vpow.pop %v2271
      %v2273 = vmul.f32 %v2239, 1.442695
      %v2274 = vpow.pop %v2273
      %v2275 = vmul.f32 %v2240, 1.442695
      %v2276 = vpow.pop %v2275
      %v2277 = vmul.f32 %v2241, 1.442695
      %v2278 = vpow.pop %v2277
      %v2279 = vmul.f32 %v2242, 1.442695
      %v2280 = vpow.pop %v2279
      %v2281 = vmul.f32 %v2243, 1.442695
      %v2282 = vpow.pop %v2281
      %v2283 = vmul.f32 %v2244, 1.442695
      %v2284 = vpow.pop %v2283
      %v2285 = vmul.f32 %v2245, 1.442695
      %v2286 = vpow.pop %v2285
      %v2287 = vmul.f32 %v2246, 1.442695
      %v2288 = vpow.pop %v2287
      %v2289 = vmul.f32 %v2247, 1.442695
      %v2290 = vpow.pop %v2289
      %v2291 = vmul.f32 %v2248, 1.442695
      %v2292 = vpow.pop %v2291
      %v2293 = vmul.f32 %v2249, 1.442695
      %v2294 = vpow.pop %v2293
      %v2295 = vmul.f32 %v2250, 1.442695
      %v2296 = vpow.pop %v2295
      %v2297 = vmul.f32 %v2251, 1.442695
      %v2298 = vpow.pop %v2297
      %v2299 = vmul.f32 %v2252, 1.442695
      %v2300 = vpow.pop %v2299
      %v2301 = vmul.f32 %v2253, 1.442695
      %v2302 = vpow.pop %v2301
      %v2303 = vmul.f32 %v2254, 1.442695
      %v2304 = vpow.pop %v2303
      %v2305 = vmul.f32 %v2255, 1.442695
      %v2306 = vpow.pop %v2305
      %v2307 = vmul.f32 %v2256, 1.442695
      %v2308 = vpow.pop %v2307
      %v2309 = vmul.f32 %v2257, 1.442695
      %v2310 = vpow.pop %v2309
      %v2311 = vmul.f32 %v2258, 1.442695
      %v2312 = vpow.pop %v2311
      %v2313 = vmul.f32 %v2259, 1.442695
      %v2314 = vpow.pop %v2313
      %v2315 = vmul.f32 %v2260, 1.442695
      %v2316 = vpow.pop %v2315
      %v2317 = vmul.f32 %v2261, 1.442695
      %v2318 = vpow.pop %v2317
      %v2319 = vmul.f32 %v2262, 1.442695
      %v2320 = vpow.pop %v2319
      %v2321 = vmul.f32 %v2263, 1.442695
      %v2322 = vpow.pop %v2321
      %v2323 = vmul.f32 %v2264, 1.442695
      %v2324 = vpow.pop %v2323
      %v2325 = vmul.f32 %v2265, 1.442695
      %v2326 = vpow.pop %v2325
      %v2327 = vmul.f32 %v2266, 1.442695
      %v2328 = vpow.pop %v2327
      %v2329 = vmul.f32 %v2267, 1.442695
      %v2330 = vpow.pop %v2329
      %v2331 = vmul.f32 %v2268, 1.442695
      %v2332 = vpow.pop %v2331
      %v2333 = vsel %vm427, %v2270, 0.0
      %2334 = vadd.xlane.f32.xlu0 %v2333
      %v2335 = vpop.xlane.xlu0 %2334
      %v2336 = vsel %vm427, %v2272, 0.0
      %2337 = vadd.xlane.f32.xlu0 %v2336
      %v2338 = vpop.xlane.xlu0 %2337
      %v2339 = vsel %vm427, %v2274, 0.0
      %2340 = vadd.xlane.f32.xlu0 %v2339
      %v2341 = vpop.xlane.xlu0 %2340
      %v2342 = vsel %vm427, %v2276, 0.0
      %2343 = vadd.xlane.f32.xlu0 %v2342
      %v2344 = vpop.xlane.xlu0 %2343
      %v2345 = vsel %vm427, %v2278, 0.0
      %2346 = vadd.xlane.f32.xlu0 %v2345
      %v2347 = vpop.xlane.xlu0 %2346
      %v2348 = vsel %vm427, %v2280, 0.0
      %2349 = vadd.xlane.f32.xlu0 %v2348
      %v2350 = vpop.xlane.xlu0 %2349
      %v2351 = vsel %vm427, %v2282, 0.0
      %2352 = vadd.xlane.f32.xlu0 %v2351
      %v2353 = vpop.xlane.xlu0 %2352
      %v2354 = vsel %vm427, %v2284, 0.0
      %2355 = vadd.xlane.f32.xlu0 %v2354
      %v2356 = vpop.xlane.xlu0 %2355
      %v2357 = vsel %vm427, %v2286, 0.0
      %2358 = vadd.xlane.f32.xlu0 %v2357
      %v2359 = vpop.xlane.xlu0 %2358
      %v2360 = vsel %vm427, %v2288, 0.0
      %2361 = vadd.xlane.f32.xlu0 %v2360
      %v2362 = vpop.xlane.xlu0 %2361
      %v2363 = vsel %vm427, %v2290, 0.0
      %2364 = vadd.xlane.f32.xlu0 %v2363
      %v2365 = vpop.xlane.xlu0 %2364
      %v2366 = vsel %vm427, %v2292, 0.0
      %2367 = vadd.xlane.f32.xlu0 %v2366
      %v2368 = vpop.xlane.xlu0 %2367
      %v2369 = vsel %vm427, %v2294, 0.0
      %2370 = vadd.xlane.f32.xlu0 %v2369
      %v2371 = vpop.xlane.xlu0 %2370
      %v2372 = vsel %vm427, %v2296, 0.0
      %2373 = vadd.xlane.f32.xlu0 %v2372
      %v2374 = vpop.xlane.xlu0 %2373
      %v2375 = vsel %vm427, %v2298, 0.0
      %2376 = vadd.xlane.f32.xlu0 %v2375
      %v2377 = vpop.xlane.xlu0 %2376
      %v2378 = vsel %vm427, %v2300, 0.0
      %2379 = vadd.xlane.f32.xlu0 %v2378
      %v2380 = vpop.xlane.xlu0 %2379
      %v2381 = vsel %vm427, %v2302, 0.0
      %2382 = vadd.xlane.f32.xlu0 %v2381
      %v2383 = vpop.xlane.xlu0 %2382
      %v2384 = vsel %vm427, %v2304, 0.0
      %2385 = vadd.xlane.f32.xlu0 %v2384
      %v2386 = vpop.xlane.xlu0 %2385
      %v2387 = vsel %vm427, %v2306, 0.0
      %2388 = vadd.xlane.f32.xlu0 %v2387
      %v2389 = vpop.xlane.xlu0 %2388
      %v2390 = vsel %vm427, %v2308, 0.0
      %2391 = vadd.xlane.f32.xlu0 %v2390
      %v2392 = vpop.xlane.xlu0 %2391
      %v2393 = vsel %vm427, %v2310, 0.0
      %2394 = vadd.xlane.f32.xlu0 %v2393
      %v2395 = vpop.xlane.xlu0 %2394
      %v2396 = vsel %vm427, %v2312, 0.0
      %2397 = vadd.xlane.f32.xlu0 %v2396
      %v2398 = vpop.xlane.xlu0 %2397
      %v2399 = vsel %vm427, %v2314, 0.0
      %2400 = vadd.xlane.f32.xlu0 %v2399
      %v2401 = vpop.xlane.xlu0 %2400
      %v2402 = vsel %vm427, %v2316, 0.0
      %2403 = vadd.xlane.f32.xlu0 %v2402
      %v2404 = vpop.xlane.xlu0 %2403
      %v2405 = vsel %vm427, %v2318, 0.0
      %2406 = vadd.xlane.f32.xlu0 %v2405
      %v2407 = vpop.xlane.xlu0 %2406
      %v2408 = vsel %vm427, %v2320, 0.0
      %2409 = vadd.xlane.f32.xlu0 %v2408
      %v2410 = vpop.xlane.xlu0 %2409
      %v2411 = vsel %vm427, %v2322, 0.0
      %2412 = vadd.xlane.f32.xlu0 %v2411
      %v2413 = vpop.xlane.xlu0 %2412
      %v2414 = vsel %vm427, %v2324, 0.0
      %2415 = vadd.xlane.f32.xlu0 %v2414
      %v2416 = vpop.xlane.xlu0 %2415
      %v2417 = vsel %vm427, %v2326, 0.0
      %2418 = vadd.xlane.f32.xlu0 %v2417
      %v2419 = vpop.xlane.xlu0 %2418
      %v2420 = vsel %vm427, %v2328, 0.0
      %2421 = vadd.xlane.f32.xlu0 %v2420
      %v2422 = vpop.xlane.xlu0 %2421
      %v2423 = vsel %vm427, %v2330, 0.0
      %2424 = vadd.xlane.f32.xlu0 %v2423
      %v2425 = vpop.xlane.xlu0 %2424
      %v2426 = vsel %vm427, %v2332, 0.0
      %2427 = vadd.xlane.f32.xlu0 %v2426
      %v2428 = vpop.xlane.xlu0 %2427
      %v2429 = vrcp.pop %v2335
      %v2430 = vrcp.pop %v2338
      %v2431 = vrcp.pop %v2341
      %v2432 = vrcp.pop %v2344
      %v2433 = vrcp.pop %v2347
      %v2434 = vrcp.pop %v2350
      %v2435 = vrcp.pop %v2353
      %v2436 = vrcp.pop %v2356
      %v2437 = vrcp.pop %v2359
      %v2438 = vrcp.pop %v2362
      %v2439 = vrcp.pop %v2365
      %v2440 = vrcp.pop %v2368
      %v2441 = vrcp.pop %v2371
      %v2442 = vrcp.pop %v2374
      %v2443 = vrcp.pop %v2377
      %v2444 = vrcp.pop %v2380
      %v2445 = vrcp.pop %v2383
      %v2446 = vrcp.pop %v2386
      %v2447 = vrcp.pop %v2389
      %v2448 = vrcp.pop %v2392
      %v2449 = vrcp.pop %v2395
      %v2450 = vrcp.pop %v2398
      %v2451 = vrcp.pop %v2401
      %v2452 = vrcp.pop %v2404
      %v2453 = vrcp.pop %v2407
      %v2454 = vrcp.pop %v2410
      %v2455 = vrcp.pop %v2413
      %v2456 = vrcp.pop %v2416
      %v2457 = vrcp.pop %v2419
      %v2458 = vrcp.pop %v2422
      %v2459 = vrcp.pop %v2425
      %v2460 = vrcp.pop %v2428
      %v2461 = vmul.f32 %v2270, %v2429
      %v2462 = vmul.f32 %v2272, %v2430
      %v2463 = vmul.f32 %v2274, %v2431
      %v2464 = vmul.f32 %v2276, %v2432
      %v2465 = vmul.f32 %v2278, %v2433
      %v2466 = vmul.f32 %v2280, %v2434
      %v2467 = vmul.f32 %v2282, %v2435
      %v2468 = vmul.f32 %v2284, %v2436
      %v2469 = vmul.f32 %v2286, %v2437
      %v2470 = vmul.f32 %v2288, %v2438
      %v2471 = vmul.f32 %v2290, %v2439
      %v2472 = vmul.f32 %v2292, %v2440
      %v2473 = vmul.f32 %v2294, %v2441
      %v2474 = vmul.f32 %v2296, %v2442
      %v2475 = vmul.f32 %v2298, %v2443
      %v2476 = vmul.f32 %v2300, %v2444
      %v2477 = vmul.f32 %v2302, %v2445
      %v2478 = vmul.f32 %v2304, %v2446
      %v2479 = vmul.f32 %v2306, %v2447
      %v2480 = vmul.f32 %v2308, %v2448
      %v2481 = vmul.f32 %v2310, %v2449
      %v2482 = vmul.f32 %v2312, %v2450
      %v2483 = vmul.f32 %v2314, %v2451
      %v2484 = vmul.f32 %v2316, %v2452
      %v2485 = vmul.f32 %v2318, %v2453
      %v2486 = vmul.f32 %v2320, %v2454
      %v2487 = vmul.f32 %v2322, %v2455
      %v2488 = vmul.f32 %v2324, %v2456
      %v2489 = vmul.f32 %v2326, %v2457
      %v2490 = vmul.f32 %v2328, %v2458
      %v2491 = vmul.f32 %v2330, %v2459
      %v2492 = vmul.f32 %v2332, %v2460
      %v2493 = vpack.c.bf16 %v2461, %v2461
      %v2494 = vpack.c.bf16 %v2462, %v2462
      %v2495 = vpack.c.bf16 %v2463, %v2463
      %v2496 = vpack.c.bf16 %v2464, %v2464
      %v2497 = vpack.c.bf16 %v2465, %v2465
      %v2498 = vpack.c.bf16 %v2466, %v2466
      %v2499 = vpack.c.bf16 %v2467, %v2467
      %v2500 = vpack.c.bf16 %v2468, %v2468
      %v2501 = vpack.c.bf16 %v2469, %v2469
      %v2502 = vpack.c.bf16 %v2470, %v2470
      %v2503 = vpack.c.bf16 %v2471, %v2471
      %v2504 = vpack.c.bf16 %v2472, %v2472
      %v2505 = vpack.c.bf16 %v2473, %v2473
      %v2506 = vpack.c.bf16 %v2474, %v2474
      %v2507 = vpack.c.bf16 %v2475, %v2475
      %v2508 = vpack.c.bf16 %v2476, %v2476
      %v2509 = vpack.c.bf16 %v2477, %v2477
      %v2510 = vpack.c.bf16 %v2478, %v2478
      %v2511 = vpack.c.bf16 %v2479, %v2479
      %v2512 = vpack.c.bf16 %v2480, %v2480
      %v2513 = vpack.c.bf16 %v2481, %v2481
      %v2514 = vpack.c.bf16 %v2482, %v2482
      %v2515 = vpack.c.bf16 %v2483, %v2483
      %v2516 = vpack.c.bf16 %v2484, %v2484
      %v2517 = vpack.c.bf16 %v2485, %v2485
      %v2518 = vpack.c.bf16 %v2486, %v2486
      %v2519 = vpack.c.bf16 %v2487, %v2487
      %v2520 = vpack.c.bf16 %v2488, %v2488
      %v2521 = vpack.c.bf16 %v2489, %v2489
      %v2522 = vpack.c.bf16 %v2490, %v2490
      %v2523 = vpack.c.bf16 %v2491, %v2491
      %v2524 = vpack.c.bf16 %v2492, %v2492
      %2525 = vrot.lane.b32.xlu0 %v654, 96
      %v2526 = vpop.permute.xlu0 %2525
      %2527 = vrot.lane.b32.xlu0 %v655, 96
      %v2528 = vpop.permute.xlu0 %2527
      %2529 = vrot.lane.b32.xlu0 %v656, 96
      %v2530 = vpop.permute.xlu0 %2529
      %2531 = vrot.lane.b32.xlu0 %v657, 96
      %v2532 = vpop.permute.xlu0 %2531
      %2533 = vrot.lane.b32.xlu0 %v658, 96
      %v2534 = vpop.permute.xlu0 %2533
      %2535 = vrot.lane.b32.xlu0 %v659, 96
      %v2536 = vpop.permute.xlu0 %2535
      %2537 = vrot.lane.b32.xlu0 %v660, 96
      %v2538 = vpop.permute.xlu0 %2537
      %2539 = vrot.lane.b32.xlu0 %v661, 96
      %v2540 = vpop.permute.xlu0 %2539
      %v2541 = vrot.slane %v2526, 4
      %v2542 = vrot.slane %v2528, 4
      %v2543 = vrot.slane %v2530, 4
      %v2544 = vrot.slane %v2532, 4
      %v2545 = vrot.slane %v2534, 4
      %v2546 = vrot.slane %v2536, 4
      %v2547 = vrot.slane %v2538, 4
      %v2548 = vrot.slane %v2540, 4
      %v2557 = vunpack.c.l.b16 %v2493
      %v2558 = vunpack.c.l.b16 %v2494
      %v2559 = vunpack.c.l.b16 %v2495
      %v2560 = vunpack.c.l.b16 %v2496
      %v2561 = vunpack.c.l.b16 %v2497
      %v2562 = vunpack.c.l.b16 %v2498
      %v2563 = vunpack.c.l.b16 %v2499
      %v2564 = vunpack.c.l.b16 %v2500
      %v2565 = vpack.c.b16 %v2558, %v2557
      %v2566 = vpack.c.b16 %v2560, %v2559
      %v2567 = vpack.c.b16 %v2562, %v2561
      %v2568 = vpack.c.b16 %v2564, %v2563
      %v2569 = vunpack.c.l.b16 %v2541
      %v2570 = vunpack.c.l.b16 %v2542
      %v2571 = vunpack.c.l.b16 %v2543
      %v2572 = vunpack.c.l.b16 %v2544
      %v2573 = vunpack.c.l.b16 %v2545
      %v2574 = vunpack.c.l.b16 %v2546
      %v2575 = vunpack.c.l.b16 %v2547
      %v2576 = vunpack.c.l.b16 %v2548
      %v2577 = vpack.c.b16 %v2570, %v2569
      %v2578 = vpack.c.b16 %v2572, %v2571
      %v2579 = vpack.c.b16 %v2574, %v2573
      %v2580 = vpack.c.b16 %v2576, %v2575
      %v2586 = vsel %vm427, %v2565, 0
      %v2589 = vsel %vm427, %v2566, 0
      %v2592 = vsel %vm427, %v2567, 0
      %v2595 = vsel %vm427, %v2568, 0
      %2597 = vmatpush.bf16.msra.mxu0 0
      %2598 = vmatpush.bf16.msra.mxu0 0
      %2599 = vmatpush.bf16.msra.mxu0 0
      %2600 = vmatpush.bf16.msra.mxu0 0
      %2601 = vmatpush.bf16.msra.mxu0 %v2580
      %2602 = vmatpush.bf16.msra.mxu0 %v2579
      %2603 = vmatpush.bf16.msra.mxu0 %v2578
      %2604 = vmatpush.bf16.msra.mxu0 %v2577
      %2605 = vmatmul.bf16.gmra.mxu0 %v2586
      %v2606 = vpop.f32.mrf.mxu0
      %v2607 = vadd.f32 0.0, %v2606
      %v2608 = vpop.f32.mrf.mxu0
      %v2609 = vadd.f32 0.0, %v2608
      %2610 = vmatmul.bf16.gmra.mxu0 %v2589
      %v2611 = vpop.f32.mrf.mxu0
      %v2612 = vadd.f32 0.0, %v2611
      %v2613 = vpop.f32.mrf.mxu0
      %v2614 = vadd.f32 0.0, %v2613
      %2615 = vmatmul.bf16.gmra.mxu0 %v2592
      %v2616 = vpop.f32.mrf.mxu0
      %v2617 = vadd.f32 0.0, %v2616
      %v2618 = vpop.f32.mrf.mxu0
      %v2619 = vadd.f32 0.0, %v2618
      %2620 = vmatmul.bf16.gmra.mxu0 %v2595
      %v2621 = vpop.f32.mrf.mxu0
      %v2622 = vadd.f32 0.0, %v2621
      %v2623 = vpop.f32.mrf.mxu0
      %v2624 = vadd.f32 0.0, %v2623
      %2625 = vdwg.mxu0
      %2626 = vrot.lane.b32.xlu0 %v662, 96
      %v2627 = vpop.permute.xlu0 %2626
      %2628 = vrot.lane.b32.xlu0 %v663, 96
      %v2629 = vpop.permute.xlu0 %2628
      %2630 = vrot.lane.b32.xlu0 %v664, 96
      %v2631 = vpop.permute.xlu0 %2630
      %2632 = vrot.lane.b32.xlu0 %v665, 96
      %v2633 = vpop.permute.xlu0 %2632
      %2634 = vrot.lane.b32.xlu0 %v666, 96
      %v2635 = vpop.permute.xlu0 %2634
      %2636 = vrot.lane.b32.xlu0 %v667, 96
      %v2637 = vpop.permute.xlu0 %2636
      %2638 = vrot.lane.b32.xlu0 %v668, 96
      %v2639 = vpop.permute.xlu0 %2638
      %2640 = vrot.lane.b32.xlu0 %v669, 96
      %v2641 = vpop.permute.xlu0 %2640
      %v2642 = vrot.slane %v2627, 4
      %v2643 = vrot.slane %v2629, 4
      %v2644 = vrot.slane %v2631, 4
      %v2645 = vrot.slane %v2633, 4
      %v2646 = vrot.slane %v2635, 4
      %v2647 = vrot.slane %v2637, 4
      %v2648 = vrot.slane %v2639, 4
      %v2649 = vrot.slane %v2641, 4
      %v2658 = vunpack.c.l.b16 %v2501
      %v2659 = vunpack.c.l.b16 %v2502
      %v2660 = vunpack.c.l.b16 %v2503
      %v2661 = vunpack.c.l.b16 %v2504
      %v2662 = vunpack.c.l.b16 %v2505
      %v2663 = vunpack.c.l.b16 %v2506
      %v2664 = vunpack.c.l.b16 %v2507
      %v2665 = vunpack.c.l.b16 %v2508
      %v2666 = vpack.c.b16 %v2659, %v2658
      %v2667 = vpack.c.b16 %v2661, %v2660
      %v2668 = vpack.c.b16 %v2663, %v2662
      %v2669 = vpack.c.b16 %v2665, %v2664
      %v2670 = vunpack.c.l.b16 %v2642
      %v2671 = vunpack.c.l.b16 %v2643
      %v2672 = vunpack.c.l.b16 %v2644
      %v2673 = vunpack.c.l.b16 %v2645
      %v2674 = vunpack.c.l.b16 %v2646
      %v2675 = vunpack.c.l.b16 %v2647
      %v2676 = vunpack.c.l.b16 %v2648
      %v2677 = vunpack.c.l.b16 %v2649
      %v2678 = vpack.c.b16 %v2671, %v2670
      %v2679 = vpack.c.b16 %v2673, %v2672
      %v2680 = vpack.c.b16 %v2675, %v2674
      %v2681 = vpack.c.b16 %v2677, %v2676
      %v2687 = vsel %vm427, %v2666, 0
      %v2690 = vsel %vm427, %v2667, 0
      %v2693 = vsel %vm427, %v2668, 0
      %v2696 = vsel %vm427, %v2669, 0
      %2698 = vmatpush.bf16.msra.mxu0 0
      %2699 = vmatpush.bf16.msra.mxu0 0
      %2700 = vmatpush.bf16.msra.mxu0 0
      %2701 = vmatpush.bf16.msra.mxu0 0
      %2702 = vmatpush.bf16.msra.mxu0 %v2681
      %2703 = vmatpush.bf16.msra.mxu0 %v2680
      %2704 = vmatpush.bf16.msra.mxu0 %v2679
      %2705 = vmatpush.bf16.msra.mxu0 %v2678
      %2706 = vmatmul.bf16.gmra.mxu0 %v2687
      %v2707 = vpop.f32.mrf.mxu0
      %v2708 = vadd.f32 0.0, %v2707
      %v2709 = vpop.f32.mrf.mxu0
      %v2710 = vadd.f32 0.0, %v2709
      %2711 = vmatmul.bf16.gmra.mxu0 %v2690
      %v2712 = vpop.f32.mrf.mxu0
      %v2713 = vadd.f32 0.0, %v2712
      %v2714 = vpop.f32.mrf.mxu0
      %v2715 = vadd.f32 0.0, %v2714
      %2716 = vmatmul.bf16.gmra.mxu0 %v2693
      %v2717 = vpop.f32.mrf.mxu0
      %v2718 = vadd.f32 0.0, %v2717
      %v2719 = vpop.f32.mrf.mxu0
      %v2720 = vadd.f32 0.0, %v2719
      %2721 = vmatmul.bf16.gmra.mxu0 %v2696
      %v2722 = vpop.f32.mrf.mxu0
      %v2723 = vadd.f32 0.0, %v2722
      %v2724 = vpop.f32.mrf.mxu0
      %v2725 = vadd.f32 0.0, %v2724
      %2726 = vdwg.mxu0
      %2727 = vrot.lane.b32.xlu0 %v670, 96
      %v2728 = vpop.permute.xlu0 %2727
      %2729 = vrot.lane.b32.xlu0 %v671, 96
      %v2730 = vpop.permute.xlu0 %2729
      %2731 = vrot.lane.b32.xlu0 %v672, 96
      %v2732 = vpop.permute.xlu0 %2731
      %2733 = vrot.lane.b32.xlu0 %v673, 96
      %v2734 = vpop.permute.xlu0 %2733
      %2735 = vrot.lane.b32.xlu0 %v674, 96
      %v2736 = vpop.permute.xlu0 %2735
      %2737 = vrot.lane.b32.xlu0 %v675, 96
      %v2738 = vpop.permute.xlu0 %2737
      %2739 = vrot.lane.b32.xlu0 %v676, 96
      %v2740 = vpop.permute.xlu0 %2739
      %2741 = vrot.lane.b32.xlu0 %v677, 96
      %v2742 = vpop.permute.xlu0 %2741
      %v2743 = vrot.slane %v2728, 4
      %v2744 = vrot.slane %v2730, 4
      %v2745 = vrot.slane %v2732, 4
      %v2746 = vrot.slane %v2734, 4
      %v2747 = vrot.slane %v2736, 4
      %v2748 = vrot.slane %v2738, 4
      %v2749 = vrot.slane %v2740, 4
      %v2750 = vrot.slane %v2742, 4
      %v2759 = vunpack.c.l.b16 %v2509
      %v2760 = vunpack.c.l.b16 %v2510
      %v2761 = vunpack.c.l.b16 %v2511
      %v2762 = vunpack.c.l.b16 %v2512
      %v2763 = vunpack.c.l.b16 %v2513
      %v2764 = vunpack.c.l.b16 %v2514
      %v2765 = vunpack.c.l.b16 %v2515
      %v2766 = vunpack.c.l.b16 %v2516
      %v2767 = vpack.c.b16 %v2760, %v2759
      %v2768 = vpack.c.b16 %v2762, %v2761
      %v2769 = vpack.c.b16 %v2764, %v2763
      %v2770 = vpack.c.b16 %v2766, %v2765
      %v2771 = vunpack.c.l.b16 %v2743
      %v2772 = vunpack.c.l.b16 %v2744
      %v2773 = vunpack.c.l.b16 %v2745
      %v2774 = vunpack.c.l.b16 %v2746
      %v2775 = vunpack.c.l.b16 %v2747
      %v2776 = vunpack.c.l.b16 %v2748
      %v2777 = vunpack.c.l.b16 %v2749
      %v2778 = vunpack.c.l.b16 %v2750
      %v2779 = vpack.c.b16 %v2772, %v2771
      %v2780 = vpack.c.b16 %v2774, %v2773
      %v2781 = vpack.c.b16 %v2776, %v2775
      %v2782 = vpack.c.b16 %v2778, %v2777
      %v2788 = vsel %vm427, %v2767, 0
      %v2791 = vsel %vm427, %v2768, 0
      %v2794 = vsel %vm427, %v2769, 0
      %v2797 = vsel %vm427, %v2770, 0
      %2799 = vmatpush.bf16.msra.mxu0 0
      %2800 = vmatpush.bf16.msra.mxu0 0
      %2801 = vmatpush.bf16.msra.mxu0 0
      %2802 = vmatpush.bf16.msra.mxu0 0
      %2803 = vmatpush.bf16.msra.mxu0 %v2782
      %2804 = vmatpush.bf16.msra.mxu0 %v2781
      %2805 = vmatpush.bf16.msra.mxu0 %v2780
      %2806 = vmatpush.bf16.msra.mxu0 %v2779
      %2807 = vmatmul.bf16.gmra.mxu0 %v2788
      %v2808 = vpop.f32.mrf.mxu0
      %v2809 = vadd.f32 0.0, %v2808
      %v2810 = vpop.f32.mrf.mxu0
      %v2811 = vadd.f32 0.0, %v2810
      %2812 = vmatmul.bf16.gmra.mxu0 %v2791
      %v2813 = vpop.f32.mrf.mxu0
      %v2814 = vadd.f32 0.0, %v2813
      %v2815 = vpop.f32.mrf.mxu0
      %v2816 = vadd.f32 0.0, %v2815
      %2817 = vmatmul.bf16.gmra.mxu0 %v2794
      %v2818 = vpop.f32.mrf.mxu0
      %v2819 = vadd.f32 0.0, %v2818
      %v2820 = vpop.f32.mrf.mxu0
      %v2821 = vadd.f32 0.0, %v2820
      %2822 = vmatmul.bf16.gmra.mxu0 %v2797
      %v2823 = vpop.f32.mrf.mxu0
      %v2824 = vadd.f32 0.0, %v2823
      %v2825 = vpop.f32.mrf.mxu0
      %v2826 = vadd.f32 0.0, %v2825
      %2827 = vdwg.mxu0
      %2828 = vrot.lane.b32.xlu0 %v678, 96
      %v2829 = vpop.permute.xlu0 %2828
      %2830 = vrot.lane.b32.xlu0 %v679, 96
      %v2831 = vpop.permute.xlu0 %2830
      %2832 = vrot.lane.b32.xlu0 %v680, 96
      %v2833 = vpop.permute.xlu0 %2832
      %2834 = vrot.lane.b32.xlu0 %v681, 96
      %v2835 = vpop.permute.xlu0 %2834
      %2836 = vrot.lane.b32.xlu0 %v682, 96
      %v2837 = vpop.permute.xlu0 %2836
      %2838 = vrot.lane.b32.xlu0 %v683, 96
      %v2839 = vpop.permute.xlu0 %2838
      %2840 = vrot.lane.b32.xlu0 %v684, 96
      %v2841 = vpop.permute.xlu0 %2840
      %2842 = vrot.lane.b32.xlu0 %v685, 96
      %v2843 = vpop.permute.xlu0 %2842
      %v2844 = vrot.slane %v2829, 4
      %v2845 = vrot.slane %v2831, 4
      %v2846 = vrot.slane %v2833, 4
      %v2847 = vrot.slane %v2835, 4
      %v2848 = vrot.slane %v2837, 4
      %v2849 = vrot.slane %v2839, 4
      %v2850 = vrot.slane %v2841, 4
      %v2851 = vrot.slane %v2843, 4
      %v2860 = vunpack.c.l.b16 %v2517
      %v2861 = vunpack.c.l.b16 %v2518
      %v2862 = vunpack.c.l.b16 %v2519
      %v2863 = vunpack.c.l.b16 %v2520
      %v2864 = vunpack.c.l.b16 %v2521
      %v2865 = vunpack.c.l.b16 %v2522
      %v2866 = vunpack.c.l.b16 %v2523
      %v2867 = vunpack.c.l.b16 %v2524
      %v2868 = vpack.c.b16 %v2861, %v2860
      %v2869 = vpack.c.b16 %v2863, %v2862
      %v2870 = vpack.c.b16 %v2865, %v2864
      %v2871 = vpack.c.b16 %v2867, %v2866
      %v2872 = vunpack.c.l.b16 %v2844
      %v2873 = vunpack.c.l.b16 %v2845
      %v2874 = vunpack.c.l.b16 %v2846
      %v2875 = vunpack.c.l.b16 %v2847
      %v2876 = vunpack.c.l.b16 %v2848
      %v2877 = vunpack.c.l.b16 %v2849
      %v2878 = vunpack.c.l.b16 %v2850
      %v2879 = vunpack.c.l.b16 %v2851
      %v2880 = vpack.c.b16 %v2873, %v2872
      %v2881 = vpack.c.b16 %v2875, %v2874
      %v2882 = vpack.c.b16 %v2877, %v2876
      %v2883 = vpack.c.b16 %v2879, %v2878
      %v2889 = vsel %vm427, %v2868, 0
      %v2892 = vsel %vm427, %v2869, 0
      %v2895 = vsel %vm427, %v2870, 0
      %v2898 = vsel %vm427, %v2871, 0
      %2900 = vmatpush.bf16.msra.mxu0 0
      %2901 = vmatpush.bf16.msra.mxu0 0
      %2902 = vmatpush.bf16.msra.mxu0 0
      %2903 = vmatpush.bf16.msra.mxu0 0
      %2904 = vmatpush.bf16.msra.mxu0 %v2883
      %2905 = vmatpush.bf16.msra.mxu0 %v2882
      %2906 = vmatpush.bf16.msra.mxu0 %v2881
      %2907 = vmatpush.bf16.msra.mxu0 %v2880
      %2908 = vmatmul.bf16.gmra.mxu0 %v2889
      %v2909 = vpop.f32.mrf.mxu0
      %v2910 = vadd.f32 0.0, %v2909
      %v2911 = vpop.f32.mrf.mxu0
      %v2912 = vadd.f32 0.0, %v2911
      %2913 = vmatmul.bf16.gmra.mxu0 %v2892
      %v2914 = vpop.f32.mrf.mxu0
      %v2915 = vadd.f32 0.0, %v2914
      %v2916 = vpop.f32.mrf.mxu0
      %v2917 = vadd.f32 0.0, %v2916
      %2918 = vmatmul.bf16.gmra.mxu0 %v2895
      %v2919 = vpop.f32.mrf.mxu0
      %v2920 = vadd.f32 0.0, %v2919
      %v2921 = vpop.f32.mrf.mxu0
      %v2922 = vadd.f32 0.0, %v2921
      %2923 = vmatmul.bf16.gmra.mxu0 %v2898
      %v2924 = vpop.f32.mrf.mxu0
      %v2925 = vadd.f32 0.0, %v2924
      %v2926 = vpop.f32.mrf.mxu0
      %v2927 = vadd.f32 0.0, %v2926
      %2928 = vdwg.mxu0
      %v2929 = vpack.c.bf16 %v2607, %v2607
      %v2930 = vpack.c.bf16 %v2609, %v2609
      %v2931 = vpack.c.bf16 %v2612, %v2612
      %v2932 = vpack.c.bf16 %v2614, %v2614
      %v2933 = vpack.c.bf16 %v2617, %v2617
      %v2934 = vpack.c.bf16 %v2619, %v2619
      %v2935 = vpack.c.bf16 %v2622, %v2622
      %v2936 = vpack.c.bf16 %v2624, %v2624
      %v2937 = vpack.c.bf16 %v2708, %v2708
      %v2938 = vpack.c.bf16 %v2710, %v2710
      %v2939 = vpack.c.bf16 %v2713, %v2713
      %v2940 = vpack.c.bf16 %v2715, %v2715
      %v2941 = vpack.c.bf16 %v2718, %v2718
      %v2942 = vpack.c.bf16 %v2720, %v2720
      %v2943 = vpack.c.bf16 %v2723, %v2723
      %v2944 = vpack.c.bf16 %v2725, %v2725
      %v2945 = vpack.c.bf16 %v2809, %v2809
      %v2946 = vpack.c.bf16 %v2811, %v2811
      %v2947 = vpack.c.bf16 %v2814, %v2814
      %v2948 = vpack.c.bf16 %v2816, %v2816
      %v2949 = vpack.c.bf16 %v2819, %v2819
      %v2950 = vpack.c.bf16 %v2821, %v2821
      %v2951 = vpack.c.bf16 %v2824, %v2824
      %v2952 = vpack.c.bf16 %v2826, %v2826
      %v2953 = vpack.c.bf16 %v2910, %v2910
      %v2954 = vpack.c.bf16 %v2912, %v2912
      %v2955 = vpack.c.bf16 %v2915, %v2915
      %v2956 = vpack.c.bf16 %v2917, %v2917
      %v2957 = vpack.c.bf16 %v2920, %v2920
      %v2958 = vpack.c.bf16 %v2922, %v2922
      %v2959 = vpack.c.bf16 %v2925, %v2925
      %v2960 = vpack.c.bf16 %v2927, %v2927
      %2993 = vrot.lane.b32.xlu0 %v2929, 32
      %v2994 = vpop.permute.xlu0 %2993
      %2995 = vrot.lane.b32.xlu0 %v2930, 32
      %v2996 = vpop.permute.xlu0 %2995
      %2997 = vrot.lane.b32.xlu0 %v2931, 32
      %v2998 = vpop.permute.xlu0 %2997
      %2999 = vrot.lane.b32.xlu0 %v2932, 32
      %v3000 = vpop.permute.xlu0 %2999
      %3001 = vrot.lane.b32.xlu0 %v2933, 32
      %v3002 = vpop.permute.xlu0 %3001
      %3003 = vrot.lane.b32.xlu0 %v2934, 32
      %v3004 = vpop.permute.xlu0 %3003
      %3005 = vrot.lane.b32.xlu0 %v2935, 32
      %v3006 = vpop.permute.xlu0 %3005
      %3007 = vrot.lane.b32.xlu0 %v2936, 32
      %v3008 = vpop.permute.xlu0 %3007
      %3009 = vrot.lane.b32.xlu0 %v2937, 32
      %v3010 = vpop.permute.xlu0 %3009
      %3011 = vrot.lane.b32.xlu0 %v2938, 32
      %v3012 = vpop.permute.xlu0 %3011
      %3013 = vrot.lane.b32.xlu0 %v2939, 32
      %v3014 = vpop.permute.xlu0 %3013
      %3015 = vrot.lane.b32.xlu0 %v2940, 32
      %v3016 = vpop.permute.xlu0 %3015
      %3017 = vrot.lane.b32.xlu0 %v2941, 32
      %v3018 = vpop.permute.xlu0 %3017
      %3019 = vrot.lane.b32.xlu0 %v2942, 32
      %v3020 = vpop.permute.xlu0 %3019
      %3021 = vrot.lane.b32.xlu0 %v2943, 32
      %v3022 = vpop.permute.xlu0 %3021
      %3023 = vrot.lane.b32.xlu0 %v2944, 32
      %v3024 = vpop.permute.xlu0 %3023
      %3025 = vrot.lane.b32.xlu0 %v2945, 32
      %v3026 = vpop.permute.xlu0 %3025
      %3027 = vrot.lane.b32.xlu0 %v2946, 32
      %v3028 = vpop.permute.xlu0 %3027
      %3029 = vrot.lane.b32.xlu0 %v2947, 32
      %v3030 = vpop.permute.xlu0 %3029
      %3031 = vrot.lane.b32.xlu0 %v2948, 32
      %v3032 = vpop.permute.xlu0 %3031
      %3033 = vrot.lane.b32.xlu0 %v2949, 32
      %v3034 = vpop.permute.xlu0 %3033
      %3035 = vrot.lane.b32.xlu0 %v2950, 32
      %v3036 = vpop.permute.xlu0 %3035
      %3037 = vrot.lane.b32.xlu0 %v2951, 32
      %v3038 = vpop.permute.xlu0 %3037
      %3039 = vrot.lane.b32.xlu0 %v2952, 32
      %v3040 = vpop.permute.xlu0 %3039
      %3041 = vrot.lane.b32.xlu0 %v2953, 32
      %v3042 = vpop.permute.xlu0 %3041
      %3043 = vrot.lane.b32.xlu0 %v2954, 32
      %v3044 = vpop.permute.xlu0 %3043
      %3045 = vrot.lane.b32.xlu0 %v2955, 32
      %v3046 = vpop.permute.xlu0 %3045
      %3047 = vrot.lane.b32.xlu0 %v2956, 32
      %v3048 = vpop.permute.xlu0 %3047
      %3049 = vrot.lane.b32.xlu0 %v2957, 32
      %v3050 = vpop.permute.xlu0 %3049
      %3051 = vrot.lane.b32.xlu0 %v2958, 32
      %v3052 = vpop.permute.xlu0 %3051
      %3053 = vrot.lane.b32.xlu0 %v2959, 32
      %v3054 = vpop.permute.xlu0 %3053
      %3055 = vrot.lane.b32.xlu0 %v2960, 32
      %v3056 = vpop.permute.xlu0 %3055
      %vm3089 = vcmask 519424
      %3090 = vst.msk [vmem:[#allocation2] sm:$0xf] %vm3089, %v2994
      %3091 = vst.msk [vmem:[#allocation2 + $0x4] sm:$0xf] %vm3089, %v2996
      %3092 = vst.msk [vmem:[#allocation2 + $0x8] sm:$0xf] %vm3089, %v2998
      %3093 = vst.msk [vmem:[#allocation2 + $0xc] sm:$0xf] %vm3089, %v3000
      %3094 = vst.msk [vmem:[#allocation2 + $0x10] sm:$0xf] %vm3089, %v3002
      %3095 = vst.msk [vmem:[#allocation2 + $0x14] sm:$0xf] %vm3089, %v3004
      %3096 = vst.msk [vmem:[#allocation2 + $0x18] sm:$0xf] %vm3089, %v3006
      %3097 = vst.msk [vmem:[#allocation2 + $0x1c] sm:$0xf] %vm3089, %v3008
      %3098 = vst.msk [vmem:[#allocation2 + $0x20] sm:$0xf] %vm3089, %v3010
      %3099 = vst.msk [vmem:[#allocation2 + $0x24] sm:$0xf] %vm3089, %v3012
      %3100 = vst.msk [vmem:[#allocation2 + $0x28] sm:$0xf] %vm3089, %v3014
      %3101 = vst.msk [vmem:[#allocation2 + $0x2c] sm:$0xf] %vm3089, %v3016
      %3102 = vst.msk [vmem:[#allocation2 + $0x30] sm:$0xf] %vm3089, %v3018
      %3103 = vst.msk [vmem:[#allocation2 + $0x34] sm:$0xf] %vm3089, %v3020
      %3104 = vst.msk [vmem:[#allocation2 + $0x38] sm:$0xf] %vm3089, %v3022
      %3105 = vst.msk [vmem:[#allocation2 + $0x3c] sm:$0xf] %vm3089, %v3024
      %3106 = vst.msk [vmem:[#allocation2 + $0x40] sm:$0xf] %vm3089, %v3026
      %3107 = vst.msk [vmem:[#allocation2 + $0x44] sm:$0xf] %vm3089, %v3028
      %3108 = vst.msk [vmem:[#allocation2 + $0x48] sm:$0xf] %vm3089, %v3030
      %3109 = vst.msk [vmem:[#allocation2 + $0x4c] sm:$0xf] %vm3089, %v3032
      %3110 = vst.msk [vmem:[#allocation2 + $0x50] sm:$0xf] %vm3089, %v3034
      %3111 = vst.msk [vmem:[#allocation2 + $0x54] sm:$0xf] %vm3089, %v3036
      %3112 = vst.msk [vmem:[#allocation2 + $0x58] sm:$0xf] %vm3089, %v3038
      %3113 = vst.msk [vmem:[#allocation2 + $0x5c] sm:$0xf] %vm3089, %v3040
      %3114 = vst.msk [vmem:[#allocation2 + $0x60] sm:$0xf] %vm3089, %v3042
      %3115 = vst.msk [vmem:[#allocation2 + $0x64] sm:$0xf] %vm3089, %v3044
      %3116 = vst.msk [vmem:[#allocation2 + $0x68] sm:$0xf] %vm3089, %v3046
      %3117 = vst.msk [vmem:[#allocation2 + $0x6c] sm:$0xf] %vm3089, %v3048
      %3118 = vst.msk [vmem:[#allocation2 + $0x70] sm:$0xf] %vm3089, %v3050
      %3119 = vst.msk [vmem:[#allocation2 + $0x74] sm:$0xf] %vm3089, %v3052
      %3120 = vst.msk [vmem:[#allocation2 + $0x78] sm:$0xf] %vm3089, %v3054
      %3121 = vst.msk [vmem:[#allocation2 + $0x7c] sm:$0xf] %vm3089, %v3056
      %v3122 = vld [vmem:[#allocation2] sm:$0xf]
      %v3123 = vld [vmem:[#allocation2 + $0x4] sm:$0xf]
      %v3124 = vld [vmem:[#allocation2 + $0x8] sm:$0xf]
      %v3125 = vld [vmem:[#allocation2 + $0xc] sm:$0xf]
      %v3126 = vld [vmem:[#allocation2 + $0x10] sm:$0xf]
      %v3127 = vld [vmem:[#allocation2 + $0x14] sm:$0xf]
      %v3128 = vld [vmem:[#allocation2 + $0x18] sm:$0xf]
      %v3129 = vld [vmem:[#allocation2 + $0x1c] sm:$0xf]
      %v3130 = vld [vmem:[#allocation2 + $0x20] sm:$0xf]
      %v3131 = vld [vmem:[#allocation2 + $0x24] sm:$0xf]
      %v3132 = vld [vmem:[#allocation2 + $0x28] sm:$0xf]
      %v3133 = vld [vmem:[#allocation2 + $0x2c] sm:$0xf]
      %v3134 = vld [vmem:[#allocation2 + $0x30] sm:$0xf]
      %v3135 = vld [vmem:[#allocation2 + $0x34] sm:$0xf]
      %v3136 = vld [vmem:[#allocation2 + $0x38] sm:$0xf]
      %v3137 = vld [vmem:[#allocation2 + $0x3c] sm:$0xf]
      %v3138 = vld [vmem:[#allocation2 + $0x40] sm:$0xf]
      %v3139 = vld [vmem:[#allocation2 + $0x44] sm:$0xf]
      %v3140 = vld [vmem:[#allocation2 + $0x48] sm:$0xf]
      %v3141 = vld [vmem:[#allocation2 + $0x4c] sm:$0xf]
      %v3142 = vld [vmem:[#allocation2 + $0x50] sm:$0xf]
      %v3143 = vld [vmem:[#allocation2 + $0x54] sm:$0xf]
      %v3144 = vld [vmem:[#allocation2 + $0x58] sm:$0xf]
      %v3145 = vld [vmem:[#allocation2 + $0x5c] sm:$0xf]
      %v3146 = vld [vmem:[#allocation2 + $0x60] sm:$0xf]
      %v3147 = vld [vmem:[#allocation2 + $0x64] sm:$0xf]
      %v3148 = vld [vmem:[#allocation2 + $0x68] sm:$0xf]
      %v3149 = vld [vmem:[#allocation2 + $0x6c] sm:$0xf]
      %v3150 = vld [vmem:[#allocation2 + $0x70] sm:$0xf]
      %v3151 = vld [vmem:[#allocation2 + $0x74] sm:$0xf]
      %v3152 = vld [vmem:[#allocation2 + $0x78] sm:$0xf]
      %v3153 = vld [vmem:[#allocation2 + $0x7c] sm:$0xf]
      %v3154 = vld [vmem:[%s4] sm:$0xf]
      %v3155 = vld [vmem:[%s4 + $0x4] sm:$0xf]
      %v3156 = vld [vmem:[%s4 + $0x8] sm:$0xf]
      %v3157 = vld [vmem:[%s4 + $0xc] sm:$0xf]
      %v3158 = vld [vmem:[%s4 + $0x10] sm:$0xf]
      %v3159 = vld [vmem:[%s4 + $0x14] sm:$0xf]
      %v3160 = vld [vmem:[%s4 + $0x18] sm:$0xf]
      %v3161 = vld [vmem:[%s4 + $0x1c] sm:$0xf]
      %v3162 = vld [vmem:[%s5] sm:$0x1]
      %v3164 = vperm.slane %v3162, 0
      %v3198 = vunpack.c.l.b16 %v3122
      %v3199 = vunpack.c.l.b16 %v3123
      %v3200 = vunpack.c.l.b16 %v3124
      %v3201 = vunpack.c.l.b16 %v3125
      %v3202 = vunpack.c.l.b16 %v3126
      %v3203 = vunpack.c.l.b16 %v3127
      %v3204 = vunpack.c.l.b16 %v3128
      %v3205 = vunpack.c.l.b16 %v3129
      %v3206 = vunpack.c.l.b16 %v3130
      %v3207 = vunpack.c.l.b16 %v3131
      %v3208 = vunpack.c.l.b16 %v3132
      %v3209 = vunpack.c.l.b16 %v3133
      %v3210 = vunpack.c.l.b16 %v3134
      %v3211 = vunpack.c.l.b16 %v3135
      %v3212 = vunpack.c.l.b16 %v3136
      %v3213 = vunpack.c.l.b16 %v3137
      %v3214 = vunpack.c.l.b16 %v3138
      %v3215 = vunpack.c.l.b16 %v3139
      %v3216 = vunpack.c.l.b16 %v3140
      %v3217 = vunpack.c.l.b16 %v3141
      %v3218 = vunpack.c.l.b16 %v3142
      %v3219 = vunpack.c.l.b16 %v3143
      %v3220 = vunpack.c.l.b16 %v3144
      %v3221 = vunpack.c.l.b16 %v3145
      %v3222 = vunpack.c.l.b16 %v3146
      %v3223 = vunpack.c.l.b16 %v3147
      %v3224 = vunpack.c.l.b16 %v3148
      %v3225 = vunpack.c.l.b16 %v3149
      %v3226 = vunpack.c.l.b16 %v3150
      %v3227 = vunpack.c.l.b16 %v3151
      %v3228 = vunpack.c.l.b16 %v3152
      %v3229 = vunpack.c.l.b16 %v3153
      %v3230 = vpack.c.b16 %v3199, %v3198
      %v3231 = vpack.c.b16 %v3201, %v3200
      %v3232 = vpack.c.b16 %v3203, %v3202
      %v3233 = vpack.c.b16 %v3205, %v3204
      %v3234 = vpack.c.b16 %v3207, %v3206
      %v3235 = vpack.c.b16 %v3209, %v3208
      %v3236 = vpack.c.b16 %v3211, %v3210
      %v3237 = vpack.c.b16 %v3213, %v3212
      %v3238 = vpack.c.b16 %v3215, %v3214
      %v3239 = vpack.c.b16 %v3217, %v3216
      %v3240 = vpack.c.b16 %v3219, %v3218
      %v3241 = vpack.c.b16 %v3221, %v3220
      %v3242 = vpack.c.b16 %v3223, %v3222
      %v3243 = vpack.c.b16 %v3225, %v3224
      %v3244 = vpack.c.b16 %v3227, %v3226
      %v3245 = vpack.c.b16 %v3229, %v3228
      %v3254 = vunpack.c.l.b16 %v3154
      %v3255 = vunpack.c.l.b16 %v3155
      %v3256 = vunpack.c.l.b16 %v3156
      %v3257 = vunpack.c.l.b16 %v3157
      %v3258 = vunpack.c.l.b16 %v3158
      %v3259 = vunpack.c.l.b16 %v3159
      %v3260 = vunpack.c.l.b16 %v3160
      %v3261 = vunpack.c.l.b16 %v3161
      %v3262 = vpack.c.b16 %v3255, %v3254
      %v3263 = vpack.c.b16 %v3257, %v3256
      %v3264 = vpack.c.b16 %v3259, %v3258
      %v3265 = vpack.c.b16 %v3261, %v3260
      %v3271 = vsel %vm427, %v3230, 0
      %v3274 = vsel %vm427, %v3231, 0
      %v3277 = vsel %vm427, %v3232, 0
      %v3280 = vsel %vm427, %v3233, 0
      %v3283 = vsel %vm427, %v3234, 0
      %v3286 = vsel %vm427, %v3235, 0
      %v3289 = vsel %vm427, %v3236, 0
      %v3292 = vsel %vm427, %v3237, 0
      %v3295 = vsel %vm427, %v3238, 0
      %v3298 = vsel %vm427, %v3239, 0
      %v3301 = vsel %vm427, %v3240, 0
      %v3304 = vsel %vm427, %v3241, 0
      %v3307 = vsel %vm427, %v3242, 0
      %v3310 = vsel %vm427, %v3243, 0
      %v3313 = vsel %vm427, %v3244, 0
      %v3316 = vsel %vm427, %v3245, 0
      %3318 = vmatpush.bf16.msra.mxu0 0
      %3319 = vmatpush.bf16.msra.mxu0 0
      %3320 = vmatpush.bf16.msra.mxu0 0
      %3321 = vmatpush.bf16.msra.mxu0 0
      %3322 = vmatpush.bf16.msra.mxu0 %v3265
      %3323 = vmatpush.bf16.msra.mxu0 %v3264
      %3324 = vmatpush.bf16.msra.mxu0 %v3263
      %3325 = vmatpush.bf16.msra.mxu0 %v3262
      %3326 = vmatmul.bf16.gmra.mxu0 %v3271
      %v3327 = vpop.f32.mrf.mxu0
      %v3328 = vadd.f32 %v3164, %v3327
      %v3329 = vpop.f32.mrf.mxu0
      %v3330 = vadd.f32 %v3164, %v3329
      %3331 = vmatmul.bf16.gmra.mxu0 %v3274
      %v3332 = vpop.f32.mrf.mxu0
      %v3333 = vadd.f32 %v3164, %v3332
      %v3334 = vpop.f32.mrf.mxu0
      %v3335 = vadd.f32 %v3164, %v3334
      %3336 = vmatmul.bf16.gmra.mxu0 %v3277
      %v3337 = vpop.f32.mrf.mxu0
      %v3338 = vadd.f32 %v3164, %v3337
      %v3339 = vpop.f32.mrf.mxu0
      %v3340 = vadd.f32 %v3164, %v3339
      %3341 = vmatmul.bf16.gmra.mxu0 %v3280
      %v3342 = vpop.f32.mrf.mxu0
      %v3343 = vadd.f32 %v3164, %v3342
      %v3344 = vpop.f32.mrf.mxu0
      %v3345 = vadd.f32 %v3164, %v3344
      %3346 = vmatmul.bf16.gmra.mxu0 %v3283
      %v3347 = vpop.f32.mrf.mxu0
      %v3348 = vadd.f32 %v3164, %v3347
      %v3349 = vpop.f32.mrf.mxu0
      %v3350 = vadd.f32 %v3164, %v3349
      %3351 = vmatmul.bf16.gmra.mxu0 %v3286
      %v3352 = vpop.f32.mrf.mxu0
      %v3353 = vadd.f32 %v3164, %v3352
      %v3354 = vpop.f32.mrf.mxu0
      %v3355 = vadd.f32 %v3164, %v3354
      %3356 = vmatmul.bf16.gmra.mxu0 %v3289
      %v3357 = vpop.f32.mrf.mxu0
      %v3358 = vadd.f32 %v3164, %v3357
      %v3359 = vpop.f32.mrf.mxu0
      %v3360 = vadd.f32 %v3164, %v3359
      %3361 = vmatmul.bf16.gmra.mxu0 %v3292
      %v3362 = vpop.f32.mrf.mxu0
      %v3363 = vadd.f32 %v3164, %v3362
      %v3364 = vpop.f32.mrf.mxu0
      %v3365 = vadd.f32 %v3164, %v3364
      %3366 = vmatmul.bf16.gmra.mxu0 %v3295
      %v3367 = vpop.f32.mrf.mxu0
      %v3368 = vadd.f32 %v3164, %v3367
      %v3369 = vpop.f32.mrf.mxu0
      %v3370 = vadd.f32 %v3164, %v3369
      %3371 = vmatmul.bf16.gmra.mxu0 %v3298
      %v3372 = vpop.f32.mrf.mxu0
      %v3373 = vadd.f32 %v3164, %v3372
      %v3374 = vpop.f32.mrf.mxu0
      %v3375 = vadd.f32 %v3164, %v3374
      %3376 = vmatmul.bf16.gmra.mxu0 %v3301
      %v3377 = vpop.f32.mrf.mxu0
      %v3378 = vadd.f32 %v3164, %v3377
      %v3379 = vpop.f32.mrf.mxu0
      %v3380 = vadd.f32 %v3164, %v3379
      %3381 = vmatmul.bf16.gmra.mxu0 %v3304
      %v3382 = vpop.f32.mrf.mxu0
      %v3383 = vadd.f32 %v3164, %v3382
      %v3384 = vpop.f32.mrf.mxu0
      %v3385 = vadd.f32 %v3164, %v3384
      %3386 = vmatmul.bf16.gmra.mxu0 %v3307
      %v3387 = vpop.f32.mrf.mxu0
      %v3388 = vadd.f32 %v3164, %v3387
      %v3389 = vpop.f32.mrf.mxu0
      %v3390 = vadd.f32 %v3164, %v3389
      %3391 = vmatmul.bf16.gmra.mxu0 %v3310
      %v3392 = vpop.f32.mrf.mxu0
      %v3393 = vadd.f32 %v3164, %v3392
      %v3394 = vpop.f32.mrf.mxu0
      %v3395 = vadd.f32 %v3164, %v3394
      %3396 = vmatmul.bf16.gmra.mxu0 %v3313
      %v3397 = vpop.f32.mrf.mxu0
      %v3398 = vadd.f32 %v3164, %v3397
      %v3399 = vpop.f32.mrf.mxu0
      %v3400 = vadd.f32 %v3164, %v3399
      %3401 = vmatmul.bf16.gmra.mxu0 %v3316
      %v3402 = vpop.f32.mrf.mxu0
      %v3403 = vadd.f32 %v3164, %v3402
      %v3404 = vpop.f32.mrf.mxu0
      %v3405 = vadd.f32 %v3164, %v3404
      %3406 = vdwg.mxu0
      %v3407 = vpack.c.bf16 %v3328, %v3328
      %v3408 = vpack.c.bf16 %v3330, %v3330
      %v3409 = vpack.c.bf16 %v3333, %v3333
      %v3410 = vpack.c.bf16 %v3335, %v3335
      %v3411 = vpack.c.bf16 %v3338, %v3338
      %v3412 = vpack.c.bf16 %v3340, %v3340
      %v3413 = vpack.c.bf16 %v3343, %v3343
      %v3414 = vpack.c.bf16 %v3345, %v3345
      %v3415 = vpack.c.bf16 %v3348, %v3348
      %v3416 = vpack.c.bf16 %v3350, %v3350
      %v3417 = vpack.c.bf16 %v3353, %v3353
      %v3418 = vpack.c.bf16 %v3355, %v3355
      %v3419 = vpack.c.bf16 %v3358, %v3358
      %v3420 = vpack.c.bf16 %v3360, %v3360
      %v3421 = vpack.c.bf16 %v3363, %v3363
      %v3422 = vpack.c.bf16 %v3365, %v3365
      %v3423 = vpack.c.bf16 %v3368, %v3368
      %v3424 = vpack.c.bf16 %v3370, %v3370
      %v3425 = vpack.c.bf16 %v3373, %v3373
      %v3426 = vpack.c.bf16 %v3375, %v3375
      %v3427 = vpack.c.bf16 %v3378, %v3378
      %v3428 = vpack.c.bf16 %v3380, %v3380
      %v3429 = vpack.c.bf16 %v3383, %v3383
      %v3430 = vpack.c.bf16 %v3385, %v3385
      %v3431 = vpack.c.bf16 %v3388, %v3388
      %v3432 = vpack.c.bf16 %v3390, %v3390
      %v3433 = vpack.c.bf16 %v3393, %v3393
      %v3434 = vpack.c.bf16 %v3395, %v3395
      %v3435 = vpack.c.bf16 %v3398, %v3398
      %v3436 = vpack.c.bf16 %v3400, %v3400
      %v3437 = vpack.c.bf16 %v3403, %v3403
      %v3438 = vpack.c.bf16 %v3405, %v3405
      %vm3439 = vcmask 519168
      %3440 = vst.msk [vmem:[%s258] sm:$0xf] %vm3439, %v3407
      %3441 = vst.msk [vmem:[%s258 + $0x4] sm:$0xf] %vm3439, %v3408
      %3442 = vst.msk [vmem:[%s258 + $0x8] sm:$0xf] %vm3439, %v3409
      %3443 = vst.msk [vmem:[%s258 + $0xc] sm:$0xf] %vm3439, %v3410
      %3444 = vst.msk [vmem:[%s258 + $0x10] sm:$0xf] %vm3439, %v3411
      %3445 = vst.msk [vmem:[%s258 + $0x14] sm:$0xf] %vm3439, %v3412
      %3446 = vst.msk [vmem:[%s258 + $0x18] sm:$0xf] %vm3439, %v3413
      %3447 = vst.msk [vmem:[%s258 + $0x1c] sm:$0xf] %vm3439, %v3414
      %3448 = vst.msk [vmem:[%s258 + $0x20] sm:$0xf] %vm3439, %v3415
      %3449 = vst.msk [vmem:[%s258 + $0x24] sm:$0xf] %vm3439, %v3416
      %3450 = vst.msk [vmem:[%s258 + $0x28] sm:$0xf] %vm3439, %v3417
      %3451 = vst.msk [vmem:[%s258 + $0x2c] sm:$0xf] %vm3439, %v3418
      %3452 = vst.msk [vmem:[%s258 + $0x30] sm:$0xf] %vm3439, %v3419
      %3453 = vst.msk [vmem:[%s258 + $0x34] sm:$0xf] %vm3439, %v3420
      %3454 = vst.msk [vmem:[%s258 + $0x38] sm:$0xf] %vm3439, %v3421
      %3455 = vst.msk [vmem:[%s258 + $0x3c] sm:$0xf] %vm3439, %v3422
      %3456 = vst.msk [vmem:[%s258 + $0x40] sm:$0xf] %vm3439, %v3423
      %3457 = vst.msk [vmem:[%s258 + $0x44] sm:$0xf] %vm3439, %v3424
      %3458 = vst.msk [vmem:[%s258 + $0x48] sm:$0xf] %vm3439, %v3425
      %3459 = vst.msk [vmem:[%s258 + $0x4c] sm:$0xf] %vm3439, %v3426
      %3460 = vst.msk [vmem:[%s258 + $0x50] sm:$0xf] %vm3439, %v3427
      %3461 = vst.msk [vmem:[%s258 + $0x54] sm:$0xf] %vm3439, %v3428
      %3462 = vst.msk [vmem:[%s258 + $0x58] sm:$0xf] %vm3439, %v3429
      %3463 = vst.msk [vmem:[%s258 + $0x5c] sm:$0xf] %vm3439, %v3430
      %3464 = vst.msk [vmem:[%s258 + $0x60] sm:$0xf] %vm3439, %v3431
      %3465 = vst.msk [vmem:[%s258 + $0x64] sm:$0xf] %vm3439, %v3432
      %3466 = vst.msk [vmem:[%s258 + $0x68] sm:$0xf] %vm3439, %v3433
      %3467 = vst.msk [vmem:[%s258 + $0x6c] sm:$0xf] %vm3439, %v3434
      %3468 = vst.msk [vmem:[%s258 + $0x70] sm:$0xf] %vm3439, %v3435
      %3469 = vst.msk [vmem:[%s258 + $0x74] sm:$0xf] %vm3439, %v3436
      %3470 = vst.msk [vmem:[%s258 + $0x78] sm:$0xf] %vm3439, %v3437
      %3471 = vst.msk [vmem:[%s258 + $0x7c] sm:$0xf] %vm3439, %v3438
      %s3472 = smul.u32 4, %s17
      %p3473 = scmp.lt.s32.totalorder %s3472, 7
      %s3474 = scalar_select %p3473, %s3472, 7
      %s3475 = smul.addr %s3474, 8
      %s3476 = smul.addr %s3475, 4
      %s3477 = scalar_lea.vmem %s6, %s3476
      // Predicated region
      $region45: #{_lambda_.1} parent=43 // pred_check
        %p3478 = pneg %p166
      $region46: #{_lambda_.1} parent=43 // pred_check_branch
        %3480 = sbr.rel (%p3478) target = $region48
      $region47: #{_lambda_.1} parent=43 // pred_region
        %s3481 = smul.u32 4, %s17
      $region48: #{_lambda_.1} parent=43 // pred_fallthru
        _
    $region44: #{_lambda_.1} parent=5 // pred_fallthru
      _
    %p3482 = scmp.le.s32.totalorder 2, %s12
    // Predicated region
    $region49: #{_lambda_.1} parent=5 // pred_check
      %p3483 = pneg %p3482
    $region50: #{_lambda_.1} parent=5 // pred_check_branch
      %3485 = sbr.rel (%p3483) target = $region52
    $region51: #{_lambda_.1} parent=5 // pred_region
      %s3486 = ssub.s32 %s12, 2
      // Predicated region
      $region53: #{_lambda_.1} parent=51 // pred_check
        %p3487 = pneg %p172
      $region54: #{_lambda_.1} parent=51 // pred_check_branch
        %3489 = sbr.rel (%p3487) target = $region56
      $region55: #{_lambda_.1} parent=51 // pred_region
        %s3490 = smul.u32 4, %s18
        %p3491 = scmp.lt.s32.totalorder %s3490, 7
        %s3492 = scalar_select %p3491, %s3490, 7
        %s3493 = smul.addr %s3492, 8
        %s3494 = smul.addr %s3493, 4
        %s3495 = scalar_lea.vmem %s6, %s3494
      $region56: #{_lambda_.1} parent=51 // pred_fallthru
        _
    $region52: #{_lambda_.1} parent=5 // pred_fallthru
      _
  $region6: #{_lambda_.1} parent=0 // loop_footer
    %s16 = sadd.s32 1, %s12
  $region7: #{_lambda_.1} parent=0 // loop_footer_branch
    %11 = sbr.rel target = $region3
  $region8: #{_lambda_.1} parent=0 // loop_exit
    _

</llo_original>
